<compile_context>
chip_gen: v7x
topology: tpu7x:2x2x1
jax: 0.10.0
libtpu: 0.0.40
codegen_flags: <defaults>
</compile_context>

<pallas_src>
import functools
import math

import jax
import jax.numpy as jnp
from jax import lax
from jax.experimental import pallas as pl
from jax.experimental.pallas import tpu as pltpu


# ----------------------------- in-kernel helpers ------------------------------

def _layernorm(z, g, b, eps=1e-5):
    """PyTorch LayerNorm semantics (biased variance), f32 math."""
    mu = jnp.mean(z, axis=-1, keepdims=True)
    var = jnp.mean((z - mu) ** 2, axis=-1, keepdims=True)
    return (z - mu) * lax.rsqrt(var + eps) * g + b


def _attention(x_q, wqkv3, wo3, n_heads, *, causal, x_kv=None):
    """Multi-head attention producing a lane-dense [L, D] slab.

    x_q, x_kv : [L, D] f32 activations (x_kv=None => self-attention).
    wqkv3     : [3H, D, Dh] bf16 (Q heads | K heads | V heads); the 1/sqrt(Dh)
                score scale is folded into the Q heads at init.
    wo3       : [H, Dh, D] bf16 output projection.
    Heads are a leading batch dim of 3-D contractions (no per-head slicing,
    no lane-dim concatenate).
    """
    L, D = x_q.shape
    H = n_heads
    xq_b = x_q.astype(jnp.bfloat16)

    if x_kv is None:
        # Fused Q/K/V projection from one stream (no duplicate kv DMA / compute).
        xb = jnp.broadcast_to(xq_b[None], (3 * H, L, D))
        qkv3 = jnp.einsum('gld,gde->gle', xb, wqkv3,
                          preferred_element_type=jnp.float32)           # [3H, L, Dh]
        q3, k3, v3 = qkv3[:H], qkv3[H:2 * H], qkv3[2 * H:]
    else:
        xkv_b = x_kv.astype(jnp.bfloat16)
        q3 = jnp.einsum('gld,gde->gle', jnp.broadcast_to(xq_b[None], (H, L, D)),
                        wqkv3[:H], preferred_element_type=jnp.float32)  # [H, L, Dh]
        kv3 = jnp.einsum('gld,gde->gle', jnp.broadcast_to(xkv_b[None], (2 * H, L, D)),
                         wqkv3[H:], preferred_element_type=jnp.float32)  # [2H, L, Dh]
        k3, v3 = kv3[:H], kv3[H:]

    # Scores (scale already folded into Q weights), softmax in f32.
    s = jnp.einsum('hqd,hkd->hqk', q3.astype(jnp.bfloat16), k3.astype(jnp.bfloat16),
                   preferred_element_type=jnp.float32)                   # [H, L, L]
    if causal:
        row = lax.broadcasted_iota(jnp.int32, (L, L), 0)
        col = lax.broadcasted_iota(jnp.int32, (L, L), 1)
        s = jnp.where((col > row)[None], -1e30, s)   # finite fill avoids NaN risk

    m = jnp.max(s, axis=-1, keepdims=True)
    p = jnp.exp(s - m)
    p = p * pl.reciprocal(jnp.sum(p, axis=-1, keepdims=True), approx=True)

    ctx = jnp.einsum('hqk,hkd->hqd', p.astype(jnp.bfloat16), v3.astype(jnp.bfloat16),
                     preferred_element_type=jnp.float32)                 # [H, L, Dh]
    out_h = jnp.einsum('hqd,hde->hqe', ctx.astype(jnp.bfloat16), wo3,
                       preferred_element_type=jnp.float32)               # [H, L, D]
    return jnp.sum(out_h, axis=0)                                        # [L, D] f32


def _ffn(x, w1, b1, w2, b2):
    """Linear -> ReLU -> Linear (dropout = identity). bf16 MXU, f32 accum/epilogue."""
    h = jnp.dot(x.astype(jnp.bfloat16), w1, preferred_element_type=jnp.float32) + b1
    h = jnp.maximum(h, 0.0)
    return jnp.dot(h.astype(jnp.bfloat16), w2, preferred_element_type=jnp.float32) + b2


# ----------------------------- fused layer kernels ------------------------------

def _encoder_layer_kernel(x_ref, wqkv_ref, wo_ref, g1_ref, be1_ref,
                          w1_ref, b1_ref, w2_ref, b2_ref, g2_ref, be2_ref,
                          o_ref, *, n_heads):
    """EncoderLayer: LN(x + MHA(x)) -> LN(. + FFN(.)) for one batch element."""
    x = x_ref[0]                                                         # [L, D] f32
    a = _attention(x, wqkv_ref[...], wo_ref[...], n_heads, causal=False)
    x = _layernorm(x + a, g1_ref[...], be1_ref[...])
    y = _ffn(x, w1_ref[...], b1_ref[...], w2_ref[...], b2_ref[...])
    o_ref[0] = _layernorm(x + y, g2_ref[...], be2_ref[...])


def _decoder_layer_kernel(x_ref, wqkv_m_ref, wo_m_ref, g1_ref, be1_ref,
                          wqkv_c_ref, wo_c_ref, g2_ref, be2_ref,
                          w1_ref, b1_ref, w2_ref, b2_ref, g3_ref, be3_ref,
                          o_ref, *, n_heads):
    """DecoderLayer (reference calls layer(x, kv=x): cross-attn K/V = layer input)."""
    x_in = x_ref[0]                                                      # [L, D] f32
    a1 = _attention(x_in, wqkv_m_ref[...], wo_m_ref[...], n_heads, causal=True)
    x = _layernorm(x_in + a1, g1_ref[...], be1_ref[...])
    a2 = _attention(x, wqkv_c_ref[...], wo_c_ref[...], n_heads,
                    causal=False, x_kv=x_in)
    x = _layernorm(x + a2, g2_ref[...], be2_ref[...])
    y = _ffn(x, w1_ref[...], b1_ref[...], w2_ref[...], b2_ref[...])
    o_ref[0] = _layernorm(x + y, g3_ref[...], be3_ref[...])


# ----------------------------- pallas_call wrappers ------------------------------

def _act_spec(L, D):
    return pl.BlockSpec((1, L, D), lambda b: (b, 0, 0))


def _w_spec(arr):
    # Grid-invariant weight/bias: full block, constant index map, single-buffered.
    zeros = (0,) * arr.ndim
    return pl.BlockSpec(arr.shape, lambda b, _z=zeros: _z,
                        pipeline_mode=pl.Buffered(1))


def pallas_encoder_layer(x, p, *, n_heads):
    B, L, D = x.shape
    weights = (p["attn_wqkv"], p["attn_wo"], p["ln1_g"], p["ln1_b"],
               p["ffn_w1"], p["ffn_b1"], p["ffn_w2"], p["ffn_b2"],
               p["ln2_g"], p["ln2_b"])
    return pl.pallas_call(
        functools.partial(_encoder_layer_kernel, n_heads=n_heads),
        out_shape=jax.ShapeDtypeStruct((B, L, D), jnp.float32),
        grid=(B,),
        in_specs=[_act_spec(L, D)] + [_w_spec(w) for w in weights],
        out_specs=_act_spec(L, D),
        compiler_params=pltpu.CompilerParams(dimension_semantics=("parallel",)),
    )(x, *weights)


def pallas_decoder_layer(x, p, *, n_heads):
    B, L, D = x.shape
    weights = (p["mask_wqkv"], p["mask_wo"], p["ln1_g"], p["ln1_b"],
               p["cross_wqkv"], p["cross_wo"], p["ln2_g"], p["ln2_b"],
               p["ffn_w1"], p["ffn_b1"], p["ffn_w2"], p["ffn_b2"],
               p["ln3_g"], p["ln3_b"])
    return pl.pallas_call(
        functools.partial(_decoder_layer_kernel, n_heads=n_heads),
        out_shape=jax.ShapeDtypeStruct((B, L, D), jnp.float32),
        grid=(B,),
        in_specs=[_act_spec(L, D)] + [_w_spec(w) for w in weights],
        out_specs=_act_spec(L, D),
        compiler_params=pltpu.CompilerParams(dimension_semantics=("parallel",)),
    )(x, *weights)


# ----------------------------- model (glue) ------------------------------

def positional_encoding(dim, max_pos=512):
    # Matches the reference PositionalEncoding: freq = 10000 ** (i / dim),
    # interleaved sin/cos along the feature dimension.
    pos = jnp.arange(max_pos, dtype=jnp.float32)
    freq = jnp.arange(dim // 2, dtype=jnp.float32) / dim
    freq = jnp.exp(freq * jnp.log(10000.0))
    x = pos[:, None] / freq[None, :]                   # [max_pos, dim//2]
    pe = jnp.stack([jnp.sin(x), jnp.cos(x)], axis=-1)  # [max_pos, dim//2, 2]
    return pe.reshape(max_pos, dim)


@functools.partial(jax.jit, static_argnames=("n_heads",))
def transformer_forward(params, enc_x, dec_x, *, n_heads):
    D = enc_x.shape[-1]
    pe = positional_encoding(D)
    enc_x = enc_x + pe[: enc_x.shape[1]][None]        # enc dropout = identity
    for lp in params["encoder"]:
        enc_x = pallas_encoder_layer(enc_x, lp, n_heads=n_heads)
    dec_x = dec_x + pe[: dec_x.shape[1]][None]        # dec dropout = identity
    for lp in params["decoder"]:
        dec_x = pallas_decoder_layer(dec_x, lp, n_heads=n_heads)
    return dec_x


# ----------------------------- parameter init ------------------------------

def _lin(key, din, dout):
    return (jax.random.normal(key, (din, dout), jnp.float32) / math.sqrt(din)).astype(jnp.float32)


def _init_mha(key, dim, n_heads):
    """Returns (wqkv3 [3H, D, Dh] bf16 with scale folded into Q, wo3 [H, Dh, D] bf16)."""
    dh = dim // n_heads
    ks = jax.random.split(key, 4)
    wq = _lin(ks[0], dim, dim) * (1.0 / math.sqrt(dh))   # fold 1/sqrt(Dh) into Q
    wk = _lin(ks[1], dim, dim)
    wv = _lin(ks[2], dim, dim)
    wo = _lin(ks[3], dim, dim)

    def heads_first(w):                                  # [D, H*Dh] -> [H, D, Dh]
        return jnp.transpose(w.reshape(dim, n_heads, dh), (1, 0, 2))

    wqkv3 = jnp.concatenate([heads_first(wq), heads_first(wk), heads_first(wv)], axis=0)
    wo3 = wo.reshape(n_heads, dh, dim)                   # row h*Dh+d -> wo3[h, d, :]
    return wqkv3.astype(jnp.bfloat16), wo3.astype(jnp.bfloat16)


def _init_ln(dim):
    return jnp.ones((1, dim), jnp.float32), jnp.zeros((1, dim), jnp.float32)


def _init_ffn(key, dim):
    ks = jax.random.split(key, 2)
    ff = dim * 4
    return {"w1": _lin(ks[0], dim, ff).astype(jnp.bfloat16),
            "b1": jnp.zeros((1, ff), jnp.float32),
            "w2": _lin(ks[1], ff, dim).astype(jnp.bfloat16),
            "b2": jnp.zeros((1, dim), jnp.float32)}


def init_params(key, n_layers, dim, n_heads):
    enc, dec = [], []
    for _ in range(n_layers):
        key, k1, k2 = jax.random.split(key, 3)
        wqkv, wo = _init_mha(k1, dim, n_heads)
        ffn = _init_ffn(k2, dim)
        g1, b1 = _init_ln(dim)
        g2, b2 = _init_ln(dim)
        enc.append({"attn_wqkv": wqkv, "attn_wo": wo,
                    "ln1_g": g1, "ln1_b": b1,
                    "ffn_w1": ffn["w1"], "ffn_b1": ffn["b1"],
                    "ffn_w2": ffn["w2"], "ffn_b2": ffn["b2"],
                    "ln2_g": g2, "ln2_b": b2})
    for _ in range(n_layers):
        key, k1, k2, k3 = jax.random.split(key, 4)
        m_wqkv, m_wo = _init_mha(k1, dim, n_heads)
        c_wqkv, c_wo = _init_mha(k2, dim, n_heads)
        ffn = _init_ffn(k3, dim)
        g1, b1 = _init_ln(dim)
        g2, b2 = _init_ln(dim)
        g3, b3 = _init_ln(dim)
        dec.append({"mask_wqkv": m_wqkv, "mask_wo": m_wo,
                    "ln1_g": g1, "ln1_b": b1,
                    "cross_wqkv": c_wqkv, "cross_wo": c_wo,
                    "ln2_g": g2, "ln2_b": b2,
                    "ffn_w1": ffn["w1"], "ffn_b1": ffn["b1"],
                    "ffn_w2": ffn["w2"], "ffn_b2": ffn["b2"],
                    "ln3_g": g3, "ln3_b": b3})
    return {"encoder": enc, "decoder": dec}


# ----------------------------- main ------------------------------

if __name__ == "__main__":
    n_layers = 2
    dim = 128          # lane-dense feature dim (multiple of 128) per review
    n_heads = 4
    B, L = 2, 8

    root = jax.random.PRNGKey(0)
    k_params, k_enc, k_dec = jax.random.split(root, 3)
    params = init_params(k_params, n_layers, dim, n_heads)

    enc_x = jax.random.normal(k_enc, (B, L, dim), jnp.float32)
    dec_x = jax.random.normal(k_dec, (B, L, dim), jnp.float32)

    out = transformer_forward(params, enc_x, dec_x, n_heads=n_heads)
    out = jax.block_until_ready(out)
    assert out.shape == (B, L, dim) and out.dtype == jnp.float32
    assert bool(jnp.all(jnp.isfinite(out)))
    print("KERNEL_OK")
</pallas_src>

<mosaic_0001>
module attributes {stable_mosaic.version = 11 : i64} {
  func.func @_decoder_layer_kernel(%arg0: i32, %arg1: memref<1x8x128xf32, #tpu.memory_space<vmem>>, %arg2: memref<12x128x32xbf16, #tpu.memory_space<vmem>>, %arg3: memref<4x32x128xbf16, #tpu.memory_space<vmem>>, %arg4: memref<1x128xf32, #tpu.memory_space<vmem>>, %arg5: memref<1x128xf32, #tpu.memory_space<vmem>>, %arg6: memref<12x128x32xbf16, #tpu.memory_space<vmem>>, %arg7: memref<4x32x128xbf16, #tpu.memory_space<vmem>>, %arg8: memref<1x128xf32, #tpu.memory_space<vmem>>, %arg9: memref<1x128xf32, #tpu.memory_space<vmem>>, %arg10: memref<128x512xbf16, #tpu.memory_space<vmem>>, %arg11: memref<1x512xf32, #tpu.memory_space<vmem>>, %arg12: memref<512x128xbf16, #tpu.memory_space<vmem>>, %arg13: memref<1x128xf32, #tpu.memory_space<vmem>>, %arg14: memref<1x128xf32, #tpu.memory_space<vmem>>, %arg15: memref<1x128xf32, #tpu.memory_space<vmem>>, %arg16: memref<1x8x128xf32, #tpu.memory_space<vmem>>) attributes {dimension_semantics = [#tpu.dimension_semantics<parallel>], iteration_bounds = array<i64: 2>, scalar_prefetch = 0 : i64, scratch_operands = 0 : i64, tpu.core_type = #tpu.core_type<tc>, window_params = [{transform_indices = @transform_0, window_bounds = array<i64: 1, 8, 128>}, {pipeline_mode = #tpu.pipeline_mode<synchronous>, transform_indices = @transform_1, window_bounds = array<i64: 12, 128, 32>}, {pipeline_mode = #tpu.pipeline_mode<synchronous>, transform_indices = @transform_2, window_bounds = array<i64: 4, 32, 128>}, {pipeline_mode = #tpu.pipeline_mode<synchronous>, transform_indices = @transform_3, window_bounds = array<i64: 1, 128>}, {pipeline_mode = #tpu.pipeline_mode<synchronous>, transform_indices = @transform_4, window_bounds = array<i64: 1, 128>}, {pipeline_mode = #tpu.pipeline_mode<synchronous>, transform_indices = @transform_5, window_bounds = array<i64: 12, 128, 32>}, {pipeline_mode = #tpu.pipeline_mode<synchronous>, transform_indices = @transform_6, window_bounds = array<i64: 4, 32, 128>}, {pipeline_mode = #tpu.pipeline_mode<synchronous>, transform_indices = @transform_7, window_bounds = array<i64: 1, 128>}, {pipeline_mode = #tpu.pipeline_mode<synchronous>, transform_indices = @transform_8, window_bounds = array<i64: 1, 128>}, {pipeline_mode = #tpu.pipeline_mode<synchronous>, transform_indices = @transform_9, window_bounds = array<i64: 128, 512>}, {pipeline_mode = #tpu.pipeline_mode<synchronous>, transform_indices = @transform_10, window_bounds = array<i64: 1, 512>}, {pipeline_mode = #tpu.pipeline_mode<synchronous>, transform_indices = @transform_11, window_bounds = array<i64: 512, 128>}, {pipeline_mode = #tpu.pipeline_mode<synchronous>, transform_indices = @transform_12, window_bounds = array<i64: 1, 128>}, {pipeline_mode = #tpu.pipeline_mode<synchronous>, transform_indices = @transform_13, window_bounds = array<i64: 1, 128>}, {pipeline_mode = #tpu.pipeline_mode<synchronous>, transform_indices = @transform_14, window_bounds = array<i64: 1, 128>}, {transform_indices = @transform_15, window_bounds = array<i64: 1, 8, 128>}]} {
    %c0 = arith.constant 0 : index
    %c0_0 = arith.constant 0 : index
    %c0_1 = arith.constant 0 : index
    %0 = vector.load %arg1[%c0, %c0_0, %c0_1] : memref<1x8x128xf32, #tpu.memory_space<vmem>>, vector<1x8x128xf32>
    %1 = vector.shape_cast %0 : vector<1x8x128xf32> to vector<8x128xf32>
    %c0_2 = arith.constant 0 : index
    %c0_3 = arith.constant 0 : index
    %c0_4 = arith.constant 0 : index
    %2 = vector.load %arg2[%c0_2, %c0_3, %c0_4] : memref<12x128x32xbf16, #tpu.memory_space<vmem>>, vector<12x128x32xbf16>
    %c0_5 = arith.constant 0 : index
    %c0_6 = arith.constant 0 : index
    %c0_7 = arith.constant 0 : index
    %3 = vector.load %arg3[%c0_5, %c0_6, %c0_7] : memref<4x32x128xbf16, #tpu.memory_space<vmem>>, vector<4x32x128xbf16>
    %4 = arith.truncf %1 : vector<8x128xf32> to vector<8x128xbf16>
    %5 = vector.shape_cast %4 : vector<8x128xbf16> to vector<1x8x128xbf16>
    %6 = vector.shape_cast %5 : vector<1x8x128xbf16> to vector<1x8x128xbf16>
    %7 = vector.broadcast %6 : vector<1x8x128xbf16> to vector<12x8x128xbf16>
    "tpu.trace_start"() <{level = 10 : i32, message = "gld,gde->gle"}> : () -> ()
    %cst = arith.constant dense<0.000000e+00> : vector<12x8x32xf32>
    %8 = tpu.matmul %7, %2, %cst {dimension_numbers = #tpu.dot_dimension_numbers<[2], [1], [1], [2], [0, 0, 0, 1, 1, 2], [0], [0]>} : vector<12x8x128xbf16>, vector<12x128x32xbf16>, vector<12x8x32xf32> -> vector<12x8x32xf32>
    "tpu.trace_stop"() : () -> ()
    %9 = vector.extract_strided_slice %8 {offsets = [0, 0, 0], sizes = [4, 8, 32], strides = [1, 1, 1]} : vector<12x8x32xf32> to vector<4x8x32xf32>
    %10 = vector.extract_strided_slice %8 {offsets = [4, 0, 0], sizes = [4, 8, 32], strides = [1, 1, 1]} : vector<12x8x32xf32> to vector<4x8x32xf32>
    %11 = vector.extract_strided_slice %8 {offsets = [8, 0, 0], sizes = [4, 8, 32], strides = [1, 1, 1]} : vector<12x8x32xf32> to vector<4x8x32xf32>
    %12 = arith.truncf %9 : vector<4x8x32xf32> to vector<4x8x32xbf16>
    %13 = arith.truncf %10 : vector<4x8x32xf32> to vector<4x8x32xbf16>
    "tpu.trace_start"() <{level = 10 : i32, message = "hqd,hkd->hqk"}> : () -> ()
    %cst_8 = arith.constant dense<0.000000e+00> : vector<4x8x8xf32>
    %14 = tpu.matmul %12, %13, %cst_8 {dimension_numbers = #tpu.dot_dimension_numbers<[2], [2], [1], [1], [0, 0, 0, 1, 1, 1], [0], [0]>} : vector<4x8x32xbf16>, vector<4x8x32xbf16>, vector<4x8x8xf32> -> vector<4x8x8xf32>
    "tpu.trace_stop"() : () -> ()
    %15 = tpu.iota {dimensions = array<i32: 0>} : vector<8x8xi32>
    %16 = tpu.iota {dimensions = array<i32: 1>} : vector<8x8xi32>
    %17 = arith.cmpi sgt, %16, %15 : vector<8x8xi32>
    %18 = vector.shape_cast %17 : vector<8x8xi1> to vector<1x8x8xi1>
    %cst_9 = arith.constant -1.000000e+30 : f32
    %19 = vector.shape_cast %18 : vector<1x8x8xi1> to vector<1x8x8xi1>
    %20 = vector.broadcast %19 : vector<1x8x8xi1> to vector<4x8x8xi1>
    %21 = vector.broadcast %cst_9 : f32 to vector<4x8x8xf32>
    %22 = arith.select %20, %21, %14 : vector<4x8x8xi1>, vector<4x8x8xf32>
    %cst_10 = arith.constant dense<0xFF800000> : vector<4x8xf32>
    %23 = vector.multi_reduction <maximumf>, %22, %cst_10 [2] : vector<4x8x8xf32> to vector<4x8xf32>
    %24 = vector.shape_cast %23 : vector<4x8xf32> to vector<4x8x1xf32>
    %25 = vector.broadcast %24 : vector<4x8x1xf32> to vector<4x8x8xf32>
    %26 = arith.subf %22, %25 : vector<4x8x8xf32>
    %27 = math.exp %26 : vector<4x8x8xf32>
    %cst_11 = arith.constant dense<0.000000e+00> : vector<4x8xf32>
    %28 = vector.multi_reduction <add>, %27, %cst_11 [2] : vector<4x8x8xf32> to vector<4x8xf32>
    %29 = vector.shape_cast %28 : vector<4x8xf32> to vector<4x8x1xf32>
    %30 = tpu.reciprocal %29 {approx = true} : vector<4x8x1xf32> -> vector<4x8x1xf32>
    %31 = vector.broadcast %30 : vector<4x8x1xf32> to vector<4x8x8xf32>
    %32 = arith.mulf %27, %31 : vector<4x8x8xf32>
    %33 = arith.truncf %32 : vector<4x8x8xf32> to vector<4x8x8xbf16>
    %34 = arith.truncf %11 : vector<4x8x32xf32> to vector<4x8x32xbf16>
    "tpu.trace_start"() <{level = 10 : i32, message = "hqk,hkd->hqd"}> : () -> ()
    %cst_12 = arith.constant dense<0.000000e+00> : vector<4x8x32xf32>
    %35 = tpu.matmul %33, %34, %cst_12 {dimension_numbers = #tpu.dot_dimension_numbers<[2], [1], [1], [2], [0, 0, 0, 1, 1, 2], [0], [0]>} : vector<4x8x8xbf16>, vector<4x8x32xbf16>, vector<4x8x32xf32> -> vector<4x8x32xf32>
    "tpu.trace_stop"() : () -> ()
    %36 = arith.truncf %35 : vector<4x8x32xf32> to vector<4x8x32xbf16>
    "tpu.trace_start"() <{level = 10 : i32, message = "hqd,hde->hqe"}> : () -> ()
    %cst_13 = arith.constant dense<0.000000e+00> : vector<4x8x128xf32>
    %37 = tpu.matmul %36, %3, %cst_13 {dimension_numbers = #tpu.dot_dimension_numbers<[2], [1], [1], [2], [0, 0, 0, 1, 1, 2], [0], [0]>} : vector<4x8x32xbf16>, vector<4x32x128xbf16>, vector<4x8x128xf32> -> vector<4x8x128xf32>
    "tpu.trace_stop"() : () -> ()
    %cst_14 = arith.constant dense<0.000000e+00> : vector<8x128xf32>
    %38 = vector.multi_reduction <add>, %37, %cst_14 [0] : vector<4x8x128xf32> to vector<8x128xf32>
    %39 = arith.addf %1, %38 : vector<8x128xf32>
    %c0_15 = arith.constant 0 : index
    %c0_16 = arith.constant 0 : index
    %40 = vector.load %arg4[%c0_15, %c0_16] : memref<1x128xf32, #tpu.memory_space<vmem>>, vector<1x128xf32>
    %c0_17 = arith.constant 0 : index
    %c0_18 = arith.constant 0 : index
    %41 = vector.load %arg5[%c0_17, %c0_18] : memref<1x128xf32, #tpu.memory_space<vmem>>, vector<1x128xf32>
    %cst_19 = arith.constant dense<0.000000e+00> : vector<8xf32>
    %42 = vector.multi_reduction <add>, %39, %cst_19 [1] : vector<8x128xf32> to vector<8xf32>
    %43 = vector.shape_cast %42 : vector<8xf32> to vector<8x1xf32>
    %cst_20 = arith.constant 1.280000e+02 : f32
    %44 = vector.broadcast %cst_20 : f32 to vector<8x1xf32>
    %45 = arith.divf %43, %44 : vector<8x1xf32>
    %46 = vector.broadcast %45 : vector<8x1xf32> to vector<8x128xf32>
    %47 = arith.subf %39, %46 : vector<8x128xf32>
    %48 = arith.mulf %47, %47 : vector<8x128xf32>
    %cst_21 = arith.constant dense<0.000000e+00> : vector<8xf32>
    %49 = vector.multi_reduction <add>, %48, %cst_21 [1] : vector<8x128xf32> to vector<8xf32>
    %50 = vector.shape_cast %49 : vector<8xf32> to vector<8x1xf32>
    %cst_22 = arith.constant 1.280000e+02 : f32
    %51 = vector.broadcast %cst_22 : f32 to vector<8x1xf32>
    %52 = arith.divf %50, %51 : vector<8x1xf32>
    %53 = vector.broadcast %45 : vector<8x1xf32> to vector<8x128xf32>
    %54 = arith.subf %39, %53 : vector<8x128xf32>
    %cst_23 = arith.constant 9.99999974E-6 : f32
    %55 = vector.broadcast %cst_23 : f32 to vector<8x1xf32>
    %56 = arith.addf %52, %55 : vector<8x1xf32>
    %57 = math.rsqrt %56 : vector<8x1xf32>
    %58 = vector.broadcast %57 : vector<8x1xf32> to vector<8x128xf32>
    %59 = arith.mulf %54, %58 : vector<8x128xf32>
    %60 = vector.broadcast %40 : vector<1x128xf32> to vector<8x128xf32>
    %61 = arith.mulf %59, %60 : vector<8x128xf32>
    %62 = vector.broadcast %41 : vector<1x128xf32> to vector<8x128xf32>
    %63 = arith.addf %61, %62 : vector<8x128xf32>
    %c0_24 = arith.constant 0 : index
    %c0_25 = arith.constant 0 : index
    %c0_26 = arith.constant 0 : index
    %64 = vector.load %arg6[%c0_24, %c0_25, %c0_26] : memref<12x128x32xbf16, #tpu.memory_space<vmem>>, vector<12x128x32xbf16>
    %c0_27 = arith.constant 0 : index
    %c0_28 = arith.constant 0 : index
    %c0_29 = arith.constant 0 : index
    %65 = vector.load %arg7[%c0_27, %c0_28, %c0_29] : memref<4x32x128xbf16, #tpu.memory_space<vmem>>, vector<4x32x128xbf16>
    %66 = arith.truncf %63 : vector<8x128xf32> to vector<8x128xbf16>
    %67 = arith.truncf %1 : vector<8x128xf32> to vector<8x128xbf16>
    %68 = vector.shape_cast %66 : vector<8x128xbf16> to vector<1x8x128xbf16>
    %69 = vector.shape_cast %68 : vector<1x8x128xbf16> to vector<1x8x128xbf16>
    %70 = vector.broadcast %69 : vector<1x8x128xbf16> to vector<4x8x128xbf16>
    %71 = vector.extract_strided_slice %64 {offsets = [0, 0, 0], sizes = [4, 128, 32], strides = [1, 1, 1]} : vector<12x128x32xbf16> to vector<4x128x32xbf16>
    "tpu.trace_start"() <{level = 10 : i32, message = "gld,gde->gle"}> : () -> ()
    %cst_30 = arith.constant dense<0.000000e+00> : vector<4x8x32xf32>
    %72 = tpu.matmul %70, %71, %cst_30 {dimension_numbers = #tpu.dot_dimension_numbers<[2], [1], [1], [2], [0, 0, 0, 1, 1, 2], [0], [0]>} : vector<4x8x128xbf16>, vector<4x128x32xbf16>, vector<4x8x32xf32> -> vector<4x8x32xf32>
    "tpu.trace_stop"() : () -> ()
    %73 = vector.shape_cast %67 : vector<8x128xbf16> to vector<1x8x128xbf16>
    %74 = vector.shape_cast %73 : vector<1x8x128xbf16> to vector<1x8x128xbf16>
    %75 = vector.broadcast %74 : vector<1x8x128xbf16> to vector<8x8x128xbf16>
    %76 = vector.extract_strided_slice %64 {offsets = [4, 0, 0], sizes = [8, 128, 32], strides = [1, 1, 1]} : vector<12x128x32xbf16> to vector<8x128x32xbf16>
    "tpu.trace_start"() <{level = 10 : i32, message = "gld,gde->gle"}> : () -> ()
    %cst_31 = arith.constant dense<0.000000e+00> : vector<8x8x32xf32>
    %77 = tpu.matmul %75, %76, %cst_31 {dimension_numbers = #tpu.dot_dimension_numbers<[2], [1], [1], [2], [0, 0, 0, 1, 1, 2], [0], [0]>} : vector<8x8x128xbf16>, vector<8x128x32xbf16>, vector<8x8x32xf32> -> vector<8x8x32xf32>
    "tpu.trace_stop"() : () -> ()
    %78 = vector.extract_strided_slice %77 {offsets = [0, 0, 0], sizes = [4, 8, 32], strides = [1, 1, 1]} : vector<8x8x32xf32> to vector<4x8x32xf32>
    %79 = vector.extract_strided_slice %77 {offsets = [4, 0, 0], sizes = [4, 8, 32], strides = [1, 1, 1]} : vector<8x8x32xf32> to vector<4x8x32xf32>
    %80 = arith.truncf %72 : vector<4x8x32xf32> to vector<4x8x32xbf16>
    %81 = arith.truncf %78 : vector<4x8x32xf32> to vector<4x8x32xbf16>
    "tpu.trace_start"() <{level = 10 : i32, message = "hqd,hkd->hqk"}> : () -> ()
    %cst_32 = arith.constant dense<0.000000e+00> : vector<4x8x8xf32>
    %82 = tpu.matmul %80, %81, %cst_32 {dimension_numbers = #tpu.dot_dimension_numbers<[2], [2], [1], [1], [0, 0, 0, 1, 1, 1], [0], [0]>} : vector<4x8x32xbf16>, vector<4x8x32xbf16>, vector<4x8x8xf32> -> vector<4x8x8xf32>
    "tpu.trace_stop"() : () -> ()
    %cst_33 = arith.constant dense<0xFF800000> : vector<4x8xf32>
    %83 = vector.multi_reduction <maximumf>, %82, %cst_33 [2] : vector<4x8x8xf32> to vector<4x8xf32>
    %84 = vector.shape_cast %83 : vector<4x8xf32> to vector<4x8x1xf32>
    %85 = vector.broadcast %84 : vector<4x8x1xf32> to vector<4x8x8xf32>
    %86 = arith.subf %82, %85 : vector<4x8x8xf32>
    %87 = math.exp %86 : vector<4x8x8xf32>
    %cst_34 = arith.constant dense<0.000000e+00> : vector<4x8xf32>
    %88 = vector.multi_reduction <add>, %87, %cst_34 [2] : vector<4x8x8xf32> to vector<4x8xf32>
    %89 = vector.shape_cast %88 : vector<4x8xf32> to vector<4x8x1xf32>
    %90 = tpu.reciprocal %89 {approx = true} : vector<4x8x1xf32> -> vector<4x8x1xf32>
    %91 = vector.broadcast %90 : vector<4x8x1xf32> to vector<4x8x8xf32>
    %92 = arith.mulf %87, %91 : vector<4x8x8xf32>
    %93 = arith.truncf %92 : vector<4x8x8xf32> to vector<4x8x8xbf16>
    %94 = arith.truncf %79 : vector<4x8x32xf32> to vector<4x8x32xbf16>
    "tpu.trace_start"() <{level = 10 : i32, message = "hqk,hkd->hqd"}> : () -> ()
    %cst_35 = arith.constant dense<0.000000e+00> : vector<4x8x32xf32>
    %95 = tpu.matmul %93, %94, %cst_35 {dimension_numbers = #tpu.dot_dimension_numbers<[2], [1], [1], [2], [0, 0, 0, 1, 1, 2], [0], [0]>} : vector<4x8x8xbf16>, vector<4x8x32xbf16>, vector<4x8x32xf32> -> vector<4x8x32xf32>
    "tpu.trace_stop"() : () -> ()
    %96 = arith.truncf %95 : vector<4x8x32xf32> to vector<4x8x32xbf16>
    "tpu.trace_start"() <{level = 10 : i32, message = "hqd,hde->hqe"}> : () -> ()
    %cst_36 = arith.constant dense<0.000000e+00> : vector<4x8x128xf32>
    %97 = tpu.matmul %96, %65, %cst_36 {dimension_numbers = #tpu.dot_dimension_numbers<[2], [1], [1], [2], [0, 0, 0, 1, 1, 2], [0], [0]>} : vector<4x8x32xbf16>, vector<4x32x128xbf16>, vector<4x8x128xf32> -> vector<4x8x128xf32>
    "tpu.trace_stop"() : () -> ()
    %cst_37 = arith.constant dense<0.000000e+00> : vector<8x128xf32>
    %98 = vector.multi_reduction <add>, %97, %cst_37 [0] : vector<4x8x128xf32> to vector<8x128xf32>
    %99 = arith.addf %63, %98 : vector<8x128xf32>
    %c0_38 = arith.constant 0 : index
    %c0_39 = arith.constant 0 : index
    %100 = vector.load %arg8[%c0_38, %c0_39] : memref<1x128xf32, #tpu.memory_space<vmem>>, vector<1x128xf32>
    %c0_40 = arith.constant 0 : index
    %c0_41 = arith.constant 0 : index
    %101 = vector.load %arg9[%c0_40, %c0_41] : memref<1x128xf32, #tpu.memory_space<vmem>>, vector<1x128xf32>
    %cst_42 = arith.constant dense<0.000000e+00> : vector<8xf32>
    %102 = vector.multi_reduction <add>, %99, %cst_42 [1] : vector<8x128xf32> to vector<8xf32>
    %103 = vector.shape_cast %102 : vector<8xf32> to vector<8x1xf32>
    %cst_43 = arith.constant 1.280000e+02 : f32
    %104 = vector.broadcast %cst_43 : f32 to vector<8x1xf32>
    %105 = arith.divf %103, %104 : vector<8x1xf32>
    %106 = vector.broadcast %105 : vector<8x1xf32> to vector<8x128xf32>
    %107 = arith.subf %99, %106 : vector<8x128xf32>
    %108 = arith.mulf %107, %107 : vector<8x128xf32>
    %cst_44 = arith.constant dense<0.000000e+00> : vector<8xf32>
    %109 = vector.multi_reduction <add>, %108, %cst_44 [1] : vector<8x128xf32> to vector<8xf32>
    %110 = vector.shape_cast %109 : vector<8xf32> to vector<8x1xf32>
    %cst_45 = arith.constant 1.280000e+02 : f32
    %111 = vector.broadcast %cst_45 : f32 to vector<8x1xf32>
    %112 = arith.divf %110, %111 : vector<8x1xf32>
    %113 = vector.broadcast %105 : vector<8x1xf32> to vector<8x128xf32>
    %114 = arith.subf %99, %113 : vector<8x128xf32>
    %cst_46 = arith.constant 9.99999974E-6 : f32
    %115 = vector.broadcast %cst_46 : f32 to vector<8x1xf32>
    %116 = arith.addf %112, %115 : vector<8x1xf32>
    %117 = math.rsqrt %116 : vector<8x1xf32>
    %118 = vector.broadcast %117 : vector<8x1xf32> to vector<8x128xf32>
    %119 = arith.mulf %114, %118 : vector<8x128xf32>
    %120 = vector.broadcast %100 : vector<1x128xf32> to vector<8x128xf32>
    %121 = arith.mulf %119, %120 : vector<8x128xf32>
    %122 = vector.broadcast %101 : vector<1x128xf32> to vector<8x128xf32>
    %123 = arith.addf %121, %122 : vector<8x128xf32>
    %c0_47 = arith.constant 0 : index
    %c0_48 = arith.constant 0 : index
    %124 = vector.load %arg10[%c0_47, %c0_48] : memref<128x512xbf16, #tpu.memory_space<vmem>>, vector<128x512xbf16>
    %c0_49 = arith.constant 0 : index
    %c0_50 = arith.constant 0 : index
    %125 = vector.load %arg11[%c0_49, %c0_50] : memref<1x512xf32, #tpu.memory_space<vmem>>, vector<1x512xf32>
    %c0_51 = arith.constant 0 : index
    %c0_52 = arith.constant 0 : index
    %126 = vector.load %arg12[%c0_51, %c0_52] : memref<512x128xbf16, #tpu.memory_space<vmem>>, vector<512x128xbf16>
    %c0_53 = arith.constant 0 : index
    %c0_54 = arith.constant 0 : index
    %127 = vector.load %arg13[%c0_53, %c0_54] : memref<1x128xf32, #tpu.memory_space<vmem>>, vector<1x128xf32>
    %128 = arith.truncf %123 : vector<8x128xf32> to vector<8x128xbf16>
    %cst_55 = arith.constant dense<0.000000e+00> : vector<8x512xf32>
    %129 = tpu.matmul %128, %124, %cst_55 {dimension_numbers = #tpu.dot_dimension_numbers<[1], [0], [0], [1], [0, 0, 1, 1], [], []>} : vector<8x128xbf16>, vector<128x512xbf16>, vector<8x512xf32> -> vector<8x512xf32>
    %130 = vector.broadcast %125 : vector<1x512xf32> to vector<8x512xf32>
    %131 = arith.addf %129, %130 : vector<8x512xf32>
    %cst_56 = arith.constant 0.000000e+00 : f32
    %132 = vector.broadcast %cst_56 : f32 to vector<8x512xf32>
    %133 = arith.maximumf %131, %132 : vector<8x512xf32>
    %134 = arith.truncf %133 : vector<8x512xf32> to vector<8x512xbf16>
    %cst_57 = arith.constant dense<0.000000e+00> : vector<8x128xf32>
    %135 = tpu.matmul %134, %126, %cst_57 {dimension_numbers = #tpu.dot_dimension_numbers<[1], [0], [0], [1], [0, 0, 1, 1], [], []>} : vector<8x512xbf16>, vector<512x128xbf16>, vector<8x128xf32> -> vector<8x128xf32>
    %136 = vector.broadcast %127 : vector<1x128xf32> to vector<8x128xf32>
    %137 = arith.addf %135, %136 : vector<8x128xf32>
    %138 = arith.addf %123, %137 : vector<8x128xf32>
    %c0_58 = arith.constant 0 : index
    %c0_59 = arith.constant 0 : index
    %139 = vector.load %arg14[%c0_58, %c0_59] : memref<1x128xf32, #tpu.memory_space<vmem>>, vector<1x128xf32>
    %c0_60 = arith.constant 0 : index
    %c0_61 = arith.constant 0 : index
    %140 = vector.load %arg15[%c0_60, %c0_61] : memref<1x128xf32, #tpu.memory_space<vmem>>, vector<1x128xf32>
    %cst_62 = arith.constant dense<0.000000e+00> : vector<8xf32>
    %141 = vector.multi_reduction <add>, %138, %cst_62 [1] : vector<8x128xf32> to vector<8xf32>
    %142 = vector.shape_cast %141 : vector<8xf32> to vector<8x1xf32>
    %cst_63 = arith.constant 1.280000e+02 : f32
    %143 = vector.broadcast %cst_63 : f32 to vector<8x1xf32>
    %144 = arith.divf %142, %143 : vector<8x1xf32>
    %145 = vector.broadcast %144 : vector<8x1xf32> to vector<8x128xf32>
    %146 = arith.subf %138, %145 : vector<8x128xf32>
    %147 = arith.mulf %146, %146 : vector<8x128xf32>
    %cst_64 = arith.constant dense<0.000000e+00> : vector<8xf32>
    %148 = vector.multi_reduction <add>, %147, %cst_64 [1] : vector<8x128xf32> to vector<8xf32>
    %149 = vector.shape_cast %148 : vector<8xf32> to vector<8x1xf32>
    %cst_65 = arith.constant 1.280000e+02 : f32
    %150 = vector.broadcast %cst_65 : f32 to vector<8x1xf32>
    %151 = arith.divf %149, %150 : vector<8x1xf32>
    %152 = vector.broadcast %144 : vector<8x1xf32> to vector<8x128xf32>
    %153 = arith.subf %138, %152 : vector<8x128xf32>
    %cst_66 = arith.constant 9.99999974E-6 : f32
    %154 = vector.broadcast %cst_66 : f32 to vector<8x1xf32>
    %155 = arith.addf %151, %154 : vector<8x1xf32>
    %156 = math.rsqrt %155 : vector<8x1xf32>
    %157 = vector.broadcast %156 : vector<8x1xf32> to vector<8x128xf32>
    %158 = arith.mulf %153, %157 : vector<8x128xf32>
    %159 = vector.broadcast %139 : vector<1x128xf32> to vector<8x128xf32>
    %160 = arith.mulf %158, %159 : vector<8x128xf32>
    %161 = vector.broadcast %140 : vector<1x128xf32> to vector<8x128xf32>
    %162 = arith.addf %160, %161 : vector<8x128xf32>
    %c0_67 = arith.constant 0 : index
    %c0_68 = arith.constant 0 : index
    %c0_69 = arith.constant 0 : index
    %163 = vector.load %arg16[%c0_67, %c0_68, %c0_69] : memref<1x8x128xf32, #tpu.memory_space<vmem>>, vector<1x8x128xf32>
    %164 = vector.shape_cast %163 : vector<1x8x128xf32> to vector<8x128xf32>
    %165 = vector.shape_cast %162 : vector<8x128xf32> to vector<1x8x128xf32>
    tpu.vector_store %arg16[%c0_67, %c0_68, %c0_69], %165 {strides = array<i32>} : memref<1x8x128xf32, #tpu.memory_space<vmem>>, vector<1x8x128xf32>,
    return
  }
  func.func @transform_0(%arg0: i32) -> (i32, i32, i32) {
    %c0_i32 = arith.constant 0 : i32
    %c0_i32_0 = arith.constant 0 : i32
    %c0_i32_1 = arith.constant 0 : i32
    return %arg0, %c0_i32, %c0_i32_0 : i32, i32, i32
  }
  func.func @transform_1(%arg0: i32) -> (i32, i32, i32) {
    %c0_i32 = arith.constant 0 : i32
    %c0_i32_0 = arith.constant 0 : i32
    %c0_i32_1 = arith.constant 0 : i32
    %c0_i32_2 = arith.constant 0 : i32
    return %c0_i32, %c0_i32_0, %c0_i32_1 : i32, i32, i32
  }
  func.func @transform_2(%arg0: i32) -> (i32, i32, i32) {
    %c0_i32 = arith.constant 0 : i32
    %c0_i32_0 = arith.constant 0 : i32
    %c0_i32_1 = arith.constant 0 : i32
    %c0_i32_2 = arith.constant 0 : i32
    return %c0_i32, %c0_i32_0, %c0_i32_1 : i32, i32, i32
  }
  func.func @transform_3(%arg0: i32) -> (i32, i32) {
    %c0_i32 = arith.constant 0 : i32
    %c0_i32_0 = arith.constant 0 : i32
    %c0_i32_1 = arith.constant 0 : i32
    return %c0_i32, %c0_i32_0 : i32, i32
  }
  func.func @transform_4(%arg0: i32) -> (i32, i32) {
    %c0_i32 = arith.constant 0 : i32
    %c0_i32_0 = arith.constant 0 : i32
    %c0_i32_1 = arith.constant 0 : i32
    return %c0_i32, %c0_i32_0 : i32, i32
  }
  func.func @transform_5(%arg0: i32) -> (i32, i32, i32) {
    %c0_i32 = arith.constant 0 : i32
    %c0_i32_0 = arith.constant 0 : i32
    %c0_i32_1 = arith.constant 0 : i32
    %c0_i32_2 = arith.constant 0 : i32
    return %c0_i32, %c0_i32_0, %c0_i32_1 : i32, i32, i32
  }
  func.func @transform_6(%arg0: i32) -> (i32, i32, i32) {
    %c0_i32 = arith.constant 0 : i32
    %c0_i32_0 = arith.constant 0 : i32
    %c0_i32_1 = arith.constant 0 : i32
    %c0_i32_2 = arith.constant 0 : i32
    return %c0_i32, %c0_i32_0, %c0_i32_1 : i32, i32, i32
  }
  func.func @transform_7(%arg0: i32) -> (i32, i32) {
    %c0_i32 = arith.constant 0 : i32
    %c0_i32_0 = arith.constant 0 : i32
    %c0_i32_1 = arith.constant 0 : i32
    return %c0_i32, %c0_i32_0 : i32, i32
  }
  func.func @transform_8(%arg0: i32) -> (i32, i32) {
    %c0_i32 = arith.constant 0 : i32
    %c0_i32_0 = arith.constant 0 : i32
    %c0_i32_1 = arith.constant 0 : i32
    return %c0_i32, %c0_i32_0 : i32, i32
  }
  func.func @transform_9(%arg0: i32) -> (i32, i32) {
    %c0_i32 = arith.constant 0 : i32
    %c0_i32_0 = arith.constant 0 : i32
    %c0_i32_1 = arith.constant 0 : i32
    return %c0_i32, %c0_i32_0 : i32, i32
  }
  func.func @transform_10(%arg0: i32) -> (i32, i32) {
    %c0_i32 = arith.constant 0 : i32
    %c0_i32_0 = arith.constant 0 : i32
    %c0_i32_1 = arith.constant 0 : i32
    return %c0_i32, %c0_i32_0 : i32, i32
  }
  func.func @transform_11(%arg0: i32) -> (i32, i32) {
    %c0_i32 = arith.constant 0 : i32
    %c0_i32_0 = arith.constant 0 : i32
    %c0_i32_1 = arith.constant 0 : i32
    return %c0_i32, %c0_i32_0 : i32, i32
  }
  func.func @transform_12(%arg0: i32) -> (i32, i32) {
    %c0_i32 = arith.constant 0 : i32
    %c0_i32_0 = arith.constant 0 : i32
    %c0_i32_1 = arith.constant 0 : i32
    return %c0_i32, %c0_i32_0 : i32, i32
  }
  func.func @transform_13(%arg0: i32) -> (i32, i32) {
    %c0_i32 = arith.constant 0 : i32
    %c0_i32_0 = arith.constant 0 : i32
    %c0_i32_1 = arith.constant 0 : i32
    return %c0_i32, %c0_i32_0 : i32, i32
  }
  func.func @transform_14(%arg0: i32) -> (i32, i32) {
    %c0_i32 = arith.constant 0 : i32
    %c0_i32_0 = arith.constant 0 : i32
    %c0_i32_1 = arith.constant 0 : i32
    return %c0_i32, %c0_i32_0 : i32, i32
  }
  func.func @transform_15(%arg0: i32) -> (i32, i32, i32) {
    %c0_i32 = arith.constant 0 : i32
    %c0_i32_0 = arith.constant 0 : i32
    %c0_i32_1 = arith.constant 0 : i32
    return %arg0, %c0_i32, %c0_i32_0 : i32, i32, i32
  }
}

module attributes {stable_mosaic.version = 11 : i64} {
  func.func @_decoder_layer_kernel(%arg0: i32, %arg1: memref<1x8x128xf32, #tpu.memory_space<vmem>>, %arg2: memref<12x128x32xbf16, #tpu.memory_space<vmem>>, %arg3: memref<4x32x128xbf16, #tpu.memory_space<vmem>>, %arg4: memref<1x128xf32, #tpu.memory_space<vmem>>, %arg5: memref<1x128xf32, #tpu.memory_space<vmem>>, %arg6: memref<12x128x32xbf16, #tpu.memory_space<vmem>>, %arg7: memref<4x32x128xbf16, #tpu.memory_space<vmem>>, %arg8: memref<1x128xf32, #tpu.memory_space<vmem>>, %arg9: memref<1x128xf32, #tpu.memory_space<vmem>>, %arg10: memref<128x512xbf16, #tpu.memory_space<vmem>>, %arg11: memref<1x512xf32, #tpu.memory_space<vmem>>, %arg12: memref<512x128xbf16, #tpu.memory_space<vmem>>, %arg13: memref<1x128xf32, #tpu.memory_space<vmem>>, %arg14: memref<1x128xf32, #tpu.memory_space<vmem>>, %arg15: memref<1x128xf32, #tpu.memory_space<vmem>>, %arg16: memref<1x8x128xf32, #tpu.memory_space<vmem>>) attributes {dimension_semantics = [#tpu.dimension_semantics<parallel>], iteration_bounds = array<i64: 2>, scalar_prefetch = 0 : i64, scratch_operands = 0 : i64, tpu.core_type = #tpu.core_type<tc>, window_params = [{transform_indices = @transform_0, window_bounds = array<i64: 1, 8, 128>}, {pipeline_mode = #tpu.pipeline_mode<synchronous>, transform_indices = @transform_1, window_bounds = array<i64: 12, 128, 32>}, {pipeline_mode = #tpu.pipeline_mode<synchronous>, transform_indices = @transform_2, window_bounds = array<i64: 4, 32, 128>}, {pipeline_mode = #tpu.pipeline_mode<synchronous>, transform_indices = @transform_3, window_bounds = array<i64: 1, 128>}, {pipeline_mode = #tpu.pipeline_mode<synchronous>, transform_indices = @transform_4, window_bounds = array<i64: 1, 128>}, {pipeline_mode = #tpu.pipeline_mode<synchronous>, transform_indices = @transform_5, window_bounds = array<i64: 12, 128, 32>}, {pipeline_mode = #tpu.pipeline_mode<synchronous>, transform_indices = @transform_6, window_bounds = array<i64: 4, 32, 128>}, {pipeline_mode = #tpu.pipeline_mode<synchronous>, transform_indices = @transform_7, window_bounds = array<i64: 1, 128>}, {pipeline_mode = #tpu.pipeline_mode<synchronous>, transform_indices = @transform_8, window_bounds = array<i64: 1, 128>}, {pipeline_mode = #tpu.pipeline_mode<synchronous>, transform_indices = @transform_9, window_bounds = array<i64: 128, 512>}, {pipeline_mode = #tpu.pipeline_mode<synchronous>, transform_indices = @transform_10, window_bounds = array<i64: 1, 512>}, {pipeline_mode = #tpu.pipeline_mode<synchronous>, transform_indices = @transform_11, window_bounds = array<i64: 512, 128>}, {pipeline_mode = #tpu.pipeline_mode<synchronous>, transform_indices = @transform_12, window_bounds = array<i64: 1, 128>}, {pipeline_mode = #tpu.pipeline_mode<synchronous>, transform_indices = @transform_13, window_bounds = array<i64: 1, 128>}, {pipeline_mode = #tpu.pipeline_mode<synchronous>, transform_indices = @transform_14, window_bounds = array<i64: 1, 128>}, {transform_indices = @transform_15, window_bounds = array<i64: 1, 8, 128>}]} {
    %c0 = arith.constant 0 : index
    %c0_0 = arith.constant 0 : index
    %c0_1 = arith.constant 0 : index
    %0 = vector.load %arg1[%c0, %c0_0, %c0_1] : memref<1x8x128xf32, #tpu.memory_space<vmem>>, vector<1x8x128xf32>
    %1 = vector.shape_cast %0 : vector<1x8x128xf32> to vector<8x128xf32>
    %c0_2 = arith.constant 0 : index
    %c0_3 = arith.constant 0 : index
    %c0_4 = arith.constant 0 : index
    %2 = vector.load %arg2[%c0_2, %c0_3, %c0_4] : memref<12x128x32xbf16, #tpu.memory_space<vmem>>, vector<12x128x32xbf16>
    %c0_5 = arith.constant 0 : index
    %c0_6 = arith.constant 0 : index
    %c0_7 = arith.constant 0 : index
    %3 = vector.load %arg3[%c0_5, %c0_6, %c0_7] : memref<4x32x128xbf16, #tpu.memory_space<vmem>>, vector<4x32x128xbf16>
    %4 = arith.truncf %1 : vector<8x128xf32> to vector<8x128xbf16>
    %5 = vector.shape_cast %4 : vector<8x128xbf16> to vector<1x8x128xbf16>
    %6 = vector.shape_cast %5 : vector<1x8x128xbf16> to vector<1x8x128xbf16>
    %7 = vector.broadcast %6 : vector<1x8x128xbf16> to vector<12x8x128xbf16>
    "tpu.trace_start"() <{level = 10 : i32, message = "gld,gde->gle"}> : () -> ()
    %cst = arith.constant dense<0.000000e+00> : vector<12x8x32xf32>
    %8 = tpu.matmul %7, %2, %cst {dimension_numbers = #tpu.dot_dimension_numbers<[2], [1], [1], [2], [0, 0, 0, 1, 1, 2], [0], [0]>} : vector<12x8x128xbf16>, vector<12x128x32xbf16>, vector<12x8x32xf32> -> vector<12x8x32xf32>
    "tpu.trace_stop"() : () -> ()
    %9 = vector.extract_strided_slice %8 {offsets = [0, 0, 0], sizes = [4, 8, 32], strides = [1, 1, 1]} : vector<12x8x32xf32> to vector<4x8x32xf32>
    %10 = vector.extract_strided_slice %8 {offsets = [4, 0, 0], sizes = [4, 8, 32], strides = [1, 1, 1]} : vector<12x8x32xf32> to vector<4x8x32xf32>
    %11 = vector.extract_strided_slice %8 {offsets = [8, 0, 0], sizes = [4, 8, 32], strides = [1, 1, 1]} : vector<12x8x32xf32> to vector<4x8x32xf32>
    %12 = arith.truncf %9 : vector<4x8x32xf32> to vector<4x8x32xbf16>
    %13 = arith.truncf %10 : vector<4x8x32xf32> to vector<4x8x32xbf16>
    "tpu.trace_start"() <{level = 10 : i32, message = "hqd,hkd->hqk"}> : () -> ()
    %cst_8 = arith.constant dense<0.000000e+00> : vector<4x8x8xf32>
    %14 = tpu.matmul %12, %13, %cst_8 {dimension_numbers = #tpu.dot_dimension_numbers<[2], [2], [1], [1], [0, 0, 0, 1, 1, 1], [0], [0]>} : vector<4x8x32xbf16>, vector<4x8x32xbf16>, vector<4x8x8xf32> -> vector<4x8x8xf32>
    "tpu.trace_stop"() : () -> ()
    %15 = tpu.iota {dimensions = array<i32: 0>} : vector<8x8xi32>
    %16 = tpu.iota {dimensions = array<i32: 1>} : vector<8x8xi32>
    %17 = arith.cmpi sgt, %16, %15 : vector<8x8xi32>
    %18 = vector.shape_cast %17 : vector<8x8xi1> to vector<1x8x8xi1>
    %cst_9 = arith.constant -1.000000e+30 : f32
    %19 = vector.shape_cast %18 : vector<1x8x8xi1> to vector<1x8x8xi1>
    %20 = vector.broadcast %19 : vector<1x8x8xi1> to vector<4x8x8xi1>
    %21 = vector.broadcast %cst_9 : f32 to vector<4x8x8xf32>
    %22 = arith.select %20, %21, %14 : vector<4x8x8xi1>, vector<4x8x8xf32>
    %cst_10 = arith.constant dense<0xFF800000> : vector<4x8xf32>
    %23 = vector.multi_reduction <maximumf>, %22, %cst_10 [2] : vector<4x8x8xf32> to vector<4x8xf32>
    %24 = vector.shape_cast %23 : vector<4x8xf32> to vector<4x8x1xf32>
    %25 = vector.broadcast %24 : vector<4x8x1xf32> to vector<4x8x8xf32>
    %26 = arith.subf %22, %25 : vector<4x8x8xf32>
    %27 = math.exp %26 : vector<4x8x8xf32>
    %cst_11 = arith.constant dense<0.000000e+00> : vector<4x8xf32>
    %28 = vector.multi_reduction <add>, %27, %cst_11 [2] : vector<4x8x8xf32> to vector<4x8xf32>
    %29 = vector.shape_cast %28 : vector<4x8xf32> to vector<4x8x1xf32>
    %30 = tpu.reciprocal %29 {approx = true} : vector<4x8x1xf32> -> vector<4x8x1xf32>
    %31 = vector.broadcast %30 : vector<4x8x1xf32> to vector<4x8x8xf32>
    %32 = arith.mulf %27, %31 : vector<4x8x8xf32>
    %33 = arith.truncf %32 : vector<4x8x8xf32> to vector<4x8x8xbf16>
    %34 = arith.truncf %11 : vector<4x8x32xf32> to vector<4x8x32xbf16>
    "tpu.trace_start"() <{level = 10 : i32, message = "hqk,hkd->hqd"}> : () -> ()
    %cst_12 = arith.constant dense<0.000000e+00> : vector<4x8x32xf32>
    %35 = tpu.matmul %33, %34, %cst_12 {dimension_numbers = #tpu.dot_dimension_numbers<[2], [1], [1], [2], [0, 0, 0, 1, 1, 2], [0], [0]>} : vector<4x8x8xbf16>, vector<4x8x32xbf16>, vector<4x8x32xf32> -> vector<4x8x32xf32>
    "tpu.trace_stop"() : () -> ()
    %36 = arith.truncf %35 : vector<4x8x32xf32> to vector<4x8x32xbf16>
    "tpu.trace_start"() <{level = 10 : i32, message = "hqd,hde->hqe"}> : () -> ()
    %cst_13 = arith.constant dense<0.000000e+00> : vector<4x8x128xf32>
    %37 = tpu.matmul %36, %3, %cst_13 {dimension_numbers = #tpu.dot_dimension_numbers<[2], [1], [1], [2], [0, 0, 0, 1, 1, 2], [0], [0]>} : vector<4x8x32xbf16>, vector<4x32x128xbf16>, vector<4x8x128xf32> -> vector<4x8x128xf32>
    "tpu.trace_stop"() : () -> ()
    %cst_14 = arith.constant dense<0.000000e+00> : vector<8x128xf32>
    %38 = vector.multi_reduction <add>, %37, %cst_14 [0] : vector<4x8x128xf32> to vector<8x128xf32>
    %39 = arith.addf %1, %38 : vector<8x128xf32>
    %c0_15 = arith.constant 0 : index
    %c0_16 = arith.constant 0 : index
    %40 = vector.load %arg4[%c0_15, %c0_16] : memref<1x128xf32, #tpu.memory_space<vmem>>, vector<1x128xf32>
    %c0_17 = arith.constant 0 : index
    %c0_18 = arith.constant 0 : index
    %41 = vector.load %arg5[%c0_17, %c0_18] : memref<1x128xf32, #tpu.memory_space<vmem>>, vector<1x128xf32>
    %cst_19 = arith.constant dense<0.000000e+00> : vector<8xf32>
    %42 = vector.multi_reduction <add>, %39, %cst_19 [1] : vector<8x128xf32> to vector<8xf32>
    %43 = vector.shape_cast %42 : vector<8xf32> to vector<8x1xf32>
    %cst_20 = arith.constant 1.280000e+02 : f32
    %44 = vector.broadcast %cst_20 : f32 to vector<8x1xf32>
    %45 = arith.divf %43, %44 : vector<8x1xf32>
    %46 = vector.broadcast %45 : vector<8x1xf32> to vector<8x128xf32>
    %47 = arith.subf %39, %46 : vector<8x128xf32>
    %48 = arith.mulf %47, %47 : vector<8x128xf32>
    %cst_21 = arith.constant dense<0.000000e+00> : vector<8xf32>
    %49 = vector.multi_reduction <add>, %48, %cst_21 [1] : vector<8x128xf32> to vector<8xf32>
    %50 = vector.shape_cast %49 : vector<8xf32> to vector<8x1xf32>
    %cst_22 = arith.constant 1.280000e+02 : f32
    %51 = vector.broadcast %cst_22 : f32 to vector<8x1xf32>
    %52 = arith.divf %50, %51 : vector<8x1xf32>
    %53 = vector.broadcast %45 : vector<8x1xf32> to vector<8x128xf32>
    %54 = arith.subf %39, %53 : vector<8x128xf32>
    %cst_23 = arith.constant 9.99999974E-6 : f32
    %55 = vector.broadcast %cst_23 : f32 to vector<8x1xf32>
    %56 = arith.addf %52, %55 : vector<8x1xf32>
    %57 = math.rsqrt %56 : vector<8x1xf32>
    %58 = vector.broadcast %57 : vector<8x1xf32> to vector<8x128xf32>
    %59 = arith.mulf %54, %58 : vector<8x128xf32>
    %60 = vector.broadcast %40 : vector<1x128xf32> to vector<8x128xf32>
    %61 = arith.mulf %59, %60 : vector<8x128xf32>
    %62 = vector.broadcast %41 : vector<1x128xf32> to vector<8x128xf32>
    %63 = arith.addf %61, %62 : vector<8x128xf32>
    %c0_24 = arith.constant 0 : index
    %c0_25 = arith.constant 0 : index
    %c0_26 = arith.constant 0 : index
    %64 = vector.load %arg6[%c0_24, %c0_25, %c0_26] : memref<12x128x32xbf16, #tpu.memory_space<vmem>>, vector<12x128x32xbf16>
    %c0_27 = arith.constant 0 : index
    %c0_28 = arith.constant 0 : index
    %c0_29 = arith.constant 0 : index
    %65 = vector.load %arg7[%c0_27, %c0_28, %c0_29] : memref<4x32x128xbf16, #tpu.memory_space<vmem>>, vector<4x32x128xbf16>
    %66 = arith.truncf %63 : vector<8x128xf32> to vector<8x128xbf16>
    %67 = arith.truncf %1 : vector<8x128xf32> to vector<8x128xbf16>
    %68 = vector.shape_cast %66 : vector<8x128xbf16> to vector<1x8x128xbf16>
    %69 = vector.shape_cast %68 : vector<1x8x128xbf16> to vector<1x8x128xbf16>
    %70 = vector.broadcast %69 : vector<1x8x128xbf16> to vector<4x8x128xbf16>
    %71 = vector.extract_strided_slice %64 {offsets = [0, 0, 0], sizes = [4, 128, 32], strides = [1, 1, 1]} : vector<12x128x32xbf16> to vector<4x128x32xbf16>
    "tpu.trace_start"() <{level = 10 : i32, message = "gld,gde->gle"}> : () -> ()
    %cst_30 = arith.constant dense<0.000000e+00> : vector<4x8x32xf32>
    %72 = tpu.matmul %70, %71, %cst_30 {dimension_numbers = #tpu.dot_dimension_numbers<[2], [1], [1], [2], [0, 0, 0, 1, 1, 2], [0], [0]>} : vector<4x8x128xbf16>, vector<4x128x32xbf16>, vector<4x8x32xf32> -> vector<4x8x32xf32>
    "tpu.trace_stop"() : () -> ()
    %73 = vector.shape_cast %67 : vector<8x128xbf16> to vector<1x8x128xbf16>
    %74 = vector.shape_cast %73 : vector<1x8x128xbf16> to vector<1x8x128xbf16>
    %75 = vector.broadcast %74 : vector<1x8x128xbf16> to vector<8x8x128xbf16>
    %76 = vector.extract_strided_slice %64 {offsets = [4, 0, 0], sizes = [8, 128, 32], strides = [1, 1, 1]} : vector<12x128x32xbf16> to vector<8x128x32xbf16>
    "tpu.trace_start"() <{level = 10 : i32, message = "gld,gde->gle"}> : () -> ()
    %cst_31 = arith.constant dense<0.000000e+00> : vector<8x8x32xf32>
    %77 = tpu.matmul %75, %76, %cst_31 {dimension_numbers = #tpu.dot_dimension_numbers<[2], [1], [1], [2], [0, 0, 0, 1, 1, 2], [0], [0]>} : vector<8x8x128xbf16>, vector<8x128x32xbf16>, vector<8x8x32xf32> -> vector<8x8x32xf32>
    "tpu.trace_stop"() : () -> ()
    %78 = vector.extract_strided_slice %77 {offsets = [0, 0, 0], sizes = [4, 8, 32], strides = [1, 1, 1]} : vector<8x8x32xf32> to vector<4x8x32xf32>
    %79 = vector.extract_strided_slice %77 {offsets = [4, 0, 0], sizes = [4, 8, 32], strides = [1, 1, 1]} : vector<8x8x32xf32> to vector<4x8x32xf32>
    %80 = arith.truncf %72 : vector<4x8x32xf32> to vector<4x8x32xbf16>
    %81 = arith.truncf %78 : vector<4x8x32xf32> to vector<4x8x32xbf16>
    "tpu.trace_start"() <{level = 10 : i32, message = "hqd,hkd->hqk"}> : () -> ()
    %cst_32 = arith.constant dense<0.000000e+00> : vector<4x8x8xf32>
    %82 = tpu.matmul %80, %81, %cst_32 {dimension_numbers = #tpu.dot_dimension_numbers<[2], [2], [1], [1], [0, 0, 0, 1, 1, 1], [0], [0]>} : vector<4x8x32xbf16>, vector<4x8x32xbf16>, vector<4x8x8xf32> -> vector<4x8x8xf32>
    "tpu.trace_stop"() : () -> ()
    %cst_33 = arith.constant dense<0xFF800000> : vector<4x8xf32>
    %83 = vector.multi_reduction <maximumf>, %82, %cst_33 [2] : vector<4x8x8xf32> to vector<4x8xf32>
    %84 = vector.shape_cast %83 : vector<4x8xf32> to vector<4x8x1xf32>
    %85 = vector.broadcast %84 : vector<4x8x1xf32> to vector<4x8x8xf32>
    %86 = arith.subf %82, %85 : vector<4x8x8xf32>
    %87 = math.exp %86 : vector<4x8x8xf32>
    %cst_34 = arith.constant dense<0.000000e+00> : vector<4x8xf32>
    %88 = vector.multi_reduction <add>, %87, %cst_34 [2] : vector<4x8x8xf32> to vector<4x8xf32>
    %89 = vector.shape_cast %88 : vector<4x8xf32> to vector<4x8x1xf32>
    %90 = tpu.reciprocal %89 {approx = true} : vector<4x8x1xf32> -> vector<4x8x1xf32>
    %91 = vector.broadcast %90 : vector<4x8x1xf32> to vector<4x8x8xf32>
    %92 = arith.mulf %87, %91 : vector<4x8x8xf32>
    %93 = arith.truncf %92 : vector<4x8x8xf32> to vector<4x8x8xbf16>
    %94 = arith.truncf %79 : vector<4x8x32xf32> to vector<4x8x32xbf16>
    "tpu.trace_start"() <{level = 10 : i32, message = "hqk,hkd->hqd"}> : () -> ()
    %cst_35 = arith.constant dense<0.000000e+00> : vector<4x8x32xf32>
    %95 = tpu.matmul %93, %94, %cst_35 {dimension_numbers = #tpu.dot_dimension_numbers<[2], [1], [1], [2], [0, 0, 0, 1, 1, 2], [0], [0]>} : vector<4x8x8xbf16>, vector<4x8x32xbf16>, vector<4x8x32xf32> -> vector<4x8x32xf32>
    "tpu.trace_stop"() : () -> ()
    %96 = arith.truncf %95 : vector<4x8x32xf32> to vector<4x8x32xbf16>
    "tpu.trace_start"() <{level = 10 : i32, message = "hqd,hde->hqe"}> : () -> ()
    %cst_36 = arith.constant dense<0.000000e+00> : vector<4x8x128xf32>
    %97 = tpu.matmul %96, %65, %cst_36 {dimension_numbers = #tpu.dot_dimension_numbers<[2], [1], [1], [2], [0, 0, 0, 1, 1, 2], [0], [0]>} : vector<4x8x32xbf16>, vector<4x32x128xbf16>, vector<4x8x128xf32> -> vector<4x8x128xf32>
    "tpu.trace_stop"() : () -> ()
    %cst_37 = arith.constant dense<0.000000e+00> : vector<8x128xf32>
    %98 = vector.multi_reduction <add>, %97, %cst_37 [0] : vector<4x8x128xf32> to vector<8x128xf32>
    %99 = arith.addf %63, %98 : vector<8x128xf32>
    %c0_38 = arith.constant 0 : index
    %c0_39 = arith.constant 0 : index
    %100 = vector.load %arg8[%c0_38, %c0_39] : memref<1x128xf32, #tpu.memory_space<vmem>>, vector<1x128xf32>
    %c0_40 = arith.constant 0 : index
    %c0_41 = arith.constant 0 : index
    %101 = vector.load %arg9[%c0_40, %c0_41] : memref<1x128xf32, #tpu.memory_space<vmem>>, vector<1x128xf32>
    %cst_42 = arith.constant dense<0.000000e+00> : vector<8xf32>
    %102 = vector.multi_reduction <add>, %99, %cst_42 [1] : vector<8x128xf32> to vector<8xf32>
    %103 = vector.shape_cast %102 : vector<8xf32> to vector<8x1xf32>
    %cst_43 = arith.constant 1.280000e+02 : f32
    %104 = vector.broadcast %cst_43 : f32 to vector<8x1xf32>
    %105 = arith.divf %103, %104 : vector<8x1xf32>
    %106 = vector.broadcast %105 : vector<8x1xf32> to vector<8x128xf32>
    %107 = arith.subf %99, %106 : vector<8x128xf32>
    %108 = arith.mulf %107, %107 : vector<8x128xf32>
    %cst_44 = arith.constant dense<0.000000e+00> : vector<8xf32>
    %109 = vector.multi_reduction <add>, %108, %cst_44 [1] : vector<8x128xf32> to vector<8xf32>
    %110 = vector.shape_cast %109 : vector<8xf32> to vector<8x1xf32>
    %cst_45 = arith.constant 1.280000e+02 : f32
    %111 = vector.broadcast %cst_45 : f32 to vector<8x1xf32>
    %112 = arith.divf %110, %111 : vector<8x1xf32>
    %113 = vector.broadcast %105 : vector<8x1xf32> to vector<8x128xf32>
    %114 = arith.subf %99, %113 : vector<8x128xf32>
    %cst_46 = arith.constant 9.99999974E-6 : f32
    %115 = vector.broadcast %cst_46 : f32 to vector<8x1xf32>
    %116 = arith.addf %112, %115 : vector<8x1xf32>
    %117 = math.rsqrt %116 : vector<8x1xf32>
    %118 = vector.broadcast %117 : vector<8x1xf32> to vector<8x128xf32>
    %119 = arith.mulf %114, %118 : vector<8x128xf32>
    %120 = vector.broadcast %100 : vector<1x128xf32> to vector<8x128xf32>
    %121 = arith.mulf %119, %120 : vector<8x128xf32>
    %122 = vector.broadcast %101 : vector<1x128xf32> to vector<8x128xf32>
    %123 = arith.addf %121, %122 : vector<8x128xf32>
    %c0_47 = arith.constant 0 : index
    %c0_48 = arith.constant 0 : index
    %124 = vector.load %arg10[%c0_47, %c0_48] : memref<128x512xbf16, #tpu.memory_space<vmem>>, vector<128x512xbf16>
    %c0_49 = arith.constant 0 : index
    %c0_50 = arith.constant 0 : index
    %125 = vector.load %arg11[%c0_49, %c0_50] : memref<1x512xf32, #tpu.memory_space<vmem>>, vector<1x512xf32>
    %c0_51 = arith.constant 0 : index
    %c0_52 = arith.constant 0 : index
    %126 = vector.load %arg12[%c0_51, %c0_52] : memref<512x128xbf16, #tpu.memory_space<vmem>>, vector<512x128xbf16>
    %c0_53 = arith.constant 0 : index
    %c0_54 = arith.constant 0 : index
    %127 = vector.load %arg13[%c0_53, %c0_54] : memref<1x128xf32, #tpu.memory_space<vmem>>, vector<1x128xf32>
    %128 = arith.truncf %123 : vector<8x128xf32> to vector<8x128xbf16>
    %cst_55 = arith.constant dense<0.000000e+00> : vector<8x512xf32>
    %129 = tpu.matmul %128, %124, %cst_55 {dimension_numbers = #tpu.dot_dimension_numbers<[1], [0], [0], [1], [0, 0, 1, 1], [], []>} : vector<8x128xbf16>, vector<128x512xbf16>, vector<8x512xf32> -> vector<8x512xf32>
    %130 = vector.broadcast %125 : vector<1x512xf32> to vector<8x512xf32>
    %131 = arith.addf %129, %130 : vector<8x512xf32>
    %cst_56 = arith.constant 0.000000e+00 : f32
    %132 = vector.broadcast %cst_56 : f32 to vector<8x512xf32>
    %133 = arith.maximumf %131, %132 : vector<8x512xf32>
    %134 = arith.truncf %133 : vector<8x512xf32> to vector<8x512xbf16>
    %cst_57 = arith.constant dense<0.000000e+00> : vector<8x128xf32>
    %135 = tpu.matmul %134, %126, %cst_57 {dimension_numbers = #tpu.dot_dimension_numbers<[1], [0], [0], [1], [0, 0, 1, 1], [], []>} : vector<8x512xbf16>, vector<512x128xbf16>, vector<8x128xf32> -> vector<8x128xf32>
    %136 = vector.broadcast %127 : vector<1x128xf32> to vector<8x128xf32>
    %137 = arith.addf %135, %136 : vector<8x128xf32>
    %138 = arith.addf %123, %137 : vector<8x128xf32>
    %c0_58 = arith.constant 0 : index
    %c0_59 = arith.constant 0 : index
    %139 = vector.load %arg14[%c0_58, %c0_59] : memref<1x128xf32, #tpu.memory_space<vmem>>, vector<1x128xf32>
    %c0_60 = arith.constant 0 : index
    %c0_61 = arith.constant 0 : index
    %140 = vector.load %arg15[%c0_60, %c0_61] : memref<1x128xf32, #tpu.memory_space<vmem>>, vector<1x128xf32>
    %cst_62 = arith.constant dense<0.000000e+00> : vector<8xf32>
    %141 = vector.multi_reduction <add>, %138, %cst_62 [1] : vector<8x128xf32> to vector<8xf32>
    %142 = vector.shape_cast %141 : vector<8xf32> to vector<8x1xf32>
    %cst_63 = arith.constant 1.280000e+02 : f32
    %143 = vector.broadcast %cst_63 : f32 to vector<8x1xf32>
    %144 = arith.divf %142, %143 : vector<8x1xf32>
    %145 = vector.broadcast %144 : vector<8x1xf32> to vector<8x128xf32>
    %146 = arith.subf %138, %145 : vector<8x128xf32>
    %147 = arith.mulf %146, %146 : vector<8x128xf32>
    %cst_64 = arith.constant dense<0.000000e+00> : vector<8xf32>
    %148 = vector.multi_reduction <add>, %147, %cst_64 [1] : vector<8x128xf32> to vector<8xf32>
    %149 = vector.shape_cast %148 : vector<8xf32> to vector<8x1xf32>
    %cst_65 = arith.constant 1.280000e+02 : f32
    %150 = vector.broadcast %cst_65 : f32 to vector<8x1xf32>
    %151 = arith.divf %149, %150 : vector<8x1xf32>
    %152 = vector.broadcast %144 : vector<8x1xf32> to vector<8x128xf32>
    %153 = arith.subf %138, %152 : vector<8x128xf32>
    %cst_66 = arith.constant 9.99999974E-6 : f32
    %154 = vector.broadcast %cst_66 : f32 to vector<8x1xf32>
    %155 = arith.addf %151, %154 : vector<8x1xf32>
    %156 = math.rsqrt %155 : vector<8x1xf32>
    %157 = vector.broadcast %156 : vector<8x1xf32> to vector<8x128xf32>
    %158 = arith.mulf %153, %157 : vector<8x128xf32>
    %159 = vector.broadcast %139 : vector<1x128xf32> to vector<8x128xf32>
    %160 = arith.mulf %158, %159 : vector<8x128xf32>
    %161 = vector.broadcast %140 : vector<1x128xf32> to vector<8x128xf32>
    %162 = arith.addf %160, %161 : vector<8x128xf32>
    %c0_67 = arith.constant 0 : index
    %c0_68 = arith.constant 0 : index
    %c0_69 = arith.constant 0 : index
    %163 = vector.load %arg16[%c0_67, %c0_68, %c0_69] : memref<1x8x128xf32, #tpu.memory_space<vmem>>, vector<1x8x128xf32>
    %164 = vector.shape_cast %163 : vector<1x8x128xf32> to vector<8x128xf32>
    %165 = vector.shape_cast %162 : vector<8x128xf32> to vector<1x8x128xf32>
    tpu.vector_store %arg16[%c0_67, %c0_68, %c0_69], %165 {strides = array<i32>} : memref<1x8x128xf32, #tpu.memory_space<vmem>>, vector<1x8x128xf32>,
    return
  }
  func.func @transform_0(%arg0: i32) -> (i32, i32, i32) {
    %c0_i32 = arith.constant 0 : i32
    %c0_i32_0 = arith.constant 0 : i32
    %c0_i32_1 = arith.constant 0 : i32
    return %arg0, %c0_i32, %c0_i32_0 : i32, i32, i32
  }
  func.func @transform_1(%arg0: i32) -> (i32, i32, i32) {
    %c0_i32 = arith.constant 0 : i32
    %c0_i32_0 = arith.constant 0 : i32
    %c0_i32_1 = arith.constant 0 : i32
    %c0_i32_2 = arith.constant 0 : i32
    return %c0_i32, %c0_i32_0, %c0_i32_1 : i32, i32, i32
  }
  func.func @transform_2(%arg0: i32) -> (i32, i32, i32) {
    %c0_i32 = arith.constant 0 : i32
    %c0_i32_0 = arith.constant 0 : i32
    %c0_i32_1 = arith.constant 0 : i32
    %c0_i32_2 = arith.constant 0 : i32
    return %c0_i32, %c0_i32_0, %c0_i32_1 : i32, i32, i32
  }
  func.func @transform_3(%arg0: i32) -> (i32, i32) {
    %c0_i32 = arith.constant 0 : i32
    %c0_i32_0 = arith.constant 0 : i32
    %c0_i32_1 = arith.constant 0 : i32
    return %c0_i32, %c0_i32_0 : i32, i32
  }
  func.func @transform_4(%arg0: i32) -> (i32, i32) {
    %c0_i32 = arith.constant 0 : i32
    %c0_i32_0 = arith.constant 0 : i32
    %c0_i32_1 = arith.constant 0 : i32
    return %c0_i32, %c0_i32_0 : i32, i32
  }
  func.func @transform_5(%arg0: i32) -> (i32, i32, i32) {
    %c0_i32 = arith.constant 0 : i32
    %c0_i32_0 = arith.constant 0 : i32
    %c0_i32_1 = arith.constant 0 : i32
    %c0_i32_2 = arith.constant 0 : i32
    return %c0_i32, %c0_i32_0, %c0_i32_1 : i32, i32, i32
  }
  func.func @transform_6(%arg0: i32) -> (i32, i32, i32) {
    %c0_i32 = arith.constant 0 : i32
    %c0_i32_0 = arith.constant 0 : i32
    %c0_i32_1 = arith.constant 0 : i32
    %c0_i32_2 = arith.constant 0 : i32
    return %c0_i32, %c0_i32_0, %c0_i32_1 : i32, i32, i32
  }
  func.func @transform_7(%arg0: i32) -> (i32, i32) {
    %c0_i32 = arith.constant 0 : i32
    %c0_i32_0 = arith.constant 0 : i32
    %c0_i32_1 = arith.constant 0 : i32
    return %c0_i32, %c0_i32_0 : i32, i32
  }
  func.func @transform_8(%arg0: i32) -> (i32, i32) {
    %c0_i32 = arith.constant 0 : i32
    %c0_i32_0 = arith.constant 0 : i32
    %c0_i32_1 = arith.constant 0 : i32
    return %c0_i32, %c0_i32_0 : i32, i32
  }
  func.func @transform_9(%arg0: i32) -> (i32, i32) {
    %c0_i32 = arith.constant 0 : i32
    %c0_i32_0 = arith.constant 0 : i32
    %c0_i32_1 = arith.constant 0 : i32
    return %c0_i32, %c0_i32_0 : i32, i32
  }
  func.func @transform_10(%arg0: i32) -> (i32, i32) {
    %c0_i32 = arith.constant 0 : i32
    %c0_i32_0 = arith.constant 0 : i32
    %c0_i32_1 = arith.constant 0 : i32
    return %c0_i32, %c0_i32_0 : i32, i32
  }
  func.func @transform_11(%arg0: i32) -> (i32, i32) {
    %c0_i32 = arith.constant 0 : i32
    %c0_i32_0 = arith.constant 0 : i32
    %c0_i32_1 = arith.constant 0 : i32
    return %c0_i32, %c0_i32_0 : i32, i32
  }
  func.func @transform_12(%arg0: i32) -> (i32, i32) {
    %c0_i32 = arith.constant 0 : i32
    %c0_i32_0 = arith.constant 0 : i32
    %c0_i32_1 = arith.constant 0 : i32
    return %c0_i32, %c0_i32_0 : i32, i32
  }
  func.func @transform_13(%arg0: i32) -> (i32, i32) {
    %c0_i32 = arith.constant 0 : i32
    %c0_i32_0 = arith.constant 0 : i32
    %c0_i32_1 = arith.constant 0 : i32
    return %c0_i32, %c0_i32_0 : i32, i32
  }
  func.func @transform_14(%arg0: i32) -> (i32, i32) {
    %c0_i32 = arith.constant 0 : i32
    %c0_i32_0 = arith.constant 0 : i32
    %c0_i32_1 = arith.constant 0 : i32
    return %c0_i32, %c0_i32_0 : i32, i32
  }
  func.func @transform_15(%arg0: i32) -> (i32, i32, i32) {
    %c0_i32 = arith.constant 0 : i32
    %c0_i32_0 = arith.constant 0 : i32
    %c0_i32_1 = arith.constant 0 : i32
    return %arg0, %c0_i32, %c0_i32_0 : i32, i32, i32
  }
}

</mosaic_0001>

<llo_original>
// kernel: transformer_forward.3
$region0: #{transformer_forward.3}
  #allocation0 [shape = 'u32[]', space=smem, size = 0x4, offset = 0x4, fixed_abs, tag = 'smem constant byte address 0x4 - core index']
  #allocation1 [shape = 'u32[144,128]{1,0:T(1,128)}', space=vmem, size = 0x12000, scoped, tag = 'internal scratch']
  %s0 = inlined_call_operand.vmem [shape: f32[2,8,128], index: 0, kind: input, shape index: {}]
  %s1 = inlined_call_operand.vmem [shape: bf16[12,128,32], index: 1, kind: input, shape index: {}]
  %s2 = inlined_call_operand.vmem [shape: bf16[4,32,128], index: 2, kind: input, shape index: {}]
  %s3 = inlined_call_operand.vmem [shape: f32[1,128], index: 3, kind: input, shape index: {}]
  %s4 = inlined_call_operand.vmem [shape: f32[1,128], index: 4, kind: input, shape index: {}]
  %s5 = inlined_call_operand.vmem [shape: bf16[12,128,32], index: 5, kind: input, shape index: {}]
  %s6 = inlined_call_operand.vmem [shape: bf16[4,32,128], index: 6, kind: input, shape index: {}]
  %s7 = inlined_call_operand.vmem [shape: f32[1,128], index: 7, kind: input, shape index: {}]
  %s8 = inlined_call_operand.vmem [shape: f32[1,128], index: 8, kind: input, shape index: {}]
  %s9 = inlined_call_operand.vmem [shape: bf16[128,512], index: 9, kind: input, shape index: {}]
  %s10 = inlined_call_operand.vmem [shape: f32[1,512], index: 10, kind: input, shape index: {}]
  %s11 = inlined_call_operand.vmem [shape: bf16[512,128], index: 11, kind: input, shape index: {}]
  %s12 = inlined_call_operand.vmem [shape: f32[1,128], index: 12, kind: input, shape index: {}]
  %s13 = inlined_call_operand.vmem [shape: f32[1,128], index: 13, kind: input, shape index: {}]
  %s14 = inlined_call_operand.vmem [shape: f32[1,128], index: 14, kind: input, shape index: {}]
  %s15 = inlined_call_operand.hbm [shape: f32[2,8,128], index: 15, kind: output, shape index: {}]
  %s16 = sld [smem:[#allocation0]]
  $region93: #{transformer_forward.3} parent=0
    _
  %s18 = ssub.s32 1, %s16
  %s19 = scalar_select 0, %s18, %s16
  $region1: #{transformer_forward.3} parent=0
    #allocation2 [shape = 'u8[8192]{0}', space=vmem, size = 0x2000, scoped, tag = 'output window, operand 0']
    #allocation3 [shape = 's32[2]{0}', space=sflag, size = 0x8, scoped, tag = 'scoped memory for transformer_forward.3']
    %20 = vsyncpa [#allocation3], 0
    %s21 = scalar_lea.sflag [#allocation3], 1
    %22 = vsyncpa %s21, 0
    loop: start=0, step=1, limit=4
    $region2: #{transformer_forward.3} parent=1 // loop_pre_header
      _
    $region3: #{transformer_forward.3} parent=1 // loop_header
      %s24 = sphi 0, %s28
      %p25 = scmp.ge.s32.totalorder %s24, 4
      %s34 = sphi 0, %s36
      %s37 = sphi 0, %s34
      %s38 = sphi 0, %s37
      %s54 = sphi 0, %s38
      %s58 = sphi 0, %s58
      %s60 = sphi 0, %s58
      %s61 = sphi 0, %s60
      %s75 = sphi 0, %s61
      %s79 = sphi 0, %s79
      %s81 = sphi 0, %s79
      %s82 = sphi 0, %s81
      %s96 = sphi 0, %s82
      %s100 = sphi 0, %s100
      %s102 = sphi 0, %s100
      %s103 = sphi 0, %s102
      %s117 = sphi 0, %s103
      %s121 = sphi 0, %s121
      %s123 = sphi 0, %s121
      %s124 = sphi 0, %s123
      %s138 = sphi 0, %s124
      %s142 = sphi 0, %s142
      %s144 = sphi 0, %s142
      %s145 = sphi 0, %s144
      %s159 = sphi 0, %s145
      %s163 = sphi 0, %s163
      %s165 = sphi 0, %s163
      %s166 = sphi 0, %s165
      %s180 = sphi 0, %s166
      %s184 = sphi 0, %s184
      %s186 = sphi 0, %s184
      %s187 = sphi 0, %s186
      %s201 = sphi 0, %s187
      %s205 = sphi 0, %s205
      %s207 = sphi 0, %s205
      %s208 = sphi 0, %s207
      %s222 = sphi 0, %s208
      %s226 = sphi 0, %s226
      %s228 = sphi 0, %s226
      %s229 = sphi 0, %s228
      %s243 = sphi 0, %s229
      %s247 = sphi 0, %s247
      %s249 = sphi 0, %s247
      %s250 = sphi 0, %s249
      %s264 = sphi 0, %s250
      %s268 = sphi 0, %s268
      %s270 = sphi 0, %s268
      %s271 = sphi 0, %s270
      %s285 = sphi 0, %s271
      %s289 = sphi 0, %s289
      %s291 = sphi 0, %s289
      %s292 = sphi 0, %s291
      %s306 = sphi 0, %s292
      %s310 = sphi 0, %s310
      %s312 = sphi 0, %s310
      %s313 = sphi 0, %s312
      %s327 = sphi 0, %s313
      %s331 = sphi 0, %s331
      %s333 = sphi 0, %s331
      %s334 = sphi 0, %s333
      %s348 = sphi 0, %s334
      %s354 = sphi 0, %s356
      %s357 = sphi 0, %s354
      %s358 = sphi 0, %s357
      %s374 = sphi 0, %s358
    $region4: #{transformer_forward.3} parent=1 // loop_header_branch
      %27 = sbr.rel (%p25) target = $region8
    $region5: #{transformer_forward.3} parent=1 // loop_body
      %s29 = ssub.s32 %s24, 1
      %s30 = ssub.s32 %s24, 2
      %s31 = sadd.s32 %s24, 1
      %s32 = ssub.s32 %s24, %s31
      %p33 = scmp.eq.s32.totalorder %s32, 0
      %s35 = sadd.s32 %s34, 1
      %s36 = scalar_select %p33, %s34, %s35
      %p39 = pneg %p33
      %p40 = scmp.eq.s32.totalorder %s24, 1
      %p41 = por %p39, %p40
      %p42 = scmp.ne.s32.totalorder %s34, %s37
      %p43 = scmp.eq.s32.totalorder %s24, 0
      %p44 = por %p42, %p43
      %p45 = scmp.ne.s32.totalorder %s34, %s37
      %p46 = scmp.eq.s32.totalorder %s29, 1
      %p47 = por %p45, %p46
      %p48 = scmp.ne.s32.totalorder %s37, %s38
      %p49 = scmp.eq.s32.totalorder %s29, 0
      %p50 = por %p48, %p49
      %p51 = scmp.ne.s32.totalorder %s37, %s38
      %p52 = scmp.eq.s32.totalorder %s30, 1
      %p53 = por %p51, %p52
      %p55 = scmp.ne.s32.totalorder %s38, %s54
      %p56 = scmp.eq.s32.totalorder %s30, 0
      %p57 = por %p55, %p56
      %s59 = sadd.s32 %s58, 1
      %p62 = scmp.eq.s32.totalorder %s24, 1
      %p63 = scmp.ne.s32.totalorder %s58, %s60
      %p64 = scmp.eq.s32.totalorder %s24, 0
      %p65 = por %p63, %p64
      %p66 = scmp.ne.s32.totalorder %s58, %s60
      %p67 = scmp.eq.s32.totalorder %s29, 1
      %p68 = por %p66, %p67
      %p69 = scmp.ne.s32.totalorder %s60, %s61
      %p70 = scmp.eq.s32.totalorder %s29, 0
      %p71 = por %p69, %p70
      %p72 = scmp.ne.s32.totalorder %s60, %s61
      %p73 = scmp.eq.s32.totalorder %s30, 1
      %p74 = por %p72, %p73
      %p76 = scmp.ne.s32.totalorder %s61, %s75
      %p77 = scmp.eq.s32.totalorder %s30, 0
      %p78 = por %p76, %p77
      %s80 = sadd.s32 %s79, 1
      %p83 = scmp.eq.s32.totalorder %s24, 1
      %p84 = scmp.ne.s32.totalorder %s79, %s81
      %p85 = scmp.eq.s32.totalorder %s24, 0
      %p86 = por %p84, %p85
      %p87 = scmp.ne.s32.totalorder %s79, %s81
      %p88 = scmp.eq.s32.totalorder %s29, 1
      %p89 = por %p87, %p88
      %p90 = scmp.ne.s32.totalorder %s81, %s82
      %p91 = scmp.eq.s32.totalorder %s29, 0
      %p92 = por %p90, %p91
      %p93 = scmp.ne.s32.totalorder %s81, %s82
      %p94 = scmp.eq.s32.totalorder %s30, 1
      %p95 = por %p93, %p94
      %p97 = scmp.ne.s32.totalorder %s82, %s96
      %p98 = scmp.eq.s32.totalorder %s30, 0
      %p99 = por %p97, %p98
      %s101 = sadd.s32 %s100, 1
      %p104 = scmp.eq.s32.totalorder %s24, 1
      %p105 = scmp.ne.s32.totalorder %s100, %s102
      %p106 = scmp.eq.s32.totalorder %s24, 0
      %p107 = por %p105, %p106
      %p108 = scmp.ne.s32.totalorder %s100, %s102
      %p109 = scmp.eq.s32.totalorder %s29, 1
      %p110 = por %p108, %p109
      %p111 = scmp.ne.s32.totalorder %s102, %s103
      %p112 = scmp.eq.s32.totalorder %s29, 0
      %p113 = por %p111, %p112
      %p114 = scmp.ne.s32.totalorder %s102, %s103
      %p115 = scmp.eq.s32.totalorder %s30, 1
      %p116 = por %p114, %p115
      %p118 = scmp.ne.s32.totalorder %s103, %s117
      %p119 = scmp.eq.s32.totalorder %s30, 0
      %p120 = por %p118, %p119
      %s122 = sadd.s32 %s121, 1
      %p125 = scmp.eq.s32.totalorder %s24, 1
      %p126 = scmp.ne.s32.totalorder %s121, %s123
      %p127 = scmp.eq.s32.totalorder %s24, 0
      %p128 = por %p126, %p127
      %p129 = scmp.ne.s32.totalorder %s121, %s123
      %p130 = scmp.eq.s32.totalorder %s29, 1
      %p131 = por %p129, %p130
      %p132 = scmp.ne.s32.totalorder %s123, %s124
      %p133 = scmp.eq.s32.totalorder %s29, 0
      %p134 = por %p132, %p133
      %p135 = scmp.ne.s32.totalorder %s123, %s124
      %p136 = scmp.eq.s32.totalorder %s30, 1
      %p137 = por %p135, %p136
      %p139 = scmp.ne.s32.totalorder %s124, %s138
      %p140 = scmp.eq.s32.totalorder %s30, 0
      %p141 = por %p139, %p140
      %s143 = sadd.s32 %s142, 1
      %p146 = scmp.eq.s32.totalorder %s24, 1
      %p147 = scmp.ne.s32.totalorder %s142, %s144
      %p148 = scmp.eq.s32.totalorder %s24, 0
      %p149 = por %p147, %p148
      %p150 = scmp.ne.s32.totalorder %s142, %s144
      %p151 = scmp.eq.s32.totalorder %s29, 1
      %p152 = por %p150, %p151
      %p153 = scmp.ne.s32.totalorder %s144, %s145
      %p154 = scmp.eq.s32.totalorder %s29, 0
      %p155 = por %p153, %p154
      %p156 = scmp.ne.s32.totalorder %s144, %s145
      %p157 = scmp.eq.s32.totalorder %s30, 1
      %p158 = por %p156, %p157
      %p160 = scmp.ne.s32.totalorder %s145, %s159
      %p161 = scmp.eq.s32.totalorder %s30, 0
      %p162 = por %p160, %p161
      %s164 = sadd.s32 %s163, 1
      %p167 = scmp.eq.s32.totalorder %s24, 1
      %p168 = scmp.ne.s32.totalorder %s163, %s165
      %p169 = scmp.eq.s32.totalorder %s24, 0
      %p170 = por %p168, %p169
      %p171 = scmp.ne.s32.totalorder %s163, %s165
      %p172 = scmp.eq.s32.totalorder %s29, 1
      %p173 = por %p171, %p172
      %p174 = scmp.ne.s32.totalorder %s165, %s166
      %p175 = scmp.eq.s32.totalorder %s29, 0
      %p176 = por %p174, %p175
      %p177 = scmp.ne.s32.totalorder %s165, %s166
      %p178 = scmp.eq.s32.totalorder %s30, 1
      %p179 = por %p177, %p178
      %p181 = scmp.ne.s32.totalorder %s166, %s180
      %p182 = scmp.eq.s32.totalorder %s30, 0
      %p183 = por %p181, %p182
      %s185 = sadd.s32 %s184, 1
      %p188 = scmp.eq.s32.totalorder %s24, 1
      %p189 = scmp.ne.s32.totalorder %s184, %s186
      %p190 = scmp.eq.s32.totalorder %s24, 0
      %p191 = por %p189, %p190
      %p192 = scmp.ne.s32.totalorder %s184, %s186
      %p193 = scmp.eq.s32.totalorder %s29, 1
      %p194 = por %p192, %p193
      %p195 = scmp.ne.s32.totalorder %s186, %s187
      %p196 = scmp.eq.s32.totalorder %s29, 0
      %p197 = por %p195, %p196
      %p198 = scmp.ne.s32.totalorder %s186, %s187
      %p199 = scmp.eq.s32.totalorder %s30, 1
      %p200 = por %p198, %p199
      %p202 = scmp.ne.s32.totalorder %s187, %s201
      %p203 = scmp.eq.s32.totalorder %s30, 0
      %p204 = por %p202, %p203
      %s206 = sadd.s32 %s205, 1
      %p209 = scmp.eq.s32.totalorder %s24, 1
      %p210 = scmp.ne.s32.totalorder %s205, %s207
      %p211 = scmp.eq.s32.totalorder %s24, 0
      %p212 = por %p210, %p211
      %p213 = scmp.ne.s32.totalorder %s205, %s207
      %p214 = scmp.eq.s32.totalorder %s29, 1
      %p215 = por %p213, %p214
      %p216 = scmp.ne.s32.totalorder %s207, %s208
      %p217 = scmp.eq.s32.totalorder %s29, 0
      %p218 = por %p216, %p217
      %p219 = scmp.ne.s32.totalorder %s207, %s208
      %p220 = scmp.eq.s32.totalorder %s30, 1
      %p221 = por %p219, %p220
      %p223 = scmp.ne.s32.totalorder %s208, %s222
      %p224 = scmp.eq.s32.totalorder %s30, 0
      %p225 = por %p223, %p224
      %s227 = sadd.s32 %s226, 1
      %p230 = scmp.eq.s32.totalorder %s24, 1
      %p231 = scmp.ne.s32.totalorder %s226, %s228
      %p232 = scmp.eq.s32.totalorder %s24, 0
      %p233 = por %p231, %p232
      %p234 = scmp.ne.s32.totalorder %s226, %s228
      %p235 = scmp.eq.s32.totalorder %s29, 1
      %p236 = por %p234, %p235
      %p237 = scmp.ne.s32.totalorder %s228, %s229
      %p238 = scmp.eq.s32.totalorder %s29, 0
      %p239 = por %p237, %p238
      %p240 = scmp.ne.s32.totalorder %s228, %s229
      %p241 = scmp.eq.s32.totalorder %s30, 1
      %p242 = por %p240, %p241
      %p244 = scmp.ne.s32.totalorder %s229, %s243
      %p245 = scmp.eq.s32.totalorder %s30, 0
      %p246 = por %p244, %p245
      %s248 = sadd.s32 %s247, 1
      %p251 = scmp.eq.s32.totalorder %s24, 1
      %p252 = scmp.ne.s32.totalorder %s247, %s249
      %p253 = scmp.eq.s32.totalorder %s24, 0
      %p254 = por %p252, %p253
      %p255 = scmp.ne.s32.totalorder %s247, %s249
      %p256 = scmp.eq.s32.totalorder %s29, 1
      %p257 = por %p255, %p256
      %p258 = scmp.ne.s32.totalorder %s249, %s250
      %p259 = scmp.eq.s32.totalorder %s29, 0
      %p260 = por %p258, %p259
      %p261 = scmp.ne.s32.totalorder %s249, %s250
      %p262 = scmp.eq.s32.totalorder %s30, 1
      %p263 = por %p261, %p262
      %p265 = scmp.ne.s32.totalorder %s250, %s264
      %p266 = scmp.eq.s32.totalorder %s30, 0
      %p267 = por %p265, %p266
      %s269 = sadd.s32 %s268, 1
      %p272 = scmp.eq.s32.totalorder %s24, 1
      %p273 = scmp.ne.s32.totalorder %s268, %s270
      %p274 = scmp.eq.s32.totalorder %s24, 0
      %p275 = por %p273, %p274
      %p276 = scmp.ne.s32.totalorder %s268, %s270
      %p277 = scmp.eq.s32.totalorder %s29, 1
      %p278 = por %p276, %p277
      %p279 = scmp.ne.s32.totalorder %s270, %s271
      %p280 = scmp.eq.s32.totalorder %s29, 0
      %p281 = por %p279, %p280
      %p282 = scmp.ne.s32.totalorder %s270, %s271
      %p283 = scmp.eq.s32.totalorder %s30, 1
      %p284 = por %p282, %p283
      %p286 = scmp.ne.s32.totalorder %s271, %s285
      %p287 = scmp.eq.s32.totalorder %s30, 0
      %p288 = por %p286, %p287
      %s290 = sadd.s32 %s289, 1
      %p293 = scmp.eq.s32.totalorder %s24, 1
      %p294 = scmp.ne.s32.totalorder %s289, %s291
      %p295 = scmp.eq.s32.totalorder %s24, 0
      %p296 = por %p294, %p295
      %p297 = scmp.ne.s32.totalorder %s289, %s291
      %p298 = scmp.eq.s32.totalorder %s29, 1
      %p299 = por %p297, %p298
      %p300 = scmp.ne.s32.totalorder %s291, %s292
      %p301 = scmp.eq.s32.totalorder %s29, 0
      %p302 = por %p300, %p301
      %p303 = scmp.ne.s32.totalorder %s291, %s292
      %p304 = scmp.eq.s32.totalorder %s30, 1
      %p305 = por %p303, %p304
      %p307 = scmp.ne.s32.totalorder %s292, %s306
      %p308 = scmp.eq.s32.totalorder %s30, 0
      %p309 = por %p307, %p308
      %s311 = sadd.s32 %s310, 1
      %p314 = scmp.eq.s32.totalorder %s24, 1
      %p315 = scmp.ne.s32.totalorder %s310, %s312
      %p316 = scmp.eq.s32.totalorder %s24, 0
      %p317 = por %p315, %p316
      %p318 = scmp.ne.s32.totalorder %s310, %s312
      %p319 = scmp.eq.s32.totalorder %s29, 1
      %p320 = por %p318, %p319
      %p321 = scmp.ne.s32.totalorder %s312, %s313
      %p322 = scmp.eq.s32.totalorder %s29, 0
      %p323 = por %p321, %p322
      %p324 = scmp.ne.s32.totalorder %s312, %s313
      %p325 = scmp.eq.s32.totalorder %s30, 1
      %p326 = por %p324, %p325
      %p328 = scmp.ne.s32.totalorder %s313, %s327
      %p329 = scmp.eq.s32.totalorder %s30, 0
      %p330 = por %p328, %p329
      %s332 = sadd.s32 %s331, 1
      %p335 = scmp.eq.s32.totalorder %s24, 1
      %p336 = scmp.ne.s32.totalorder %s331, %s333
      %p337 = scmp.eq.s32.totalorder %s24, 0
      %p338 = por %p336, %p337
      %p339 = scmp.ne.s32.totalorder %s331, %s333
      %p340 = scmp.eq.s32.totalorder %s29, 1
      %p341 = por %p339, %p340
      %p342 = scmp.ne.s32.totalorder %s333, %s334
      %p343 = scmp.eq.s32.totalorder %s29, 0
      %p344 = por %p342, %p343
      %p345 = scmp.ne.s32.totalorder %s333, %s334
      %p346 = scmp.eq.s32.totalorder %s30, 1
      %p347 = por %p345, %p346
      %p349 = scmp.ne.s32.totalorder %s334, %s348
      %p350 = scmp.eq.s32.totalorder %s30, 0
      %p351 = por %p349, %p350
      %s352 = ssub.s32 %s24, %s31
      %p353 = scmp.eq.s32.totalorder %s352, 0
      %s355 = sadd.s32 %s354, 1
      %s356 = scalar_select %p353, %s354, %s355
      %p359 = pneg %p353
      %p360 = scmp.eq.s32.totalorder %s24, 1
      %p361 = por %p359, %p360
      %p362 = scmp.ne.s32.totalorder %s354, %s357
      %p363 = scmp.eq.s32.totalorder %s24, 0
      %p364 = por %p362, %p363
      %p365 = scmp.ne.s32.totalorder %s354, %s357
      %p366 = scmp.eq.s32.totalorder %s29, 1
      %p367 = por %p365, %p366
      %p368 = scmp.ne.s32.totalorder %s357, %s358
      %p369 = scmp.eq.s32.totalorder %s29, 0
      %p370 = por %p368, %p369
      %p371 = scmp.ne.s32.totalorder %s357, %s358
      %p372 = scmp.eq.s32.totalorder %s30, 1
      %p373 = por %p371, %p372
      %p375 = scmp.ne.s32.totalorder %s358, %s374
      %p376 = scmp.eq.s32.totalorder %s30, 0
      %p377 = por %p375, %p376
      %p378 = scmp.le.s32.totalorder 1, %s24
      %p379 = scmp.lt.s32.totalorder %s24, 3
      %p380 = pnand %p378, %p379
      %p381 = pneg %p380
      // Predicated region
      $region9: #{transformer_forward.3} parent=5 // pred_check
        _
      $region10: #{transformer_forward.3} parent=5 // pred_check_branch
        %383 = sbr.rel (%p380) target = $region12
      $region11: #{transformer_forward.3} parent=5 // pred_region
        %s384 = ssub.s32 %s24, 1
        // Predicated region
        $region13: #{transformer_forward.3} parent=11 // pred_check
          %p385 = pneg %p71
        $region14: #{transformer_forward.3} parent=11 // pred_check_branch
          %387 = sbr.rel (%p385) target = $region16
        $region15: #{transformer_forward.3} parent=11 // pred_region
          _
        $region16: #{transformer_forward.3} parent=11 // pred_fallthru
          _
        // Predicated region
        $region17: #{transformer_forward.3} parent=11 // pred_check
          %p388 = pneg %p92
        $region18: #{transformer_forward.3} parent=11 // pred_check_branch
          %390 = sbr.rel (%p388) target = $region20
        $region19: #{transformer_forward.3} parent=11 // pred_region
          _
        $region20: #{transformer_forward.3} parent=11 // pred_fallthru
          _
        // Predicated region
        $region21: #{transformer_forward.3} parent=11 // pred_check
          %p391 = pneg %p113
        $region22: #{transformer_forward.3} parent=11 // pred_check_branch
          %393 = sbr.rel (%p391) target = $region24
        $region23: #{transformer_forward.3} parent=11 // pred_region
          _
        $region24: #{transformer_forward.3} parent=11 // pred_fallthru
          _
        // Predicated region
        $region25: #{transformer_forward.3} parent=11 // pred_check
          %p394 = pneg %p134
        $region26: #{transformer_forward.3} parent=11 // pred_check_branch
          %396 = sbr.rel (%p394) target = $region28
        $region27: #{transformer_forward.3} parent=11 // pred_region
          _
        $region28: #{transformer_forward.3} parent=11 // pred_fallthru
          _
        // Predicated region
        $region29: #{transformer_forward.3} parent=11 // pred_check
          %p397 = pneg %p155
        $region30: #{transformer_forward.3} parent=11 // pred_check_branch
          %399 = sbr.rel (%p397) target = $region32
        $region31: #{transformer_forward.3} parent=11 // pred_region
          _
        $region32: #{transformer_forward.3} parent=11 // pred_fallthru
          _
        // Predicated region
        $region33: #{transformer_forward.3} parent=11 // pred_check
          %p400 = pneg %p176
        $region34: #{transformer_forward.3} parent=11 // pred_check_branch
          %402 = sbr.rel (%p400) target = $region36
        $region35: #{transformer_forward.3} parent=11 // pred_region
          _
        $region36: #{transformer_forward.3} parent=11 // pred_fallthru
          _
        // Predicated region
        $region37: #{transformer_forward.3} parent=11 // pred_check
          %p403 = pneg %p197
        $region38: #{transformer_forward.3} parent=11 // pred_check_branch
          %405 = sbr.rel (%p403) target = $region40
        $region39: #{transformer_forward.3} parent=11 // pred_region
          _
        $region40: #{transformer_forward.3} parent=11 // pred_fallthru
          _
        // Predicated region
        $region41: #{transformer_forward.3} parent=11 // pred_check
          %p406 = pneg %p218
        $region42: #{transformer_forward.3} parent=11 // pred_check_branch
          %408 = sbr.rel (%p406) target = $region44
        $region43: #{transformer_forward.3} parent=11 // pred_region
          _
        $region44: #{transformer_forward.3} parent=11 // pred_fallthru
          _
        // Predicated region
        $region45: #{transformer_forward.3} parent=11 // pred_check
          %p409 = pneg %p239
        $region46: #{transformer_forward.3} parent=11 // pred_check_branch
          %411 = sbr.rel (%p409) target = $region48
        $region47: #{transformer_forward.3} parent=11 // pred_region
          _
        $region48: #{transformer_forward.3} parent=11 // pred_fallthru
          _
        // Predicated region
        $region49: #{transformer_forward.3} parent=11 // pred_check
          %p412 = pneg %p260
        $region50: #{transformer_forward.3} parent=11 // pred_check_branch
          %414 = sbr.rel (%p412) target = $region52
        $region51: #{transformer_forward.3} parent=11 // pred_region
          _
        $region52: #{transformer_forward.3} parent=11 // pred_fallthru
          _
        // Predicated region
        $region53: #{transformer_forward.3} parent=11 // pred_check
          %p415 = pneg %p281
        $region54: #{transformer_forward.3} parent=11 // pred_check_branch
          %417 = sbr.rel (%p415) target = $region56
        $region55: #{transformer_forward.3} parent=11 // pred_region
          _
        $region56: #{transformer_forward.3} parent=11 // pred_fallthru
          _
        // Predicated region
        $region57: #{transformer_forward.3} parent=11 // pred_check
          %p418 = pneg %p302
        $region58: #{transformer_forward.3} parent=11 // pred_check_branch
          %420 = sbr.rel (%p418) target = $region60
        $region59: #{transformer_forward.3} parent=11 // pred_region
          _
        $region60: #{transformer_forward.3} parent=11 // pred_fallthru
          _
        // Predicated region
        $region61: #{transformer_forward.3} parent=11 // pred_check
          %p421 = pneg %p323
        $region62: #{transformer_forward.3} parent=11 // pred_check_branch
          %423 = sbr.rel (%p421) target = $region64
        $region63: #{transformer_forward.3} parent=11 // pred_region
          _
        $region64: #{transformer_forward.3} parent=11 // pred_fallthru
          _
        // Predicated region
        $region65: #{transformer_forward.3} parent=11 // pred_check
          %p424 = pneg %p344
        $region66: #{transformer_forward.3} parent=11 // pred_check_branch
          %426 = sbr.rel (%p424) target = $region68
        $region67: #{transformer_forward.3} parent=11 // pred_region
          _
        $region68: #{transformer_forward.3} parent=11 // pred_fallthru
          _
      $region12: #{transformer_forward.3} parent=5 // pred_fallthru
        _
      %p427 = scmp.lt.s32.totalorder %s24, 2
      // Predicated region
      $region69: #{transformer_forward.3} parent=5 // pred_check
        %p428 = pneg %p427
      $region70: #{transformer_forward.3} parent=5 // pred_check_branch
        %430 = sbr.rel (%p428) target = $region72
      $region71: #{transformer_forward.3} parent=5 // pred_region
        // Predicated region
        $region73: #{transformer_forward.3} parent=71 // pred_check
          %p431 = pneg %p44
        $region74: #{transformer_forward.3} parent=71 // pred_check_branch
          %433 = sbr.rel (%p431) target = $region76
        $region75: #{transformer_forward.3} parent=71 // pred_region
          %p434 = scmp.lt.s32.totalorder %s24, 1
          %s435 = scalar_select %p434, %s24, 1
          %s436 = smul.addr %s435, 8
          %s437 = scalar_lea.vmem %s0, %s436
        $region76: #{transformer_forward.3} parent=71 // pred_fallthru
          _
      $region72: #{transformer_forward.3} parent=5 // pred_fallthru
        _
      %p438 = scmp.le.s32.totalorder 1, %s24
      %p439 = scmp.lt.s32.totalorder %s24, 3
      %p440 = pnand %p438, %p439
      %p441 = pneg %p440
      // Predicated region
      $region77: #{transformer_forward.3} parent=5 // pred_check
        _
      $region78: #{transformer_forward.3} parent=5 // pred_check_branch
        %443 = sbr.rel (%p440) target = $region80
      $region79: #{transformer_forward.3} parent=5 // pred_region
        %s444 = ssub.s32 %s24, 1
        %p445 = scmp.lt.s32.totalorder %s29, 1
        %s446 = scalar_select %p445, %s29, 1
        %s447 = smul.addr %s446, 8
        %s448 = scalar_lea.vmem %s0, %s447
        %p449 = pneg %p50
        %p450 = pneg %p47
        %p451 = pneg %p71
        %p452 = pneg %p68
        %p453 = pneg %p92
        %p454 = pneg %p89
        %p455 = pneg %p113
        %p456 = pneg %p110
        %p457 = pneg %p134
        %p458 = pneg %p131
        %p459 = pneg %p155
        %p460 = pneg %p152
        %p461 = pneg %p176
        %p462 = pneg %p173
        %p463 = pneg %p197
        %p464 = pneg %p194
        %p465 = pneg %p218
        %p466 = pneg %p215
        %p467 = pneg %p239
        %p468 = pneg %p236
        %p469 = pneg %p260
        %p470 = pneg %p257
        %p471 = pneg %p281
        %p472 = pneg %p278
        %p473 = pneg %p302
        %p474 = pneg %p299
        %p475 = pneg %p323
        %p476 = pneg %p320
        %p477 = pneg %p344
        %p478 = pneg %p341
        %p479 = pneg %p370
        %p480 = pneg %p367
        %s481 = sand.u32 %s357, 1
        %s482 = scalar_lea.sflag [#allocation3], %s481
        %s483 = sand.u32 %s357, 1
        %s484 = smul.addr %s483, 8
        %s485 = scalar_lea.vmem [#allocation2], %s484
        %p486 = scmp.lt.s32.totalorder %s29, 1
        %s487 = scalar_select %p486, %s29, 1
        %s488 = smul.addr %s487, 8
        %s489 = scalar_lea.vmem %s0, %s488
        %v491 = vld [vmem:[%s489] sm:$0xff]
        %v492 = vld [vmem:[%s1] sm:$0xf]
        %v493 = vld [vmem:[%s1 + $0x4] sm:$0xf]
        %v494 = vld [vmem:[%s1 + $0x8] sm:$0xf]
        %v495 = vld [vmem:[%s1 + $0xc] sm:$0xf]
        %v496 = vld [vmem:[%s1 + $0x10] sm:$0xf]
        %v497 = vld [vmem:[%s1 + $0x14] sm:$0xf]
        %v498 = vld [vmem:[%s1 + $0x18] sm:$0xf]
        %v499 = vld [vmem:[%s1 + $0x1c] sm:$0xf]
        %v500 = vld [vmem:[%s1 + $0x20] sm:$0xf]
        %v501 = vld [vmem:[%s1 + $0x24] sm:$0xf]
        %v502 = vld [vmem:[%s1 + $0x28] sm:$0xf]
        %v503 = vld [vmem:[%s1 + $0x2c] sm:$0xf]
        %v504 = vld [vmem:[%s1 + $0x30] sm:$0xf]
        %v505 = vld [vmem:[%s1 + $0x34] sm:$0xf]
        %v506 = vld [vmem:[%s1 + $0x38] sm:$0xf]
        %v507 = vld [vmem:[%s1 + $0x3c] sm:$0xf]
        %v508 = vld [vmem:[%s1 + $0x40] sm:$0xf]
        %v509 = vld [vmem:[%s1 + $0x44] sm:$0xf]
        %v510 = vld [vmem:[%s1 + $0x48] sm:$0xf]
        %v511 = vld [vmem:[%s1 + $0x4c] sm:$0xf]
        %v512 = vld [vmem:[%s1 + $0x50] sm:$0xf]
        %v513 = vld [vmem:[%s1 + $0x54] sm:$0xf]
        %v514 = vld [vmem:[%s1 + $0x58] sm:$0xf]
        %v515 = vld [vmem:[%s1 + $0x5c] sm:$0xf]
        %v516 = vld [vmem:[%s1 + $0x60] sm:$0xf]
        %v517 = vld [vmem:[%s1 + $0x64] sm:$0xf]
        %v518 = vld [vmem:[%s1 + $0x68] sm:$0xf]
        %v519 = vld [vmem:[%s1 + $0x6c] sm:$0xf]
        %v520 = vld [vmem:[%s1 + $0x70] sm:$0xf]
        %v521 = vld [vmem:[%s1 + $0x74] sm:$0xf]
        %v522 = vld [vmem:[%s1 + $0x78] sm:$0xf]
        %v523 = vld [vmem:[%s1 + $0x7c] sm:$0xf]
        %v524 = vld [vmem:[%s1 + $0x80] sm:$0xf]
        %v525 = vld [vmem:[%s1 + $0x84] sm:$0xf]
        %v526 = vld [vmem:[%s1 + $0x88] sm:$0xf]
        %v527 = vld [vmem:[%s1 + $0x8c] sm:$0xf]
        %v528 = vld [vmem:[%s1 + $0x90] sm:$0xf]
        %v529 = vld [vmem:[%s1 + $0x94] sm:$0xf]
        %v530 = vld [vmem:[%s1 + $0x98] sm:$0xf]
        %v531 = vld [vmem:[%s1 + $0x9c] sm:$0xf]
        %v532 = vld [vmem:[%s1 + $0xa0] sm:$0xf]
        %v533 = vld [vmem:[%s1 + $0xa4] sm:$0xf]
        %v534 = vld [vmem:[%s1 + $0xa8] sm:$0xf]
        %v535 = vld [vmem:[%s1 + $0xac] sm:$0xf]
        %v536 = vld [vmem:[%s1 + $0xb0] sm:$0xf]
        %v537 = vld [vmem:[%s1 + $0xb4] sm:$0xf]
        %v538 = vld [vmem:[%s1 + $0xb8] sm:$0xf]
        %v539 = vld [vmem:[%s1 + $0xbc] sm:$0xf]
        %v540 = vld [vmem:[%s1 + $0xc0] sm:$0xf]
        %v541 = vld [vmem:[%s1 + $0xc4] sm:$0xf]
        %v542 = vld [vmem:[%s1 + $0xc8] sm:$0xf]
        %v543 = vld [vmem:[%s1 + $0xcc] sm:$0xf]
        %v544 = vld [vmem:[%s1 + $0xd0] sm:$0xf]
        %v545 = vld [vmem:[%s1 + $0xd4] sm:$0xf]
        %v546 = vld [vmem:[%s1 + $0xd8] sm:$0xf]
        %v547 = vld [vmem:[%s1 + $0xdc] sm:$0xf]
        %v548 = vld [vmem:[%s1 + $0xe0] sm:$0xf]
        %v549 = vld [vmem:[%s1 + $0xe4] sm:$0xf]
        %v550 = vld [vmem:[%s1 + $0xe8] sm:$0xf]
        %v551 = vld [vmem:[%s1 + $0xec] sm:$0xf]
        %v552 = vld [vmem:[%s1 + $0xf0] sm:$0xf]
        %v553 = vld [vmem:[%s1 + $0xf4] sm:$0xf]
        %v554 = vld [vmem:[%s1 + $0xf8] sm:$0xf]
        %v555 = vld [vmem:[%s1 + $0xfc] sm:$0xf]
        %v556 = vld [vmem:[%s1 + $0x100] sm:$0xf]
        %v557 = vld [vmem:[%s1 + $0x104] sm:$0xf]
        %v558 = vld [vmem:[%s1 + $0x108] sm:$0xf]
        %v559 = vld [vmem:[%s1 + $0x10c] sm:$0xf]
        %v560 = vld [vmem:[%s1 + $0x110] sm:$0xf]
        %v561 = vld [vmem:[%s1 + $0x114] sm:$0xf]
        %v562 = vld [vmem:[%s1 + $0x118] sm:$0xf]
        %v563 = vld [vmem:[%s1 + $0x11c] sm:$0xf]
        %v564 = vld [vmem:[%s1 + $0x120] sm:$0xf]
        %v565 = vld [vmem:[%s1 + $0x124] sm:$0xf]
        %v566 = vld [vmem:[%s1 + $0x128] sm:$0xf]
        %v567 = vld [vmem:[%s1 + $0x12c] sm:$0xf]
        %v568 = vld [vmem:[%s1 + $0x130] sm:$0xf]
        %v569 = vld [vmem:[%s1 + $0x134] sm:$0xf]
        %v570 = vld [vmem:[%s1 + $0x138] sm:$0xf]
        %v571 = vld [vmem:[%s1 + $0x13c] sm:$0xf]
        %v572 = vld [vmem:[%s1 + $0x140] sm:$0xf]
        %v573 = vld [vmem:[%s1 + $0x144] sm:$0xf]
        %v574 = vld [vmem:[%s1 + $0x148] sm:$0xf]
        %v575 = vld [vmem:[%s1 + $0x14c] sm:$0xf]
        %v576 = vld [vmem:[%s1 + $0x150] sm:$0xf]
        %v577 = vld [vmem:[%s1 + $0x154] sm:$0xf]
        %v578 = vld [vmem:[%s1 + $0x158] sm:$0xf]
        %v579 = vld [vmem:[%s1 + $0x15c] sm:$0xf]
        %v580 = vld [vmem:[%s1 + $0x160] sm:$0xf]
        %v581 = vld [vmem:[%s1 + $0x164] sm:$0xf]
        %v582 = vld [vmem:[%s1 + $0x168] sm:$0xf]
        %v583 = vld [vmem:[%s1 + $0x16c] sm:$0xf]
        %v584 = vld [vmem:[%s1 + $0x170] sm:$0xf]
        %v585 = vld [vmem:[%s1 + $0x174] sm:$0xf]
        %v586 = vld [vmem:[%s1 + $0x178] sm:$0xf]
        %v587 = vld [vmem:[%s1 + $0x17c] sm:$0xf]
        %v588 = vld [vmem:[%s1 + $0x180] sm:$0xf]
        %v589 = vld [vmem:[%s1 + $0x184] sm:$0xf]
        %v590 = vld [vmem:[%s1 + $0x188] sm:$0xf]
        %v591 = vld [vmem:[%s1 + $0x18c] sm:$0xf]
        %v592 = vld [vmem:[%s1 + $0x190] sm:$0xf]
        %v593 = vld [vmem:[%s1 + $0x194] sm:$0xf]
        %v594 = vld [vmem:[%s1 + $0x198] sm:$0xf]
        %v595 = vld [vmem:[%s1 + $0x19c] sm:$0xf]
        %v596 = vld [vmem:[%s1 + $0x1a0] sm:$0xf]
        %v597 = vld [vmem:[%s1 + $0x1a4] sm:$0xf]
        %v598 = vld [vmem:[%s1 + $0x1a8] sm:$0xf]
        %v599 = vld [vmem:[%s1 + $0x1ac] sm:$0xf]
        %v600 = vld [vmem:[%s1 + $0x1b0] sm:$0xf]
        %v601 = vld [vmem:[%s1 + $0x1b4] sm:$0xf]
        %v602 = vld [vmem:[%s1 + $0x1b8] sm:$0xf]
        %v603 = vld [vmem:[%s1 + $0x1bc] sm:$0xf]
        %v604 = vld [vmem:[%s1 + $0x1c0] sm:$0xf]
        %v605 = vld [vmem:[%s1 + $0x1c4] sm:$0xf]
        %v606 = vld [vmem:[%s1 + $0x1c8] sm:$0xf]
        %v607 = vld [vmem:[%s1 + $0x1cc] sm:$0xf]
        %v608 = vld [vmem:[%s1 + $0x1d0] sm:$0xf]
        %v609 = vld [vmem:[%s1 + $0x1d4] sm:$0xf]
        %v610 = vld [vmem:[%s1 + $0x1d8] sm:$0xf]
        %v611 = vld [vmem:[%s1 + $0x1dc] sm:$0xf]
        %v612 = vld [vmem:[%s1 + $0x1e0] sm:$0xf]
        %v613 = vld [vmem:[%s1 + $0x1e4] sm:$0xf]
        %v614 = vld [vmem:[%s1 + $0x1e8] sm:$0xf]
        %v615 = vld [vmem:[%s1 + $0x1ec] sm:$0xf]
        %v616 = vld [vmem:[%s1 + $0x1f0] sm:$0xf]
        %v617 = vld [vmem:[%s1 + $0x1f4] sm:$0xf]
        %v618 = vld [vmem:[%s1 + $0x1f8] sm:$0xf]
        %v619 = vld [vmem:[%s1 + $0x1fc] sm:$0xf]
        %v620 = vld [vmem:[%s1 + $0x200] sm:$0xf]
        %v621 = vld [vmem:[%s1 + $0x204] sm:$0xf]
        %v622 = vld [vmem:[%s1 + $0x208] sm:$0xf]
        %v623 = vld [vmem:[%s1 + $0x20c] sm:$0xf]
        %v624 = vld [vmem:[%s1 + $0x210] sm:$0xf]
        %v625 = vld [vmem:[%s1 + $0x214] sm:$0xf]
        %v626 = vld [vmem:[%s1 + $0x218] sm:$0xf]
        %v627 = vld [vmem:[%s1 + $0x21c] sm:$0xf]
        %v628 = vld [vmem:[%s1 + $0x220] sm:$0xf]
        %v629 = vld [vmem:[%s1 + $0x224] sm:$0xf]
        %v630 = vld [vmem:[%s1 + $0x228] sm:$0xf]
        %v631 = vld [vmem:[%s1 + $0x22c] sm:$0xf]
        %v632 = vld [vmem:[%s1 + $0x230] sm:$0xf]
        %v633 = vld [vmem:[%s1 + $0x234] sm:$0xf]
        %v634 = vld [vmem:[%s1 + $0x238] sm:$0xf]
        %v635 = vld [vmem:[%s1 + $0x23c] sm:$0xf]
        %v636 = vld [vmem:[%s1 + $0x240] sm:$0xf]
        %v637 = vld [vmem:[%s1 + $0x244] sm:$0xf]
        %v638 = vld [vmem:[%s1 + $0x248] sm:$0xf]
        %v639 = vld [vmem:[%s1 + $0x24c] sm:$0xf]
        %v640 = vld [vmem:[%s1 + $0x250] sm:$0xf]
        %v641 = vld [vmem:[%s1 + $0x254] sm:$0xf]
        %v642 = vld [vmem:[%s1 + $0x258] sm:$0xf]
        %v643 = vld [vmem:[%s1 + $0x25c] sm:$0xf]
        %v644 = vld [vmem:[%s1 + $0x260] sm:$0xf]
        %v645 = vld [vmem:[%s1 + $0x264] sm:$0xf]
        %v646 = vld [vmem:[%s1 + $0x268] sm:$0xf]
        %v647 = vld [vmem:[%s1 + $0x26c] sm:$0xf]
        %v648 = vld [vmem:[%s1 + $0x270] sm:$0xf]
        %v649 = vld [vmem:[%s1 + $0x274] sm:$0xf]
        %v650 = vld [vmem:[%s1 + $0x278] sm:$0xf]
        %v651 = vld [vmem:[%s1 + $0x27c] sm:$0xf]
        %v652 = vld [vmem:[%s1 + $0x280] sm:$0xf]
        %v653 = vld [vmem:[%s1 + $0x284] sm:$0xf]
        %v654 = vld [vmem:[%s1 + $0x288] sm:$0xf]
        %v655 = vld [vmem:[%s1 + $0x28c] sm:$0xf]
        %v656 = vld [vmem:[%s1 + $0x290] sm:$0xf]
        %v657 = vld [vmem:[%s1 + $0x294] sm:$0xf]
        %v658 = vld [vmem:[%s1 + $0x298] sm:$0xf]
        %v659 = vld [vmem:[%s1 + $0x29c] sm:$0xf]
        %v660 = vld [vmem:[%s1 + $0x2a0] sm:$0xf]
        %v661 = vld [vmem:[%s1 + $0x2a4] sm:$0xf]
        %v662 = vld [vmem:[%s1 + $0x2a8] sm:$0xf]
        %v663 = vld [vmem:[%s1 + $0x2ac] sm:$0xf]
        %v664 = vld [vmem:[%s1 + $0x2b0] sm:$0xf]
        %v665 = vld [vmem:[%s1 + $0x2b4] sm:$0xf]
        %v666 = vld [vmem:[%s1 + $0x2b8] sm:$0xf]
        %v667 = vld [vmem:[%s1 + $0x2bc] sm:$0xf]
        %v668 = vld [vmem:[%s1 + $0x2c0] sm:$0xf]
        %v669 = vld [vmem:[%s1 + $0x2c4] sm:$0xf]
        %v670 = vld [vmem:[%s1 + $0x2c8] sm:$0xf]
        %v671 = vld [vmem:[%s1 + $0x2cc] sm:$0xf]
        %v672 = vld [vmem:[%s1 + $0x2d0] sm:$0xf]
        %v673 = vld [vmem:[%s1 + $0x2d4] sm:$0xf]
        %v674 = vld [vmem:[%s1 + $0x2d8] sm:$0xf]
        %v675 = vld [vmem:[%s1 + $0x2dc] sm:$0xf]
        %v676 = vld [vmem:[%s1 + $0x2e0] sm:$0xf]
        %v677 = vld [vmem:[%s1 + $0x2e4] sm:$0xf]
        %v678 = vld [vmem:[%s1 + $0x2e8] sm:$0xf]
        %v679 = vld [vmem:[%s1 + $0x2ec] sm:$0xf]
        %v680 = vld [vmem:[%s1 + $0x2f0] sm:$0xf]
        %v681 = vld [vmem:[%s1 + $0x2f4] sm:$0xf]
        %v682 = vld [vmem:[%s1 + $0x2f8] sm:$0xf]
        %v683 = vld [vmem:[%s1 + $0x2fc] sm:$0xf]
        %v684 = vld [vmem:[%s2] sm:$0xf]
        %v685 = vld [vmem:[%s2 + $0x4] sm:$0xf]
        %v686 = vld [vmem:[%s2 + $0x8] sm:$0xf]
        %v687 = vld [vmem:[%s2 + $0xc] sm:$0xf]
        %v688 = vld [vmem:[%s2 + $0x10] sm:$0xf]
        %v689 = vld [vmem:[%s2 + $0x14] sm:$0xf]
        %v690 = vld [vmem:[%s2 + $0x18] sm:$0xf]
        %v691 = vld [vmem:[%s2 + $0x1c] sm:$0xf]
        %v692 = vld [vmem:[%s2 + $0x20] sm:$0xf]
        %v693 = vld [vmem:[%s2 + $0x24] sm:$0xf]
        %v694 = vld [vmem:[%s2 + $0x28] sm:$0xf]
        %v695 = vld [vmem:[%s2 + $0x2c] sm:$0xf]
        %v696 = vld [vmem:[%s2 + $0x30] sm:$0xf]
        %v697 = vld [vmem:[%s2 + $0x34] sm:$0xf]
        %v698 = vld [vmem:[%s2 + $0x38] sm:$0xf]
        %v699 = vld [vmem:[%s2 + $0x3c] sm:$0xf]
        %v700 = vpack.c.bf16 %v491, %v491
        %v717 = vunpack.c.l.b16 %v492
        %v718 = vunpack.c.l.b16 %v493
        %v719 = vunpack.c.l.b16 %v494
        %v720 = vunpack.c.l.b16 %v495
        %v721 = vunpack.c.l.b16 %v496
        %v722 = vunpack.c.l.b16 %v497
        %v723 = vunpack.c.l.b16 %v498
        %v724 = vunpack.c.l.b16 %v499
        %v725 = vunpack.c.l.b16 %v500
        %v726 = vunpack.c.l.b16 %v501
        %v727 = vunpack.c.l.b16 %v502
        %v728 = vunpack.c.l.b16 %v503
        %v729 = vunpack.c.l.b16 %v504
        %v730 = vunpack.c.l.b16 %v505
        %v731 = vunpack.c.l.b16 %v506
        %v732 = vunpack.c.l.b16 %v507
        %v733 = vpack.c.b16 %v718, %v717
        %v734 = vpack.c.b16 %v720, %v719
        %v735 = vpack.c.b16 %v722, %v721
        %v736 = vpack.c.b16 %v724, %v723
        %v737 = vpack.c.b16 %v726, %v725
        %v738 = vpack.c.b16 %v728, %v727
        %v739 = vpack.c.b16 %v730, %v729
        %v740 = vpack.c.b16 %v732, %v731
        %749 = vmatprep.subr.bf16.mxu0 0
        %750 = vmatpush1.bf16.msra.mxu0 %v733
        %751 = vmatprep.subr.bf16.mxu0 0
        %752 = vmatpush1.bf16.msra.mxu0 %v734
        %753 = vmatprep.subr.bf16.mxu0 0
        %754 = vmatpush1.bf16.msra.mxu0 %v735
        %755 = vmatprep.subr.bf16.mxu0 0
        %756 = vmatpush1.bf16.msra.mxu0 %v736
        %757 = vmatprep.subr.bf16.mxu0 0
        %758 = vmatpush1.bf16.msra.mxu0 %v737
        %759 = vmatprep.subr.bf16.mxu0 0
        %760 = vmatpush1.bf16.msra.mxu0 %v738
        %761 = vmatprep.subr.bf16.mxu0 0
        %762 = vmatpush1.bf16.msra.mxu0 %v739
        %763 = vmatprep.subr.bf16.mxu0 0
        %764 = vmatpush1.bf16.msra.mxu0 %v740
        %765 = vmatprep.subr.bf16.mxu0 0
        %766 = vmatpush1.bf16.msra.mxu0 0
        %767 = vmatprep.subr.bf16.mxu0 0
        %768 = vmatpush1.bf16.msra.mxu0 0
        %769 = vmatprep.subr.bf16.mxu0 0
        %770 = vmatpush1.bf16.msra.mxu0 0
        %771 = vmatprep.subr.bf16.mxu0 0
        %772 = vmatpush1.bf16.msra.mxu0 0
        %773 = vmatprep.subr.bf16.mxu0 0
        %774 = vmatpush1.bf16.msra.mxu0 0
        %775 = vmatprep.subr.bf16.mxu0 0
        %776 = vmatpush1.bf16.msra.mxu0 0
        %777 = vmatprep.subr.bf16.mxu0 0
        %778 = vmatpush1.bf16.msra.mxu0 0
        %779 = vmatprep.subr.bf16.mxu0 0
        %780 = vmatpush1.bf16.msra.mxu0 0
        %781 = vmatprep.mubr.bf16.mxu0 0
        %782 = vmatmul.mubr.bf16.gmra.mrb[0].mxu0 %v700
        %v783 = vpop.f32.mrb[0].mxu0
        %v784 = vadd.f32 0.0, %v783
        %v785 = vpop.f32.mrb[0].mxu0
        %v786 = vpop.f32.mrb[0].mxu0
        %v787 = vpop.f32.mrb[0].mxu0
        %788 = vdwg.mxu0
        %v805 = vunpack.c.l.b16 %v508
        %v806 = vunpack.c.l.b16 %v509
        %v807 = vunpack.c.l.b16 %v510
        %v808 = vunpack.c.l.b16 %v511
        %v809 = vunpack.c.l.b16 %v512
        %v810 = vunpack.c.l.b16 %v513
        %v811 = vunpack.c.l.b16 %v514
        %v812 = vunpack.c.l.b16 %v515
        %v813 = vunpack.c.l.b16 %v516
        %v814 = vunpack.c.l.b16 %v517
        %v815 = vunpack.c.l.b16 %v518
        %v816 = vunpack.c.l.b16 %v519
        %v817 = vunpack.c.l.b16 %v520
        %v818 = vunpack.c.l.b16 %v521
        %v819 = vunpack.c.l.b16 %v522
        %v820 = vunpack.c.l.b16 %v523
        %v821 = vpack.c.b16 %v806, %v805
        %v822 = vpack.c.b16 %v808, %v807
        %v823 = vpack.c.b16 %v810, %v809
        %v824 = vpack.c.b16 %v812, %v811
        %v825 = vpack.c.b16 %v814, %v813
        %v826 = vpack.c.b16 %v816, %v815
        %v827 = vpack.c.b16 %v818, %v817
        %v828 = vpack.c.b16 %v820, %v819
        %837 = vmatprep.subr.bf16.mxu0 0
        %838 = vmatpush1.bf16.msra.mxu0 %v821
        %839 = vmatprep.subr.bf16.mxu0 0
        %840 = vmatpush1.bf16.msra.mxu0 %v822
        %841 = vmatprep.subr.bf16.mxu0 0
        %842 = vmatpush1.bf16.msra.mxu0 %v823
        %843 = vmatprep.subr.bf16.mxu0 0
        %844 = vmatpush1.bf16.msra.mxu0 %v824
        %845 = vmatprep.subr.bf16.mxu0 0
        %846 = vmatpush1.bf16.msra.mxu0 %v825
        %847 = vmatprep.subr.bf16.mxu0 0
        %848 = vmatpush1.bf16.msra.mxu0 %v826
        %849 = vmatprep.subr.bf16.mxu0 0
        %850 = vmatpush1.bf16.msra.mxu0 %v827
        %851 = vmatprep.subr.bf16.mxu0 0
        %852 = vmatpush1.bf16.msra.mxu0 %v828
        %853 = vmatprep.subr.bf16.mxu0 0
        %854 = vmatpush1.bf16.msra.mxu0 0
        %855 = vmatprep.subr.bf16.mxu0 0
        %856 = vmatpush1.bf16.msra.mxu0 0
        %857 = vmatprep.subr.bf16.mxu0 0
        %858 = vmatpush1.bf16.msra.mxu0 0
        %859 = vmatprep.subr.bf16.mxu0 0
        %860 = vmatpush1.bf16.msra.mxu0 0
        %861 = vmatprep.subr.bf16.mxu0 0
        %862 = vmatpush1.bf16.msra.mxu0 0
        %863 = vmatprep.subr.bf16.mxu0 0
        %864 = vmatpush1.bf16.msra.mxu0 0
        %865 = vmatprep.subr.bf16.mxu0 0
        %866 = vmatpush1.bf16.msra.mxu0 0
        %867 = vmatprep.subr.bf16.mxu0 0
        %868 = vmatpush1.bf16.msra.mxu0 0
        %869 = vmatprep.mubr.bf16.mxu0 0
        %870 = vmatmul.mubr.bf16.gmra.mrb[0].mxu0 %v700
        %v871 = vpop.f32.mrb[0].mxu0
        %v872 = vadd.f32 0.0, %v871
        %v873 = vpop.f32.mrb[0].mxu0
        %v874 = vpop.f32.mrb[0].mxu0
        %v875 = vpop.f32.mrb[0].mxu0
        %876 = vdwg.mxu0
        %v893 = vunpack.c.l.b16 %v524
        %v894 = vunpack.c.l.b16 %v525
        %v895 = vunpack.c.l.b16 %v526
        %v896 = vunpack.c.l.b16 %v527
        %v897 = vunpack.c.l.b16 %v528
        %v898 = vunpack.c.l.b16 %v529
        %v899 = vunpack.c.l.b16 %v530
        %v900 = vunpack.c.l.b16 %v531
        %v901 = vunpack.c.l.b16 %v532
        %v902 = vunpack.c.l.b16 %v533
        %v903 = vunpack.c.l.b16 %v534
        %v904 = vunpack.c.l.b16 %v535
        %v905 = vunpack.c.l.b16 %v536
        %v906 = vunpack.c.l.b16 %v537
        %v907 = vunpack.c.l.b16 %v538
        %v908 = vunpack.c.l.b16 %v539
        %v909 = vpack.c.b16 %v894, %v893
        %v910 = vpack.c.b16 %v896, %v895
        %v911 = vpack.c.b16 %v898, %v897
        %v912 = vpack.c.b16 %v900, %v899
        %v913 = vpack.c.b16 %v902, %v901
        %v914 = vpack.c.b16 %v904, %v903
        %v915 = vpack.c.b16 %v906, %v905
        %v916 = vpack.c.b16 %v908, %v907
        %925 = vmatprep.subr.bf16.mxu0 0
        %926 = vmatpush1.bf16.msra.mxu0 %v909
        %927 = vmatprep.subr.bf16.mxu0 0
        %928 = vmatpush1.bf16.msra.mxu0 %v910
        %929 = vmatprep.subr.bf16.mxu0 0
        %930 = vmatpush1.bf16.msra.mxu0 %v911
        %931 = vmatprep.subr.bf16.mxu0 0
        %932 = vmatpush1.bf16.msra.mxu0 %v912
        %933 = vmatprep.subr.bf16.mxu0 0
        %934 = vmatpush1.bf16.msra.mxu0 %v913
        %935 = vmatprep.subr.bf16.mxu0 0
        %936 = vmatpush1.bf16.msra.mxu0 %v914
        %937 = vmatprep.subr.bf16.mxu0 0
        %938 = vmatpush1.bf16.msra.mxu0 %v915
        %939 = vmatprep.subr.bf16.mxu0 0
        %940 = vmatpush1.bf16.msra.mxu0 %v916
        %941 = vmatprep.subr.bf16.mxu0 0
        %942 = vmatpush1.bf16.msra.mxu0 0
        %943 = vmatprep.subr.bf16.mxu0 0
        %944 = vmatpush1.bf16.msra.mxu0 0
        %945 = vmatprep.subr.bf16.mxu0 0
        %946 = vmatpush1.bf16.msra.mxu0 0
        %947 = vmatprep.subr.bf16.mxu0 0
        %948 = vmatpush1.bf16.msra.mxu0 0
        %949 = vmatprep.subr.bf16.mxu0 0
        %950 = vmatpush1.bf16.msra.mxu0 0
        %951 = vmatprep.subr.bf16.mxu0 0
        %952 = vmatpush1.bf16.msra.mxu0 0
        %953 = vmatprep.subr.bf16.mxu0 0
        %954 = vmatpush1.bf16.msra.mxu0 0
        %955 = vmatprep.subr.bf16.mxu0 0
        %956 = vmatpush1.bf16.msra.mxu0 0
        %957 = vmatprep.mubr.bf16.mxu0 0
        %958 = vmatmul.mubr.bf16.gmra.mrb[0].mxu0 %v700
        %v959 = vpop.f32.mrb[0].mxu0
        %v960 = vadd.f32 0.0, %v959
        %v961 = vpop.f32.mrb[0].mxu0
        %v962 = vpop.f32.mrb[0].mxu0
        %v963 = vpop.f32.mrb[0].mxu0
        %964 = vdwg.mxu0
        %v981 = vunpack.c.l.b16 %v540
        %v982 = vunpack.c.l.b16 %v541
        %v983 = vunpack.c.l.b16 %v542
        %v984 = vunpack.c.l.b16 %v543
        %v985 = vunpack.c.l.b16 %v544
        %v986 = vunpack.c.l.b16 %v545
        %v987 = vunpack.c.l.b16 %v546
        %v988 = vunpack.c.l.b16 %v547
        %v989 = vunpack.c.l.b16 %v548
        %v990 = vunpack.c.l.b16 %v549
        %v991 = vunpack.c.l.b16 %v550
        %v992 = vunpack.c.l.b16 %v551
        %v993 = vunpack.c.l.b16 %v552
        %v994 = vunpack.c.l.b16 %v553
        %v995 = vunpack.c.l.b16 %v554
        %v996 = vunpack.c.l.b16 %v555
        %v997 = vpack.c.b16 %v982, %v981
        %v998 = vpack.c.b16 %v984, %v983
        %v999 = vpack.c.b16 %v986, %v985
        %v1000 = vpack.c.b16 %v988, %v987
        %v1001 = vpack.c.b16 %v990, %v989
        %v1002 = vpack.c.b16 %v992, %v991
        %v1003 = vpack.c.b16 %v994, %v993
        %v1004 = vpack.c.b16 %v996, %v995
        %1013 = vmatprep.subr.bf16.mxu0 0
        %1014 = vmatpush1.bf16.msra.mxu0 %v997
        %1015 = vmatprep.subr.bf16.mxu0 0
        %1016 = vmatpush1.bf16.msra.mxu0 %v998
        %1017 = vmatprep.subr.bf16.mxu0 0
        %1018 = vmatpush1.bf16.msra.mxu0 %v999
        %1019 = vmatprep.subr.bf16.mxu0 0
        %1020 = vmatpush1.bf16.msra.mxu0 %v1000
        %1021 = vmatprep.subr.bf16.mxu0 0
        %1022 = vmatpush1.bf16.msra.mxu0 %v1001
        %1023 = vmatprep.subr.bf16.mxu0 0
        %1024 = vmatpush1.bf16.msra.mxu0 %v1002
        %1025 = vmatprep.subr.bf16.mxu0 0
        %1026 = vmatpush1.bf16.msra.mxu0 %v1003
        %1027 = vmatprep.subr.bf16.mxu0 0
        %1028 = vmatpush1.bf16.msra.mxu0 %v1004
        %1029 = vmatprep.subr.bf16.mxu0 0
        %1030 = vmatpush1.bf16.msra.mxu0 0
        %1031 = vmatprep.subr.bf16.mxu0 0
        %1032 = vmatpush1.bf16.msra.mxu0 0
        %1033 = vmatprep.subr.bf16.mxu0 0
        %1034 = vmatpush1.bf16.msra.mxu0 0
        %1035 = vmatprep.subr.bf16.mxu0 0
        %1036 = vmatpush1.bf16.msra.mxu0 0
        %1037 = vmatprep.subr.bf16.mxu0 0
        %1038 = vmatpush1.bf16.msra.mxu0 0
        %1039 = vmatprep.subr.bf16.mxu0 0
        %1040 = vmatpush1.bf16.msra.mxu0 0
        %1041 = vmatprep.subr.bf16.mxu0 0
        %1042 = vmatpush1.bf16.msra.mxu0 0
        %1043 = vmatprep.subr.bf16.mxu0 0
        %1044 = vmatpush1.bf16.msra.mxu0 0
        %1045 = vmatprep.mubr.bf16.mxu0 0
        %1046 = vmatmul.mubr.bf16.gmra.mrb[0].mxu0 %v700
        %v1047 = vpop.f32.mrb[0].mxu0
        %v1048 = vadd.f32 0.0, %v1047
        %v1049 = vpop.f32.mrb[0].mxu0
        %v1050 = vpop.f32.mrb[0].mxu0
        %v1051 = vpop.f32.mrb[0].mxu0
        %1052 = vdwg.mxu0
        %v1069 = vunpack.c.l.b16 %v556
        %v1070 = vunpack.c.l.b16 %v557
        %v1071 = vunpack.c.l.b16 %v558
        %v1072 = vunpack.c.l.b16 %v559
        %v1073 = vunpack.c.l.b16 %v560
        %v1074 = vunpack.c.l.b16 %v561
        %v1075 = vunpack.c.l.b16 %v562
        %v1076 = vunpack.c.l.b16 %v563
        %v1077 = vunpack.c.l.b16 %v564
        %v1078 = vunpack.c.l.b16 %v565
        %v1079 = vunpack.c.l.b16 %v566
        %v1080 = vunpack.c.l.b16 %v567
        %v1081 = vunpack.c.l.b16 %v568
        %v1082 = vunpack.c.l.b16 %v569
        %v1083 = vunpack.c.l.b16 %v570
        %v1084 = vunpack.c.l.b16 %v571
        %v1085 = vpack.c.b16 %v1070, %v1069
        %v1086 = vpack.c.b16 %v1072, %v1071
        %v1087 = vpack.c.b16 %v1074, %v1073
        %v1088 = vpack.c.b16 %v1076, %v1075
        %v1089 = vpack.c.b16 %v1078, %v1077
        %v1090 = vpack.c.b16 %v1080, %v1079
        %v1091 = vpack.c.b16 %v1082, %v1081
        %v1092 = vpack.c.b16 %v1084, %v1083
        %1101 = vmatprep.subr.bf16.mxu0 0
        %1102 = vmatpush1.bf16.msra.mxu0 %v1085
        %1103 = vmatprep.subr.bf16.mxu0 0
        %1104 = vmatpush1.bf16.msra.mxu0 %v1086
        %1105 = vmatprep.subr.bf16.mxu0 0
        %1106 = vmatpush1.bf16.msra.mxu0 %v1087
        %1107 = vmatprep.subr.bf16.mxu0 0
        %1108 = vmatpush1.bf16.msra.mxu0 %v1088
        %1109 = vmatprep.subr.bf16.mxu0 0
        %1110 = vmatpush1.bf16.msra.mxu0 %v1089
        %1111 = vmatprep.subr.bf16.mxu0 0
        %1112 = vmatpush1.bf16.msra.mxu0 %v1090
        %1113 = vmatprep.subr.bf16.mxu0 0
        %1114 = vmatpush1.bf16.msra.mxu0 %v1091
        %1115 = vmatprep.subr.bf16.mxu0 0
        %1116 = vmatpush1.bf16.msra.mxu0 %v1092
        %1117 = vmatprep.subr.bf16.mxu0 0
        %1118 = vmatpush1.bf16.msra.mxu0 0
        %1119 = vmatprep.subr.bf16.mxu0 0
        %1120 = vmatpush1.bf16.msra.mxu0 0
        %1121 = vmatprep.subr.bf16.mxu0 0
        %1122 = vmatpush1.bf16.msra.mxu0 0
        %1123 = vmatprep.subr.bf16.mxu0 0
        %1124 = vmatpush1.bf16.msra.mxu0 0
        %1125 = vmatprep.subr.bf16.mxu0 0
        %1126 = vmatpush1.bf16.msra.mxu0 0
        %1127 = vmatprep.subr.bf16.mxu0 0
        %1128 = vmatpush1.bf16.msra.mxu0 0
        %1129 = vmatprep.subr.bf16.mxu0 0
        %1130 = vmatpush1.bf16.msra.mxu0 0
        %1131 = vmatprep.subr.bf16.mxu0 0
        %1132 = vmatpush1.bf16.msra.mxu0 0
        %1133 = vmatprep.mubr.bf16.mxu0 0
        %1134 = vmatmul.mubr.bf16.gmra.mrb[0].mxu0 %v700
        %v1135 = vpop.f32.mrb[0].mxu0
        %v1136 = vadd.f32 0.0, %v1135
        %v1137 = vpop.f32.mrb[0].mxu0
        %v1138 = vpop.f32.mrb[0].mxu0
        %v1139 = vpop.f32.mrb[0].mxu0
        %1140 = vdwg.mxu0
        %v1157 = vunpack.c.l.b16 %v572
        %v1158 = vunpack.c.l.b16 %v573
        %v1159 = vunpack.c.l.b16 %v574
        %v1160 = vunpack.c.l.b16 %v575
        %v1161 = vunpack.c.l.b16 %v576
        %v1162 = vunpack.c.l.b16 %v577
        %v1163 = vunpack.c.l.b16 %v578
        %v1164 = vunpack.c.l.b16 %v579
        %v1165 = vunpack.c.l.b16 %v580
        %v1166 = vunpack.c.l.b16 %v581
        %v1167 = vunpack.c.l.b16 %v582
        %v1168 = vunpack.c.l.b16 %v583
        %v1169 = vunpack.c.l.b16 %v584
        %v1170 = vunpack.c.l.b16 %v585
        %v1171 = vunpack.c.l.b16 %v586
        %v1172 = vunpack.c.l.b16 %v587
        %v1173 = vpack.c.b16 %v1158, %v1157
        %v1174 = vpack.c.b16 %v1160, %v1159
        %v1175 = vpack.c.b16 %v1162, %v1161
        %v1176 = vpack.c.b16 %v1164, %v1163
        %v1177 = vpack.c.b16 %v1166, %v1165
        %v1178 = vpack.c.b16 %v1168, %v1167
        %v1179 = vpack.c.b16 %v1170, %v1169
        %v1180 = vpack.c.b16 %v1172, %v1171
        %1189 = vmatprep.subr.bf16.mxu0 0
        %1190 = vmatpush1.bf16.msra.mxu0 %v1173
        %1191 = vmatprep.subr.bf16.mxu0 0
        %1192 = vmatpush1.bf16.msra.mxu0 %v1174
        %1193 = vmatprep.subr.bf16.mxu0 0
        %1194 = vmatpush1.bf16.msra.mxu0 %v1175
        %1195 = vmatprep.subr.bf16.mxu0 0
        %1196 = vmatpush1.bf16.msra.mxu0 %v1176
        %1197 = vmatprep.subr.bf16.mxu0 0
        %1198 = vmatpush1.bf16.msra.mxu0 %v1177
        %1199 = vmatprep.subr.bf16.mxu0 0
        %1200 = vmatpush1.bf16.msra.mxu0 %v1178
        %1201 = vmatprep.subr.bf16.mxu0 0
        %1202 = vmatpush1.bf16.msra.mxu0 %v1179
        %1203 = vmatprep.subr.bf16.mxu0 0
        %1204 = vmatpush1.bf16.msra.mxu0 %v1180
        %1205 = vmatprep.subr.bf16.mxu0 0
        %1206 = vmatpush1.bf16.msra.mxu0 0
        %1207 = vmatprep.subr.bf16.mxu0 0
        %1208 = vmatpush1.bf16.msra.mxu0 0
        %1209 = vmatprep.subr.bf16.mxu0 0
        %1210 = vmatpush1.bf16.msra.mxu0 0
        %1211 = vmatprep.subr.bf16.mxu0 0
        %1212 = vmatpush1.bf16.msra.mxu0 0
        %1213 = vmatprep.subr.bf16.mxu0 0
        %1214 = vmatpush1.bf16.msra.mxu0 0
        %1215 = vmatprep.subr.bf16.mxu0 0
        %1216 = vmatpush1.bf16.msra.mxu0 0
        %1217 = vmatprep.subr.bf16.mxu0 0
        %1218 = vmatpush1.bf16.msra.mxu0 0
        %1219 = vmatprep.subr.bf16.mxu0 0
        %1220 = vmatpush1.bf16.msra.mxu0 0
        %1221 = vmatprep.mubr.bf16.mxu0 0
        %1222 = vmatmul.mubr.bf16.gmra.mrb[0].mxu0 %v700
        %v1223 = vpop.f32.mrb[0].mxu0
        %v1224 = vadd.f32 0.0, %v1223
        %v1225 = vpop.f32.mrb[0].mxu0
        %v1226 = vpop.f32.mrb[0].mxu0
        %v1227 = vpop.f32.mrb[0].mxu0
        %1228 = vdwg.mxu0
        %v1245 = vunpack.c.l.b16 %v588
        %v1246 = vunpack.c.l.b16 %v589
        %v1247 = vunpack.c.l.b16 %v590
        %v1248 = vunpack.c.l.b16 %v591
        %v1249 = vunpack.c.l.b16 %v592
        %v1250 = vunpack.c.l.b16 %v593
        %v1251 = vunpack.c.l.b16 %v594
        %v1252 = vunpack.c.l.b16 %v595
        %v1253 = vunpack.c.l.b16 %v596
        %v1254 = vunpack.c.l.b16 %v597
        %v1255 = vunpack.c.l.b16 %v598
        %v1256 = vunpack.c.l.b16 %v599
        %v1257 = vunpack.c.l.b16 %v600
        %v1258 = vunpack.c.l.b16 %v601
        %v1259 = vunpack.c.l.b16 %v602
        %v1260 = vunpack.c.l.b16 %v603
        %v1261 = vpack.c.b16 %v1246, %v1245
        %v1262 = vpack.c.b16 %v1248, %v1247
        %v1263 = vpack.c.b16 %v1250, %v1249
        %v1264 = vpack.c.b16 %v1252, %v1251
        %v1265 = vpack.c.b16 %v1254, %v1253
        %v1266 = vpack.c.b16 %v1256, %v1255
        %v1267 = vpack.c.b16 %v1258, %v1257
        %v1268 = vpack.c.b16 %v1260, %v1259
        %1277 = vmatprep.subr.bf16.mxu0 0
        %1278 = vmatpush1.bf16.msra.mxu0 %v1261
        %1279 = vmatprep.subr.bf16.mxu0 0
        %1280 = vmatpush1.bf16.msra.mxu0 %v1262
        %1281 = vmatprep.subr.bf16.mxu0 0
        %1282 = vmatpush1.bf16.msra.mxu0 %v1263
        %1283 = vmatprep.subr.bf16.mxu0 0
        %1284 = vmatpush1.bf16.msra.mxu0 %v1264
        %1285 = vmatprep.subr.bf16.mxu0 0
        %1286 = vmatpush1.bf16.msra.mxu0 %v1265
        %1287 = vmatprep.subr.bf16.mxu0 0
        %1288 = vmatpush1.bf16.msra.mxu0 %v1266
        %1289 = vmatprep.subr.bf16.mxu0 0
        %1290 = vmatpush1.bf16.msra.mxu0 %v1267
        %1291 = vmatprep.subr.bf16.mxu0 0
        %1292 = vmatpush1.bf16.msra.mxu0 %v1268
        %1293 = vmatprep.subr.bf16.mxu0 0
        %1294 = vmatpush1.bf16.msra.mxu0 0
        %1295 = vmatprep.subr.bf16.mxu0 0
        %1296 = vmatpush1.bf16.msra.mxu0 0
        %1297 = vmatprep.subr.bf16.mxu0 0
        %1298 = vmatpush1.bf16.msra.mxu0 0
        %1299 = vmatprep.subr.bf16.mxu0 0
        %1300 = vmatpush1.bf16.msra.mxu0 0
        %1301 = vmatprep.subr.bf16.mxu0 0
        %1302 = vmatpush1.bf16.msra.mxu0 0
        %1303 = vmatprep.subr.bf16.mxu0 0
        %1304 = vmatpush1.bf16.msra.mxu0 0
        %1305 = vmatprep.subr.bf16.mxu0 0
        %1306 = vmatpush1.bf16.msra.mxu0 0
        %1307 = vmatprep.subr.bf16.mxu0 0
        %1308 = vmatpush1.bf16.msra.mxu0 0
        %1309 = vmatprep.mubr.bf16.mxu0 0
        %1310 = vmatmul.mubr.bf16.gmra.mrb[0].mxu0 %v700
        %v1311 = vpop.f32.mrb[0].mxu0
        %v1312 = vadd.f32 0.0, %v1311
        %v1313 = vpop.f32.mrb[0].mxu0
        %v1314 = vpop.f32.mrb[0].mxu0
        %v1315 = vpop.f32.mrb[0].mxu0
        %1316 = vdwg.mxu0
        %v1333 = vunpack.c.l.b16 %v604
        %v1334 = vunpack.c.l.b16 %v605
        %v1335 = vunpack.c.l.b16 %v606
        %v1336 = vunpack.c.l.b16 %v607
        %v1337 = vunpack.c.l.b16 %v608
        %v1338 = vunpack.c.l.b16 %v609
        %v1339 = vunpack.c.l.b16 %v610
        %v1340 = vunpack.c.l.b16 %v611
        %v1341 = vunpack.c.l.b16 %v612
        %v1342 = vunpack.c.l.b16 %v613
        %v1343 = vunpack.c.l.b16 %v614
        %v1344 = vunpack.c.l.b16 %v615
        %v1345 = vunpack.c.l.b16 %v616
        %v1346 = vunpack.c.l.b16 %v617
        %v1347 = vunpack.c.l.b16 %v618
        %v1348 = vunpack.c.l.b16 %v619
        %v1349 = vpack.c.b16 %v1334, %v1333
        %v1350 = vpack.c.b16 %v1336, %v1335
        %v1351 = vpack.c.b16 %v1338, %v1337
        %v1352 = vpack.c.b16 %v1340, %v1339
        %v1353 = vpack.c.b16 %v1342, %v1341
        %v1354 = vpack.c.b16 %v1344, %v1343
        %v1355 = vpack.c.b16 %v1346, %v1345
        %v1356 = vpack.c.b16 %v1348, %v1347
        %1365 = vmatprep.subr.bf16.mxu0 0
        %1366 = vmatpush1.bf16.msra.mxu0 %v1349
        %1367 = vmatprep.subr.bf16.mxu0 0
        %1368 = vmatpush1.bf16.msra.mxu0 %v1350
        %1369 = vmatprep.subr.bf16.mxu0 0
        %1370 = vmatpush1.bf16.msra.mxu0 %v1351
        %1371 = vmatprep.subr.bf16.mxu0 0
        %1372 = vmatpush1.bf16.msra.mxu0 %v1352
        %1373 = vmatprep.subr.bf16.mxu0 0
        %1374 = vmatpush1.bf16.msra.mxu0 %v1353
        %1375 = vmatprep.subr.bf16.mxu0 0
        %1376 = vmatpush1.bf16.msra.mxu0 %v1354
        %1377 = vmatprep.subr.bf16.mxu0 0
        %1378 = vmatpush1.bf16.msra.mxu0 %v1355
        %1379 = vmatprep.subr.bf16.mxu0 0
        %1380 = vmatpush1.bf16.msra.mxu0 %v1356
        %1381 = vmatprep.subr.bf16.mxu0 0
        %1382 = vmatpush1.bf16.msra.mxu0 0
        %1383 = vmatprep.subr.bf16.mxu0 0
        %1384 = vmatpush1.bf16.msra.mxu0 0
        %1385 = vmatprep.subr.bf16.mxu0 0
        %1386 = vmatpush1.bf16.msra.mxu0 0
        %1387 = vmatprep.subr.bf16.mxu0 0
        %1388 = vmatpush1.bf16.msra.mxu0 0
        %1389 = vmatprep.subr.bf16.mxu0 0
        %1390 = vmatpush1.bf16.msra.mxu0 0
        %1391 = vmatprep.subr.bf16.mxu0 0
        %1392 = vmatpush1.bf16.msra.mxu0 0
        %1393 = vmatprep.subr.bf16.mxu0 0
        %1394 = vmatpush1.bf16.msra.mxu0 0
        %1395 = vmatprep.subr.bf16.mxu0 0
        %1396 = vmatpush1.bf16.msra.mxu0 0
        %1397 = vmatprep.mubr.bf16.mxu0 0
        %1398 = vmatmul.mubr.bf16.gmra.mrb[0].mxu0 %v700
        %v1399 = vpop.f32.mrb[0].mxu0
        %v1400 = vadd.f32 0.0, %v1399
        %v1401 = vpop.f32.mrb[0].mxu0
        %v1402 = vpop.f32.mrb[0].mxu0
        %v1403 = vpop.f32.mrb[0].mxu0
        %1404 = vdwg.mxu0
        %v1421 = vunpack.c.l.b16 %v620
        %v1422 = vunpack.c.l.b16 %v621
        %v1423 = vunpack.c.l.b16 %v622
        %v1424 = vunpack.c.l.b16 %v623
        %v1425 = vunpack.c.l.b16 %v624
        %v1426 = vunpack.c.l.b16 %v625
        %v1427 = vunpack.c.l.b16 %v626
        %v1428 = vunpack.c.l.b16 %v627
        %v1429 = vunpack.c.l.b16 %v628
        %v1430 = vunpack.c.l.b16 %v629
        %v1431 = vunpack.c.l.b16 %v630
        %v1432 = vunpack.c.l.b16 %v631
        %v1433 = vunpack.c.l.b16 %v632
        %v1434 = vunpack.c.l.b16 %v633
        %v1435 = vunpack.c.l.b16 %v634
        %v1436 = vunpack.c.l.b16 %v635
        %v1437 = vpack.c.b16 %v1422, %v1421
        %v1438 = vpack.c.b16 %v1424, %v1423
        %v1439 = vpack.c.b16 %v1426, %v1425
        %v1440 = vpack.c.b16 %v1428, %v1427
        %v1441 = vpack.c.b16 %v1430, %v1429
        %v1442 = vpack.c.b16 %v1432, %v1431
        %v1443 = vpack.c.b16 %v1434, %v1433
        %v1444 = vpack.c.b16 %v1436, %v1435
        %1453 = vmatprep.subr.bf16.mxu0 0
        %1454 = vmatpush1.bf16.msra.mxu0 %v1437
        %1455 = vmatprep.subr.bf16.mxu0 0
        %1456 = vmatpush1.bf16.msra.mxu0 %v1438
        %1457 = vmatprep.subr.bf16.mxu0 0
        %1458 = vmatpush1.bf16.msra.mxu0 %v1439
        %1459 = vmatprep.subr.bf16.mxu0 0
        %1460 = vmatpush1.bf16.msra.mxu0 %v1440
        %1461 = vmatprep.subr.bf16.mxu0 0
        %1462 = vmatpush1.bf16.msra.mxu0 %v1441
        %1463 = vmatprep.subr.bf16.mxu0 0
        %1464 = vmatpush1.bf16.msra.mxu0 %v1442
        %1465 = vmatprep.subr.bf16.mxu0 0
        %1466 = vmatpush1.bf16.msra.mxu0 %v1443
        %1467 = vmatprep.subr.bf16.mxu0 0
        %1468 = vmatpush1.bf16.msra.mxu0 %v1444
        %1469 = vmatprep.subr.bf16.mxu0 0
        %1470 = vmatpush1.bf16.msra.mxu0 0
        %1471 = vmatprep.subr.bf16.mxu0 0
        %1472 = vmatpush1.bf16.msra.mxu0 0
        %1473 = vmatprep.subr.bf16.mxu0 0
        %1474 = vmatpush1.bf16.msra.mxu0 0
        %1475 = vmatprep.subr.bf16.mxu0 0
        %1476 = vmatpush1.bf16.msra.mxu0 0
        %1477 = vmatprep.subr.bf16.mxu0 0
        %1478 = vmatpush1.bf16.msra.mxu0 0
        %1479 = vmatprep.subr.bf16.mxu0 0
        %1480 = vmatpush1.bf16.msra.mxu0 0
        %1481 = vmatprep.subr.bf16.mxu0 0
        %1482 = vmatpush1.bf16.msra.mxu0 0
        %1483 = vmatprep.subr.bf16.mxu0 0
        %1484 = vmatpush1.bf16.msra.mxu0 0
        %1485 = vmatprep.mubr.bf16.mxu0 0
        %1486 = vmatmul.mubr.bf16.gmra.mrb[0].mxu0 %v700
        %v1487 = vpop.f32.mrb[0].mxu0
        %v1488 = vadd.f32 0.0, %v1487
        %v1489 = vpop.f32.mrb[0].mxu0
        %v1490 = vpop.f32.mrb[0].mxu0
        %v1491 = vpop.f32.mrb[0].mxu0
        %1492 = vdwg.mxu0
        %v1509 = vunpack.c.l.b16 %v636
        %v1510 = vunpack.c.l.b16 %v637
        %v1511 = vunpack.c.l.b16 %v638
        %v1512 = vunpack.c.l.b16 %v639
        %v1513 = vunpack.c.l.b16 %v640
        %v1514 = vunpack.c.l.b16 %v641
        %v1515 = vunpack.c.l.b16 %v642
        %v1516 = vunpack.c.l.b16 %v643
        %v1517 = vunpack.c.l.b16 %v644
        %v1518 = vunpack.c.l.b16 %v645
        %v1519 = vunpack.c.l.b16 %v646
        %v1520 = vunpack.c.l.b16 %v647
        %v1521 = vunpack.c.l.b16 %v648
        %v1522 = vunpack.c.l.b16 %v649
        %v1523 = vunpack.c.l.b16 %v650
        %v1524 = vunpack.c.l.b16 %v651
        %v1525 = vpack.c.b16 %v1510, %v1509
        %v1526 = vpack.c.b16 %v1512, %v1511
        %v1527 = vpack.c.b16 %v1514, %v1513
        %v1528 = vpack.c.b16 %v1516, %v1515
        %v1529 = vpack.c.b16 %v1518, %v1517
        %v1530 = vpack.c.b16 %v1520, %v1519
        %v1531 = vpack.c.b16 %v1522, %v1521
        %v1532 = vpack.c.b16 %v1524, %v1523
        %1541 = vmatprep.subr.bf16.mxu0 0
        %1542 = vmatpush1.bf16.msra.mxu0 %v1525
        %1543 = vmatprep.subr.bf16.mxu0 0
        %1544 = vmatpush1.bf16.msra.mxu0 %v1526
        %1545 = vmatprep.subr.bf16.mxu0 0
        %1546 = vmatpush1.bf16.msra.mxu0 %v1527
        %1547 = vmatprep.subr.bf16.mxu0 0
        %1548 = vmatpush1.bf16.msra.mxu0 %v1528
        %1549 = vmatprep.subr.bf16.mxu0 0
        %1550 = vmatpush1.bf16.msra.mxu0 %v1529
        %1551 = vmatprep.subr.bf16.mxu0 0
        %1552 = vmatpush1.bf16.msra.mxu0 %v1530
        %1553 = vmatprep.subr.bf16.mxu0 0
        %1554 = vmatpush1.bf16.msra.mxu0 %v1531
        %1555 = vmatprep.subr.bf16.mxu0 0
        %1556 = vmatpush1.bf16.msra.mxu0 %v1532
        %1557 = vmatprep.subr.bf16.mxu0 0
        %1558 = vmatpush1.bf16.msra.mxu0 0
        %1559 = vmatprep.subr.bf16.mxu0 0
        %1560 = vmatpush1.bf16.msra.mxu0 0
        %1561 = vmatprep.subr.bf16.mxu0 0
        %1562 = vmatpush1.bf16.msra.mxu0 0
        %1563 = vmatprep.subr.bf16.mxu0 0
        %1564 = vmatpush1.bf16.msra.mxu0 0
        %1565 = vmatprep.subr.bf16.mxu0 0
        %1566 = vmatpush1.bf16.msra.mxu0 0
        %1567 = vmatprep.subr.bf16.mxu0 0
        %1568 = vmatpush1.bf16.msra.mxu0 0
        %1569 = vmatprep.subr.bf16.mxu0 0
        %1570 = vmatpush1.bf16.msra.mxu0 0
        %1571 = vmatprep.subr.bf16.mxu0 0
        %1572 = vmatpush1.bf16.msra.mxu0 0
        %1573 = vmatprep.mubr.bf16.mxu0 0
        %1574 = vmatmul.mubr.bf16.gmra.mrb[0].mxu0 %v700
        %v1575 = vpop.f32.mrb[0].mxu0
        %v1576 = vadd.f32 0.0, %v1575
        %v1577 = vpop.f32.mrb[0].mxu0
        %v1578 = vpop.f32.mrb[0].mxu0
        %v1579 = vpop.f32.mrb[0].mxu0
        %1580 = vdwg.mxu0
        %v1597 = vunpack.c.l.b16 %v652
        %v1598 = vunpack.c.l.b16 %v653
        %v1599 = vunpack.c.l.b16 %v654
        %v1600 = vunpack.c.l.b16 %v655
        %v1601 = vunpack.c.l.b16 %v656
        %v1602 = vunpack.c.l.b16 %v657
        %v1603 = vunpack.c.l.b16 %v658
        %v1604 = vunpack.c.l.b16 %v659
        %v1605 = vunpack.c.l.b16 %v660
        %v1606 = vunpack.c.l.b16 %v661
        %v1607 = vunpack.c.l.b16 %v662
        %v1608 = vunpack.c.l.b16 %v663
        %v1609 = vunpack.c.l.b16 %v664
        %v1610 = vunpack.c.l.b16 %v665
        %v1611 = vunpack.c.l.b16 %v666
        %v1612 = vunpack.c.l.b16 %v667
        %v1613 = vpack.c.b16 %v1598, %v1597
        %v1614 = vpack.c.b16 %v1600, %v1599
        %v1615 = vpack.c.b16 %v1602, %v1601
        %v1616 = vpack.c.b16 %v1604, %v1603
        %v1617 = vpack.c.b16 %v1606, %v1605
        %v1618 = vpack.c.b16 %v1608, %v1607
        %v1619 = vpack.c.b16 %v1610, %v1609
        %v1620 = vpack.c.b16 %v1612, %v1611
        %1629 = vmatprep.subr.bf16.mxu0 0
        %1630 = vmatpush1.bf16.msra.mxu0 %v1613
        %1631 = vmatprep.subr.bf16.mxu0 0
        %1632 = vmatpush1.bf16.msra.mxu0 %v1614
        %1633 = vmatprep.subr.bf16.mxu0 0
        %1634 = vmatpush1.bf16.msra.mxu0 %v1615
        %1635 = vmatprep.subr.bf16.mxu0 0
        %1636 = vmatpush1.bf16.msra.mxu0 %v1616
        %1637 = vmatprep.subr.bf16.mxu0 0
        %1638 = vmatpush1.bf16.msra.mxu0 %v1617
        %1639 = vmatprep.subr.bf16.mxu0 0
        %1640 = vmatpush1.bf16.msra.mxu0 %v1618
        %1641 = vmatprep.subr.bf16.mxu0 0
        %1642 = vmatpush1.bf16.msra.mxu0 %v1619
        %1643 = vmatprep.subr.bf16.mxu0 0
        %1644 = vmatpush1.bf16.msra.mxu0 %v1620
        %1645 = vmatprep.subr.bf16.mxu0 0
        %1646 = vmatpush1.bf16.msra.mxu0 0
        %1647 = vmatprep.subr.bf16.mxu0 0
        %1648 = vmatpush1.bf16.msra.mxu0 0
        %1649 = vmatprep.subr.bf16.mxu0 0
        %1650 = vmatpush1.bf16.msra.mxu0 0
        %1651 = vmatprep.subr.bf16.mxu0 0
        %1652 = vmatpush1.bf16.msra.mxu0 0
        %1653 = vmatprep.subr.bf16.mxu0 0
        %1654 = vmatpush1.bf16.msra.mxu0 0
        %1655 = vmatprep.subr.bf16.mxu0 0
        %1656 = vmatpush1.bf16.msra.mxu0 0
        %1657 = vmatprep.subr.bf16.mxu0 0
        %1658 = vmatpush1.bf16.msra.mxu0 0
        %1659 = vmatprep.subr.bf16.mxu0 0
        %1660 = vmatpush1.bf16.msra.mxu0 0
        %1661 = vmatprep.mubr.bf16.mxu0 0
        %1662 = vmatmul.mubr.bf16.gmra.mrb[0].mxu0 %v700
        %v1663 = vpop.f32.mrb[0].mxu0
        %v1664 = vadd.f32 0.0, %v1663
        %v1665 = vpop.f32.mrb[0].mxu0
        %v1666 = vpop.f32.mrb[0].mxu0
        %v1667 = vpop.f32.mrb[0].mxu0
        %1668 = vdwg.mxu0
        %v1685 = vunpack.c.l.b16 %v668
        %v1686 = vunpack.c.l.b16 %v669
        %v1687 = vunpack.c.l.b16 %v670
        %v1688 = vunpack.c.l.b16 %v671
        %v1689 = vunpack.c.l.b16 %v672
        %v1690 = vunpack.c.l.b16 %v673
        %v1691 = vunpack.c.l.b16 %v674
        %v1692 = vunpack.c.l.b16 %v675
        %v1693 = vunpack.c.l.b16 %v676
        %v1694 = vunpack.c.l.b16 %v677
        %v1695 = vunpack.c.l.b16 %v678
        %v1696 = vunpack.c.l.b16 %v679
        %v1697 = vunpack.c.l.b16 %v680
        %v1698 = vunpack.c.l.b16 %v681
        %v1699 = vunpack.c.l.b16 %v682
        %v1700 = vunpack.c.l.b16 %v683
        %v1701 = vpack.c.b16 %v1686, %v1685
        %v1702 = vpack.c.b16 %v1688, %v1687
        %v1703 = vpack.c.b16 %v1690, %v1689
        %v1704 = vpack.c.b16 %v1692, %v1691
        %v1705 = vpack.c.b16 %v1694, %v1693
        %v1706 = vpack.c.b16 %v1696, %v1695
        %v1707 = vpack.c.b16 %v1698, %v1697
        %v1708 = vpack.c.b16 %v1700, %v1699
        %1717 = vmatprep.subr.bf16.mxu0 0
        %1718 = vmatpush1.bf16.msra.mxu0 %v1701
        %1719 = vmatprep.subr.bf16.mxu0 0
        %1720 = vmatpush1.bf16.msra.mxu0 %v1702
        %1721 = vmatprep.subr.bf16.mxu0 0
        %1722 = vmatpush1.bf16.msra.mxu0 %v1703
        %1723 = vmatprep.subr.bf16.mxu0 0
        %1724 = vmatpush1.bf16.msra.mxu0 %v1704
        %1725 = vmatprep.subr.bf16.mxu0 0
        %1726 = vmatpush1.bf16.msra.mxu0 %v1705
        %1727 = vmatprep.subr.bf16.mxu0 0
        %1728 = vmatpush1.bf16.msra.mxu0 %v1706
        %1729 = vmatprep.subr.bf16.mxu0 0
        %1730 = vmatpush1.bf16.msra.mxu0 %v1707
        %1731 = vmatprep.subr.bf16.mxu0 0
        %1732 = vmatpush1.bf16.msra.mxu0 %v1708
        %1733 = vmatprep.subr.bf16.mxu0 0
        %1734 = vmatpush1.bf16.msra.mxu0 0
        %1735 = vmatprep.subr.bf16.mxu0 0
        %1736 = vmatpush1.bf16.msra.mxu0 0
        %1737 = vmatprep.subr.bf16.mxu0 0
        %1738 = vmatpush1.bf16.msra.mxu0 0
        %1739 = vmatprep.subr.bf16.mxu0 0
        %1740 = vmatpush1.bf16.msra.mxu0 0
        %1741 = vmatprep.subr.bf16.mxu0 0
        %1742 = vmatpush1.bf16.msra.mxu0 0
        %1743 = vmatprep.subr.bf16.mxu0 0
        %1744 = vmatpush1.bf16.msra.mxu0 0
        %1745 = vmatprep.subr.bf16.mxu0 0
        %1746 = vmatpush1.bf16.msra.mxu0 0
        %1747 = vmatprep.subr.bf16.mxu0 0
        %1748 = vmatpush1.bf16.msra.mxu0 0
        %1749 = vmatprep.mubr.bf16.mxu0 0
        %1750 = vmatmul.mubr.bf16.gmra.mrb[0].mxu0 %v700
        %v1751 = vpop.f32.mrb[0].mxu0
        %v1752 = vadd.f32 0.0, %v1751
        %v1753 = vpop.f32.mrb[0].mxu0
        %v1754 = vpop.f32.mrb[0].mxu0
        %v1755 = vpop.f32.mrb[0].mxu0
        %1756 = vdwg.mxu0
        %v1757 = vpack.c.bf16 %v784, %v784
        %v1758 = vpack.c.bf16 %v872, %v872
        %v1759 = vpack.c.bf16 %v960, %v960
        %v1760 = vpack.c.bf16 %v1048, %v1048
        %v1761 = vpack.c.bf16 %v1136, %v1136
        %v1762 = vpack.c.bf16 %v1224, %v1224
        %v1763 = vpack.c.bf16 %v1312, %v1312
        %v1764 = vpack.c.bf16 %v1400, %v1400
        %vm1765 = vcmask 261120
        %v1767 = vsel %vm1765, %v1757, 0
        %v1770 = vsel %vm1765, %v1761, 0
        %1772 = vmatprep.subr.bf16.mxu0 0
        %1773 = vmatpush1.bf16.xpose.msra.mxu0 %v1770
        %1774 = vmatprep.subr.bf16.mxu0 0
        %1775 = vmatpush1.bf16.xpose.msra.mxu0 0
        %1776 = vmatprep.subr.bf16.mxu0 0
        %1777 = vmatpush1.bf16.xpose.msra.mxu0 0
        %1778 = vmatprep.subr.bf16.mxu0 0
        %1779 = vmatpush1.bf16.xpose.msra.mxu0 0
        %1780 = vmatprep.subr.bf16.mxu0 0
        %1781 = vmatpush1.bf16.xpose.msra.mxu0 0
        %1782 = vmatprep.subr.bf16.mxu0 0
        %1783 = vmatpush1.bf16.xpose.msra.mxu0 0
        %1784 = vmatprep.subr.bf16.mxu0 0
        %1785 = vmatpush1.bf16.xpose.msra.mxu0 0
        %1786 = vmatprep.subr.bf16.mxu0 0
        %1787 = vmatpush1.bf16.xpose.msra.mxu0 0
        %1788 = vmatprep.subr.bf16.mxu0 0
        %1789 = vmatpush1.bf16.xpose.msra.mxu0 0
        %1790 = vmatprep.subr.bf16.mxu0 0
        %1791 = vmatpush1.bf16.xpose.msra.mxu0 0
        %1792 = vmatprep.subr.bf16.mxu0 0
        %1793 = vmatpush1.bf16.xpose.msra.mxu0 0
        %1794 = vmatprep.subr.bf16.mxu0 0
        %1795 = vmatpush1.bf16.xpose.msra.mxu0 0
        %1796 = vmatprep.subr.bf16.mxu0 0
        %1797 = vmatpush1.bf16.xpose.msra.mxu0 0
        %1798 = vmatprep.subr.bf16.mxu0 0
        %1799 = vmatpush1.bf16.xpose.msra.mxu0 0
        %1800 = vmatprep.subr.bf16.mxu0 0
        %1801 = vmatpush1.bf16.xpose.msra.mxu0 0
        %1802 = vmatprep.subr.bf16.mxu0 0
        %1803 = vmatpush1.bf16.xpose.msra.mxu0 0
        %1804 = vmatprep.mubr.bf16.mxu0 0
        %1805 = vmatmul.mubr.bf16.gmra.mrb[0].mxu0 %v1767
        %v1806 = vpop.f32.mrb[0].mxu0
        %v1807 = vadd.f32 0.0, %v1806
        %v1808 = vpop.f32.mrb[0].mxu0
        %v1809 = vpop.f32.mrb[0].mxu0
        %v1810 = vpop.f32.mrb[0].mxu0
        %1811 = vdwg.mxu0
        %v1813 = vsel %vm1765, %v1758, 0
        %v1816 = vsel %vm1765, %v1762, 0
        %1818 = vmatprep.subr.bf16.mxu0 0
        %1819 = vmatpush1.bf16.xpose.msra.mxu0 %v1816
        %1820 = vmatprep.subr.bf16.mxu0 0
        %1821 = vmatpush1.bf16.xpose.msra.mxu0 0
        %1822 = vmatprep.subr.bf16.mxu0 0
        %1823 = vmatpush1.bf16.xpose.msra.mxu0 0
        %1824 = vmatprep.subr.bf16.mxu0 0
        %1825 = vmatpush1.bf16.xpose.msra.mxu0 0
        %1826 = vmatprep.subr.bf16.mxu0 0
        %1827 = vmatpush1.bf16.xpose.msra.mxu0 0
        %1828 = vmatprep.subr.bf16.mxu0 0
        %1829 = vmatpush1.bf16.xpose.msra.mxu0 0
        %1830 = vmatprep.subr.bf16.mxu0 0
        %1831 = vmatpush1.bf16.xpose.msra.mxu0 0
        %1832 = vmatprep.subr.bf16.mxu0 0
        %1833 = vmatpush1.bf16.xpose.msra.mxu0 0
        %1834 = vmatprep.subr.bf16.mxu0 0
        %1835 = vmatpush1.bf16.xpose.msra.mxu0 0
        %1836 = vmatprep.subr.bf16.mxu0 0
        %1837 = vmatpush1.bf16.xpose.msra.mxu0 0
        %1838 = vmatprep.subr.bf16.mxu0 0
        %1839 = vmatpush1.bf16.xpose.msra.mxu0 0
        %1840 = vmatprep.subr.bf16.mxu0 0
        %1841 = vmatpush1.bf16.xpose.msra.mxu0 0
        %1842 = vmatprep.subr.bf16.mxu0 0
        %1843 = vmatpush1.bf16.xpose.msra.mxu0 0
        %1844 = vmatprep.subr.bf16.mxu0 0
        %1845 = vmatpush1.bf16.xpose.msra.mxu0 0
        %1846 = vmatprep.subr.bf16.mxu0 0
        %1847 = vmatpush1.bf16.xpose.msra.mxu0 0
        %1848 = vmatprep.subr.bf16.mxu0 0
        %1849 = vmatpush1.bf16.xpose.msra.mxu0 0
        %1850 = vmatprep.mubr.bf16.mxu0 0
        %1851 = vmatmul.mubr.bf16.gmra.mrb[0].mxu0 %v1813
        %v1852 = vpop.f32.mrb[0].mxu0
        %v1853 = vadd.f32 0.0, %v1852
        %v1854 = vpop.f32.mrb[0].mxu0
        %v1855 = vpop.f32.mrb[0].mxu0
        %v1856 = vpop.f32.mrb[0].mxu0
        %1857 = vdwg.mxu0
        %v1859 = vsel %vm1765, %v1759, 0
        %v1862 = vsel %vm1765, %v1763, 0
        %1864 = vmatprep.subr.bf16.mxu0 0
        %1865 = vmatpush1.bf16.xpose.msra.mxu0 %v1862
        %1866 = vmatprep.subr.bf16.mxu0 0
        %1867 = vmatpush1.bf16.xpose.msra.mxu0 0
        %1868 = vmatprep.subr.bf16.mxu0 0
        %1869 = vmatpush1.bf16.xpose.msra.mxu0 0
        %1870 = vmatprep.subr.bf16.mxu0 0
        %1871 = vmatpush1.bf16.xpose.msra.mxu0 0
        %1872 = vmatprep.subr.bf16.mxu0 0
        %1873 = vmatpush1.bf16.xpose.msra.mxu0 0
        %1874 = vmatprep.subr.bf16.mxu0 0
        %1875 = vmatpush1.bf16.xpose.msra.mxu0 0
        %1876 = vmatprep.subr.bf16.mxu0 0
        %1877 = vmatpush1.bf16.xpose.msra.mxu0 0
        %1878 = vmatprep.subr.bf16.mxu0 0
        %1879 = vmatpush1.bf16.xpose.msra.mxu0 0
        %1880 = vmatprep.subr.bf16.mxu0 0
        %1881 = vmatpush1.bf16.xpose.msra.mxu0 0
        %1882 = vmatprep.subr.bf16.mxu0 0
        %1883 = vmatpush1.bf16.xpose.msra.mxu0 0
        %1884 = vmatprep.subr.bf16.mxu0 0
        %1885 = vmatpush1.bf16.xpose.msra.mxu0 0
        %1886 = vmatprep.subr.bf16.mxu0 0
        %1887 = vmatpush1.bf16.xpose.msra.mxu0 0
        %1888 = vmatprep.subr.bf16.mxu0 0
        %1889 = vmatpush1.bf16.xpose.msra.mxu0 0
        %1890 = vmatprep.subr.bf16.mxu0 0
        %1891 = vmatpush1.bf16.xpose.msra.mxu0 0
        %1892 = vmatprep.subr.bf16.mxu0 0
        %1893 = vmatpush1.bf16.xpose.msra.mxu0 0
        %1894 = vmatprep.subr.bf16.mxu0 0
        %1895 = vmatpush1.bf16.xpose.msra.mxu0 0
        %1896 = vmatprep.mubr.bf16.mxu0 0
        %1897 = vmatmul.mubr.bf16.gmra.mrb[0].mxu0 %v1859
        %v1898 = vpop.f32.mrb[0].mxu0
        %v1899 = vadd.f32 0.0, %v1898
        %v1900 = vpop.f32.mrb[0].mxu0
        %v1901 = vpop.f32.mrb[0].mxu0
        %v1902 = vpop.f32.mrb[0].mxu0
        %1903 = vdwg.mxu0
        %v1905 = vsel %vm1765, %v1760, 0
        %v1908 = vsel %vm1765, %v1764, 0
        %1910 = vmatprep.subr.bf16.mxu0 0
        %1911 = vmatpush1.bf16.xpose.msra.mxu0 %v1908
        %1912 = vmatprep.subr.bf16.mxu0 0
        %1913 = vmatpush1.bf16.xpose.msra.mxu0 0
        %1914 = vmatprep.subr.bf16.mxu0 0
        %1915 = vmatpush1.bf16.xpose.msra.mxu0 0
        %1916 = vmatprep.subr.bf16.mxu0 0
        %1917 = vmatpush1.bf16.xpose.msra.mxu0 0
        %1918 = vmatprep.subr.bf16.mxu0 0
        %1919 = vmatpush1.bf16.xpose.msra.mxu0 0
        %1920 = vmatprep.subr.bf16.mxu0 0
        %1921 = vmatpush1.bf16.xpose.msra.mxu0 0
        %1922 = vmatprep.subr.bf16.mxu0 0
        %1923 = vmatpush1.bf16.xpose.msra.mxu0 0
        %1924 = vmatprep.subr.bf16.mxu0 0
        %1925 = vmatpush1.bf16.xpose.msra.mxu0 0
        %1926 = vmatprep.subr.bf16.mxu0 0
        %1927 = vmatpush1.bf16.xpose.msra.mxu0 0
        %1928 = vmatprep.subr.bf16.mxu0 0
        %1929 = vmatpush1.bf16.xpose.msra.mxu0 0
        %1930 = vmatprep.subr.bf16.mxu0 0
        %1931 = vmatpush1.bf16.xpose.msra.mxu0 0
        %1932 = vmatprep.subr.bf16.mxu0 0
        %1933 = vmatpush1.bf16.xpose.msra.mxu0 0
        %1934 = vmatprep.subr.bf16.mxu0 0
        %1935 = vmatpush1.bf16.xpose.msra.mxu0 0
        %1936 = vmatprep.subr.bf16.mxu0 0
        %1937 = vmatpush1.bf16.xpose.msra.mxu0 0
        %1938 = vmatprep.subr.bf16.mxu0 0
        %1939 = vmatpush1.bf16.xpose.msra.mxu0 0
        %1940 = vmatprep.subr.bf16.mxu0 0
        %1941 = vmatpush1.bf16.xpose.msra.mxu0 0
        %1942 = vmatprep.mubr.bf16.mxu0 0
        %1943 = vmatmul.mubr.bf16.gmra.mrb[0].mxu0 %v1905
        %v1944 = vpop.f32.mrb[0].mxu0
        %v1945 = vadd.f32 0.0, %v1944
        %v1946 = vpop.f32.mrb[0].mxu0
        %v1947 = vpop.f32.mrb[0].mxu0
        %v1948 = vpop.f32.mrb[0].mxu0
        %1949 = vdwg.mxu0
        %v1950 = vlaneseq
        %v1951 = vshrl.u32 %v1950, 7
        %v1952 = vlaneseq
        %v1953 = vand.u32 %v1952, 127
        %vm1954 = vcmp.gt.s32.totalorder %v1953, %v1951
        %v1955 = vsel %vm1954, 1, 0
        %vm1956 = vcmp.eq.s32.totalorder %v1955, 1
        %v1957 = vsel %vm1956, -1e+30, %v1807
        %v1958 = vsel %vm1956, -1e+30, %v1853
        %v1959 = vsel %vm1956, -1e+30, %v1899
        %v1960 = vsel %vm1956, -1e+30, %v1945
        %vm1961 = vcmask 64512
        %v1962 = vsel %vm1961, %v1957, -inf
        %1963 = vmax.xlane.f32.xlu0 %v1962
        %v1964 = vpop.xlane.xlu0 %1963
        %v1965 = vsel %vm1961, %v1958, -inf
        %1966 = vmax.xlane.f32.xlu0 %v1965
        %v1967 = vpop.xlane.xlu0 %1966
        %v1968 = vsel %vm1961, %v1959, -inf
        %1969 = vmax.xlane.f32.xlu0 %v1968
        %v1970 = vpop.xlane.xlu0 %1969
        %v1971 = vsel %vm1961, %v1960, -inf
        %1972 = vmax.xlane.f32.xlu0 %v1971
        %v1973 = vpop.xlane.xlu0 %1972
        %v1974 = vsub.f32 %v1957, %v1964
        %v1975 = vsub.f32 %v1958, %v1967
        %v1976 = vsub.f32 %v1959, %v1970
        %v1977 = vsub.f32 %v1960, %v1973
        %v1978 = vmul.f32 %v1974, 1.442695
        %v1979 = vpow.pop %v1978
        %v1980 = vmul.f32 %v1975, 1.442695
        %v1981 = vpow.pop %v1980
        %v1982 = vmul.f32 %v1976, 1.442695
        %v1983 = vpow.pop %v1982
        %v1984 = vmul.f32 %v1977, 1.442695
        %v1985 = vpow.pop %v1984
        %v1986 = vsel %vm1961, %v1979, 0.0
        %1987 = vadd.xlane.f32.xlu0 %v1986
        %v1988 = vpop.xlane.xlu0 %1987
        %v1989 = vsel %vm1961, %v1981, 0.0
        %1990 = vadd.xlane.f32.xlu0 %v1989
        %v1991 = vpop.xlane.xlu0 %1990
        %v1992 = vsel %vm1961, %v1983, 0.0
        %1993 = vadd.xlane.f32.xlu0 %v1992
        %v1994 = vpop.xlane.xlu0 %1993
        %v1995 = vsel %vm1961, %v1985, 0.0
        %1996 = vadd.xlane.f32.xlu0 %v1995
        %v1997 = vpop.xlane.xlu0 %1996
        %v1998 = vrcp.pop %v1988
        %v1999 = vrcp.pop %v1991
        %v2000 = vrcp.pop %v1994
        %v2001 = vrcp.pop %v1997
        %v2002 = vmul.f32 %v1979, %v1998
        %v2003 = vmul.f32 %v1981, %v1999
        %v2004 = vmul.f32 %v1983, %v2000
        %v2005 = vmul.f32 %v1985, %v2001
        %v2006 = vpack.c.bf16 %v2002, %v2002
        %v2007 = vpack.c.bf16 %v2003, %v2003
        %v2008 = vpack.c.bf16 %v2004, %v2004
        %v2009 = vpack.c.bf16 %v2005, %v2005
        %v2010 = vpack.c.bf16 %v1488, %v1488
        %v2011 = vpack.c.bf16 %v1576, %v1576
        %v2012 = vpack.c.bf16 %v1664, %v1664
        %v2013 = vpack.c.bf16 %v1752, %v1752
        %v2015 = vsel %vm1961, %v2006, 0
        %vm2017 = vcmask 1043456
        %v2019 = vsel %vm2017, %v2010, 0
        %2021 = vmatprep.subr.bf16.mxu0 0
        %2022 = vmatpush1.bf16.msra.mxu0 %v2019
        %2023 = vmatprep.subr.bf16.mxu0 0
        %2024 = vmatpush1.bf16.msra.mxu0 0
        %2025 = vmatprep.subr.bf16.mxu0 0
        %2026 = vmatpush1.bf16.msra.mxu0 0
        %2027 = vmatprep.subr.bf16.mxu0 0
        %2028 = vmatpush1.bf16.msra.mxu0 0
        %2029 = vmatprep.subr.bf16.mxu0 0
        %2030 = vmatpush1.bf16.msra.mxu0 0
        %2031 = vmatprep.subr.bf16.mxu0 0
        %2032 = vmatpush1.bf16.msra.mxu0 0
        %2033 = vmatprep.subr.bf16.mxu0 0
        %2034 = vmatpush1.bf16.msra.mxu0 0
        %2035 = vmatprep.subr.bf16.mxu0 0
        %2036 = vmatpush1.bf16.msra.mxu0 0
        %2037 = vmatprep.subr.bf16.mxu0 0
        %2038 = vmatpush1.bf16.msra.mxu0 0
        %2039 = vmatprep.subr.bf16.mxu0 0
        %2040 = vmatpush1.bf16.msra.mxu0 0
        %2041 = vmatprep.subr.bf16.mxu0 0
        %2042 = vmatpush1.bf16.msra.mxu0 0
        %2043 = vmatprep.subr.bf16.mxu0 0
        %2044 = vmatpush1.bf16.msra.mxu0 0
        %2045 = vmatprep.subr.bf16.mxu0 0
        %2046 = vmatpush1.bf16.msra.mxu0 0
        %2047 = vmatprep.subr.bf16.mxu0 0
        %2048 = vmatpush1.bf16.msra.mxu0 0
        %2049 = vmatprep.subr.bf16.mxu0 0
        %2050 = vmatpush1.bf16.msra.mxu0 0
        %2051 = vmatprep.subr.bf16.mxu0 0
        %2052 = vmatpush1.bf16.msra.mxu0 0
        %2053 = vmatprep.mubr.bf16.mxu0 0
        %2054 = vmatmul.mubr.bf16.gmra.mrb[0].mxu0 %v2015
        %v2055 = vpop.f32.mrb[0].mxu0
        %v2056 = vadd.f32 0.0, %v2055
        %v2057 = vpop.f32.mrb[0].mxu0
        %v2058 = vpop.f32.mrb[0].mxu0
        %v2059 = vpop.f32.mrb[0].mxu0
        %2060 = vdwg.mxu0
        %v2062 = vsel %vm1961, %v2007, 0
        %v2065 = vsel %vm2017, %v2011, 0
        %2067 = vmatprep.subr.bf16.mxu0 0
        %2068 = vmatpush1.bf16.msra.mxu0 %v2065
        %2069 = vmatprep.subr.bf16.mxu0 0
        %2070 = vmatpush1.bf16.msra.mxu0 0
        %2071 = vmatprep.subr.bf16.mxu0 0
        %2072 = vmatpush1.bf16.msra.mxu0 0
        %2073 = vmatprep.subr.bf16.mxu0 0
        %2074 = vmatpush1.bf16.msra.mxu0 0
        %2075 = vmatprep.subr.bf16.mxu0 0
        %2076 = vmatpush1.bf16.msra.mxu0 0
        %2077 = vmatprep.subr.bf16.mxu0 0
        %2078 = vmatpush1.bf16.msra.mxu0 0
        %2079 = vmatprep.subr.bf16.mxu0 0
        %2080 = vmatpush1.bf16.msra.mxu0 0
        %2081 = vmatprep.subr.bf16.mxu0 0
        %2082 = vmatpush1.bf16.msra.mxu0 0
        %2083 = vmatprep.subr.bf16.mxu0 0
        %2084 = vmatpush1.bf16.msra.mxu0 0
        %2085 = vmatprep.subr.bf16.mxu0 0
        %2086 = vmatpush1.bf16.msra.mxu0 0
        %2087 = vmatprep.subr.bf16.mxu0 0
        %2088 = vmatpush1.bf16.msra.mxu0 0
        %2089 = vmatprep.subr.bf16.mxu0 0
        %2090 = vmatpush1.bf16.msra.mxu0 0
        %2091 = vmatprep.subr.bf16.mxu0 0
        %2092 = vmatpush1.bf16.msra.mxu0 0
        %2093 = vmatprep.subr.bf16.mxu0 0
        %2094 = vmatpush1.bf16.msra.mxu0 0
        %2095 = vmatprep.subr.bf16.mxu0 0
        %2096 = vmatpush1.bf16.msra.mxu0 0
        %2097 = vmatprep.subr.bf16.mxu0 0
        %2098 = vmatpush1.bf16.msra.mxu0 0
        %2099 = vmatprep.mubr.bf16.mxu0 0
        %2100 = vmatmul.mubr.bf16.gmra.mrb[0].mxu0 %v2062
        %v2101 = vpop.f32.mrb[0].mxu0
        %v2102 = vadd.f32 0.0, %v2101
        %v2103 = vpop.f32.mrb[0].mxu0
        %v2104 = vpop.f32.mrb[0].mxu0
        %v2105 = vpop.f32.mrb[0].mxu0
        %2106 = vdwg.mxu0
        %v2108 = vsel %vm1961, %v2008, 0
        %v2111 = vsel %vm2017, %v2012, 0
        %2113 = vmatprep.subr.bf16.mxu0 0
        %2114 = vmatpush1.bf16.msra.mxu0 %v2111
        %2115 = vmatprep.subr.bf16.mxu0 0
        %2116 = vmatpush1.bf16.msra.mxu0 0
        %2117 = vmatprep.subr.bf16.mxu0 0
        %2118 = vmatpush1.bf16.msra.mxu0 0
        %2119 = vmatprep.subr.bf16.mxu0 0
        %2120 = vmatpush1.bf16.msra.mxu0 0
        %2121 = vmatprep.subr.bf16.mxu0 0
        %2122 = vmatpush1.bf16.msra.mxu0 0
        %2123 = vmatprep.subr.bf16.mxu0 0
        %2124 = vmatpush1.bf16.msra.mxu0 0
        %2125 = vmatprep.subr.bf16.mxu0 0
        %2126 = vmatpush1.bf16.msra.mxu0 0
        %2127 = vmatprep.subr.bf16.mxu0 0
        %2128 = vmatpush1.bf16.msra.mxu0 0
        %2129 = vmatprep.subr.bf16.mxu0 0
        %2130 = vmatpush1.bf16.msra.mxu0 0
        %2131 = vmatprep.subr.bf16.mxu0 0
        %2132 = vmatpush1.bf16.msra.mxu0 0
        %2133 = vmatprep.subr.bf16.mxu0 0
        %2134 = vmatpush1.bf16.msra.mxu0 0
        %2135 = vmatprep.subr.bf16.mxu0 0
        %2136 = vmatpush1.bf16.msra.mxu0 0
        %2137 = vmatprep.subr.bf16.mxu0 0
        %2138 = vmatpush1.bf16.msra.mxu0 0
        %2139 = vmatprep.subr.bf16.mxu0 0
        %2140 = vmatpush1.bf16.msra.mxu0 0
        %2141 = vmatprep.subr.bf16.mxu0 0
        %2142 = vmatpush1.bf16.msra.mxu0 0
        %2143 = vmatprep.subr.bf16.mxu0 0
        %2144 = vmatpush1.bf16.msra.mxu0 0
        %2145 = vmatprep.mubr.bf16.mxu0 0
        %2146 = vmatmul.mubr.bf16.gmra.mrb[0].mxu0 %v2108
        %v2147 = vpop.f32.mrb[0].mxu0
        %v2148 = vadd.f32 0.0, %v2147
        %v2149 = vpop.f32.mrb[0].mxu0
        %v2150 = vpop.f32.mrb[0].mxu0
        %v2151 = vpop.f32.mrb[0].mxu0
        %2152 = vdwg.mxu0
        %v2154 = vsel %vm1961, %v2009, 0
        %v2157 = vsel %vm2017, %v2013, 0
        %2159 = vmatprep.subr.bf16.mxu0 0
        %2160 = vmatpush1.bf16.msra.mxu0 %v2157
        %2161 = vmatprep.subr.bf16.mxu0 0
        %2162 = vmatpush1.bf16.msra.mxu0 0
        %2163 = vmatprep.subr.bf16.mxu0 0
        %2164 = vmatpush1.bf16.msra.mxu0 0
        %2165 = vmatprep.subr.bf16.mxu0 0
        %2166 = vmatpush1.bf16.msra.mxu0 0
        %2167 = vmatprep.subr.bf16.mxu0 0
        %2168 = vmatpush1.bf16.msra.mxu0 0
        %2169 = vmatprep.subr.bf16.mxu0 0
        %2170 = vmatpush1.bf16.msra.mxu0 0
        %2171 = vmatprep.subr.bf16.mxu0 0
        %2172 = vmatpush1.bf16.msra.mxu0 0
        %2173 = vmatprep.subr.bf16.mxu0 0
        %2174 = vmatpush1.bf16.msra.mxu0 0
        %2175 = vmatprep.subr.bf16.mxu0 0
        %2176 = vmatpush1.bf16.msra.mxu0 0
        %2177 = vmatprep.subr.bf16.mxu0 0
        %2178 = vmatpush1.bf16.msra.mxu0 0
        %2179 = vmatprep.subr.bf16.mxu0 0
        %2180 = vmatpush1.bf16.msra.mxu0 0
        %2181 = vmatprep.subr.bf16.mxu0 0
        %2182 = vmatpush1.bf16.msra.mxu0 0
        %2183 = vmatprep.subr.bf16.mxu0 0
        %2184 = vmatpush1.bf16.msra.mxu0 0
        %2185 = vmatprep.subr.bf16.mxu0 0
        %2186 = vmatpush1.bf16.msra.mxu0 0
        %2187 = vmatprep.subr.bf16.mxu0 0
        %2188 = vmatpush1.bf16.msra.mxu0 0
        %2189 = vmatprep.subr.bf16.mxu0 0
        %2190 = vmatpush1.bf16.msra.mxu0 0
        %2191 = vmatprep.mubr.bf16.mxu0 0
        %2192 = vmatmul.mubr.bf16.gmra.mrb[0].mxu0 %v2154
        %v2193 = vpop.f32.mrb[0].mxu0
        %v2194 = vadd.f32 0.0, %v2193
        %v2195 = vpop.f32.mrb[0].mxu0
        %v2196 = vpop.f32.mrb[0].mxu0
        %v2197 = vpop.f32.mrb[0].mxu0
        %2198 = vdwg.mxu0
        %v2199 = vpack.c.bf16 %v2056, %v2056
        %v2200 = vpack.c.bf16 %v2102, %v2102
        %v2201 = vpack.c.bf16 %v2148, %v2148
        %v2202 = vpack.c.bf16 %v2194, %v2194
        %v2207 = vunpack.c.l.b16 %v684
        %v2208 = vunpack.c.l.b16 %v685
        %v2209 = vunpack.c.l.b16 %v686
        %v2210 = vunpack.c.l.b16 %v687
        %v2211 = vpack.c.b16 %v2208, %v2207
        %v2212 = vpack.c.b16 %v2210, %v2209
        %v2216 = vsel %vm1765, %v2199, 0
        %2218 = vmatprep.subr.bf16.mxu0 0
        %2219 = vmatpush1.bf16.msra.mxu0 %v2211
        %2220 = vmatprep.subr.bf16.mxu0 0
        %2221 = vmatpush1.bf16.msra.mxu0 %v2212
        %2222 = vmatprep.subr.bf16.mxu0 0
        %2223 = vmatpush1.bf16.msra.mxu0 0
        %2224 = vmatprep.subr.bf16.mxu0 0
        %2225 = vmatpush1.bf16.msra.mxu0 0
        %2226 = vmatprep.subr.bf16.mxu0 0
        %2227 = vmatpush1.bf16.msra.mxu0 0
        %2228 = vmatprep.subr.bf16.mxu0 0
        %2229 = vmatpush1.bf16.msra.mxu0 0
        %2230 = vmatprep.subr.bf16.mxu0 0
        %2231 = vmatpush1.bf16.msra.mxu0 0
        %2232 = vmatprep.subr.bf16.mxu0 0
        %2233 = vmatpush1.bf16.msra.mxu0 0
        %2234 = vmatprep.subr.bf16.mxu0 0
        %2235 = vmatpush1.bf16.msra.mxu0 0
        %2236 = vmatprep.subr.bf16.mxu0 0
        %2237 = vmatpush1.bf16.msra.mxu0 0
        %2238 = vmatprep.subr.bf16.mxu0 0
        %2239 = vmatpush1.bf16.msra.mxu0 0
        %2240 = vmatprep.subr.bf16.mxu0 0
        %2241 = vmatpush1.bf16.msra.mxu0 0
        %2242 = vmatprep.subr.bf16.mxu0 0
        %2243 = vmatpush1.bf16.msra.mxu0 0
        %2244 = vmatprep.subr.bf16.mxu0 0
        %2245 = vmatpush1.bf16.msra.mxu0 0
        %2246 = vmatprep.subr.bf16.mxu0 0
        %2247 = vmatpush1.bf16.msra.mxu0 0
        %2248 = vmatprep.subr.bf16.mxu0 0
        %2249 = vmatpush1.bf16.msra.mxu0 0
        %2250 = vmatprep.mubr.bf16.mxu0 0
        %2251 = vmatmul.mubr.bf16.gmra.mrb[0].mxu0 %v2216
        %v2252 = vpop.f32.mrb[0].mxu0
        %v2253 = vadd.f32 0.0, %v2252
        %v2254 = vpop.f32.mrb[0].mxu0
        %v2255 = vpop.f32.mrb[0].mxu0
        %v2256 = vpop.f32.mrb[0].mxu0
        %2257 = vdwg.mxu0
        %v2262 = vunpack.c.l.b16 %v688
        %v2263 = vunpack.c.l.b16 %v689
        %v2264 = vunpack.c.l.b16 %v690
        %v2265 = vunpack.c.l.b16 %v691
        %v2266 = vpack.c.b16 %v2263, %v2262
        %v2267 = vpack.c.b16 %v2265, %v2264
        %v2271 = vsel %vm1765, %v2200, 0
        %2273 = vmatprep.subr.bf16.mxu0 0
        %2274 = vmatpush1.bf16.msra.mxu0 %v2266
        %2275 = vmatprep.subr.bf16.mxu0 0
        %2276 = vmatpush1.bf16.msra.mxu0 %v2267
        %2277 = vmatprep.subr.bf16.mxu0 0
        %2278 = vmatpush1.bf16.msra.mxu0 0
        %2279 = vmatprep.subr.bf16.mxu0 0
        %2280 = vmatpush1.bf16.msra.mxu0 0
        %2281 = vmatprep.subr.bf16.mxu0 0
        %2282 = vmatpush1.bf16.msra.mxu0 0
        %2283 = vmatprep.subr.bf16.mxu0 0
        %2284 = vmatpush1.bf16.msra.mxu0 0
        %2285 = vmatprep.subr.bf16.mxu0 0
        %2286 = vmatpush1.bf16.msra.mxu0 0
        %2287 = vmatprep.subr.bf16.mxu0 0
        %2288 = vmatpush1.bf16.msra.mxu0 0
        %2289 = vmatprep.subr.bf16.mxu0 0
        %2290 = vmatpush1.bf16.msra.mxu0 0
        %2291 = vmatprep.subr.bf16.mxu0 0
        %2292 = vmatpush1.bf16.msra.mxu0 0
        %2293 = vmatprep.subr.bf16.mxu0 0
        %2294 = vmatpush1.bf16.msra.mxu0 0
        %2295 = vmatprep.subr.bf16.mxu0 0
        %2296 = vmatpush1.bf16.msra.mxu0 0
        %2297 = vmatprep.subr.bf16.mxu0 0
        %2298 = vmatpush1.bf16.msra.mxu0 0
        %2299 = vmatprep.subr.bf16.mxu0 0
        %2300 = vmatpush1.bf16.msra.mxu0 0
        %2301 = vmatprep.subr.bf16.mxu0 0
        %2302 = vmatpush1.bf16.msra.mxu0 0
        %2303 = vmatprep.subr.bf16.mxu0 0
        %2304 = vmatpush1.bf16.msra.mxu0 0
        %2305 = vmatprep.mubr.bf16.mxu0 0
        %2306 = vmatmul.mubr.bf16.gmra.mrb[0].mxu0 %v2271
        %v2307 = vpop.f32.mrb[0].mxu0
        %v2308 = vadd.f32 0.0, %v2307
        %v2309 = vpop.f32.mrb[0].mxu0
        %v2310 = vpop.f32.mrb[0].mxu0
        %v2311 = vpop.f32.mrb[0].mxu0
        %2312 = vdwg.mxu0
        %v2317 = vunpack.c.l.b16 %v692
        %v2318 = vunpack.c.l.b16 %v693
        %v2319 = vunpack.c.l.b16 %v694
        %v2320 = vunpack.c.l.b16 %v695
        %v2321 = vpack.c.b16 %v2318, %v2317
        %v2322 = vpack.c.b16 %v2320, %v2319
        %v2326 = vsel %vm1765, %v2201, 0
        %2328 = vmatprep.subr.bf16.mxu0 0
        %2329 = vmatpush1.bf16.msra.mxu0 %v2321
        %2330 = vmatprep.subr.bf16.mxu0 0
        %2331 = vmatpush1.bf16.msra.mxu0 %v2322
        %2332 = vmatprep.subr.bf16.mxu0 0
        %2333 = vmatpush1.bf16.msra.mxu0 0
        %2334 = vmatprep.subr.bf16.mxu0 0
        %2335 = vmatpush1.bf16.msra.mxu0 0
        %2336 = vmatprep.subr.bf16.mxu0 0
        %2337 = vmatpush1.bf16.msra.mxu0 0
        %2338 = vmatprep.subr.bf16.mxu0 0
        %2339 = vmatpush1.bf16.msra.mxu0 0
        %2340 = vmatprep.subr.bf16.mxu0 0
        %2341 = vmatpush1.bf16.msra.mxu0 0
        %2342 = vmatprep.subr.bf16.mxu0 0
        %2343 = vmatpush1.bf16.msra.mxu0 0
        %2344 = vmatprep.subr.bf16.mxu0 0
        %2345 = vmatpush1.bf16.msra.mxu0 0
        %2346 = vmatprep.subr.bf16.mxu0 0
        %2347 = vmatpush1.bf16.msra.mxu0 0
        %2348 = vmatprep.subr.bf16.mxu0 0
        %2349 = vmatpush1.bf16.msra.mxu0 0
        %2350 = vmatprep.subr.bf16.mxu0 0
        %2351 = vmatpush1.bf16.msra.mxu0 0
        %2352 = vmatprep.subr.bf16.mxu0 0
        %2353 = vmatpush1.bf16.msra.mxu0 0
        %2354 = vmatprep.subr.bf16.mxu0 0
        %2355 = vmatpush1.bf16.msra.mxu0 0
        %2356 = vmatprep.subr.bf16.mxu0 0
        %2357 = vmatpush1.bf16.msra.mxu0 0
        %2358 = vmatprep.subr.bf16.mxu0 0
        %2359 = vmatpush1.bf16.msra.mxu0 0
        %2360 = vmatprep.mubr.bf16.mxu0 0
        %2361 = vmatmul.mubr.bf16.gmra.mrb[0].mxu0 %v2326
        %v2362 = vpop.f32.mrb[0].mxu0
        %v2363 = vadd.f32 0.0, %v2362
        %v2364 = vpop.f32.mrb[0].mxu0
        %v2365 = vpop.f32.mrb[0].mxu0
        %v2366 = vpop.f32.mrb[0].mxu0
        %2367 = vdwg.mxu0
        %v2372 = vunpack.c.l.b16 %v696
        %v2373 = vunpack.c.l.b16 %v697
        %v2374 = vunpack.c.l.b16 %v698
        %v2375 = vunpack.c.l.b16 %v699
        %v2376 = vpack.c.b16 %v2373, %v2372
        %v2377 = vpack.c.b16 %v2375, %v2374
        %v2381 = vsel %vm1765, %v2202, 0
        %2383 = vmatprep.subr.bf16.mxu0 0
        %2384 = vmatpush1.bf16.msra.mxu0 %v2376
        %2385 = vmatprep.subr.bf16.mxu0 0
        %2386 = vmatpush1.bf16.msra.mxu0 %v2377
        %2387 = vmatprep.subr.bf16.mxu0 0
        %2388 = vmatpush1.bf16.msra.mxu0 0
        %2389 = vmatprep.subr.bf16.mxu0 0
        %2390 = vmatpush1.bf16.msra.mxu0 0
        %2391 = vmatprep.subr.bf16.mxu0 0
        %2392 = vmatpush1.bf16.msra.mxu0 0
        %2393 = vmatprep.subr.bf16.mxu0 0
        %2394 = vmatpush1.bf16.msra.mxu0 0
        %2395 = vmatprep.subr.bf16.mxu0 0
        %2396 = vmatpush1.bf16.msra.mxu0 0
        %2397 = vmatprep.subr.bf16.mxu0 0
        %2398 = vmatpush1.bf16.msra.mxu0 0
        %2399 = vmatprep.subr.bf16.mxu0 0
        %2400 = vmatpush1.bf16.msra.mxu0 0
        %2401 = vmatprep.subr.bf16.mxu0 0
        %2402 = vmatpush1.bf16.msra.mxu0 0
        %2403 = vmatprep.subr.bf16.mxu0 0
        %2404 = vmatpush1.bf16.msra.mxu0 0
        %2405 = vmatprep.subr.bf16.mxu0 0
        %2406 = vmatpush1.bf16.msra.mxu0 0
        %2407 = vmatprep.subr.bf16.mxu0 0
        %2408 = vmatpush1.bf16.msra.mxu0 0
        %2409 = vmatprep.subr.bf16.mxu0 0
        %2410 = vmatpush1.bf16.msra.mxu0 0
        %2411 = vmatprep.subr.bf16.mxu0 0
        %2412 = vmatpush1.bf16.msra.mxu0 0
        %2413 = vmatprep.subr.bf16.mxu0 0
        %2414 = vmatpush1.bf16.msra.mxu0 0
        %2415 = vmatprep.mubr.bf16.mxu0 0
        %2416 = vmatmul.mubr.bf16.gmra.mrb[0].mxu0 %v2381
        %v2417 = vpop.f32.mrb[0].mxu0
        %v2418 = vadd.f32 0.0, %v2417
        %v2419 = vpop.f32.mrb[0].mxu0
        %v2420 = vpop.f32.mrb[0].mxu0
        %v2421 = vpop.f32.mrb[0].mxu0
        %2422 = vdwg.mxu0
        %v2423 = vadd.f32 %v2253, %v2308
        %v2424 = vadd.f32 %v2423, %v2363
        %v2425 = vadd.f32 %v2424, %v2418
        %v2426 = vadd.f32 %v491, %v2425
        %v2427 = vld [vmem:[%s3] sm:$0x1]
        %v2428 = vld [vmem:[%s4] sm:$0x1]
        %2429 = vadd.xlane.f32.xlu0 %v2426
        %v2430 = vpop.xlane.xlu0 %2429
        %v2431 = vrcp.pop 128.0
        %v2432 = vmul.f32 %v2430, %v2431
        %v2433 = vsub.f32 %v2426, %v2432
        %v2434 = vmul.f32 %v2433, %v2433
        %2435 = vadd.xlane.f32.xlu0 %v2434
        %v2436 = vpop.xlane.xlu0 %2435
        %v2437 = vmul.f32 %v2436, %v2431
        %v2438 = vadd.f32 %v2437, 1e-05
        %v2439 = vrsqrt.pop %v2438
        %v2440 = vmul.f32 %v2433, %v2439
        %v2442 = vlaneseq
        %v2443 = vshrl.u32 %v2442, 7
        %v2444 = vsub.s32 0, %v2443
        %v2445 = vrot.slane %v2427, %v2444
        %v2447 = vmul.f32 %v2440, %v2445
        %v2449 = vlaneseq
        %v2450 = vshrl.u32 %v2449, 7
        %v2451 = vsub.s32 0, %v2450
        %v2452 = vrot.slane %v2428, %v2451
        %v2454 = vadd.f32 %v2447, %v2452
        %v2455 = vld [vmem:[%s5] sm:$0xf]
        %v2456 = vld [vmem:[%s5 + $0x4] sm:$0xf]
        %v2457 = vld [vmem:[%s5 + $0x8] sm:$0xf]
        %v2458 = vld [vmem:[%s5 + $0xc] sm:$0xf]
        %v2459 = vld [vmem:[%s5 + $0x10] sm:$0xf]
        %v2460 = vld [vmem:[%s5 + $0x14] sm:$0xf]
        %v2461 = vld [vmem:[%s5 + $0x18] sm:$0xf]
        %v2462 = vld [vmem:[%s5 + $0x1c] sm:$0xf]
        %v2463 = vld [vmem:[%s5 + $0x20] sm:$0xf]
        %v2464 = vld [vmem:[%s5 + $0x24] sm:$0xf]
        %v2465 = vld [vmem:[%s5 + $0x28] sm:$0xf]
        %v2466 = vld [vmem:[%s5 + $0x2c] sm:$0xf]
        %v2467 = vld [vmem:[%s5 + $0x30] sm:$0xf]
        %v2468 = vld [vmem:[%s5 + $0x34] sm:$0xf]
        %v2469 = vld [vmem:[%s5 + $0x38] sm:$0xf]
        %v2470 = vld [vmem:[%s5 + $0x3c] sm:$0xf]
        %v2471 = vld [vmem:[%s5 + $0x40] sm:$0xf]
        %v2472 = vld [vmem:[%s5 + $0x44] sm:$0xf]
        %v2473 = vld [vmem:[%s5 + $0x48] sm:$0xf]
        %v2474 = vld [vmem:[%s5 + $0x4c] sm:$0xf]
        %v2475 = vld [vmem:[%s5 + $0x50] sm:$0xf]
        %v2476 = vld [vmem:[%s5 + $0x54] sm:$0xf]
        %v2477 = vld [vmem:[%s5 + $0x58] sm:$0xf]
        %v2478 = vld [vmem:[%s5 + $0x5c] sm:$0xf]
        %v2479 = vld [vmem:[%s5 + $0x60] sm:$0xf]
        %v2480 = vld [vmem:[%s5 + $0x64] sm:$0xf]
        %v2481 = vld [vmem:[%s5 + $0x68] sm:$0xf]
        %v2482 = vld [vmem:[%s5 + $0x6c] sm:$0xf]
        %v2483 = vld [vmem:[%s5 + $0x70] sm:$0xf]
        %v2484 = vld [vmem:[%s5 + $0x74] sm:$0xf]
        %v2485 = vld [vmem:[%s5 + $0x78] sm:$0xf]
        %v2486 = vld [vmem:[%s5 + $0x7c] sm:$0xf]
        %v2487 = vld [vmem:[%s5 + $0x80] sm:$0xf]
        %v2488 = vld [vmem:[%s5 + $0x84] sm:$0xf]
        %v2489 = vld [vmem:[%s5 + $0x88] sm:$0xf]
        %v2490 = vld [vmem:[%s5 + $0x8c] sm:$0xf]
        %v2491 = vld [vmem:[%s5 + $0x90] sm:$0xf]
        %v2492 = vld [vmem:[%s5 + $0x94] sm:$0xf]
        %v2493 = vld [vmem:[%s5 + $0x98] sm:$0xf]
        %v2494 = vld [vmem:[%s5 + $0x9c] sm:$0xf]
        %v2495 = vld [vmem:[%s5 + $0xa0] sm:$0xf]
        %v2496 = vld [vmem:[%s5 + $0xa4] sm:$0xf]
        %v2497 = vld [vmem:[%s5 + $0xa8] sm:$0xf]
        %v2498 = vld [vmem:[%s5 + $0xac] sm:$0xf]
        %v2499 = vld [vmem:[%s5 + $0xb0] sm:$0xf]
        %v2500 = vld [vmem:[%s5 + $0xb4] sm:$0xf]
        %v2501 = vld [vmem:[%s5 + $0xb8] sm:$0xf]
        %v2502 = vld [vmem:[%s5 + $0xbc] sm:$0xf]
        %v2503 = vld [vmem:[%s5 + $0xc0] sm:$0xf]
        %v2504 = vld [vmem:[%s5 + $0xc4] sm:$0xf]
        %v2505 = vld [vmem:[%s5 + $0xc8] sm:$0xf]
        %v2506 = vld [vmem:[%s5 + $0xcc] sm:$0xf]
        %v2507 = vld [vmem:[%s5 + $0xd0] sm:$0xf]
        %v2508 = vld [vmem:[%s5 + $0xd4] sm:$0xf]
        %v2509 = vld [vmem:[%s5 + $0xd8] sm:$0xf]
        %v2510 = vld [vmem:[%s5 + $0xdc] sm:$0xf]
        %v2511 = vld [vmem:[%s5 + $0xe0] sm:$0xf]
        %v2512 = vld [vmem:[%s5 + $0xe4] sm:$0xf]
        %v2513 = vld [vmem:[%s5 + $0xe8] sm:$0xf]
        %v2514 = vld [vmem:[%s5 + $0xec] sm:$0xf]
        %v2515 = vld [vmem:[%s5 + $0xf0] sm:$0xf]
        %v2516 = vld [vmem:[%s5 + $0xf4] sm:$0xf]
        %v2517 = vld [vmem:[%s5 + $0xf8] sm:$0xf]
        %v2518 = vld [vmem:[%s5 + $0xfc] sm:$0xf]
        %v2519 = vld [vmem:[%s5 + $0x100] sm:$0xf]
        %v2520 = vld [vmem:[%s5 + $0x104] sm:$0xf]
        %v2521 = vld [vmem:[%s5 + $0x108] sm:$0xf]
        %v2522 = vld [vmem:[%s5 + $0x10c] sm:$0xf]
        %v2523 = vld [vmem:[%s5 + $0x110] sm:$0xf]
        %v2524 = vld [vmem:[%s5 + $0x114] sm:$0xf]
        %v2525 = vld [vmem:[%s5 + $0x118] sm:$0xf]
        %v2526 = vld [vmem:[%s5 + $0x11c] sm:$0xf]
        %v2527 = vld [vmem:[%s5 + $0x120] sm:$0xf]
        %v2528 = vld [vmem:[%s5 + $0x124] sm:$0xf]
        %v2529 = vld [vmem:[%s5 + $0x128] sm:$0xf]
        %v2530 = vld [vmem:[%s5 + $0x12c] sm:$0xf]
        %v2531 = vld [vmem:[%s5 + $0x130] sm:$0xf]
        %v2532 = vld [vmem:[%s5 + $0x134] sm:$0xf]
        %v2533 = vld [vmem:[%s5 + $0x138] sm:$0xf]
        %v2534 = vld [vmem:[%s5 + $0x13c] sm:$0xf]
        %v2535 = vld [vmem:[%s5 + $0x140] sm:$0xf]
        %v2536 = vld [vmem:[%s5 + $0x144] sm:$0xf]
        %v2537 = vld [vmem:[%s5 + $0x148] sm:$0xf]
        %v2538 = vld [vmem:[%s5 + $0x14c] sm:$0xf]
        %v2539 = vld [vmem:[%s5 + $0x150] sm:$0xf]
        %v2540 = vld [vmem:[%s5 + $0x154] sm:$0xf]
        %v2541 = vld [vmem:[%s5 + $0x158] sm:$0xf]
        %v2542 = vld [vmem:[%s5 + $0x15c] sm:$0xf]
        %v2543 = vld [vmem:[%s5 + $0x160] sm:$0xf]
        %v2544 = vld [vmem:[%s5 + $0x164] sm:$0xf]
        %v2545 = vld [vmem:[%s5 + $0x168] sm:$0xf]
        %v2546 = vld [vmem:[%s5 + $0x16c] sm:$0xf]
        %v2547 = vld [vmem:[%s5 + $0x170] sm:$0xf]
        %v2548 = vld [vmem:[%s5 + $0x174] sm:$0xf]
        %v2549 = vld [vmem:[%s5 + $0x178] sm:$0xf]
        %v2550 = vld [vmem:[%s5 + $0x17c] sm:$0xf]
        %v2551 = vld [vmem:[%s5 + $0x180] sm:$0xf]
        %v2552 = vld [vmem:[%s5 + $0x184] sm:$0xf]
        %v2553 = vld [vmem:[%s5 + $0x188] sm:$0xf]
        %v2554 = vld [vmem:[%s5 + $0x18c] sm:$0xf]
        %v2555 = vld [vmem:[%s5 + $0x190] sm:$0xf]
        %v2556 = vld [vmem:[%s5 + $0x194] sm:$0xf]
        %v2557 = vld [vmem:[%s5 + $0x198] sm:$0xf]
        %v2558 = vld [vmem:[%s5 + $0x19c] sm:$0xf]
        %v2559 = vld [vmem:[%s5 + $0x1a0] sm:$0xf]
        %v2560 = vld [vmem:[%s5 + $0x1a4] sm:$0xf]
        %v2561 = vld [vmem:[%s5 + $0x1a8] sm:$0xf]
        %v2562 = vld [vmem:[%s5 + $0x1ac] sm:$0xf]
        %v2563 = vld [vmem:[%s5 + $0x1b0] sm:$0xf]
        %v2564 = vld [vmem:[%s5 + $0x1b4] sm:$0xf]
        %v2565 = vld [vmem:[%s5 + $0x1b8] sm:$0xf]
        %v2566 = vld [vmem:[%s5 + $0x1bc] sm:$0xf]
        %v2567 = vld [vmem:[%s5 + $0x1c0] sm:$0xf]
        %v2568 = vld [vmem:[%s5 + $0x1c4] sm:$0xf]
        %v2569 = vld [vmem:[%s5 + $0x1c8] sm:$0xf]
        %v2570 = vld [vmem:[%s5 + $0x1cc] sm:$0xf]
        %v2571 = vld [vmem:[%s5 + $0x1d0] sm:$0xf]
        %v2572 = vld [vmem:[%s5 + $0x1d4] sm:$0xf]
        %v2573 = vld [vmem:[%s5 + $0x1d8] sm:$0xf]
        %v2574 = vld [vmem:[%s5 + $0x1dc] sm:$0xf]
        %v2575 = vld [vmem:[%s5 + $0x1e0] sm:$0xf]
        %v2576 = vld [vmem:[%s5 + $0x1e4] sm:$0xf]
        %v2577 = vld [vmem:[%s5 + $0x1e8] sm:$0xf]
        %v2578 = vld [vmem:[%s5 + $0x1ec] sm:$0xf]
        %v2579 = vld [vmem:[%s5 + $0x1f0] sm:$0xf]
        %v2580 = vld [vmem:[%s5 + $0x1f4] sm:$0xf]
        %v2581 = vld [vmem:[%s5 + $0x1f8] sm:$0xf]
        %v2582 = vld [vmem:[%s5 + $0x1fc] sm:$0xf]
        %v2583 = vld [vmem:[%s5 + $0x200] sm:$0xf]
        %v2584 = vld [vmem:[%s5 + $0x204] sm:$0xf]
        %v2585 = vld [vmem:[%s5 + $0x208] sm:$0xf]
        %v2586 = vld [vmem:[%s5 + $0x20c] sm:$0xf]
        %v2587 = vld [vmem:[%s5 + $0x210] sm:$0xf]
        %v2588 = vld [vmem:[%s5 + $0x214] sm:$0xf]
        %v2589 = vld [vmem:[%s5 + $0x218] sm:$0xf]
        %v2590 = vld [vmem:[%s5 + $0x21c] sm:$0xf]
        %v2591 = vld [vmem:[%s5 + $0x220] sm:$0xf]
        %v2592 = vld [vmem:[%s5 + $0x224] sm:$0xf]
        %v2593 = vld [vmem:[%s5 + $0x228] sm:$0xf]
        %v2594 = vld [vmem:[%s5 + $0x22c] sm:$0xf]
        %v2595 = vld [vmem:[%s5 + $0x230] sm:$0xf]
        %v2596 = vld [vmem:[%s5 + $0x234] sm:$0xf]
        %v2597 = vld [vmem:[%s5 + $0x238] sm:$0xf]
        %v2598 = vld [vmem:[%s5 + $0x23c] sm:$0xf]
        %v2599 = vld [vmem:[%s5 + $0x240] sm:$0xf]
        %v2600 = vld [vmem:[%s5 + $0x244] sm:$0xf]
        %v2601 = vld [vmem:[%s5 + $0x248] sm:$0xf]
        %v2602 = vld [vmem:[%s5 + $0x24c] sm:$0xf]
        %v2603 = vld [vmem:[%s5 + $0x250] sm:$0xf]
        %v2604 = vld [vmem:[%s5 + $0x254] sm:$0xf]
        %v2605 = vld [vmem:[%s5 + $0x258] sm:$0xf]
        %v2606 = vld [vmem:[%s5 + $0x25c] sm:$0xf]
        %v2607 = vld [vmem:[%s5 + $0x260] sm:$0xf]
        %v2608 = vld [vmem:[%s5 + $0x264] sm:$0xf]
        %v2609 = vld [vmem:[%s5 + $0x268] sm:$0xf]
        %v2610 = vld [vmem:[%s5 + $0x26c] sm:$0xf]
        %v2611 = vld [vmem:[%s5 + $0x270] sm:$0xf]
        %v2612 = vld [vmem:[%s5 + $0x274] sm:$0xf]
        %v2613 = vld [vmem:[%s5 + $0x278] sm:$0xf]
        %v2614 = vld [vmem:[%s5 + $0x27c] sm:$0xf]
        %v2615 = vld [vmem:[%s5 + $0x280] sm:$0xf]
        %v2616 = vld [vmem:[%s5 + $0x284] sm:$0xf]
        %v2617 = vld [vmem:[%s5 + $0x288] sm:$0xf]
        %v2618 = vld [vmem:[%s5 + $0x28c] sm:$0xf]
        %v2619 = vld [vmem:[%s5 + $0x290] sm:$0xf]
        %v2620 = vld [vmem:[%s5 + $0x294] sm:$0xf]
        %v2621 = vld [vmem:[%s5 + $0x298] sm:$0xf]
        %v2622 = vld [vmem:[%s5 + $0x29c] sm:$0xf]
        %v2623 = vld [vmem:[%s5 + $0x2a0] sm:$0xf]
        %v2624 = vld [vmem:[%s5 + $0x2a4] sm:$0xf]
        %v2625 = vld [vmem:[%s5 + $0x2a8] sm:$0xf]
        %v2626 = vld [vmem:[%s5 + $0x2ac] sm:$0xf]
        %v2627 = vld [vmem:[%s5 + $0x2b0] sm:$0xf]
        %v2628 = vld [vmem:[%s5 + $0x2b4] sm:$0xf]
        %v2629 = vld [vmem:[%s5 + $0x2b8] sm:$0xf]
        %v2630 = vld [vmem:[%s5 + $0x2bc] sm:$0xf]
        %v2631 = vld [vmem:[%s5 + $0x2c0] sm:$0xf]
        %v2632 = vld [vmem:[%s5 + $0x2c4] sm:$0xf]
        %v2633 = vld [vmem:[%s5 + $0x2c8] sm:$0xf]
        %v2634 = vld [vmem:[%s5 + $0x2cc] sm:$0xf]
        %v2635 = vld [vmem:[%s5 + $0x2d0] sm:$0xf]
        %v2636 = vld [vmem:[%s5 + $0x2d4] sm:$0xf]
        %v2637 = vld [vmem:[%s5 + $0x2d8] sm:$0xf]
        %v2638 = vld [vmem:[%s5 + $0x2dc] sm:$0xf]
        %v2639 = vld [vmem:[%s5 + $0x2e0] sm:$0xf]
        %v2640 = vld [vmem:[%s5 + $0x2e4] sm:$0xf]
        %v2641 = vld [vmem:[%s5 + $0x2e8] sm:$0xf]
        %v2642 = vld [vmem:[%s5 + $0x2ec] sm:$0xf]
        %v2643 = vld [vmem:[%s5 + $0x2f0] sm:$0xf]
        %v2644 = vld [vmem:[%s5 + $0x2f4] sm:$0xf]
        %v2645 = vld [vmem:[%s5 + $0x2f8] sm:$0xf]
        %v2646 = vld [vmem:[%s5 + $0x2fc] sm:$0xf]
        %v2647 = vld [vmem:[%s6] sm:$0xf]
        %v2648 = vld [vmem:[%s6 + $0x4] sm:$0xf]
        %v2649 = vld [vmem:[%s6 + $0x8] sm:$0xf]
        %v2650 = vld [vmem:[%s6 + $0xc] sm:$0xf]
        %v2651 = vld [vmem:[%s6 + $0x10] sm:$0xf]
        %v2652 = vld [vmem:[%s6 + $0x14] sm:$0xf]
        %v2653 = vld [vmem:[%s6 + $0x18] sm:$0xf]
        %v2654 = vld [vmem:[%s6 + $0x1c] sm:$0xf]
        %v2655 = vld [vmem:[%s6 + $0x20] sm:$0xf]
        %v2656 = vld [vmem:[%s6 + $0x24] sm:$0xf]
        %v2657 = vld [vmem:[%s6 + $0x28] sm:$0xf]
        %v2658 = vld [vmem:[%s6 + $0x2c] sm:$0xf]
        %v2659 = vld [vmem:[%s6 + $0x30] sm:$0xf]
        %v2660 = vld [vmem:[%s6 + $0x34] sm:$0xf]
        %v2661 = vld [vmem:[%s6 + $0x38] sm:$0xf]
        %v2662 = vld [vmem:[%s6 + $0x3c] sm:$0xf]
        %v2663 = vpack.c.bf16 %v2454, %v2454
        %v2680 = vunpack.c.l.b16 %v2455
        %v2681 = vunpack.c.l.b16 %v2456
        %v2682 = vunpack.c.l.b16 %v2457
        %v2683 = vunpack.c.l.b16 %v2458
        %v2684 = vunpack.c.l.b16 %v2459
        %v2685 = vunpack.c.l.b16 %v2460
        %v2686 = vunpack.c.l.b16 %v2461
        %v2687 = vunpack.c.l.b16 %v2462
        %v2688 = vunpack.c.l.b16 %v2463
        %v2689 = vunpack.c.l.b16 %v2464
        %v2690 = vunpack.c.l.b16 %v2465
        %v2691 = vunpack.c.l.b16 %v2466
        %v2692 = vunpack.c.l.b16 %v2467
        %v2693 = vunpack.c.l.b16 %v2468
        %v2694 = vunpack.c.l.b16 %v2469
        %v2695 = vunpack.c.l.b16 %v2470
        %v2696 = vpack.c.b16 %v2681, %v2680
        %v2697 = vpack.c.b16 %v2683, %v2682
        %v2698 = vpack.c.b16 %v2685, %v2684
        %v2699 = vpack.c.b16 %v2687, %v2686
        %v2700 = vpack.c.b16 %v2689, %v2688
        %v2701 = vpack.c.b16 %v2691, %v2690
        %v2702 = vpack.c.b16 %v2693, %v2692
        %v2703 = vpack.c.b16 %v2695, %v2694
        %2712 = vmatprep.subr.bf16.mxu0 0
        %2713 = vmatpush1.bf16.msra.mxu0 %v2696
        %2714 = vmatprep.subr.bf16.mxu0 0
        %2715 = vmatpush1.bf16.msra.mxu0 %v2697
        %2716 = vmatprep.subr.bf16.mxu0 0
        %2717 = vmatpush1.bf16.msra.mxu0 %v2698
        %2718 = vmatprep.subr.bf16.mxu0 0
        %2719 = vmatpush1.bf16.msra.mxu0 %v2699
        %2720 = vmatprep.subr.bf16.mxu0 0
        %2721 = vmatpush1.bf16.msra.mxu0 %v2700
        %2722 = vmatprep.subr.bf16.mxu0 0
        %2723 = vmatpush1.bf16.msra.mxu0 %v2701
        %2724 = vmatprep.subr.bf16.mxu0 0
        %2725 = vmatpush1.bf16.msra.mxu0 %v2702
        %2726 = vmatprep.subr.bf16.mxu0 0
        %2727 = vmatpush1.bf16.msra.mxu0 %v2703
        %2728 = vmatprep.subr.bf16.mxu0 0
        %2729 = vmatpush1.bf16.msra.mxu0 0
        %2730 = vmatprep.subr.bf16.mxu0 0
        %2731 = vmatpush1.bf16.msra.mxu0 0
        %2732 = vmatprep.subr.bf16.mxu0 0
        %2733 = vmatpush1.bf16.msra.mxu0 0
        %2734 = vmatprep.subr.bf16.mxu0 0
        %2735 = vmatpush1.bf16.msra.mxu0 0
        %2736 = vmatprep.subr.bf16.mxu0 0
        %2737 = vmatpush1.bf16.msra.mxu0 0
        %2738 = vmatprep.subr.bf16.mxu0 0
        %2739 = vmatpush1.bf16.msra.mxu0 0
        %2740 = vmatprep.subr.bf16.mxu0 0
        %2741 = vmatpush1.bf16.msra.mxu0 0
        %2742 = vmatprep.subr.bf16.mxu0 0
        %2743 = vmatpush1.bf16.msra.mxu0 0
        %2744 = vmatprep.mubr.bf16.mxu0 0
        %2745 = vmatmul.mubr.bf16.gmra.mrb[0].mxu0 %v2663
        %v2746 = vpop.f32.mrb[0].mxu0
        %v2747 = vadd.f32 0.0, %v2746
        %v2748 = vpop.f32.mrb[0].mxu0
        %v2749 = vpop.f32.mrb[0].mxu0
        %v2750 = vpop.f32.mrb[0].mxu0
        %2751 = vdwg.mxu0
        %v2768 = vunpack.c.l.b16 %v2471
        %v2769 = vunpack.c.l.b16 %v2472
        %v2770 = vunpack.c.l.b16 %v2473
        %v2771 = vunpack.c.l.b16 %v2474
        %v2772 = vunpack.c.l.b16 %v2475
        %v2773 = vunpack.c.l.b16 %v2476
        %v2774 = vunpack.c.l.b16 %v2477
        %v2775 = vunpack.c.l.b16 %v2478
        %v2776 = vunpack.c.l.b16 %v2479
        %v2777 = vunpack.c.l.b16 %v2480
        %v2778 = vunpack.c.l.b16 %v2481
        %v2779 = vunpack.c.l.b16 %v2482
        %v2780 = vunpack.c.l.b16 %v2483
        %v2781 = vunpack.c.l.b16 %v2484
        %v2782 = vunpack.c.l.b16 %v2485
        %v2783 = vunpack.c.l.b16 %v2486
        %v2784 = vpack.c.b16 %v2769, %v2768
        %v2785 = vpack.c.b16 %v2771, %v2770
        %v2786 = vpack.c.b16 %v2773, %v2772
        %v2787 = vpack.c.b16 %v2775, %v2774
        %v2788 = vpack.c.b16 %v2777, %v2776
        %v2789 = vpack.c.b16 %v2779, %v2778
        %v2790 = vpack.c.b16 %v2781, %v2780
        %v2791 = vpack.c.b16 %v2783, %v2782
        %2800 = vmatprep.subr.bf16.mxu0 0
        %2801 = vmatpush1.bf16.msra.mxu0 %v2784
        %2802 = vmatprep.subr.bf16.mxu0 0
        %2803 = vmatpush1.bf16.msra.mxu0 %v2785
        %2804 = vmatprep.subr.bf16.mxu0 0
        %2805 = vmatpush1.bf16.msra.mxu0 %v2786
        %2806 = vmatprep.subr.bf16.mxu0 0
        %2807 = vmatpush1.bf16.msra.mxu0 %v2787
        %2808 = vmatprep.subr.bf16.mxu0 0
        %2809 = vmatpush1.bf16.msra.mxu0 %v2788
        %2810 = vmatprep.subr.bf16.mxu0 0
        %2811 = vmatpush1.bf16.msra.mxu0 %v2789
        %2812 = vmatprep.subr.bf16.mxu0 0
        %2813 = vmatpush1.bf16.msra.mxu0 %v2790
        %2814 = vmatprep.subr.bf16.mxu0 0
        %2815 = vmatpush1.bf16.msra.mxu0 %v2791
        %2816 = vmatprep.subr.bf16.mxu0 0
        %2817 = vmatpush1.bf16.msra.mxu0 0
        %2818 = vmatprep.subr.bf16.mxu0 0
        %2819 = vmatpush1.bf16.msra.mxu0 0
        %2820 = vmatprep.subr.bf16.mxu0 0
        %2821 = vmatpush1.bf16.msra.mxu0 0
        %2822 = vmatprep.subr.bf16.mxu0 0
        %2823 = vmatpush1.bf16.msra.mxu0 0
        %2824 = vmatprep.subr.bf16.mxu0 0
        %2825 = vmatpush1.bf16.msra.mxu0 0
        %2826 = vmatprep.subr.bf16.mxu0 0
        %2827 = vmatpush1.bf16.msra.mxu0 0
        %2828 = vmatprep.subr.bf16.mxu0 0
        %2829 = vmatpush1.bf16.msra.mxu0 0
        %2830 = vmatprep.subr.bf16.mxu0 0
        %2831 = vmatpush1.bf16.msra.mxu0 0
        %2832 = vmatprep.mubr.bf16.mxu0 0
        %2833 = vmatmul.mubr.bf16.gmra.mrb[0].mxu0 %v2663
        %v2834 = vpop.f32.mrb[0].mxu0
        %v2835 = vadd.f32 0.0, %v2834
        %v2836 = vpop.f32.mrb[0].mxu0
        %v2837 = vpop.f32.mrb[0].mxu0
        %v2838 = vpop.f32.mrb[0].mxu0
        %2839 = vdwg.mxu0
        %v2856 = vunpack.c.l.b16 %v2487
        %v2857 = vunpack.c.l.b16 %v2488
        %v2858 = vunpack.c.l.b16 %v2489
        %v2859 = vunpack.c.l.b16 %v2490
        %v2860 = vunpack.c.l.b16 %v2491
        %v2861 = vunpack.c.l.b16 %v2492
        %v2862 = vunpack.c.l.b16 %v2493
        %v2863 = vunpack.c.l.b16 %v2494
        %v2864 = vunpack.c.l.b16 %v2495
        %v2865 = vunpack.c.l.b16 %v2496
        %v2866 = vunpack.c.l.b16 %v2497
        %v2867 = vunpack.c.l.b16 %v2498
        %v2868 = vunpack.c.l.b16 %v2499
        %v2869 = vunpack.c.l.b16 %v2500
        %v2870 = vunpack.c.l.b16 %v2501
        %v2871 = vunpack.c.l.b16 %v2502
        %v2872 = vpack.c.b16 %v2857, %v2856
        %v2873 = vpack.c.b16 %v2859, %v2858
        %v2874 = vpack.c.b16 %v2861, %v2860
        %v2875 = vpack.c.b16 %v2863, %v2862
        %v2876 = vpack.c.b16 %v2865, %v2864
        %v2877 = vpack.c.b16 %v2867, %v2866
        %v2878 = vpack.c.b16 %v2869, %v2868
        %v2879 = vpack.c.b16 %v2871, %v2870
        %2888 = vmatprep.subr.bf16.mxu0 0
        %2889 = vmatpush1.bf16.msra.mxu0 %v2872
        %2890 = vmatprep.subr.bf16.mxu0 0
        %2891 = vmatpush1.bf16.msra.mxu0 %v2873
        %2892 = vmatprep.subr.bf16.mxu0 0
        %2893 = vmatpush1.bf16.msra.mxu0 %v2874
        %2894 = vmatprep.subr.bf16.mxu0 0
        %2895 = vmatpush1.bf16.msra.mxu0 %v2875
        %2896 = vmatprep.subr.bf16.mxu0 0
        %2897 = vmatpush1.bf16.msra.mxu0 %v2876
        %2898 = vmatprep.subr.bf16.mxu0 0
        %2899 = vmatpush1.bf16.msra.mxu0 %v2877
        %2900 = vmatprep.subr.bf16.mxu0 0
        %2901 = vmatpush1.bf16.msra.mxu0 %v2878
        %2902 = vmatprep.subr.bf16.mxu0 0
        %2903 = vmatpush1.bf16.msra.mxu0 %v2879
        %2904 = vmatprep.subr.bf16.mxu0 0
        %2905 = vmatpush1.bf16.msra.mxu0 0
        %2906 = vmatprep.subr.bf16.mxu0 0
        %2907 = vmatpush1.bf16.msra.mxu0 0
        %2908 = vmatprep.subr.bf16.mxu0 0
        %2909 = vmatpush1.bf16.msra.mxu0 0
        %2910 = vmatprep.subr.bf16.mxu0 0
        %2911 = vmatpush1.bf16.msra.mxu0 0
        %2912 = vmatprep.subr.bf16.mxu0 0
        %2913 = vmatpush1.bf16.msra.mxu0 0
        %2914 = vmatprep.subr.bf16.mxu0 0
        %2915 = vmatpush1.bf16.msra.mxu0 0
        %2916 = vmatprep.subr.bf16.mxu0 0
        %2917 = vmatpush1.bf16.msra.mxu0 0
        %2918 = vmatprep.subr.bf16.mxu0 0
        %2919 = vmatpush1.bf16.msra.mxu0 0
        %2920 = vmatprep.mubr.bf16.mxu0 0
        %2921 = vmatmul.mubr.bf16.gmra.mrb[0].mxu0 %v2663
        %v2922 = vpop.f32.mrb[0].mxu0
        %v2923 = vadd.f32 0.0, %v2922
        %v2924 = vpop.f32.mrb[0].mxu0
        %v2925 = vpop.f32.mrb[0].mxu0
        %v2926 = vpop.f32.mrb[0].mxu0
        %2927 = vdwg.mxu0
        %v2944 = vunpack.c.l.b16 %v2503
        %v2945 = vunpack.c.l.b16 %v2504
        %v2946 = vunpack.c.l.b16 %v2505
        %v2947 = vunpack.c.l.b16 %v2506
        %v2948 = vunpack.c.l.b16 %v2507
        %v2949 = vunpack.c.l.b16 %v2508
        %v2950 = vunpack.c.l.b16 %v2509
        %v2951 = vunpack.c.l.b16 %v2510
        %v2952 = vunpack.c.l.b16 %v2511
        %v2953 = vunpack.c.l.b16 %v2512
        %v2954 = vunpack.c.l.b16 %v2513
        %v2955 = vunpack.c.l.b16 %v2514
        %v2956 = vunpack.c.l.b16 %v2515
        %v2957 = vunpack.c.l.b16 %v2516
        %v2958 = vunpack.c.l.b16 %v2517
        %v2959 = vunpack.c.l.b16 %v2518
        %v2960 = vpack.c.b16 %v2945, %v2944
        %v2961 = vpack.c.b16 %v2947, %v2946
        %v2962 = vpack.c.b16 %v2949, %v2948
        %v2963 = vpack.c.b16 %v2951, %v2950
        %v2964 = vpack.c.b16 %v2953, %v2952
        %v2965 = vpack.c.b16 %v2955, %v2954
        %v2966 = vpack.c.b16 %v2957, %v2956
        %v2967 = vpack.c.b16 %v2959, %v2958
        %2976 = vmatprep.subr.bf16.mxu0 0
        %2977 = vmatpush1.bf16.msra.mxu0 %v2960
        %2978 = vmatprep.subr.bf16.mxu0 0
        %2979 = vmatpush1.bf16.msra.mxu0 %v2961
        %2980 = vmatprep.subr.bf16.mxu0 0
        %2981 = vmatpush1.bf16.msra.mxu0 %v2962
        %2982 = vmatprep.subr.bf16.mxu0 0
        %2983 = vmatpush1.bf16.msra.mxu0 %v2963
        %2984 = vmatprep.subr.bf16.mxu0 0
        %2985 = vmatpush1.bf16.msra.mxu0 %v2964
        %2986 = vmatprep.subr.bf16.mxu0 0
        %2987 = vmatpush1.bf16.msra.mxu0 %v2965
        %2988 = vmatprep.subr.bf16.mxu0 0
        %2989 = vmatpush1.bf16.msra.mxu0 %v2966
        %2990 = vmatprep.subr.bf16.mxu0 0
        %2991 = vmatpush1.bf16.msra.mxu0 %v2967
        %2992 = vmatprep.subr.bf16.mxu0 0
        %2993 = vmatpush1.bf16.msra.mxu0 0
        %2994 = vmatprep.subr.bf16.mxu0 0
        %2995 = vmatpush1.bf16.msra.mxu0 0
        %2996 = vmatprep.subr.bf16.mxu0 0
        %2997 = vmatpush1.bf16.msra.mxu0 0
        %2998 = vmatprep.subr.bf16.mxu0 0
        %2999 = vmatpush1.bf16.msra.mxu0 0
        %3000 = vmatprep.subr.bf16.mxu0 0
        %3001 = vmatpush1.bf16.msra.mxu0 0
        %3002 = vmatprep.subr.bf16.mxu0 0
        %3003 = vmatpush1.bf16.msra.mxu0 0
        %3004 = vmatprep.subr.bf16.mxu0 0
        %3005 = vmatpush1.bf16.msra.mxu0 0
        %3006 = vmatprep.subr.bf16.mxu0 0
        %3007 = vmatpush1.bf16.msra.mxu0 0
        %3008 = vmatprep.mubr.bf16.mxu0 0
        %3009 = vmatmul.mubr.bf16.gmra.mrb[0].mxu0 %v2663
        %v3010 = vpop.f32.mrb[0].mxu0
        %v3011 = vadd.f32 0.0, %v3010
        %v3012 = vpop.f32.mrb[0].mxu0
        %v3013 = vpop.f32.mrb[0].mxu0
        %v3014 = vpop.f32.mrb[0].mxu0
        %3015 = vdwg.mxu0
        %v3032 = vunpack.c.l.b16 %v2519
        %v3033 = vunpack.c.l.b16 %v2520
        %v3034 = vunpack.c.l.b16 %v2521
        %v3035 = vunpack.c.l.b16 %v2522
        %v3036 = vunpack.c.l.b16 %v2523
        %v3037 = vunpack.c.l.b16 %v2524
        %v3038 = vunpack.c.l.b16 %v2525
        %v3039 = vunpack.c.l.b16 %v2526
        %v3040 = vunpack.c.l.b16 %v2527
        %v3041 = vunpack.c.l.b16 %v2528
        %v3042 = vunpack.c.l.b16 %v2529
        %v3043 = vunpack.c.l.b16 %v2530
        %v3044 = vunpack.c.l.b16 %v2531
        %v3045 = vunpack.c.l.b16 %v2532
        %v3046 = vunpack.c.l.b16 %v2533
        %v3047 = vunpack.c.l.b16 %v2534
        %v3048 = vpack.c.b16 %v3033, %v3032
        %v3049 = vpack.c.b16 %v3035, %v3034
        %v3050 = vpack.c.b16 %v3037, %v3036
        %v3051 = vpack.c.b16 %v3039, %v3038
        %v3052 = vpack.c.b16 %v3041, %v3040
        %v3053 = vpack.c.b16 %v3043, %v3042
        %v3054 = vpack.c.b16 %v3045, %v3044
        %v3055 = vpack.c.b16 %v3047, %v3046
        %3064 = vmatprep.subr.bf16.mxu0 0
        %3065 = vmatpush1.bf16.msra.mxu0 %v3048
        %3066 = vmatprep.subr.bf16.mxu0 0
        %3067 = vmatpush1.bf16.msra.mxu0 %v3049
        %3068 = vmatprep.subr.bf16.mxu0 0
        %3069 = vmatpush1.bf16.msra.mxu0 %v3050
        %3070 = vmatprep.subr.bf16.mxu0 0
        %3071 = vmatpush1.bf16.msra.mxu0 %v3051
        %3072 = vmatprep.subr.bf16.mxu0 0
        %3073 = vmatpush1.bf16.msra.mxu0 %v3052
        %3074 = vmatprep.subr.bf16.mxu0 0
        %3075 = vmatpush1.bf16.msra.mxu0 %v3053
        %3076 = vmatprep.subr.bf16.mxu0 0
        %3077 = vmatpush1.bf16.msra.mxu0 %v3054
        %3078 = vmatprep.subr.bf16.mxu0 0
        %3079 = vmatpush1.bf16.msra.mxu0 %v3055
        %3080 = vmatprep.subr.bf16.mxu0 0
        %3081 = vmatpush1.bf16.msra.mxu0 0
        %3082 = vmatprep.subr.bf16.mxu0 0
        %3083 = vmatpush1.bf16.msra.mxu0 0
        %3084 = vmatprep.subr.bf16.mxu0 0
        %3085 = vmatpush1.bf16.msra.mxu0 0
        %3086 = vmatprep.subr.bf16.mxu0 0
        %3087 = vmatpush1.bf16.msra.mxu0 0
        %3088 = vmatprep.subr.bf16.mxu0 0
        %3089 = vmatpush1.bf16.msra.mxu0 0
        %3090 = vmatprep.subr.bf16.mxu0 0
        %3091 = vmatpush1.bf16.msra.mxu0 0
        %3092 = vmatprep.subr.bf16.mxu0 0
        %3093 = vmatpush1.bf16.msra.mxu0 0
        %3094 = vmatprep.subr.bf16.mxu0 0
        %3095 = vmatpush1.bf16.msra.mxu0 0
        %3096 = vmatprep.mubr.bf16.mxu0 0
        %3097 = vmatmul.mubr.bf16.gmra.mrb[0].mxu0 %v700
        %v3098 = vpop.f32.mrb[0].mxu0
        %v3099 = vadd.f32 0.0, %v3098
        %v3100 = vpop.f32.mrb[0].mxu0
        %v3101 = vpop.f32.mrb[0].mxu0
        %v3102 = vpop.f32.mrb[0].mxu0
        %3103 = vdwg.mxu0
        %v3120 = vunpack.c.l.b16 %v2535
        %v3121 = vunpack.c.l.b16 %v2536
        %v3122 = vunpack.c.l.b16 %v2537
        %v3123 = vunpack.c.l.b16 %v2538
        %v3124 = vunpack.c.l.b16 %v2539
        %v3125 = vunpack.c.l.b16 %v2540
        %v3126 = vunpack.c.l.b16 %v2541
        %v3127 = vunpack.c.l.b16 %v2542
        %v3128 = vunpack.c.l.b16 %v2543
        %v3129 = vunpack.c.l.b16 %v2544
        %v3130 = vunpack.c.l.b16 %v2545
        %v3131 = vunpack.c.l.b16 %v2546
        %v3132 = vunpack.c.l.b16 %v2547
        %v3133 = vunpack.c.l.b16 %v2548
        %v3134 = vunpack.c.l.b16 %v2549
        %v3135 = vunpack.c.l.b16 %v2550
        %v3136 = vpack.c.b16 %v3121, %v3120
        %v3137 = vpack.c.b16 %v3123, %v3122
        %v3138 = vpack.c.b16 %v3125, %v3124
        %v3139 = vpack.c.b16 %v3127, %v3126
        %v3140 = vpack.c.b16 %v3129, %v3128
        %v3141 = vpack.c.b16 %v3131, %v3130
        %v3142 = vpack.c.b16 %v3133, %v3132
        %v3143 = vpack.c.b16 %v3135, %v3134
        %3152 = vmatprep.subr.bf16.mxu0 0
        %3153 = vmatpush1.bf16.msra.mxu0 %v3136
        %3154 = vmatprep.subr.bf16.mxu0 0
        %3155 = vmatpush1.bf16.msra.mxu0 %v3137
        %3156 = vmatprep.subr.bf16.mxu0 0
        %3157 = vmatpush1.bf16.msra.mxu0 %v3138
        %3158 = vmatprep.subr.bf16.mxu0 0
        %3159 = vmatpush1.bf16.msra.mxu0 %v3139
        %3160 = vmatprep.subr.bf16.mxu0 0
        %3161 = vmatpush1.bf16.msra.mxu0 %v3140
        %3162 = vmatprep.subr.bf16.mxu0 0
        %3163 = vmatpush1.bf16.msra.mxu0 %v3141
        %3164 = vmatprep.subr.bf16.mxu0 0
        %3165 = vmatpush1.bf16.msra.mxu0 %v3142
        %3166 = vmatprep.subr.bf16.mxu0 0
        %3167 = vmatpush1.bf16.msra.mxu0 %v3143
        %3168 = vmatprep.subr.bf16.mxu0 0
        %3169 = vmatpush1.bf16.msra.mxu0 0
        %3170 = vmatprep.subr.bf16.mxu0 0
        %3171 = vmatpush1.bf16.msra.mxu0 0
        %3172 = vmatprep.subr.bf16.mxu0 0
        %3173 = vmatpush1.bf16.msra.mxu0 0
        %3174 = vmatprep.subr.bf16.mxu0 0
        %3175 = vmatpush1.bf16.msra.mxu0 0
        %3176 = vmatprep.subr.bf16.mxu0 0
        %3177 = vmatpush1.bf16.msra.mxu0 0
        %3178 = vmatprep.subr.bf16.mxu0 0
        %3179 = vmatpush1.bf16.msra.mxu0 0
        %3180 = vmatprep.subr.bf16.mxu0 0
        %3181 = vmatpush1.bf16.msra.mxu0 0
        %3182 = vmatprep.subr.bf16.mxu0 0
        %3183 = vmatpush1.bf16.msra.mxu0 0
        %3184 = vmatprep.mubr.bf16.mxu0 0
        %3185 = vmatmul.mubr.bf16.gmra.mrb[0].mxu0 %v700
        %v3186 = vpop.f32.mrb[0].mxu0
        %v3187 = vadd.f32 0.0, %v3186
        %v3188 = vpop.f32.mrb[0].mxu0
        %v3189 = vpop.f32.mrb[0].mxu0
        %v3190 = vpop.f32.mrb[0].mxu0
        %3191 = vdwg.mxu0
        %v3208 = vunpack.c.l.b16 %v2551
        %v3209 = vunpack.c.l.b16 %v2552
        %v3210 = vunpack.c.l.b16 %v2553
        %v3211 = vunpack.c.l.b16 %v2554
        %v3212 = vunpack.c.l.b16 %v2555
        %v3213 = vunpack.c.l.b16 %v2556
        %v3214 = vunpack.c.l.b16 %v2557
        %v3215 = vunpack.c.l.b16 %v2558
        %v3216 = vunpack.c.l.b16 %v2559
        %v3217 = vunpack.c.l.b16 %v2560
        %v3218 = vunpack.c.l.b16 %v2561
        %v3219 = vunpack.c.l.b16 %v2562
        %v3220 = vunpack.c.l.b16 %v2563
        %v3221 = vunpack.c.l.b16 %v2564
        %v3222 = vunpack.c.l.b16 %v2565
        %v3223 = vunpack.c.l.b16 %v2566
        %v3224 = vpack.c.b16 %v3209, %v3208
        %v3225 = vpack.c.b16 %v3211, %v3210
        %v3226 = vpack.c.b16 %v3213, %v3212
        %v3227 = vpack.c.b16 %v3215, %v3214
        %v3228 = vpack.c.b16 %v3217, %v3216
        %v3229 = vpack.c.b16 %v3219, %v3218
        %v3230 = vpack.c.b16 %v3221, %v3220
        %v3231 = vpack.c.b16 %v3223, %v3222
        %3240 = vmatprep.subr.bf16.mxu0 0
        %3241 = vmatpush1.bf16.msra.mxu0 %v3224
        %3242 = vmatprep.subr.bf16.mxu0 0
        %3243 = vmatpush1.bf16.msra.mxu0 %v3225
        %3244 = vmatprep.subr.bf16.mxu0 0
        %3245 = vmatpush1.bf16.msra.mxu0 %v3226
        %3246 = vmatprep.subr.bf16.mxu0 0
        %3247 = vmatpush1.bf16.msra.mxu0 %v3227
        %3248 = vmatprep.subr.bf16.mxu0 0
        %3249 = vmatpush1.bf16.msra.mxu0 %v3228
        %3250 = vmatprep.subr.bf16.mxu0 0
        %3251 = vmatpush1.bf16.msra.mxu0 %v3229
        %3252 = vmatprep.subr.bf16.mxu0 0
        %3253 = vmatpush1.bf16.msra.mxu0 %v3230
        %3254 = vmatprep.subr.bf16.mxu0 0
        %3255 = vmatpush1.bf16.msra.mxu0 %v3231
        %3256 = vmatprep.subr.bf16.mxu0 0
        %3257 = vmatpush1.bf16.msra.mxu0 0
        %3258 = vmatprep.subr.bf16.mxu0 0
        %3259 = vmatpush1.bf16.msra.mxu0 0
        %3260 = vmatprep.subr.bf16.mxu0 0
        %3261 = vmatpush1.bf16.msra.mxu0 0
        %3262 = vmatprep.subr.bf16.mxu0 0
        %3263 = vmatpush1.bf16.msra.mxu0 0
        %3264 = vmatprep.subr.bf16.mxu0 0
        %3265 = vmatpush1.bf16.msra.mxu0 0
        %3266 = vmatprep.subr.bf16.mxu0 0
        %3267 = vmatpush1.bf16.msra.mxu0 0
        %3268 = vmatprep.subr.bf16.mxu0 0
        %3269 = vmatpush1.bf16.msra.mxu0 0
        %3270 = vmatprep.subr.bf16.mxu0 0
        %3271 = vmatpush1.bf16.msra.mxu0 0
        %3272 = vmatprep.mubr.bf16.mxu0 0
        %3273 = vmatmul.mubr.bf16.gmra.mrb[0].mxu0 %v700
        %v3274 = vpop.f32.mrb[0].mxu0
        %v3275 = vadd.f32 0.0, %v3274
        %v3276 = vpop.f32.mrb[0].mxu0
        %v3277 = vpop.f32.mrb[0].mxu0
        %v3278 = vpop.f32.mrb[0].mxu0
        %3279 = vdwg.mxu0
        %v3296 = vunpack.c.l.b16 %v2567
        %v3297 = vunpack.c.l.b16 %v2568
        %v3298 = vunpack.c.l.b16 %v2569
        %v3299 = vunpack.c.l.b16 %v2570
        %v3300 = vunpack.c.l.b16 %v2571
        %v3301 = vunpack.c.l.b16 %v2572
        %v3302 = vunpack.c.l.b16 %v2573
        %v3303 = vunpack.c.l.b16 %v2574
        %v3304 = vunpack.c.l.b16 %v2575
        %v3305 = vunpack.c.l.b16 %v2576
        %v3306 = vunpack.c.l.b16 %v2577
        %v3307 = vunpack.c.l.b16 %v2578
        %v3308 = vunpack.c.l.b16 %v2579
        %v3309 = vunpack.c.l.b16 %v2580
        %v3310 = vunpack.c.l.b16 %v2581
        %v3311 = vunpack.c.l.b16 %v2582
        %v3312 = vpack.c.b16 %v3297, %v3296
        %v3313 = vpack.c.b16 %v3299, %v3298
        %v3314 = vpack.c.b16 %v3301, %v3300
        %v3315 = vpack.c.b16 %v3303, %v3302
        %v3316 = vpack.c.b16 %v3305, %v3304
        %v3317 = vpack.c.b16 %v3307, %v3306
        %v3318 = vpack.c.b16 %v3309, %v3308
        %v3319 = vpack.c.b16 %v3311, %v3310
        %3328 = vmatprep.subr.bf16.mxu0 0
        %3329 = vmatpush1.bf16.msra.mxu0 %v3312
        %3330 = vmatprep.subr.bf16.mxu0 0
        %3331 = vmatpush1.bf16.msra.mxu0 %v3313
        %3332 = vmatprep.subr.bf16.mxu0 0
        %3333 = vmatpush1.bf16.msra.mxu0 %v3314
        %3334 = vmatprep.subr.bf16.mxu0 0
        %3335 = vmatpush1.bf16.msra.mxu0 %v3315
        %3336 = vmatprep.subr.bf16.mxu0 0
        %3337 = vmatpush1.bf16.msra.mxu0 %v3316
        %3338 = vmatprep.subr.bf16.mxu0 0
        %3339 = vmatpush1.bf16.msra.mxu0 %v3317
        %3340 = vmatprep.subr.bf16.mxu0 0
        %3341 = vmatpush1.bf16.msra.mxu0 %v3318
        %3342 = vmatprep.subr.bf16.mxu0 0
        %3343 = vmatpush1.bf16.msra.mxu0 %v3319
        %3344 = vmatprep.subr.bf16.mxu0 0
        %3345 = vmatpush1.bf16.msra.mxu0 0
        %3346 = vmatprep.subr.bf16.mxu0 0
        %3347 = vmatpush1.bf16.msra.mxu0 0
        %3348 = vmatprep.subr.bf16.mxu0 0
        %3349 = vmatpush1.bf16.msra.mxu0 0
        %3350 = vmatprep.subr.bf16.mxu0 0
        %3351 = vmatpush1.bf16.msra.mxu0 0
        %3352 = vmatprep.subr.bf16.mxu0 0
        %3353 = vmatpush1.bf16.msra.mxu0 0
        %3354 = vmatprep.subr.bf16.mxu0 0
        %3355 = vmatpush1.bf16.msra.mxu0 0
        %3356 = vmatprep.subr.bf16.mxu0 0
        %3357 = vmatpush1.bf16.msra.mxu0 0
        %3358 = vmatprep.subr.bf16.mxu0 0
        %3359 = vmatpush1.bf16.msra.mxu0 0
        %3360 = vmatprep.mubr.bf16.mxu0 0
        %3361 = vmatmul.mubr.bf16.gmra.mrb[0].mxu0 %v700
        %v3362 = vpop.f32.mrb[0].mxu0
        %v3363 = vadd.f32 0.0, %v3362
        %v3364 = vpop.f32.mrb[0].mxu0
        %v3365 = vpop.f32.mrb[0].mxu0
        %v3366 = vpop.f32.mrb[0].mxu0
        %3367 = vdwg.mxu0
        %v3384 = vunpack.c.l.b16 %v2583
        %v3385 = vunpack.c.l.b16 %v2584
        %v3386 = vunpack.c.l.b16 %v2585
        %v3387 = vunpack.c.l.b16 %v2586
        %v3388 = vunpack.c.l.b16 %v2587
        %v3389 = vunpack.c.l.b16 %v2588
        %v3390 = vunpack.c.l.b16 %v2589
        %v3391 = vunpack.c.l.b16 %v2590
        %v3392 = vunpack.c.l.b16 %v2591
        %v3393 = vunpack.c.l.b16 %v2592
        %v3394 = vunpack.c.l.b16 %v2593
        %v3395 = vunpack.c.l.b16 %v2594
        %v3396 = vunpack.c.l.b16 %v2595
        %v3397 = vunpack.c.l.b16 %v2596
        %v3398 = vunpack.c.l.b16 %v2597
        %v3399 = vunpack.c.l.b16 %v2598
        %v3400 = vpack.c.b16 %v3385, %v3384
        %v3401 = vpack.c.b16 %v3387, %v3386
        %v3402 = vpack.c.b16 %v3389, %v3388
        %v3403 = vpack.c.b16 %v3391, %v3390
        %v3404 = vpack.c.b16 %v3393, %v3392
        %v3405 = vpack.c.b16 %v3395, %v3394
        %v3406 = vpack.c.b16 %v3397, %v3396
        %v3407 = vpack.c.b16 %v3399, %v3398
        %3416 = vmatprep.subr.bf16.mxu0 0
        %3417 = vmatpush1.bf16.msra.mxu0 %v3400
        %3418 = vmatprep.subr.bf16.mxu0 0
        %3419 = vmatpush1.bf16.msra.mxu0 %v3401
        %3420 = vmatprep.subr.bf16.mxu0 0
        %3421 = vmatpush1.bf16.msra.mxu0 %v3402
        %3422 = vmatprep.subr.bf16.mxu0 0
        %3423 = vmatpush1.bf16.msra.mxu0 %v3403
        %3424 = vmatprep.subr.bf16.mxu0 0
        %3425 = vmatpush1.bf16.msra.mxu0 %v3404
        %3426 = vmatprep.subr.bf16.mxu0 0
        %3427 = vmatpush1.bf16.msra.mxu0 %v3405
        %3428 = vmatprep.subr.bf16.mxu0 0
        %3429 = vmatpush1.bf16.msra.mxu0 %v3406
        %3430 = vmatprep.subr.bf16.mxu0 0
        %3431 = vmatpush1.bf16.msra.mxu0 %v3407
        %3432 = vmatprep.subr.bf16.mxu0 0
        %3433 = vmatpush1.bf16.msra.mxu0 0
        %3434 = vmatprep.subr.bf16.mxu0 0
        %3435 = vmatpush1.bf16.msra.mxu0 0
        %3436 = vmatprep.subr.bf16.mxu0 0
        %3437 = vmatpush1.bf16.msra.mxu0 0
        %3438 = vmatprep.subr.bf16.mxu0 0
        %3439 = vmatpush1.bf16.msra.mxu0 0
        %3440 = vmatprep.subr.bf16.mxu0 0
        %3441 = vmatpush1.bf16.msra.mxu0 0
        %3442 = vmatprep.subr.bf16.mxu0 0
        %3443 = vmatpush1.bf16.msra.mxu0 0
        %3444 = vmatprep.subr.bf16.mxu0 0
        %3445 = vmatpush1.bf16.msra.mxu0 0
        %3446 = vmatprep.subr.bf16.mxu0 0
        %3447 = vmatpush1.bf16.msra.mxu0 0
        %3448 = vmatprep.mubr.bf16.mxu0 0
        %3449 = vmatmul.mubr.bf16.gmra.mrb[0].mxu0 %v700
        %v3450 = vpop.f32.mrb[0].mxu0
        %v3451 = vadd.f32 0.0, %v3450
        %v3452 = vpop.f32.mrb[0].mxu0
        %v3453 = vpop.f32.mrb[0].mxu0
        %v3454 = vpop.f32.mrb[0].mxu0
        %3455 = vdwg.mxu0
        %v3472 = vunpack.c.l.b16 %v2599
        %v3473 = vunpack.c.l.b16 %v2600
        %v3474 = vunpack.c.l.b16 %v2601
        %v3475 = vunpack.c.l.b16 %v2602
        %v3476 = vunpack.c.l.b16 %v2603
        %v3477 = vunpack.c.l.b16 %v2604
        %v3478 = vunpack.c.l.b16 %v2605
        %v3479 = vunpack.c.l.b16 %v2606
        %v3480 = vunpack.c.l.b16 %v2607
        %v3481 = vunpack.c.l.b16 %v2608
        %v3482 = vunpack.c.l.b16 %v2609
        %v3483 = vunpack.c.l.b16 %v2610
        %v3484 = vunpack.c.l.b16 %v2611
        %v3485 = vunpack.c.l.b16 %v2612
        %v3486 = vunpack.c.l.b16 %v2613
        %v3487 = vunpack.c.l.b16 %v2614
        %v3488 = vpack.c.b16 %v3473, %v3472
        %v3489 = vpack.c.b16 %v3475, %v3474
        %v3490 = vpack.c.b16 %v3477, %v3476
        %v3491 = vpack.c.b16 %v3479, %v3478
        %v3492 = vpack.c.b16 %v3481, %v3480
        %v3493 = vpack.c.b16 %v3483, %v3482
        %v3494 = vpack.c.b16 %v3485, %v3484
        %v3495 = vpack.c.b16 %v3487, %v3486
        %3504 = vmatprep.subr.bf16.mxu0 0
        %3505 = vmatpush1.bf16.msra.mxu0 %v3488
        %3506 = vmatprep.subr.bf16.mxu0 0
        %3507 = vmatpush1.bf16.msra.mxu0 %v3489
        %3508 = vmatprep.subr.bf16.mxu0 0
        %3509 = vmatpush1.bf16.msra.mxu0 %v3490
        %3510 = vmatprep.subr.bf16.mxu0 0
        %3511 = vmatpush1.bf16.msra.mxu0 %v3491
        %3512 = vmatprep.subr.bf16.mxu0 0
        %3513 = vmatpush1.bf16.msra.mxu0 %v3492
        %3514 = vmatprep.subr.bf16.mxu0 0
        %3515 = vmatpush1.bf16.msra.mxu0 %v3493
        %3516 = vmatprep.subr.bf16.mxu0 0
        %3517 = vmatpush1.bf16.msra.mxu0 %v3494
        %3518 = vmatprep.subr.bf16.mxu0 0
        %3519 = vmatpush1.bf16.msra.mxu0 %v3495
        %3520 = vmatprep.subr.bf16.mxu0 0
        %3521 = vmatpush1.bf16.msra.mxu0 0
        %3522 = vmatprep.subr.bf16.mxu0 0
        %3523 = vmatpush1.bf16.msra.mxu0 0
        %3524 = vmatprep.subr.bf16.mxu0 0
        %3525 = vmatpush1.bf16.msra.mxu0 0
        %3526 = vmatprep.subr.bf16.mxu0 0
        %3527 = vmatpush1.bf16.msra.mxu0 0
        %3528 = vmatprep.subr.bf16.mxu0 0
        %3529 = vmatpush1.bf16.msra.mxu0 0
        %3530 = vmatprep.subr.bf16.mxu0 0
        %3531 = vmatpush1.bf16.msra.mxu0 0
        %3532 = vmatprep.subr.bf16.mxu0 0
        %3533 = vmatpush1.bf16.msra.mxu0 0
        %3534 = vmatprep.subr.bf16.mxu0 0
        %3535 = vmatpush1.bf16.msra.mxu0 0
        %3536 = vmatprep.mubr.bf16.mxu0 0
        %3537 = vmatmul.mubr.bf16.gmra.mrb[0].mxu0 %v700
        %v3538 = vpop.f32.mrb[0].mxu0
        %v3539 = vadd.f32 0.0, %v3538
        %v3540 = vpop.f32.mrb[0].mxu0
        %v3541 = vpop.f32.mrb[0].mxu0
        %v3542 = vpop.f32.mrb[0].mxu0
        %3543 = vdwg.mxu0
        %v3560 = vunpack.c.l.b16 %v2615
        %v3561 = vunpack.c.l.b16 %v2616
        %v3562 = vunpack.c.l.b16 %v2617
        %v3563 = vunpack.c.l.b16 %v2618
        %v3564 = vunpack.c.l.b16 %v2619
        %v3565 = vunpack.c.l.b16 %v2620
        %v3566 = vunpack.c.l.b16 %v2621
        %v3567 = vunpack.c.l.b16 %v2622
        %v3568 = vunpack.c.l.b16 %v2623
        %v3569 = vunpack.c.l.b16 %v2624
        %v3570 = vunpack.c.l.b16 %v2625
        %v3571 = vunpack.c.l.b16 %v2626
        %v3572 = vunpack.c.l.b16 %v2627
        %v3573 = vunpack.c.l.b16 %v2628
        %v3574 = vunpack.c.l.b16 %v2629
        %v3575 = vunpack.c.l.b16 %v2630
        %v3576 = vpack.c.b16 %v3561, %v3560
        %v3577 = vpack.c.b16 %v3563, %v3562
        %v3578 = vpack.c.b16 %v3565, %v3564
        %v3579 = vpack.c.b16 %v3567, %v3566
        %v3580 = vpack.c.b16 %v3569, %v3568
        %v3581 = vpack.c.b16 %v3571, %v3570
        %v3582 = vpack.c.b16 %v3573, %v3572
        %v3583 = vpack.c.b16 %v3575, %v3574
        %3592 = vmatprep.subr.bf16.mxu0 0
        %3593 = vmatpush1.bf16.msra.mxu0 %v3576
        %3594 = vmatprep.subr.bf16.mxu0 0
        %3595 = vmatpush1.bf16.msra.mxu0 %v3577
        %3596 = vmatprep.subr.bf16.mxu0 0
        %3597 = vmatpush1.bf16.msra.mxu0 %v3578
        %3598 = vmatprep.subr.bf16.mxu0 0
        %3599 = vmatpush1.bf16.msra.mxu0 %v3579
        %3600 = vmatprep.subr.bf16.mxu0 0
        %3601 = vmatpush1.bf16.msra.mxu0 %v3580
        %3602 = vmatprep.subr.bf16.mxu0 0
        %3603 = vmatpush1.bf16.msra.mxu0 %v3581
        %3604 = vmatprep.subr.bf16.mxu0 0
        %3605 = vmatpush1.bf16.msra.mxu0 %v3582
        %3606 = vmatprep.subr.bf16.mxu0 0
        %3607 = vmatpush1.bf16.msra.mxu0 %v3583
        %3608 = vmatprep.subr.bf16.mxu0 0
        %3609 = vmatpush1.bf16.msra.mxu0 0
        %3610 = vmatprep.subr.bf16.mxu0 0
        %3611 = vmatpush1.bf16.msra.mxu0 0
        %3612 = vmatprep.subr.bf16.mxu0 0
        %3613 = vmatpush1.bf16.msra.mxu0 0
        %3614 = vmatprep.subr.bf16.mxu0 0
        %3615 = vmatpush1.bf16.msra.mxu0 0
        %3616 = vmatprep.subr.bf16.mxu0 0
        %3617 = vmatpush1.bf16.msra.mxu0 0
        %3618 = vmatprep.subr.bf16.mxu0 0
        %3619 = vmatpush1.bf16.msra.mxu0 0
        %3620 = vmatprep.subr.bf16.mxu0 0
        %3621 = vmatpush1.bf16.msra.mxu0 0
        %3622 = vmatprep.subr.bf16.mxu0 0
        %3623 = vmatpush1.bf16.msra.mxu0 0
        %3624 = vmatprep.mubr.bf16.mxu0 0
        %3625 = vmatmul.mubr.bf16.gmra.mrb[0].mxu0 %v700
        %v3626 = vpop.f32.mrb[0].mxu0
        %v3627 = vadd.f32 0.0, %v3626
        %v3628 = vpop.f32.mrb[0].mxu0
        %v3629 = vpop.f32.mrb[0].mxu0
        %v3630 = vpop.f32.mrb[0].mxu0
        %3631 = vdwg.mxu0
        %v3648 = vunpack.c.l.b16 %v2631
        %v3649 = vunpack.c.l.b16 %v2632
        %v3650 = vunpack.c.l.b16 %v2633
        %v3651 = vunpack.c.l.b16 %v2634
        %v3652 = vunpack.c.l.b16 %v2635
        %v3653 = vunpack.c.l.b16 %v2636
        %v3654 = vunpack.c.l.b16 %v2637
        %v3655 = vunpack.c.l.b16 %v2638
        %v3656 = vunpack.c.l.b16 %v2639
        %v3657 = vunpack.c.l.b16 %v2640
        %v3658 = vunpack.c.l.b16 %v2641
        %v3659 = vunpack.c.l.b16 %v2642
        %v3660 = vunpack.c.l.b16 %v2643
        %v3661 = vunpack.c.l.b16 %v2644
        %v3662 = vunpack.c.l.b16 %v2645
        %v3663 = vunpack.c.l.b16 %v2646
        %v3664 = vpack.c.b16 %v3649, %v3648
        %v3665 = vpack.c.b16 %v3651, %v3650
        %v3666 = vpack.c.b16 %v3653, %v3652
        %v3667 = vpack.c.b16 %v3655, %v3654
        %v3668 = vpack.c.b16 %v3657, %v3656
        %v3669 = vpack.c.b16 %v3659, %v3658
        %v3670 = vpack.c.b16 %v3661, %v3660
        %v3671 = vpack.c.b16 %v3663, %v3662
        %3680 = vmatprep.subr.bf16.mxu0 0
        %3681 = vmatpush1.bf16.msra.mxu0 %v3664
        %3682 = vmatprep.subr.bf16.mxu0 0
        %3683 = vmatpush1.bf16.msra.mxu0 %v3665
        %3684 = vmatprep.subr.bf16.mxu0 0
        %3685 = vmatpush1.bf16.msra.mxu0 %v3666
        %3686 = vmatprep.subr.bf16.mxu0 0
        %3687 = vmatpush1.bf16.msra.mxu0 %v3667
        %3688 = vmatprep.subr.bf16.mxu0 0
        %3689 = vmatpush1.bf16.msra.mxu0 %v3668
        %3690 = vmatprep.subr.bf16.mxu0 0
        %3691 = vmatpush1.bf16.msra.mxu0 %v3669
        %3692 = vmatprep.subr.bf16.mxu0 0
        %3693 = vmatpush1.bf16.msra.mxu0 %v3670
        %3694 = vmatprep.subr.bf16.mxu0 0
        %3695 = vmatpush1.bf16.msra.mxu0 %v3671
        %3696 = vmatprep.subr.bf16.mxu0 0
        %3697 = vmatpush1.bf16.msra.mxu0 0
        %3698 = vmatprep.subr.bf16.mxu0 0
        %3699 = vmatpush1.bf16.msra.mxu0 0
        %3700 = vmatprep.subr.bf16.mxu0 0
        %3701 = vmatpush1.bf16.msra.mxu0 0
        %3702 = vmatprep.subr.bf16.mxu0 0
        %3703 = vmatpush1.bf16.msra.mxu0 0
        %3704 = vmatprep.subr.bf16.mxu0 0
        %3705 = vmatpush1.bf16.msra.mxu0 0
        %3706 = vmatprep.subr.bf16.mxu0 0
        %3707 = vmatpush1.bf16.msra.mxu0 0
        %3708 = vmatprep.subr.bf16.mxu0 0
        %3709 = vmatpush1.bf16.msra.mxu0 0
        %3710 = vmatprep.subr.bf16.mxu0 0
        %3711 = vmatpush1.bf16.msra.mxu0 0
        %3712 = vmatprep.mubr.bf16.mxu0 0
        %3713 = vmatmul.mubr.bf16.gmra.mrb[0].mxu0 %v700
        %v3714 = vpop.f32.mrb[0].mxu0
        %v3715 = vadd.f32 0.0, %v3714
        %v3716 = vpop.f32.mrb[0].mxu0
        %v3717 = vpop.f32.mrb[0].mxu0
        %v3718 = vpop.f32.mrb[0].mxu0
        %3719 = vdwg.mxu0
        %v3720 = vpack.c.bf16 %v2747, %v2747
        %v3721 = vpack.c.bf16 %v2835, %v2835
        %v3722 = vpack.c.bf16 %v2923, %v2923
        %v3723 = vpack.c.bf16 %v3011, %v3011
        %v3724 = vpack.c.bf16 %v3099, %v3099
        %v3725 = vpack.c.bf16 %v3187, %v3187
        %v3726 = vpack.c.bf16 %v3275, %v3275
        %v3727 = vpack.c.bf16 %v3363, %v3363
        %v3729 = vsel %vm1765, %v3720, 0
        %v3732 = vsel %vm1765, %v3724, 0
        %3734 = vmatprep.subr.bf16.mxu0 0
        %3735 = vmatpush1.bf16.xpose.msra.mxu0 %v3732
        %3736 = vmatprep.subr.bf16.mxu0 0
        %3737 = vmatpush1.bf16.xpose.msra.mxu0 0
        %3738 = vmatprep.subr.bf16.mxu0 0
        %3739 = vmatpush1.bf16.xpose.msra.mxu0 0
        %3740 = vmatprep.subr.bf16.mxu0 0
        %3741 = vmatpush1.bf16.xpose.msra.mxu0 0
        %3742 = vmatprep.subr.bf16.mxu0 0
        %3743 = vmatpush1.bf16.xpose.msra.mxu0 0
        %3744 = vmatprep.subr.bf16.mxu0 0
        %3745 = vmatpush1.bf16.xpose.msra.mxu0 0
        %3746 = vmatprep.subr.bf16.mxu0 0
        %3747 = vmatpush1.bf16.xpose.msra.mxu0 0
        %3748 = vmatprep.subr.bf16.mxu0 0
        %3749 = vmatpush1.bf16.xpose.msra.mxu0 0
        %3750 = vmatprep.subr.bf16.mxu0 0
        %3751 = vmatpush1.bf16.xpose.msra.mxu0 0
        %3752 = vmatprep.subr.bf16.mxu0 0
        %3753 = vmatpush1.bf16.xpose.msra.mxu0 0
        %3754 = vmatprep.subr.bf16.mxu0 0
        %3755 = vmatpush1.bf16.xpose.msra.mxu0 0
        %3756 = vmatprep.subr.bf16.mxu0 0
        %3757 = vmatpush1.bf16.xpose.msra.mxu0 0
        %3758 = vmatprep.subr.bf16.mxu0 0
        %3759 = vmatpush1.bf16.xpose.msra.mxu0 0
        %3760 = vmatprep.subr.bf16.mxu0 0
        %3761 = vmatpush1.bf16.xpose.msra.mxu0 0
        %3762 = vmatprep.subr.bf16.mxu0 0
        %3763 = vmatpush1.bf16.xpose.msra.mxu0 0
        %3764 = vmatprep.subr.bf16.mxu0 0
        %3765 = vmatpush1.bf16.xpose.msra.mxu0 0
        %3766 = vmatprep.mubr.bf16.mxu0 0
        %3767 = vmatmul.mubr.bf16.gmra.mrb[0].mxu0 %v3729
        %v3768 = vpop.f32.mrb[0].mxu0
        %v3769 = vadd.f32 0.0, %v3768
        %v3770 = vpop.f32.mrb[0].mxu0
        %v3771 = vpop.f32.mrb[0].mxu0
        %v3772 = vpop.f32.mrb[0].mxu0
        %3773 = vdwg.mxu0
        %v3775 = vsel %vm1765, %v3721, 0
        %v3778 = vsel %vm1765, %v3725, 0
        %3780 = vmatprep.subr.bf16.mxu0 0
        %3781 = vmatpush1.bf16.xpose.msra.mxu0 %v3778
        %3782 = vmatprep.subr.bf16.mxu0 0
        %3783 = vmatpush1.bf16.xpose.msra.mxu0 0
        %3784 = vmatprep.subr.bf16.mxu0 0
        %3785 = vmatpush1.bf16.xpose.msra.mxu0 0
        %3786 = vmatprep.subr.bf16.mxu0 0
        %3787 = vmatpush1.bf16.xpose.msra.mxu0 0
        %3788 = vmatprep.subr.bf16.mxu0 0
        %3789 = vmatpush1.bf16.xpose.msra.mxu0 0
        %3790 = vmatprep.subr.bf16.mxu0 0
        %3791 = vmatpush1.bf16.xpose.msra.mxu0 0
        %3792 = vmatprep.subr.bf16.mxu0 0
        %3793 = vmatpush1.bf16.xpose.msra.mxu0 0
        %3794 = vmatprep.subr.bf16.mxu0 0
        %3795 = vmatpush1.bf16.xpose.msra.mxu0 0
        %3796 = vmatprep.subr.bf16.mxu0 0
        %3797 = vmatpush1.bf16.xpose.msra.mxu0 0
        %3798 = vmatprep.subr.bf16.mxu0 0
        %3799 = vmatpush1.bf16.xpose.msra.mxu0 0
        %3800 = vmatprep.subr.bf16.mxu0 0
        %3801 = vmatpush1.bf16.xpose.msra.mxu0 0
        %3802 = vmatprep.subr.bf16.mxu0 0
        %3803 = vmatpush1.bf16.xpose.msra.mxu0 0
        %3804 = vmatprep.subr.bf16.mxu0 0
        %3805 = vmatpush1.bf16.xpose.msra.mxu0 0
        %3806 = vmatprep.subr.bf16.mxu0 0
        %3807 = vmatpush1.bf16.xpose.msra.mxu0 0
        %3808 = vmatprep.subr.bf16.mxu0 0
        %3809 = vmatpush1.bf16.xpose.msra.mxu0 0
        %3810 = vmatprep.subr.bf16.mxu0 0
        %3811 = vmatpush1.bf16.xpose.msra.mxu0 0
        %3812 = vmatprep.mubr.bf16.mxu0 0
        %3813 = vmatmul.mubr.bf16.gmra.mrb[0].mxu0 %v3775
        %v3814 = vpop.f32.mrb[0].mxu0
        %v3815 = vadd.f32 0.0, %v3814
        %v3816 = vpop.f32.mrb[0].mxu0
        %v3817 = vpop.f32.mrb[0].mxu0
        %v3818 = vpop.f32.mrb[0].mxu0
        %3819 = vdwg.mxu0
        %v3821 = vsel %vm1765, %v3722, 0
        %v3824 = vsel %vm1765, %v3726, 0
        %3826 = vmatprep.subr.bf16.mxu0 0
        %3827 = vmatpush1.bf16.xpose.msra.mxu0 %v3824
        %3828 = vmatprep.subr.bf16.mxu0 0
        %3829 = vmatpush1.bf16.xpose.msra.mxu0 0
        %3830 = vmatprep.subr.bf16.mxu0 0
        %3831 = vmatpush1.bf16.xpose.msra.mxu0 0
        %3832 = vmatprep.subr.bf16.mxu0 0
        %3833 = vmatpush1.bf16.xpose.msra.mxu0 0
        %3834 = vmatprep.subr.bf16.mxu0 0
        %3835 = vmatpush1.bf16.xpose.msra.mxu0 0
        %3836 = vmatprep.subr.bf16.mxu0 0
        %3837 = vmatpush1.bf16.xpose.msra.mxu0 0
        %3838 = vmatprep.subr.bf16.mxu0 0
        %3839 = vmatpush1.bf16.xpose.msra.mxu0 0
        %3840 = vmatprep.subr.bf16.mxu0 0
        %3841 = vmatpush1.bf16.xpose.msra.mxu0 0
        %3842 = vmatprep.subr.bf16.mxu0 0
        %3843 = vmatpush1.bf16.xpose.msra.mxu0 0
        %3844 = vmatprep.subr.bf16.mxu0 0
        %3845 = vmatpush1.bf16.xpose.msra.mxu0 0
        %3846 = vmatprep.subr.bf16.mxu0 0
        %3847 = vmatpush1.bf16.xpose.msra.mxu0 0
        %3848 = vmatprep.subr.bf16.mxu0 0
        %3849 = vmatpush1.bf16.xpose.msra.mxu0 0
        %3850 = vmatprep.subr.bf16.mxu0 0
        %3851 = vmatpush1.bf16.xpose.msra.mxu0 0
        %3852 = vmatprep.subr.bf16.mxu0 0
        %3853 = vmatpush1.bf16.xpose.msra.mxu0 0
        %3854 = vmatprep.subr.bf16.mxu0 0
        %3855 = vmatpush1.bf16.xpose.msra.mxu0 0
        %3856 = vmatprep.subr.bf16.mxu0 0
        %3857 = vmatpush1.bf16.xpose.msra.mxu0 0
        %3858 = vmatprep.mubr.bf16.mxu0 0
        %3859 = vmatmul.mubr.bf16.gmra.mrb[0].mxu0 %v3821
        %v3860 = vpop.f32.mrb[0].mxu0
        %v3861 = vadd.f32 0.0, %v3860
        %v3862 = vpop.f32.mrb[0].mxu0
        %v3863 = vpop.f32.mrb[0].mxu0
        %v3864 = vpop.f32.mrb[0].mxu0
        %3865 = vdwg.mxu0
        %v3867 = vsel %vm1765, %v3723, 0
        %v3870 = vsel %vm1765, %v3727, 0
        %3872 = vmatprep.subr.bf16.mxu0 0
        %3873 = vmatpush1.bf16.xpose.msra.mxu0 %v3870
        %3874 = vmatprep.subr.bf16.mxu0 0
        %3875 = vmatpush1.bf16.xpose.msra.mxu0 0
        %3876 = vmatprep.subr.bf16.mxu0 0
        %3877 = vmatpush1.bf16.xpose.msra.mxu0 0
        %3878 = vmatprep.subr.bf16.mxu0 0
        %3879 = vmatpush1.bf16.xpose.msra.mxu0 0
        %3880 = vmatprep.subr.bf16.mxu0 0
        %3881 = vmatpush1.bf16.xpose.msra.mxu0 0
        %3882 = vmatprep.subr.bf16.mxu0 0
        %3883 = vmatpush1.bf16.xpose.msra.mxu0 0
        %3884 = vmatprep.subr.bf16.mxu0 0
        %3885 = vmatpush1.bf16.xpose.msra.mxu0 0
        %3886 = vmatprep.subr.bf16.mxu0 0
        %3887 = vmatpush1.bf16.xpose.msra.mxu0 0
        %3888 = vmatprep.subr.bf16.mxu0 0
        %3889 = vmatpush1.bf16.xpose.msra.mxu0 0
        %3890 = vmatprep.subr.bf16.mxu0 0
        %3891 = vmatpush1.bf16.xpose.msra.mxu0 0
        %3892 = vmatprep.subr.bf16.mxu0 0
        %3893 = vmatpush1.bf16.xpose.msra.mxu0 0
        %3894 = vmatprep.subr.bf16.mxu0 0
        %3895 = vmatpush1.bf16.xpose.msra.mxu0 0
        %3896 = vmatprep.subr.bf16.mxu0 0
        %3897 = vmatpush1.bf16.xpose.msra.mxu0 0
        %3898 = vmatprep.subr.bf16.mxu0 0
        %3899 = vmatpush1.bf16.xpose.msra.mxu0 0
        %3900 = vmatprep.subr.bf16.mxu0 0
        %3901 = vmatpush1.bf16.xpose.msra.mxu0 0
        %3902 = vmatprep.subr.bf16.mxu0 0
        %3903 = vmatpush1.bf16.xpose.msra.mxu0 0
        %3904 = vmatprep.mubr.bf16.mxu0 0
        %3905 = vmatmul.mubr.bf16.gmra.mrb[0].mxu0 %v3867
        %v3906 = vpop.f32.mrb[0].mxu0
        %v3907 = vadd.f32 0.0, %v3906
        %v3908 = vpop.f32.mrb[0].mxu0
        %v3909 = vpop.f32.mrb[0].mxu0
        %v3910 = vpop.f32.mrb[0].mxu0
        %3911 = vdwg.mxu0
        %v3912 = vsel %vm1961, %v3769, -inf
        %3913 = vmax.xlane.f32.xlu0 %v3912
        %v3914 = vpop.xlane.xlu0 %3913
        %v3915 = vsel %vm1961, %v3815, -inf
        %3916 = vmax.xlane.f32.xlu0 %v3915
        %v3917 = vpop.xlane.xlu0 %3916
        %v3918 = vsel %vm1961, %v3861, -inf
        %3919 = vmax.xlane.f32.xlu0 %v3918
        %v3920 = vpop.xlane.xlu0 %3919
        %v3921 = vsel %vm1961, %v3907, -inf
        %3922 = vmax.xlane.f32.xlu0 %v3921
        %v3923 = vpop.xlane.xlu0 %3922
        %v3924 = vsub.f32 %v3769, %v3914
        %v3925 = vsub.f32 %v3815, %v3917
        %v3926 = vsub.f32 %v3861, %v3920
        %v3927 = vsub.f32 %v3907, %v3923
        %v3928 = vmul.f32 %v3924, 1.442695
        %v3929 = vpow.pop %v3928
        %v3930 = vmul.f32 %v3925, 1.442695
        %v3931 = vpow.pop %v3930
        %v3932 = vmul.f32 %v3926, 1.442695
        %v3933 = vpow.pop %v3932
        %v3934 = vmul.f32 %v3927, 1.442695
        %v3935 = vpow.pop %v3934
        %v3936 = vsel %vm1961, %v3929, 0.0
        %3937 = vadd.xlane.f32.xlu0 %v3936
        %v3938 = vpop.xlane.xlu0 %3937
        %v3939 = vsel %vm1961, %v3931, 0.0
        %3940 = vadd.xlane.f32.xlu0 %v3939
        %v3941 = vpop.xlane.xlu0 %3940
        %v3942 = vsel %vm1961, %v3933, 0.0
        %3943 = vadd.xlane.f32.xlu0 %v3942
        %v3944 = vpop.xlane.xlu0 %3943
        %v3945 = vsel %vm1961, %v3935, 0.0
        %3946 = vadd.xlane.f32.xlu0 %v3945
        %v3947 = vpop.xlane.xlu0 %3946
        %v3948 = vrcp.pop %v3938
        %v3949 = vrcp.pop %v3941
        %v3950 = vrcp.pop %v3944
        %v3951 = vrcp.pop %v3947
        %v3952 = vmul.f32 %v3929, %v3948
        %v3953 = vmul.f32 %v3931, %v3949
        %v3954 = vmul.f32 %v3933, %v3950
        %v3955 = vmul.f32 %v3935, %v3951
        %v3956 = vpack.c.bf16 %v3952, %v3952
        %v3957 = vpack.c.bf16 %v3953, %v3953
        %v3958 = vpack.c.bf16 %v3954, %v3954
        %v3959 = vpack.c.bf16 %v3955, %v3955
        %v3960 = vpack.c.bf16 %v3451, %v3451
        %v3961 = vpack.c.bf16 %v3539, %v3539
        %v3962 = vpack.c.bf16 %v3627, %v3627
        %v3963 = vpack.c.bf16 %v3715, %v3715
        %v3965 = vsel %vm1961, %v3956, 0
        %v3968 = vsel %vm2017, %v3960, 0
        %3970 = vmatprep.subr.bf16.mxu0 0
        %3971 = vmatpush1.bf16.msra.mxu0 %v3968
        %3972 = vmatprep.subr.bf16.mxu0 0
        %3973 = vmatpush1.bf16.msra.mxu0 0
        %3974 = vmatprep.subr.bf16.mxu0 0
        %3975 = vmatpush1.bf16.msra.mxu0 0
        %3976 = vmatprep.subr.bf16.mxu0 0
        %3977 = vmatpush1.bf16.msra.mxu0 0
        %3978 = vmatprep.subr.bf16.mxu0 0
        %3979 = vmatpush1.bf16.msra.mxu0 0
        %3980 = vmatprep.subr.bf16.mxu0 0
        %3981 = vmatpush1.bf16.msra.mxu0 0
        %3982 = vmatprep.subr.bf16.mxu0 0
        %3983 = vmatpush1.bf16.msra.mxu0 0
        %3984 = vmatprep.subr.bf16.mxu0 0
        %3985 = vmatpush1.bf16.msra.mxu0 0
        %3986 = vmatprep.subr.bf16.mxu0 0
        %3987 = vmatpush1.bf16.msra.mxu0 0
        %3988 = vmatprep.subr.bf16.mxu0 0
        %3989 = vmatpush1.bf16.msra.mxu0 0
        %3990 = vmatprep.subr.bf16.mxu0 0
        %3991 = vmatpush1.bf16.msra.mxu0 0
        %3992 = vmatprep.subr.bf16.mxu0 0
        %3993 = vmatpush1.bf16.msra.mxu0 0
        %3994 = vmatprep.subr.bf16.mxu0 0
        %3995 = vmatpush1.bf16.msra.mxu0 0
        %3996 = vmatprep.subr.bf16.mxu0 0
        %3997 = vmatpush1.bf16.msra.mxu0 0
        %3998 = vmatprep.subr.bf16.mxu0 0
        %3999 = vmatpush1.bf16.msra.mxu0 0
        %4000 = vmatprep.subr.bf16.mxu0 0
        %4001 = vmatpush1.bf16.msra.mxu0 0
        %4002 = vmatprep.mubr.bf16.mxu0 0
        %4003 = vmatmul.mubr.bf16.gmra.mrb[0].mxu0 %v3965
        %v4004 = vpop.f32.mrb[0].mxu0
        %v4005 = vadd.f32 0.0, %v4004
        %v4006 = vpop.f32.mrb[0].mxu0
        %v4007 = vpop.f32.mrb[0].mxu0
        %v4008 = vpop.f32.mrb[0].mxu0
        %4009 = vdwg.mxu0
        %v4011 = vsel %vm1961, %v3957, 0
        %v4014 = vsel %vm2017, %v3961, 0
        %4016 = vmatprep.subr.bf16.mxu0 0
        %4017 = vmatpush1.bf16.msra.mxu0 %v4014
        %4018 = vmatprep.subr.bf16.mxu0 0
        %4019 = vmatpush1.bf16.msra.mxu0 0
        %4020 = vmatprep.subr.bf16.mxu0 0
        %4021 = vmatpush1.bf16.msra.mxu0 0
        %4022 = vmatprep.subr.bf16.mxu0 0
        %4023 = vmatpush1.bf16.msra.mxu0 0
        %4024 = vmatprep.subr.bf16.mxu0 0
        %4025 = vmatpush1.bf16.msra.mxu0 0
        %4026 = vmatprep.subr.bf16.mxu0 0
        %4027 = vmatpush1.bf16.msra.mxu0 0
        %4028 = vmatprep.subr.bf16.mxu0 0
        %4029 = vmatpush1.bf16.msra.mxu0 0
        %4030 = vmatprep.subr.bf16.mxu0 0
        %4031 = vmatpush1.bf16.msra.mxu0 0
        %4032 = vmatprep.subr.bf16.mxu0 0
        %4033 = vmatpush1.bf16.msra.mxu0 0
        %4034 = vmatprep.subr.bf16.mxu0 0
        %4035 = vmatpush1.bf16.msra.mxu0 0
        %4036 = vmatprep.subr.bf16.mxu0 0
        %4037 = vmatpush1.bf16.msra.mxu0 0
        %4038 = vmatprep.subr.bf16.mxu0 0
        %4039 = vmatpush1.bf16.msra.mxu0 0
        %4040 = vmatprep.subr.bf16.mxu0 0
        %4041 = vmatpush1.bf16.msra.mxu0 0
        %4042 = vmatprep.subr.bf16.mxu0 0
        %4043 = vmatpush1.bf16.msra.mxu0 0
        %4044 = vmatprep.subr.bf16.mxu0 0
        %4045 = vmatpush1.bf16.msra.mxu0 0
        %4046 = vmatprep.subr.bf16.mxu0 0
        %4047 = vmatpush1.bf16.msra.mxu0 0
        %4048 = vmatprep.mubr.bf16.mxu0 0
        %4049 = vmatmul.mubr.bf16.gmra.mrb[0].mxu0 %v4011
        %v4050 = vpop.f32.mrb[0].mxu0
        %v4051 = vadd.f32 0.0, %v4050
        %v4052 = vpop.f32.mrb[0].mxu0
        %v4053 = vpop.f32.mrb[0].mxu0
        %v4054 = vpop.f32.mrb[0].mxu0
        %4055 = vdwg.mxu0
        %v4057 = vsel %vm1961, %v3958, 0
        %v4060 = vsel %vm2017, %v3962, 0
        %4062 = vmatprep.subr.bf16.mxu0 0
        %4063 = vmatpush1.bf16.msra.mxu0 %v4060
        %4064 = vmatprep.subr.bf16.mxu0 0
        %4065 = vmatpush1.bf16.msra.mxu0 0
        %4066 = vmatprep.subr.bf16.mxu0 0
        %4067 = vmatpush1.bf16.msra.mxu0 0
        %4068 = vmatprep.subr.bf16.mxu0 0
        %4069 = vmatpush1.bf16.msra.mxu0 0
        %4070 = vmatprep.subr.bf16.mxu0 0
        %4071 = vmatpush1.bf16.msra.mxu0 0
        %4072 = vmatprep.subr.bf16.mxu0 0
        %4073 = vmatpush1.bf16.msra.mxu0 0
        %4074 = vmatprep.subr.bf16.mxu0 0
        %4075 = vmatpush1.bf16.msra.mxu0 0
        %4076 = vmatprep.subr.bf16.mxu0 0
        %4077 = vmatpush1.bf16.msra.mxu0 0
        %4078 = vmatprep.subr.bf16.mxu0 0
        %4079 = vmatpush1.bf16.msra.mxu0 0
        %4080 = vmatprep.subr.bf16.mxu0 0
        %4081 = vmatpush1.bf16.msra.mxu0 0
        %4082 = vmatprep.subr.bf16.mxu0 0
        %4083 = vmatpush1.bf16.msra.mxu0 0
        %4084 = vmatprep.subr.bf16.mxu0 0
        %4085 = vmatpush1.bf16.msra.mxu0 0
        %4086 = vmatprep.subr.bf16.mxu0 0
        %4087 = vmatpush1.bf16.msra.mxu0 0
        %4088 = vmatprep.subr.bf16.mxu0 0
        %4089 = vmatpush1.bf16.msra.mxu0 0
        %4090 = vmatprep.subr.bf16.mxu0 0
        %4091 = vmatpush1.bf16.msra.mxu0 0
        %4092 = vmatprep.subr.bf16.mxu0 0
        %4093 = vmatpush1.bf16.msra.mxu0 0
        %4094 = vmatprep.mubr.bf16.mxu0 0
        %4095 = vmatmul.mubr.bf16.gmra.mrb[0].mxu0 %v4057
        %v4096 = vpop.f32.mrb[0].mxu0
        %v4097 = vadd.f32 0.0, %v4096
        %v4098 = vpop.f32.mrb[0].mxu0
        %v4099 = vpop.f32.mrb[0].mxu0
        %v4100 = vpop.f32.mrb[0].mxu0
        %4101 = vdwg.mxu0
        %v4103 = vsel %vm1961, %v3959, 0
        %v4106 = vsel %vm2017, %v3963, 0
        %4108 = vmatprep.subr.bf16.mxu0 0
        %4109 = vmatpush1.bf16.msra.mxu0 %v4106
        %4110 = vmatprep.subr.bf16.mxu0 0
        %4111 = vmatpush1.bf16.msra.mxu0 0
        %4112 = vmatprep.subr.bf16.mxu0 0
        %4113 = vmatpush1.bf16.msra.mxu0 0
        %4114 = vmatprep.subr.bf16.mxu0 0
        %4115 = vmatpush1.bf16.msra.mxu0 0
        %4116 = vmatprep.subr.bf16.mxu0 0
        %4117 = vmatpush1.bf16.msra.mxu0 0
        %4118 = vmatprep.subr.bf16.mxu0 0
        %4119 = vmatpush1.bf16.msra.mxu0 0
        %4120 = vmatprep.subr.bf16.mxu0 0
        %4121 = vmatpush1.bf16.msra.mxu0 0
        %4122 = vmatprep.subr.bf16.mxu0 0
        %4123 = vmatpush1.bf16.msra.mxu0 0
        %4124 = vmatprep.subr.bf16.mxu0 0
        %4125 = vmatpush1.bf16.msra.mxu0 0
        %4126 = vmatprep.subr.bf16.mxu0 0
        %4127 = vmatpush1.bf16.msra.mxu0 0
        %4128 = vmatprep.subr.bf16.mxu0 0
        %4129 = vmatpush1.bf16.msra.mxu0 0
        %4130 = vmatprep.subr.bf16.mxu0 0
        %4131 = vmatpush1.bf16.msra.mxu0 0
        %4132 = vmatprep.subr.bf16.mxu0 0
        %4133 = vmatpush1.bf16.msra.mxu0 0
        %4134 = vmatprep.subr.bf16.mxu0 0
        %4135 = vmatpush1.bf16.msra.mxu0 0
        %4136 = vmatprep.subr.bf16.mxu0 0
        %4137 = vmatpush1.bf16.msra.mxu0 0
        %4138 = vmatprep.subr.bf16.mxu0 0
        %4139 = vmatpush1.bf16.msra.mxu0 0
        %4140 = vmatprep.mubr.bf16.mxu0 0
        %4141 = vmatmul.mubr.bf16.gmra.mrb[0].mxu0 %v4103
        %v4142 = vpop.f32.mrb[0].mxu0
        %v4143 = vadd.f32 0.0, %v4142
        %v4144 = vpop.f32.mrb[0].mxu0
        %v4145 = vpop.f32.mrb[0].mxu0
        %v4146 = vpop.f32.mrb[0].mxu0
        %4147 = vdwg.mxu0
        %v4148 = vpack.c.bf16 %v4005, %v4005
        %v4149 = vpack.c.bf16 %v4051, %v4051
        %v4150 = vpack.c.bf16 %v4097, %v4097
        %v4151 = vpack.c.bf16 %v4143, %v4143
        %v4156 = vunpack.c.l.b16 %v2647
        %v4157 = vunpack.c.l.b16 %v2648
        %v4158 = vunpack.c.l.b16 %v2649
        %v4159 = vunpack.c.l.b16 %v2650
        %v4160 = vpack.c.b16 %v4157, %v4156
        %v4161 = vpack.c.b16 %v4159, %v4158
        %v4165 = vsel %vm1765, %v4148, 0
        %4167 = vmatprep.subr.bf16.mxu0 0
        %4168 = vmatpush1.bf16.msra.mxu0 %v4160
        %4169 = vmatprep.subr.bf16.mxu0 0
        %4170 = vmatpush1.bf16.msra.mxu0 %v4161
        %4171 = vmatprep.subr.bf16.mxu0 0
        %4172 = vmatpush1.bf16.msra.mxu0 0
        %4173 = vmatprep.subr.bf16.mxu0 0
        %4174 = vmatpush1.bf16.msra.mxu0 0
        %4175 = vmatprep.subr.bf16.mxu0 0
        %4176 = vmatpush1.bf16.msra.mxu0 0
        %4177 = vmatprep.subr.bf16.mxu0 0
        %4178 = vmatpush1.bf16.msra.mxu0 0
        %4179 = vmatprep.subr.bf16.mxu0 0
        %4180 = vmatpush1.bf16.msra.mxu0 0
        %4181 = vmatprep.subr.bf16.mxu0 0
        %4182 = vmatpush1.bf16.msra.mxu0 0
        %4183 = vmatprep.subr.bf16.mxu0 0
        %4184 = vmatpush1.bf16.msra.mxu0 0
        %4185 = vmatprep.subr.bf16.mxu0 0
        %4186 = vmatpush1.bf16.msra.mxu0 0
        %4187 = vmatprep.subr.bf16.mxu0 0
        %4188 = vmatpush1.bf16.msra.mxu0 0
        %4189 = vmatprep.subr.bf16.mxu0 0
        %4190 = vmatpush1.bf16.msra.mxu0 0
        %4191 = vmatprep.subr.bf16.mxu0 0
        %4192 = vmatpush1.bf16.msra.mxu0 0
        %4193 = vmatprep.subr.bf16.mxu0 0
        %4194 = vmatpush1.bf16.msra.mxu0 0
        %4195 = vmatprep.subr.bf16.mxu0 0
        %4196 = vmatpush1.bf16.msra.mxu0 0
        %4197 = vmatprep.subr.bf16.mxu0 0
        %4198 = vmatpush1.bf16.msra.mxu0 0
        %4199 = vmatprep.mubr.bf16.mxu0 0
        %4200 = vmatmul.mubr.bf16.gmra.mrb[0].mxu0 %v4165
        %v4201 = vpop.f32.mrb[0].mxu0
        %v4202 = vadd.f32 0.0, %v4201
        %v4203 = vpop.f32.mrb[0].mxu0
        %v4204 = vpop.f32.mrb[0].mxu0
        %v4205 = vpop.f32.mrb[0].mxu0
        %4206 = vdwg.mxu0
        %v4211 = vunpack.c.l.b16 %v2651
        %v4212 = vunpack.c.l.b16 %v2652
        %v4213 = vunpack.c.l.b16 %v2653
        %v4214 = vunpack.c.l.b16 %v2654
        %v4215 = vpack.c.b16 %v4212, %v4211
        %v4216 = vpack.c.b16 %v4214, %v4213
        %v4220 = vsel %vm1765, %v4149, 0
        %4222 = vmatprep.subr.bf16.mxu0 0
        %4223 = vmatpush1.bf16.msra.mxu0 %v4215
        %4224 = vmatprep.subr.bf16.mxu0 0
        %4225 = vmatpush1.bf16.msra.mxu0 %v4216
        %4226 = vmatprep.subr.bf16.mxu0 0
        %4227 = vmatpush1.bf16.msra.mxu0 0
        %4228 = vmatprep.subr.bf16.mxu0 0
        %4229 = vmatpush1.bf16.msra.mxu0 0
        %4230 = vmatprep.subr.bf16.mxu0 0
        %4231 = vmatpush1.bf16.msra.mxu0 0
        %4232 = vmatprep.subr.bf16.mxu0 0
        %4233 = vmatpush1.bf16.msra.mxu0 0
        %4234 = vmatprep.subr.bf16.mxu0 0
        %4235 = vmatpush1.bf16.msra.mxu0 0
        %4236 = vmatprep.subr.bf16.mxu0 0
        %4237 = vmatpush1.bf16.msra.mxu0 0
        %4238 = vmatprep.subr.bf16.mxu0 0
        %4239 = vmatpush1.bf16.msra.mxu0 0
        %4240 = vmatprep.subr.bf16.mxu0 0
        %4241 = vmatpush1.bf16.msra.mxu0 0
        %4242 = vmatprep.subr.bf16.mxu0 0
        %4243 = vmatpush1.bf16.msra.mxu0 0
        %4244 = vmatprep.subr.bf16.mxu0 0
        %4245 = vmatpush1.bf16.msra.mxu0 0
        %4246 = vmatprep.subr.bf16.mxu0 0
        %4247 = vmatpush1.bf16.msra.mxu0 0
        %4248 = vmatprep.subr.bf16.mxu0 0
        %4249 = vmatpush1.bf16.msra.mxu0 0
        %4250 = vmatprep.subr.bf16.mxu0 0
        %4251 = vmatpush1.bf16.msra.mxu0 0
        %4252 = vmatprep.subr.bf16.mxu0 0
        %4253 = vmatpush1.bf16.msra.mxu0 0
        %4254 = vmatprep.mubr.bf16.mxu0 0
        %4255 = vmatmul.mubr.bf16.gmra.mrb[0].mxu0 %v4220
        %v4256 = vpop.f32.mrb[0].mxu0
        %v4257 = vadd.f32 0.0, %v4256
        %v4258 = vpop.f32.mrb[0].mxu0
        %v4259 = vpop.f32.mrb[0].mxu0
        %v4260 = vpop.f32.mrb[0].mxu0
        %4261 = vdwg.mxu0
        %v4266 = vunpack.c.l.b16 %v2655
        %v4267 = vunpack.c.l.b16 %v2656
        %v4268 = vunpack.c.l.b16 %v2657
        %v4269 = vunpack.c.l.b16 %v2658
        %v4270 = vpack.c.b16 %v4267, %v4266
        %v4271 = vpack.c.b16 %v4269, %v4268
        %v4275 = vsel %vm1765, %v4150, 0
        %4277 = vmatprep.subr.bf16.mxu0 0
        %4278 = vmatpush1.bf16.msra.mxu0 %v4270
        %4279 = vmatprep.subr.bf16.mxu0 0
        %4280 = vmatpush1.bf16.msra.mxu0 %v4271
        %4281 = vmatprep.subr.bf16.mxu0 0
        %4282 = vmatpush1.bf16.msra.mxu0 0
        %4283 = vmatprep.subr.bf16.mxu0 0
        %4284 = vmatpush1.bf16.msra.mxu0 0
        %4285 = vmatprep.subr.bf16.mxu0 0
        %4286 = vmatpush1.bf16.msra.mxu0 0
        %4287 = vmatprep.subr.bf16.mxu0 0
        %4288 = vmatpush1.bf16.msra.mxu0 0
        %4289 = vmatprep.subr.bf16.mxu0 0
        %4290 = vmatpush1.bf16.msra.mxu0 0
        %4291 = vmatprep.subr.bf16.mxu0 0
        %4292 = vmatpush1.bf16.msra.mxu0 0
        %4293 = vmatprep.subr.bf16.mxu0 0
        %4294 = vmatpush1.bf16.msra.mxu0 0
        %4295 = vmatprep.subr.bf16.mxu0 0
        %4296 = vmatpush1.bf16.msra.mxu0 0
        %4297 = vmatprep.subr.bf16.mxu0 0
        %4298 = vmatpush1.bf16.msra.mxu0 0
        %4299 = vmatprep.subr.bf16.mxu0 0
        %4300 = vmatpush1.bf16.msra.mxu0 0
        %4301 = vmatprep.subr.bf16.mxu0 0
        %4302 = vmatpush1.bf16.msra.mxu0 0
        %4303 = vmatprep.subr.bf16.mxu0 0
        %4304 = vmatpush1.bf16.msra.mxu0 0
        %4305 = vmatprep.subr.bf16.mxu0 0
        %4306 = vmatpush1.bf16.msra.mxu0 0
        %4307 = vmatprep.subr.bf16.mxu0 0
        %4308 = vmatpush1.bf16.msra.mxu0 0
        %4309 = vmatprep.mubr.bf16.mxu0 0
        %4310 = vmatmul.mubr.bf16.gmra.mrb[0].mxu0 %v4275
        %v4311 = vpop.f32.mrb[0].mxu0
        %v4312 = vadd.f32 0.0, %v4311
        %v4313 = vpop.f32.mrb[0].mxu0
        %v4314 = vpop.f32.mrb[0].mxu0
        %v4315 = vpop.f32.mrb[0].mxu0
        %4316 = vdwg.mxu0
        %v4321 = vunpack.c.l.b16 %v2659
        %v4322 = vunpack.c.l.b16 %v2660
        %v4323 = vunpack.c.l.b16 %v2661
        %v4324 = vunpack.c.l.b16 %v2662
        %v4325 = vpack.c.b16 %v4322, %v4321
        %v4326 = vpack.c.b16 %v4324, %v4323
        %v4330 = vsel %vm1765, %v4151, 0
        %4332 = vmatprep.subr.bf16.mxu0 0
        %4333 = vmatpush1.bf16.msra.mxu0 %v4325
        %4334 = vmatprep.subr.bf16.mxu0 0
        %4335 = vmatpush1.bf16.msra.mxu0 %v4326
        %4336 = vmatprep.subr.bf16.mxu0 0
        %4337 = vmatpush1.bf16.msra.mxu0 0
        %4338 = vmatprep.subr.bf16.mxu0 0
        %4339 = vmatpush1.bf16.msra.mxu0 0
        %4340 = vmatprep.subr.bf16.mxu0 0
        %4341 = vmatpush1.bf16.msra.mxu0 0
        %4342 = vmatprep.subr.bf16.mxu0 0
        %4343 = vmatpush1.bf16.msra.mxu0 0
        %4344 = vmatprep.subr.bf16.mxu0 0
        %4345 = vmatpush1.bf16.msra.mxu0 0
        %4346 = vmatprep.subr.bf16.mxu0 0
        %4347 = vmatpush1.bf16.msra.mxu0 0
        %4348 = vmatprep.subr.bf16.mxu0 0
        %4349 = vmatpush1.bf16.msra.mxu0 0
        %4350 = vmatprep.subr.bf16.mxu0 0
        %4351 = vmatpush1.bf16.msra.mxu0 0
        %4352 = vmatprep.subr.bf16.mxu0 0
        %4353 = vmatpush1.bf16.msra.mxu0 0
        %4354 = vmatprep.subr.bf16.mxu0 0
        %4355 = vmatpush1.bf16.msra.mxu0 0
        %4356 = vmatprep.subr.bf16.mxu0 0
        %4357 = vmatpush1.bf16.msra.mxu0 0
        %4358 = vmatprep.subr.bf16.mxu0 0
        %4359 = vmatpush1.bf16.msra.mxu0 0
        %4360 = vmatprep.subr.bf16.mxu0 0
        %4361 = vmatpush1.bf16.msra.mxu0 0
        %4362 = vmatprep.subr.bf16.mxu0 0
        %4363 = vmatpush1.bf16.msra.mxu0 0
        %4364 = vmatprep.mubr.bf16.mxu0 0
        %4365 = vmatmul.mubr.bf16.gmra.mrb[0].mxu0 %v4330
        %v4366 = vpop.f32.mrb[0].mxu0
        %v4367 = vadd.f32 0.0, %v4366
        %v4368 = vpop.f32.mrb[0].mxu0
        %v4369 = vpop.f32.mrb[0].mxu0
        %v4370 = vpop.f32.mrb[0].mxu0
        %4371 = vdwg.mxu0
        %v4372 = vadd.f32 %v4202, %v4257
        %v4373 = vadd.f32 %v4372, %v4312
        %v4374 = vadd.f32 %v4373, %v4367
        %v4375 = vadd.f32 %v2454, %v4374
        %v4376 = vld [vmem:[%s7] sm:$0x1]
        %v4377 = vld [vmem:[%s8] sm:$0x1]
        %4378 = vadd.xlane.f32.xlu0 %v4375
        %v4379 = vpop.xlane.xlu0 %4378
        %v4380 = vmul.f32 %v4379, %v2431
        %v4381 = vsub.f32 %v4375, %v4380
        %v4382 = vmul.f32 %v4381, %v4381
        %4383 = vadd.xlane.f32.xlu0 %v4382
        %v4384 = vpop.xlane.xlu0 %4383
        %v4385 = vmul.f32 %v4384, %v2431
        %v4386 = vadd.f32 %v4385, 1e-05
        %v4387 = vrsqrt.pop %v4386
        %v4388 = vmul.f32 %v4381, %v4387
        %v4390 = vlaneseq
        %v4391 = vshrl.u32 %v4390, 7
        %v4392 = vsub.s32 0, %v4391
        %v4393 = vrot.slane %v4376, %v4392
        %v4395 = vmul.f32 %v4388, %v4393
        %v4397 = vlaneseq
        %v4398 = vshrl.u32 %v4397, 7
        %v4399 = vsub.s32 0, %v4398
        %v4400 = vrot.slane %v4377, %v4399
        %v4402 = vadd.f32 %v4395, %v4400
        %v4403 = vld [vmem:[%s9] sm:$0xff]
        %v4404 = vld [vmem:[%s9 + $0x8] sm:$0xff]
        %v4405 = vld [vmem:[%s9 + $0x10] sm:$0xff]
        %v4406 = vld [vmem:[%s9 + $0x18] sm:$0xff]
        %v4407 = vld [vmem:[%s9 + $0x20] sm:$0xff]
        %v4408 = vld [vmem:[%s9 + $0x28] sm:$0xff]
        %v4409 = vld [vmem:[%s9 + $0x30] sm:$0xff]
        %v4410 = vld [vmem:[%s9 + $0x38] sm:$0xff]
        %v4411 = vld [vmem:[%s9 + $0x40] sm:$0xff]
        %v4412 = vld [vmem:[%s9 + $0x48] sm:$0xff]
        %v4413 = vld [vmem:[%s9 + $0x50] sm:$0xff]
        %v4414 = vld [vmem:[%s9 + $0x58] sm:$0xff]
        %v4415 = vld [vmem:[%s9 + $0x60] sm:$0xff]
        %v4416 = vld [vmem:[%s9 + $0x68] sm:$0xff]
        %v4417 = vld [vmem:[%s9 + $0x70] sm:$0xff]
        %v4418 = vld [vmem:[%s9 + $0x78] sm:$0xff]
        %v4419 = vld [vmem:[%s9 + $0x80] sm:$0xff]
        %v4420 = vld [vmem:[%s9 + $0x88] sm:$0xff]
        %v4421 = vld [vmem:[%s9 + $0x90] sm:$0xff]
        %v4422 = vld [vmem:[%s9 + $0x98] sm:$0xff]
        %v4423 = vld [vmem:[%s9 + $0xa0] sm:$0xff]
        %v4424 = vld [vmem:[%s9 + $0xa8] sm:$0xff]
        %v4425 = vld [vmem:[%s9 + $0xb0] sm:$0xff]
        %v4426 = vld [vmem:[%s9 + $0xb8] sm:$0xff]
        %v4427 = vld [vmem:[%s9 + $0xc0] sm:$0xff]
        %v4428 = vld [vmem:[%s9 + $0xc8] sm:$0xff]
        %v4429 = vld [vmem:[%s9 + $0xd0] sm:$0xff]
        %v4430 = vld [vmem:[%s9 + $0xd8] sm:$0xff]
        %v4431 = vld [vmem:[%s9 + $0xe0] sm:$0xff]
        %v4432 = vld [vmem:[%s9 + $0xe8] sm:$0xff]
        %v4433 = vld [vmem:[%s9 + $0xf0] sm:$0xff]
        %v4434 = vld [vmem:[%s9 + $0xf8] sm:$0xff]
        %v4435 = vld [vmem:[%s10] sm:$0xf]
        %v4436 = vld [vmem:[%s11] sm:$0xf]
        %v4437 = vld [vmem:[%s11 + $0x4] sm:$0xf]
        %v4438 = vld [vmem:[%s11 + $0x8] sm:$0xf]
        %v4439 = vld [vmem:[%s11 + $0xc] sm:$0xf]
        %v4440 = vld [vmem:[%s11 + $0x10] sm:$0xf]
        %v4441 = vld [vmem:[%s11 + $0x14] sm:$0xf]
        %v4442 = vld [vmem:[%s11 + $0x18] sm:$0xf]
        %v4443 = vld [vmem:[%s11 + $0x1c] sm:$0xf]
        %v4444 = vld [vmem:[%s11 + $0x20] sm:$0xf]
        %v4445 = vld [vmem:[%s11 + $0x24] sm:$0xf]
        %v4446 = vld [vmem:[%s11 + $0x28] sm:$0xf]
        %v4447 = vld [vmem:[%s11 + $0x2c] sm:$0xf]
        %v4448 = vld [vmem:[%s11 + $0x30] sm:$0xf]
        %v4449 = vld [vmem:[%s11 + $0x34] sm:$0xf]
        %v4450 = vld [vmem:[%s11 + $0x38] sm:$0xf]
        %v4451 = vld [vmem:[%s11 + $0x3c] sm:$0xf]
        %v4452 = vld [vmem:[%s11 + $0x40] sm:$0xf]
        %v4453 = vld [vmem:[%s11 + $0x44] sm:$0xf]
        %v4454 = vld [vmem:[%s11 + $0x48] sm:$0xf]
        %v4455 = vld [vmem:[%s11 + $0x4c] sm:$0xf]
        %v4456 = vld [vmem:[%s11 + $0x50] sm:$0xf]
        %v4457 = vld [vmem:[%s11 + $0x54] sm:$0xf]
        %v4458 = vld [vmem:[%s11 + $0x58] sm:$0xf]
        %v4459 = vld [vmem:[%s11 + $0x5c] sm:$0xf]
        %v4460 = vld [vmem:[%s11 + $0x60] sm:$0xf]
        %v4461 = vld [vmem:[%s11 + $0x64] sm:$0xf]
        %v4462 = vld [vmem:[%s11 + $0x68] sm:$0xf]
        %v4463 = vld [vmem:[%s11 + $0x6c] sm:$0xf]
        %v4464 = vld [vmem:[%s11 + $0x70] sm:$0xf]
        %v4465 = vld [vmem:[%s11 + $0x74] sm:$0xf]
        %v4466 = vld [vmem:[%s11 + $0x78] sm:$0xf]
        %v4467 = vld [vmem:[%s11 + $0x7c] sm:$0xf]
        %v4468 = vld [vmem:[%s11 + $0x80] sm:$0xf]
        %v4469 = vld [vmem:[%s11 + $0x84] sm:$0xf]
        %v4470 = vld [vmem:[%s11 + $0x88] sm:$0xf]
        %v4471 = vld [vmem:[%s11 + $0x8c] sm:$0xf]
        %v4472 = vld [vmem:[%s11 + $0x90] sm:$0xf]
        %v4473 = vld [vmem:[%s11 + $0x94] sm:$0xf]
        %v4474 = vld [vmem:[%s11 + $0x98] sm:$0xf]
        %v4475 = vld [vmem:[%s11 + $0x9c] sm:$0xf]
        %v4476 = vld [vmem:[%s11 + $0xa0] sm:$0xf]
        %v4477 = vld [vmem:[%s11 + $0xa4] sm:$0xf]
        %v4478 = vld [vmem:[%s11 + $0xa8] sm:$0xf]
        %v4479 = vld [vmem:[%s11 + $0xac] sm:$0xf]
        %v4480 = vld [vmem:[%s11 + $0xb0] sm:$0xf]
        %v4481 = vld [vmem:[%s11 + $0xb4] sm:$0xf]
        %v4482 = vld [vmem:[%s11 + $0xb8] sm:$0xf]
        %v4483 = vld [vmem:[%s11 + $0xbc] sm:$0xf]
        %v4484 = vld [vmem:[%s11 + $0xc0] sm:$0xf]
        %v4485 = vld [vmem:[%s11 + $0xc4] sm:$0xf]
        %v4486 = vld [vmem:[%s11 + $0xc8] sm:$0xf]
        %v4487 = vld [vmem:[%s11 + $0xcc] sm:$0xf]
        %v4488 = vld [vmem:[%s11 + $0xd0] sm:$0xf]
        %v4489 = vld [vmem:[%s11 + $0xd4] sm:$0xf]
        %v4490 = vld [vmem:[%s11 + $0xd8] sm:$0xf]
        %v4491 = vld [vmem:[%s11 + $0xdc] sm:$0xf]
        %v4492 = vld [vmem:[%s11 + $0xe0] sm:$0xf]
        %v4493 = vld [vmem:[%s11 + $0xe4] sm:$0xf]
        %v4494 = vld [vmem:[%s11 + $0xe8] sm:$0xf]
        %v4495 = vld [vmem:[%s11 + $0xec] sm:$0xf]
        %v4496 = vld [vmem:[%s11 + $0xf0] sm:$0xf]
        %v4497 = vld [vmem:[%s11 + $0xf4] sm:$0xf]
        %v4498 = vld [vmem:[%s11 + $0xf8] sm:$0xf]
        %v4499 = vld [vmem:[%s11 + $0xfc] sm:$0xf]
        %v4500 = vld [vmem:[%s12] sm:$0x1]
        %v4501 = vpack.c.bf16 %v4402, %v4402
        %v4503 = vlaneseq
        %v4504 = vshrl.u32 %v4503, 7
        %v4505 = vsub.s32 0, %v4504
        %v4506 = vrot.slane %v4435, %v4505
        %v4507 = vlaneseq
        %v4508 = vshrl.u32 %v4507, 7
        %v4509 = vsub.s32 1, %v4508
        %v4510 = vrot.slane %v4435, %v4509
        %v4511 = vlaneseq
        %v4512 = vshrl.u32 %v4511, 7
        %v4513 = vsub.s32 2, %v4512
        %v4514 = vrot.slane %v4435, %v4513
        %v4515 = vlaneseq
        %v4516 = vshrl.u32 %v4515, 7
        %v4517 = vsub.s32 3, %v4516
        %v4518 = vrot.slane %v4435, %v4517
        %v4555 = vunpack.c.l.b16 %v4403
        %v4556 = vunpack.c.h.b16 %v4403
        %v4557 = vunpack.c.l.b16 %v4404
        %v4558 = vunpack.c.h.b16 %v4404
        %v4559 = vunpack.c.l.b16 %v4405
        %v4560 = vunpack.c.h.b16 %v4405
        %v4561 = vunpack.c.l.b16 %v4406
        %v4562 = vunpack.c.h.b16 %v4406
        %v4563 = vunpack.c.l.b16 %v4407
        %v4564 = vunpack.c.h.b16 %v4407
        %v4565 = vunpack.c.l.b16 %v4408
        %v4566 = vunpack.c.h.b16 %v4408
        %v4567 = vunpack.c.l.b16 %v4409
        %v4568 = vunpack.c.h.b16 %v4409
        %v4569 = vunpack.c.l.b16 %v4410
        %v4570 = vunpack.c.h.b16 %v4410
        %v4571 = vunpack.c.l.b16 %v4411
        %v4572 = vunpack.c.h.b16 %v4411
        %v4573 = vunpack.c.l.b16 %v4412
        %v4574 = vunpack.c.h.b16 %v4412
        %v4575 = vunpack.c.l.b16 %v4413
        %v4576 = vunpack.c.h.b16 %v4413
        %v4577 = vunpack.c.l.b16 %v4414
        %v4578 = vunpack.c.h.b16 %v4414
        %v4579 = vunpack.c.l.b16 %v4415
        %v4580 = vunpack.c.h.b16 %v4415
        %v4581 = vunpack.c.l.b16 %v4416
        %v4582 = vunpack.c.h.b16 %v4416
        %v4583 = vunpack.c.l.b16 %v4417
        %v4584 = vunpack.c.h.b16 %v4417
        %v4585 = vunpack.c.l.b16 %v4418
        %v4586 = vunpack.c.h.b16 %v4418
        %v4587 = vunpack.c.l.b16 %v4419
        %v4588 = vunpack.c.h.b16 %v4419
        %v4589 = vunpack.c.l.b16 %v4420
        %v4590 = vunpack.c.h.b16 %v4420
        %v4591 = vunpack.c.l.b16 %v4421
        %v4592 = vunpack.c.h.b16 %v4421
        %v4593 = vunpack.c.l.b16 %v4422
        %v4594 = vunpack.c.h.b16 %v4422
        %v4595 = vunpack.c.l.b16 %v4423
        %v4596 = vunpack.c.h.b16 %v4423
        %v4597 = vunpack.c.l.b16 %v4424
        %v4598 = vunpack.c.h.b16 %v4424
        %v4599 = vunpack.c.l.b16 %v4425
        %v4600 = vunpack.c.h.b16 %v4425
        %v4601 = vunpack.c.l.b16 %v4426
        %v4602 = vunpack.c.h.b16 %v4426
        %v4603 = vunpack.c.l.b16 %v4427
        %v4604 = vunpack.c.h.b16 %v4427
        %v4605 = vunpack.c.l.b16 %v4428
        %v4606 = vunpack.c.h.b16 %v4428
        %v4607 = vunpack.c.l.b16 %v4429
        %v4608 = vunpack.c.h.b16 %v4429
        %v4609 = vunpack.c.l.b16 %v4430
        %v4610 = vunpack.c.h.b16 %v4430
        %v4611 = vunpack.c.l.b16 %v4431
        %v4612 = vunpack.c.h.b16 %v4431
        %v4613 = vunpack.c.l.b16 %v4432
        %v4614 = vunpack.c.h.b16 %v4432
        %v4615 = vunpack.c.l.b16 %v4433
        %v4616 = vunpack.c.h.b16 %v4433
        %v4617 = vunpack.c.l.b16 %v4434
        %v4618 = vunpack.c.h.b16 %v4434
        %v4619 = vpack.c.b16 %v4559, %v4555
        %v4620 = vpack.c.b16 %v4560, %v4556
        %v4621 = vpack.c.b16 %v4561, %v4557
        %v4622 = vpack.c.b16 %v4562, %v4558
        %v4623 = vpack.c.b16 %v4567, %v4563
        %v4624 = vpack.c.b16 %v4568, %v4564
        %v4625 = vpack.c.b16 %v4569, %v4565
        %v4626 = vpack.c.b16 %v4570, %v4566
        %v4627 = vpack.c.b16 %v4575, %v4571
        %v4628 = vpack.c.b16 %v4576, %v4572
        %v4629 = vpack.c.b16 %v4577, %v4573
        %v4630 = vpack.c.b16 %v4578, %v4574
        %v4631 = vpack.c.b16 %v4583, %v4579
        %v4632 = vpack.c.b16 %v4584, %v4580
        %v4633 = vpack.c.b16 %v4585, %v4581
        %v4634 = vpack.c.b16 %v4586, %v4582
        %v4635 = vpack.c.b16 %v4591, %v4587
        %v4636 = vpack.c.b16 %v4592, %v4588
        %v4637 = vpack.c.b16 %v4593, %v4589
        %v4638 = vpack.c.b16 %v4594, %v4590
        %v4639 = vpack.c.b16 %v4599, %v4595
        %v4640 = vpack.c.b16 %v4600, %v4596
        %v4641 = vpack.c.b16 %v4601, %v4597
        %v4642 = vpack.c.b16 %v4602, %v4598
        %v4643 = vpack.c.b16 %v4607, %v4603
        %v4644 = vpack.c.b16 %v4608, %v4604
        %v4645 = vpack.c.b16 %v4609, %v4605
        %v4646 = vpack.c.b16 %v4610, %v4606
        %v4647 = vpack.c.b16 %v4615, %v4611
        %v4648 = vpack.c.b16 %v4616, %v4612
        %v4649 = vpack.c.b16 %v4617, %v4613
        %v4650 = vpack.c.b16 %v4618, %v4614
        %4683 = vmatprep.subr.bf16.mxu0 %v4620
        %4684 = vmatpush1.bf16.msra.mxu0 %v4619
        %4685 = vmatprep.subr.bf16.mxu0 %v4624
        %4686 = vmatpush1.bf16.msra.mxu0 %v4623
        %4687 = vmatprep.subr.bf16.mxu0 %v4628
        %4688 = vmatpush1.bf16.msra.mxu0 %v4627
        %4689 = vmatprep.subr.bf16.mxu0 %v4632
        %4690 = vmatpush1.bf16.msra.mxu0 %v4631
        %4691 = vmatprep.subr.bf16.mxu0 %v4636
        %4692 = vmatpush1.bf16.msra.mxu0 %v4635
        %4693 = vmatprep.subr.bf16.mxu0 %v4640
        %4694 = vmatpush1.bf16.msra.mxu0 %v4639
        %4695 = vmatprep.subr.bf16.mxu0 %v4644
        %4696 = vmatpush1.bf16.msra.mxu0 %v4643
        %4697 = vmatprep.subr.bf16.mxu0 %v4648
        %4698 = vmatpush1.bf16.msra.mxu0 %v4647
        %4699 = vmatprep.subr.bf16.mxu0 0
        %4700 = vmatpush1.bf16.msra.mxu0 0
        %4701 = vmatprep.subr.bf16.mxu0 0
        %4702 = vmatpush1.bf16.msra.mxu0 0
        %4703 = vmatprep.subr.bf16.mxu0 0
        %4704 = vmatpush1.bf16.msra.mxu0 0
        %4705 = vmatprep.subr.bf16.mxu0 0
        %4706 = vmatpush1.bf16.msra.mxu0 0
        %4707 = vmatprep.subr.bf16.mxu0 0
        %4708 = vmatpush1.bf16.msra.mxu0 0
        %4709 = vmatprep.subr.bf16.mxu0 0
        %4710 = vmatpush1.bf16.msra.mxu0 0
        %4711 = vmatprep.subr.bf16.mxu0 0
        %4712 = vmatpush1.bf16.msra.mxu0 0
        %4713 = vmatprep.subr.bf16.mxu0 0
        %4714 = vmatpush1.bf16.msra.mxu0 0
        %4715 = vmatprep.mubr.bf16.mxu0 0
        %4716 = vmatmul.mubr.bf16.gmra.mrb[0].mxu0 %v4501
        %v4717 = vpop.f32.mrb[0].mxu0
        %v4718 = vadd.f32 %v4506, %v4717
        %v4719 = vpop.f32.mrb[0].mxu0
        %v4720 = vadd.f32 %v4510, %v4719
        %v4721 = vpop.f32.mrb[0].mxu0
        %v4722 = vpop.f32.mrb[0].mxu0
        %4723 = vdwg.mxu0
        %4724 = vmatprep.subr.bf16.mxu0 %v4622
        %4725 = vmatpush1.bf16.msra.mxu0 %v4621
        %4726 = vmatprep.subr.bf16.mxu0 %v4626
        %4727 = vmatpush1.bf16.msra.mxu0 %v4625
        %4728 = vmatprep.subr.bf16.mxu0 %v4630
        %4729 = vmatpush1.bf16.msra.mxu0 %v4629
        %4730 = vmatprep.subr.bf16.mxu0 %v4634
        %4731 = vmatpush1.bf16.msra.mxu0 %v4633
        %4732 = vmatprep.subr.bf16.mxu0 %v4638
        %4733 = vmatpush1.bf16.msra.mxu0 %v4637
        %4734 = vmatprep.subr.bf16.mxu0 %v4642
        %4735 = vmatpush1.bf16.msra.mxu0 %v4641
        %4736 = vmatprep.subr.bf16.mxu0 %v4646
        %4737 = vmatpush1.bf16.msra.mxu0 %v4645
        %4738 = vmatprep.subr.bf16.mxu0 %v4650
        %4739 = vmatpush1.bf16.msra.mxu0 %v4649
        %4740 = vmatprep.subr.bf16.mxu0 0
        %4741 = vmatpush1.bf16.msra.mxu0 0
        %4742 = vmatprep.subr.bf16.mxu0 0
        %4743 = vmatpush1.bf16.msra.mxu0 0
        %4744 = vmatprep.subr.bf16.mxu0 0
        %4745 = vmatpush1.bf16.msra.mxu0 0
        %4746 = vmatprep.subr.bf16.mxu0 0
        %4747 = vmatpush1.bf16.msra.mxu0 0
        %4748 = vmatprep.subr.bf16.mxu0 0
        %4749 = vmatpush1.bf16.msra.mxu0 0
        %4750 = vmatprep.subr.bf16.mxu0 0
        %4751 = vmatpush1.bf16.msra.mxu0 0
        %4752 = vmatprep.subr.bf16.mxu0 0
        %4753 = vmatpush1.bf16.msra.mxu0 0
        %4754 = vmatprep.subr.bf16.mxu0 0
        %4755 = vmatpush1.bf16.msra.mxu0 0
        %4756 = vmatprep.mubr.bf16.mxu0 0
        %4757 = vmatmul.mubr.bf16.gmra.mrb[0].mxu0 %v4501
        %v4758 = vpop.f32.mrb[0].mxu0
        %v4759 = vadd.f32 %v4514, %v4758
        %v4760 = vpop.f32.mrb[0].mxu0
        %v4761 = vadd.f32 %v4518, %v4760
        %v4762 = vpop.f32.mrb[0].mxu0
        %v4763 = vpop.f32.mrb[0].mxu0
        %4764 = vdwg.mxu0
        %v4765 = vmax.f32 %v4718, 0.0
        %v4766 = vmax.f32 %v4720, 0.0
        %v4767 = vmax.f32 %v4759, 0.0
        %v4768 = vmax.f32 %v4761, 0.0
        %v4769 = vpack.c.bf16 %v4765, %v4765
        %v4770 = vpack.c.bf16 %v4766, %v4766
        %v4771 = vpack.c.bf16 %v4767, %v4767
        %v4772 = vpack.c.bf16 %v4768, %v4768
        %v4774 = vlaneseq
        %v4775 = vshrl.u32 %v4774, 7
        %v4776 = vsub.s32 0, %v4775
        %v4777 = vrot.slane %v4500, %v4776
        %v4843 = vunpack.c.l.b16 %v4436
        %v4844 = vunpack.c.l.b16 %v4437
        %v4845 = vunpack.c.l.b16 %v4438
        %v4846 = vunpack.c.l.b16 %v4439
        %v4847 = vunpack.c.l.b16 %v4440
        %v4848 = vunpack.c.l.b16 %v4441
        %v4849 = vunpack.c.l.b16 %v4442
        %v4850 = vunpack.c.l.b16 %v4443
        %v4851 = vunpack.c.l.b16 %v4444
        %v4852 = vunpack.c.l.b16 %v4445
        %v4853 = vunpack.c.l.b16 %v4446
        %v4854 = vunpack.c.l.b16 %v4447
        %v4855 = vunpack.c.l.b16 %v4448
        %v4856 = vunpack.c.l.b16 %v4449
        %v4857 = vunpack.c.l.b16 %v4450
        %v4858 = vunpack.c.l.b16 %v4451
        %v4859 = vunpack.c.l.b16 %v4452
        %v4860 = vunpack.c.l.b16 %v4453
        %v4861 = vunpack.c.l.b16 %v4454
        %v4862 = vunpack.c.l.b16 %v4455
        %v4863 = vunpack.c.l.b16 %v4456
        %v4864 = vunpack.c.l.b16 %v4457
        %v4865 = vunpack.c.l.b16 %v4458
        %v4866 = vunpack.c.l.b16 %v4459
        %v4867 = vunpack.c.l.b16 %v4460
        %v4868 = vunpack.c.l.b16 %v4461
        %v4869 = vunpack.c.l.b16 %v4462
        %v4870 = vunpack.c.l.b16 %v4463
        %v4871 = vunpack.c.l.b16 %v4464
        %v4872 = vunpack.c.l.b16 %v4465
        %v4873 = vunpack.c.l.b16 %v4466
        %v4874 = vunpack.c.l.b16 %v4467
        %v4875 = vunpack.c.l.b16 %v4468
        %v4876 = vunpack.c.l.b16 %v4469
        %v4877 = vunpack.c.l.b16 %v4470
        %v4878 = vunpack.c.l.b16 %v4471
        %v4879 = vunpack.c.l.b16 %v4472
        %v4880 = vunpack.c.l.b16 %v4473
        %v4881 = vunpack.c.l.b16 %v4474
        %v4882 = vunpack.c.l.b16 %v4475
        %v4883 = vunpack.c.l.b16 %v4476
        %v4884 = vunpack.c.l.b16 %v4477
        %v4885 = vunpack.c.l.b16 %v4478
        %v4886 = vunpack.c.l.b16 %v4479
        %v4887 = vunpack.c.l.b16 %v4480
        %v4888 = vunpack.c.l.b16 %v4481
        %v4889 = vunpack.c.l.b16 %v4482
        %v4890 = vunpack.c.l.b16 %v4483
        %v4891 = vunpack.c.l.b16 %v4484
        %v4892 = vunpack.c.l.b16 %v4485
        %v4893 = vunpack.c.l.b16 %v4486
        %v4894 = vunpack.c.l.b16 %v4487
        %v4895 = vunpack.c.l.b16 %v4488
        %v4896 = vunpack.c.l.b16 %v4489
        %v4897 = vunpack.c.l.b16 %v4490
        %v4898 = vunpack.c.l.b16 %v4491
        %v4899 = vunpack.c.l.b16 %v4492
        %v4900 = vunpack.c.l.b16 %v4493
        %v4901 = vunpack.c.l.b16 %v4494
        %v4902 = vunpack.c.l.b16 %v4495
        %v4903 = vunpack.c.l.b16 %v4496
        %v4904 = vunpack.c.l.b16 %v4497
        %v4905 = vunpack.c.l.b16 %v4498
        %v4906 = vunpack.c.l.b16 %v4499
        %v4907 = vpack.c.b16 %v4844, %v4843
        %v4908 = vpack.c.b16 %v4846, %v4845
        %v4909 = vpack.c.b16 %v4848, %v4847
        %v4910 = vpack.c.b16 %v4850, %v4849
        %v4911 = vpack.c.b16 %v4852, %v4851
        %v4912 = vpack.c.b16 %v4854, %v4853
        %v4913 = vpack.c.b16 %v4856, %v4855
        %v4914 = vpack.c.b16 %v4858, %v4857
        %v4915 = vpack.c.b16 %v4860, %v4859
        %v4916 = vpack.c.b16 %v4862, %v4861
        %v4917 = vpack.c.b16 %v4864, %v4863
        %v4918 = vpack.c.b16 %v4866, %v4865
        %v4919 = vpack.c.b16 %v4868, %v4867
        %v4920 = vpack.c.b16 %v4870, %v4869
        %v4921 = vpack.c.b16 %v4872, %v4871
        %v4922 = vpack.c.b16 %v4874, %v4873
        %v4923 = vpack.c.b16 %v4876, %v4875
        %v4924 = vpack.c.b16 %v4878, %v4877
        %v4925 = vpack.c.b16 %v4880, %v4879
        %v4926 = vpack.c.b16 %v4882, %v4881
        %v4927 = vpack.c.b16 %v4884, %v4883
        %v4928 = vpack.c.b16 %v4886, %v4885
        %v4929 = vpack.c.b16 %v4888, %v4887
        %v4930 = vpack.c.b16 %v4890, %v4889
        %v4931 = vpack.c.b16 %v4892, %v4891
        %v4932 = vpack.c.b16 %v4894, %v4893
        %v4933 = vpack.c.b16 %v4896, %v4895
        %v4934 = vpack.c.b16 %v4898, %v4897
        %v4935 = vpack.c.b16 %v4900, %v4899
        %v4936 = vpack.c.b16 %v4902, %v4901
        %v4937 = vpack.c.b16 %v4904, %v4903
        %v4938 = vpack.c.b16 %v4906, %v4905
        %4971 = vmatprep.subr.bf16.mxu0 0
        %4972 = vmatpush1.bf16.msra.mxu0 %v4907
        %4973 = vmatprep.subr.bf16.mxu0 0
        %4974 = vmatpush1.bf16.msra.mxu0 %v4908
        %4975 = vmatprep.subr.bf16.mxu0 0
        %4976 = vmatpush1.bf16.msra.mxu0 %v4909
        %4977 = vmatprep.subr.bf16.mxu0 0
        %4978 = vmatpush1.bf16.msra.mxu0 %v4910
        %4979 = vmatprep.subr.bf16.mxu0 0
        %4980 = vmatpush1.bf16.msra.mxu0 %v4911
        %4981 = vmatprep.subr.bf16.mxu0 0
        %4982 = vmatpush1.bf16.msra.mxu0 %v4912
        %4983 = vmatprep.subr.bf16.mxu0 0
        %4984 = vmatpush1.bf16.msra.mxu0 %v4913
        %4985 = vmatprep.subr.bf16.mxu0 0
        %4986 = vmatpush1.bf16.msra.mxu0 %v4914
        %4987 = vmatprep.subr.bf16.mxu0 0
        %4988 = vmatpush1.bf16.msra.mxu0 %v4915
        %4989 = vmatprep.subr.bf16.mxu0 0
        %4990 = vmatpush1.bf16.msra.mxu0 %v4916
        %4991 = vmatprep.subr.bf16.mxu0 0
        %4992 = vmatpush1.bf16.msra.mxu0 %v4917
        %4993 = vmatprep.subr.bf16.mxu0 0
        %4994 = vmatpush1.bf16.msra.mxu0 %v4918
        %4995 = vmatprep.subr.bf16.mxu0 0
        %4996 = vmatpush1.bf16.msra.mxu0 %v4919
        %4997 = vmatprep.subr.bf16.mxu0 0
        %4998 = vmatpush1.bf16.msra.mxu0 %v4920
        %4999 = vmatprep.subr.bf16.mxu0 0
        %5000 = vmatpush1.bf16.msra.mxu0 %v4921
        %5001 = vmatprep.subr.bf16.mxu0 0
        %5002 = vmatpush1.bf16.msra.mxu0 %v4922
        %5003 = vmatprep.mubr.bf16.mxu0 %v4770
        %5004 = vmatmul.mubr.bf16.gmra.mrb[0].mxu0 %v4769
        %v5005 = vpop.f32.mrb[0].mxu0
        %v5006 = vadd.f32 %v4777, %v5005
        %v5007 = vpop.f32.mrb[0].mxu0
        %v5008 = vpop.f32.mrb[0].mxu0
        %v5009 = vpop.f32.mrb[0].mxu0
        %5010 = vdwg.mxu0
        %5011 = vmatprep.subr.bf16.mxu0 0
        %5012 = vmatpush1.bf16.msra.mxu0 %v4923
        %5013 = vmatprep.subr.bf16.mxu0 0
        %5014 = vmatpush1.bf16.msra.mxu0 %v4924
        %5015 = vmatprep.subr.bf16.mxu0 0
        %5016 = vmatpush1.bf16.msra.mxu0 %v4925
        %5017 = vmatprep.subr.bf16.mxu0 0
        %5018 = vmatpush1.bf16.msra.mxu0 %v4926
        %5019 = vmatprep.subr.bf16.mxu0 0
        %5020 = vmatpush1.bf16.msra.mxu0 %v4927
        %5021 = vmatprep.subr.bf16.mxu0 0
        %5022 = vmatpush1.bf16.msra.mxu0 %v4928
        %5023 = vmatprep.subr.bf16.mxu0 0
        %5024 = vmatpush1.bf16.msra.mxu0 %v4929
        %5025 = vmatprep.subr.bf16.mxu0 0
        %5026 = vmatpush1.bf16.msra.mxu0 %v4930
        %5027 = vmatprep.subr.bf16.mxu0 0
        %5028 = vmatpush1.bf16.msra.mxu0 %v4931
        %5029 = vmatprep.subr.bf16.mxu0 0
        %5030 = vmatpush1.bf16.msra.mxu0 %v4932
        %5031 = vmatprep.subr.bf16.mxu0 0
        %5032 = vmatpush1.bf16.msra.mxu0 %v4933
        %5033 = vmatprep.subr.bf16.mxu0 0
        %5034 = vmatpush1.bf16.msra.mxu0 %v4934
        %5035 = vmatprep.subr.bf16.mxu0 0
        %5036 = vmatpush1.bf16.msra.mxu0 %v4935
        %5037 = vmatprep.subr.bf16.mxu0 0
        %5038 = vmatpush1.bf16.msra.mxu0 %v4936
        %5039 = vmatprep.subr.bf16.mxu0 0
        %5040 = vmatpush1.bf16.msra.mxu0 %v4937
        %5041 = vmatprep.subr.bf16.mxu0 0
        %5042 = vmatpush1.bf16.msra.mxu0 %v4938
        %5043 = vmatprep.mubr.bf16.mxu0 %v4772
        %5044 = vmatmul.mubr.bf16.gmra.mrb[0].mxu0 %v4771
        %v5045 = vpop.f32.mrb[0].mxu0
        %v5046 = vadd.f32 %v5006, %v5045
        %v5047 = vpop.f32.mrb[0].mxu0
        %v5048 = vpop.f32.mrb[0].mxu0
        %v5049 = vpop.f32.mrb[0].mxu0
        %5050 = vdwg.mxu0
        %v5051 = vadd.f32 %v4402, %v5046
        %v5052 = vld [vmem:[%s13] sm:$0x1]
        %v5053 = vld [vmem:[%s14] sm:$0x1]
        %5054 = vadd.xlane.f32.xlu0 %v5051
        %v5055 = vpop.xlane.xlu0 %5054
        %v5056 = vmul.f32 %v5055, %v2431
        %v5057 = vsub.f32 %v5051, %v5056
        %v5058 = vmul.f32 %v5057, %v5057
        %5059 = vadd.xlane.f32.xlu0 %v5058
        %v5060 = vpop.xlane.xlu0 %5059
        %v5061 = vmul.f32 %v5060, %v2431
        %v5062 = vadd.f32 %v5061, 1e-05
        %v5063 = vrsqrt.pop %v5062
        %v5064 = vmul.f32 %v5057, %v5063
        %v5066 = vlaneseq
        %v5067 = vshrl.u32 %v5066, 7
        %v5068 = vsub.s32 0, %v5067
        %v5069 = vrot.slane %v5052, %v5068
        %v5071 = vmul.f32 %v5064, %v5069
        %v5073 = vlaneseq
        %v5074 = vshrl.u32 %v5073, 7
        %v5075 = vsub.s32 0, %v5074
        %v5076 = vrot.slane %v5053, %v5075
        %v5078 = vadd.f32 %v5071, %v5076
        %5079 = vst [vmem:[%s485] sm:$0xff] %v5078
        %s5080 = sand.u32 %s357, 1
        %s5081 = scalar_lea.sflag [#allocation3], %s5080
        %s5082 = sand.u32 %s357, 1
        %s5083 = smul.addr %s5082, 8
        %s5084 = scalar_lea.vmem [#allocation2], %s5083
        // Predicated region
        $region81: #{transformer_forward.3} parent=79 // pred_check
          %p5085 = pneg %p367
        $region82: #{transformer_forward.3} parent=79 // pred_check_branch
          %5087 = sbr.rel (%p5085) target = $region84
        $region83: #{transformer_forward.3} parent=79 // pred_region
          %s5089 = ssub.s32 128, 128
          %5090 = vsyncadd %s5081, %s5089
          %s5091 = smul.addr %s29, 128
          %s5092 = scalar_lea.hbm %s15, %s5091
          %s5094 = sshll.u32 %s5084, 4
          %s5095 = int_to_ptr.vmem [resolvable:$true] %s5094
          %5097 = dma.vmem_to_hbm [thread:$0]  %s5095, 128, %s5092, %s5081
        $region84: #{transformer_forward.3} parent=79 // pred_fallthru
          _
      $region80: #{transformer_forward.3} parent=5 // pred_fallthru
        _
      %p5098 = scmp.le.s32.totalorder 2, %s24
      // Predicated region
      $region85: #{transformer_forward.3} parent=5 // pred_check
        %p5099 = pneg %p5098
      $region86: #{transformer_forward.3} parent=5 // pred_check_branch
        %5101 = sbr.rel (%p5099) target = $region88
      $region87: #{transformer_forward.3} parent=5 // pred_region
        %s5102 = ssub.s32 %s24, 2
        // Predicated region
        $region89: #{transformer_forward.3} parent=87 // pred_check
          %p5103 = pneg %p373
        $region90: #{transformer_forward.3} parent=87 // pred_check_branch
          %5105 = sbr.rel (%p5103) target = $region92
        $region91: #{transformer_forward.3} parent=87 // pred_region
          %s5106 = sand.u32 %s358, 1
          %s5107 = scalar_lea.sflag [#allocation3], %s5106
          %s5108 = sand.u32 %s358, 1
          %s5109 = smul.addr %s5108, 8
          %s5110 = scalar_lea.vmem [#allocation2], %s5109
          %5111 = dma.done %s5107, 128
        $region92: #{transformer_forward.3} parent=87 // pred_fallthru
          _
      $region88: #{transformer_forward.3} parent=5 // pred_fallthru
        _
    $region6: #{transformer_forward.3} parent=1 // loop_footer
      %s28 = sadd.s32 1, %s24
    $region7: #{transformer_forward.3} parent=1 // loop_footer_branch
      %23 = sbr.rel target = $region3
    $region8: #{transformer_forward.3} parent=1 // loop_exit
      _
    %5112 = vsyncpa [#allocation3], 1
    %s5113 = scalar_lea.sflag [#allocation3], 1
    %5114 = vsyncpa %s5113, 1

// kernel: transformer_forward.2
$region0: #{transformer_forward.2}
  #allocation0 [shape = 'u32[]', space=smem, size = 0x4, offset = 0x4, fixed_abs, tag = 'smem constant byte address 0x4 - core index']
  #allocation1 [shape = 'u32[144,128]{1,0:T(1,128)}', space=vmem, size = 0x12000, scoped, tag = 'internal scratch']
  %s0 = inlined_call_operand.vmem [shape: f32[2,8,128], index: 0, kind: input, shape index: {}]
  %s1 = inlined_call_operand.vmem [shape: bf16[12,128,32], index: 1, kind: input, shape index: {}]
  %s2 = inlined_call_operand.vmem [shape: bf16[4,32,128], index: 2, kind: input, shape index: {}]
  %s3 = inlined_call_operand.vmem [shape: f32[1,128], index: 3, kind: input, shape index: {}]
  %s4 = inlined_call_operand.vmem [shape: f32[1,128], index: 4, kind: input, shape index: {}]
  %s5 = inlined_call_operand.vmem [shape: bf16[12,128,32], index: 5, kind: input, shape index: {}]
  %s6 = inlined_call_operand.vmem [shape: bf16[4,32,128], index: 6, kind: input, shape index: {}]
  %s7 = inlined_call_operand.vmem [shape: f32[1,128], index: 7, kind: input, shape index: {}]
  %s8 = inlined_call_operand.vmem [shape: f32[1,128], index: 8, kind: input, shape index: {}]
  %s9 = inlined_call_operand.vmem [shape: bf16[128,512], index: 9, kind: input, shape index: {}]
  %s10 = inlined_call_operand.vmem [shape: f32[1,512], index: 10, kind: input, shape index: {}]
  %s11 = inlined_call_operand.vmem [shape: bf16[512,128], index: 11, kind: input, shape index: {}]
  %s12 = inlined_call_operand.vmem [shape: f32[1,128], index: 12, kind: input, shape index: {}]
  %s13 = inlined_call_operand.vmem [shape: f32[1,128], index: 13, kind: input, shape index: {}]
  %s14 = inlined_call_operand.vmem [shape: f32[1,128], index: 14, kind: input, shape index: {}]
  %s15 = inlined_call_operand.vmem [shape: f32[2,8,128], index: 15, kind: output, shape index: {}]
  %s16 = sld [smem:[#allocation0]]
  $region93: #{transformer_forward.2} parent=0
    _
  %s18 = ssub.s32 1, %s16
  %s19 = scalar_select 0, %s18, %s16
  loop: start=0, step=1, limit=4
  $region2: #{transformer_forward.2} parent=0 // loop_pre_header
    _
  $region3: #{transformer_forward.2} parent=0 // loop_header
    %s21 = sphi 0, %s25
    %p22 = scmp.ge.s32.totalorder %s21, 4
    %s31 = sphi 0, %s33
    %s34 = sphi 0, %s31
    %s35 = sphi 0, %s34
    %s51 = sphi 0, %s35
    %s55 = sphi 0, %s55
    %s57 = sphi 0, %s55
    %s58 = sphi 0, %s57
    %s72 = sphi 0, %s58
    %s76 = sphi 0, %s76
    %s78 = sphi 0, %s76
    %s79 = sphi 0, %s78
    %s93 = sphi 0, %s79
    %s97 = sphi 0, %s97
    %s99 = sphi 0, %s97
    %s100 = sphi 0, %s99
    %s114 = sphi 0, %s100
    %s118 = sphi 0, %s118
    %s120 = sphi 0, %s118
    %s121 = sphi 0, %s120
    %s135 = sphi 0, %s121
    %s139 = sphi 0, %s139
    %s141 = sphi 0, %s139
    %s142 = sphi 0, %s141
    %s156 = sphi 0, %s142
    %s160 = sphi 0, %s160
    %s162 = sphi 0, %s160
    %s163 = sphi 0, %s162
    %s177 = sphi 0, %s163
    %s181 = sphi 0, %s181
    %s183 = sphi 0, %s181
    %s184 = sphi 0, %s183
    %s198 = sphi 0, %s184
    %s202 = sphi 0, %s202
    %s204 = sphi 0, %s202
    %s205 = sphi 0, %s204
    %s219 = sphi 0, %s205
    %s223 = sphi 0, %s223
    %s225 = sphi 0, %s223
    %s226 = sphi 0, %s225
    %s240 = sphi 0, %s226
    %s244 = sphi 0, %s244
    %s246 = sphi 0, %s244
    %s247 = sphi 0, %s246
    %s261 = sphi 0, %s247
    %s265 = sphi 0, %s265
    %s267 = sphi 0, %s265
    %s268 = sphi 0, %s267
    %s282 = sphi 0, %s268
    %s286 = sphi 0, %s286
    %s288 = sphi 0, %s286
    %s289 = sphi 0, %s288
    %s303 = sphi 0, %s289
    %s307 = sphi 0, %s307
    %s309 = sphi 0, %s307
    %s310 = sphi 0, %s309
    %s324 = sphi 0, %s310
    %s328 = sphi 0, %s328
    %s330 = sphi 0, %s328
    %s331 = sphi 0, %s330
    %s345 = sphi 0, %s331
    %s351 = sphi 0, %s353
    %s354 = sphi 0, %s351
    %s355 = sphi 0, %s354
    %s371 = sphi 0, %s355
  $region4: #{transformer_forward.2} parent=0 // loop_header_branch
    %24 = sbr.rel (%p22) target = $region8
  $region5: #{transformer_forward.2} parent=0 // loop_body
    %s26 = ssub.s32 %s21, 1
    %s27 = ssub.s32 %s21, 2
    %s28 = sadd.s32 %s21, 1
    %s29 = ssub.s32 %s21, %s28
    %p30 = scmp.eq.s32.totalorder %s29, 0
    %s32 = sadd.s32 %s31, 1
    %s33 = scalar_select %p30, %s31, %s32
    %p36 = pneg %p30
    %p37 = scmp.eq.s32.totalorder %s21, 1
    %p38 = por %p36, %p37
    %p39 = scmp.ne.s32.totalorder %s31, %s34
    %p40 = scmp.eq.s32.totalorder %s21, 0
    %p41 = por %p39, %p40
    %p42 = scmp.ne.s32.totalorder %s31, %s34
    %p43 = scmp.eq.s32.totalorder %s26, 1
    %p44 = por %p42, %p43
    %p45 = scmp.ne.s32.totalorder %s34, %s35
    %p46 = scmp.eq.s32.totalorder %s26, 0
    %p47 = por %p45, %p46
    %p48 = scmp.ne.s32.totalorder %s34, %s35
    %p49 = scmp.eq.s32.totalorder %s27, 1
    %p50 = por %p48, %p49
    %p52 = scmp.ne.s32.totalorder %s35, %s51
    %p53 = scmp.eq.s32.totalorder %s27, 0
    %p54 = por %p52, %p53
    %s56 = sadd.s32 %s55, 1
    %p59 = scmp.eq.s32.totalorder %s21, 1
    %p60 = scmp.ne.s32.totalorder %s55, %s57
    %p61 = scmp.eq.s32.totalorder %s21, 0
    %p62 = por %p60, %p61
    %p63 = scmp.ne.s32.totalorder %s55, %s57
    %p64 = scmp.eq.s32.totalorder %s26, 1
    %p65 = por %p63, %p64
    %p66 = scmp.ne.s32.totalorder %s57, %s58
    %p67 = scmp.eq.s32.totalorder %s26, 0
    %p68 = por %p66, %p67
    %p69 = scmp.ne.s32.totalorder %s57, %s58
    %p70 = scmp.eq.s32.totalorder %s27, 1
    %p71 = por %p69, %p70
    %p73 = scmp.ne.s32.totalorder %s58, %s72
    %p74 = scmp.eq.s32.totalorder %s27, 0
    %p75 = por %p73, %p74
    %s77 = sadd.s32 %s76, 1
    %p80 = scmp.eq.s32.totalorder %s21, 1
    %p81 = scmp.ne.s32.totalorder %s76, %s78
    %p82 = scmp.eq.s32.totalorder %s21, 0
    %p83 = por %p81, %p82
    %p84 = scmp.ne.s32.totalorder %s76, %s78
    %p85 = scmp.eq.s32.totalorder %s26, 1
    %p86 = por %p84, %p85
    %p87 = scmp.ne.s32.totalorder %s78, %s79
    %p88 = scmp.eq.s32.totalorder %s26, 0
    %p89 = por %p87, %p88
    %p90 = scmp.ne.s32.totalorder %s78, %s79
    %p91 = scmp.eq.s32.totalorder %s27, 1
    %p92 = por %p90, %p91
    %p94 = scmp.ne.s32.totalorder %s79, %s93
    %p95 = scmp.eq.s32.totalorder %s27, 0
    %p96 = por %p94, %p95
    %s98 = sadd.s32 %s97, 1
    %p101 = scmp.eq.s32.totalorder %s21, 1
    %p102 = scmp.ne.s32.totalorder %s97, %s99
    %p103 = scmp.eq.s32.totalorder %s21, 0
    %p104 = por %p102, %p103
    %p105 = scmp.ne.s32.totalorder %s97, %s99
    %p106 = scmp.eq.s32.totalorder %s26, 1
    %p107 = por %p105, %p106
    %p108 = scmp.ne.s32.totalorder %s99, %s100
    %p109 = scmp.eq.s32.totalorder %s26, 0
    %p110 = por %p108, %p109
    %p111 = scmp.ne.s32.totalorder %s99, %s100
    %p112 = scmp.eq.s32.totalorder %s27, 1
    %p113 = por %p111, %p112
    %p115 = scmp.ne.s32.totalorder %s100, %s114
    %p116 = scmp.eq.s32.totalorder %s27, 0
    %p117 = por %p115, %p116
    %s119 = sadd.s32 %s118, 1
    %p122 = scmp.eq.s32.totalorder %s21, 1
    %p123 = scmp.ne.s32.totalorder %s118, %s120
    %p124 = scmp.eq.s32.totalorder %s21, 0
    %p125 = por %p123, %p124
    %p126 = scmp.ne.s32.totalorder %s118, %s120
    %p127 = scmp.eq.s32.totalorder %s26, 1
    %p128 = por %p126, %p127
    %p129 = scmp.ne.s32.totalorder %s120, %s121
    %p130 = scmp.eq.s32.totalorder %s26, 0
    %p131 = por %p129, %p130
    %p132 = scmp.ne.s32.totalorder %s120, %s121
    %p133 = scmp.eq.s32.totalorder %s27, 1
    %p134 = por %p132, %p133
    %p136 = scmp.ne.s32.totalorder %s121, %s135
    %p137 = scmp.eq.s32.totalorder %s27, 0
    %p138 = por %p136, %p137
    %s140 = sadd.s32 %s139, 1
    %p143 = scmp.eq.s32.totalorder %s21, 1
    %p144 = scmp.ne.s32.totalorder %s139, %s141
    %p145 = scmp.eq.s32.totalorder %s21, 0
    %p146 = por %p144, %p145
    %p147 = scmp.ne.s32.totalorder %s139, %s141
    %p148 = scmp.eq.s32.totalorder %s26, 1
    %p149 = por %p147, %p148
    %p150 = scmp.ne.s32.totalorder %s141, %s142
    %p151 = scmp.eq.s32.totalorder %s26, 0
    %p152 = por %p150, %p151
    %p153 = scmp.ne.s32.totalorder %s141, %s142
    %p154 = scmp.eq.s32.totalorder %s27, 1
    %p155 = por %p153, %p154
    %p157 = scmp.ne.s32.totalorder %s142, %s156
    %p158 = scmp.eq.s32.totalorder %s27, 0
    %p159 = por %p157, %p158
    %s161 = sadd.s32 %s160, 1
    %p164 = scmp.eq.s32.totalorder %s21, 1
    %p165 = scmp.ne.s32.totalorder %s160, %s162
    %p166 = scmp.eq.s32.totalorder %s21, 0
    %p167 = por %p165, %p166
    %p168 = scmp.ne.s32.totalorder %s160, %s162
    %p169 = scmp.eq.s32.totalorder %s26, 1
    %p170 = por %p168, %p169
    %p171 = scmp.ne.s32.totalorder %s162, %s163
    %p172 = scmp.eq.s32.totalorder %s26, 0
    %p173 = por %p171, %p172
    %p174 = scmp.ne.s32.totalorder %s162, %s163
    %p175 = scmp.eq.s32.totalorder %s27, 1
    %p176 = por %p174, %p175
    %p178 = scmp.ne.s32.totalorder %s163, %s177
    %p179 = scmp.eq.s32.totalorder %s27, 0
    %p180 = por %p178, %p179
    %s182 = sadd.s32 %s181, 1
    %p185 = scmp.eq.s32.totalorder %s21, 1
    %p186 = scmp.ne.s32.totalorder %s181, %s183
    %p187 = scmp.eq.s32.totalorder %s21, 0
    %p188 = por %p186, %p187
    %p189 = scmp.ne.s32.totalorder %s181, %s183
    %p190 = scmp.eq.s32.totalorder %s26, 1
    %p191 = por %p189, %p190
    %p192 = scmp.ne.s32.totalorder %s183, %s184
    %p193 = scmp.eq.s32.totalorder %s26, 0
    %p194 = por %p192, %p193
    %p195 = scmp.ne.s32.totalorder %s183, %s184
    %p196 = scmp.eq.s32.totalorder %s27, 1
    %p197 = por %p195, %p196
    %p199 = scmp.ne.s32.totalorder %s184, %s198
    %p200 = scmp.eq.s32.totalorder %s27, 0
    %p201 = por %p199, %p200
    %s203 = sadd.s32 %s202, 1
    %p206 = scmp.eq.s32.totalorder %s21, 1
    %p207 = scmp.ne.s32.totalorder %s202, %s204
    %p208 = scmp.eq.s32.totalorder %s21, 0
    %p209 = por %p207, %p208
    %p210 = scmp.ne.s32.totalorder %s202, %s204
    %p211 = scmp.eq.s32.totalorder %s26, 1
    %p212 = por %p210, %p211
    %p213 = scmp.ne.s32.totalorder %s204, %s205
    %p214 = scmp.eq.s32.totalorder %s26, 0
    %p215 = por %p213, %p214
    %p216 = scmp.ne.s32.totalorder %s204, %s205
    %p217 = scmp.eq.s32.totalorder %s27, 1
    %p218 = por %p216, %p217
    %p220 = scmp.ne.s32.totalorder %s205, %s219
    %p221 = scmp.eq.s32.totalorder %s27, 0
    %p222 = por %p220, %p221
    %s224 = sadd.s32 %s223, 1
    %p227 = scmp.eq.s32.totalorder %s21, 1
    %p228 = scmp.ne.s32.totalorder %s223, %s225
    %p229 = scmp.eq.s32.totalorder %s21, 0
    %p230 = por %p228, %p229
    %p231 = scmp.ne.s32.totalorder %s223, %s225
    %p232 = scmp.eq.s32.totalorder %s26, 1
    %p233 = por %p231, %p232
    %p234 = scmp.ne.s32.totalorder %s225, %s226
    %p235 = scmp.eq.s32.totalorder %s26, 0
    %p236 = por %p234, %p235
    %p237 = scmp.ne.s32.totalorder %s225, %s226
    %p238 = scmp.eq.s32.totalorder %s27, 1
    %p239 = por %p237, %p238
    %p241 = scmp.ne.s32.totalorder %s226, %s240
    %p242 = scmp.eq.s32.totalorder %s27, 0
    %p243 = por %p241, %p242
    %s245 = sadd.s32 %s244, 1
    %p248 = scmp.eq.s32.totalorder %s21, 1
    %p249 = scmp.ne.s32.totalorder %s244, %s246
    %p250 = scmp.eq.s32.totalorder %s21, 0
    %p251 = por %p249, %p250
    %p252 = scmp.ne.s32.totalorder %s244, %s246
    %p253 = scmp.eq.s32.totalorder %s26, 1
    %p254 = por %p252, %p253
    %p255 = scmp.ne.s32.totalorder %s246, %s247
    %p256 = scmp.eq.s32.totalorder %s26, 0
    %p257 = por %p255, %p256
    %p258 = scmp.ne.s32.totalorder %s246, %s247
    %p259 = scmp.eq.s32.totalorder %s27, 1
    %p260 = por %p258, %p259
    %p262 = scmp.ne.s32.totalorder %s247, %s261
    %p263 = scmp.eq.s32.totalorder %s27, 0
    %p264 = por %p262, %p263
    %s266 = sadd.s32 %s265, 1
    %p269 = scmp.eq.s32.totalorder %s21, 1
    %p270 = scmp.ne.s32.totalorder %s265, %s267
    %p271 = scmp.eq.s32.totalorder %s21, 0
    %p272 = por %p270, %p271
    %p273 = scmp.ne.s32.totalorder %s265, %s267
    %p274 = scmp.eq.s32.totalorder %s26, 1
    %p275 = por %p273, %p274
    %p276 = scmp.ne.s32.totalorder %s267, %s268
    %p277 = scmp.eq.s32.totalorder %s26, 0
    %p278 = por %p276, %p277
    %p279 = scmp.ne.s32.totalorder %s267, %s268
    %p280 = scmp.eq.s32.totalorder %s27, 1
    %p281 = por %p279, %p280
    %p283 = scmp.ne.s32.totalorder %s268, %s282
    %p284 = scmp.eq.s32.totalorder %s27, 0
    %p285 = por %p283, %p284
    %s287 = sadd.s32 %s286, 1
    %p290 = scmp.eq.s32.totalorder %s21, 1
    %p291 = scmp.ne.s32.totalorder %s286, %s288
    %p292 = scmp.eq.s32.totalorder %s21, 0
    %p293 = por %p291, %p292
    %p294 = scmp.ne.s32.totalorder %s286, %s288
    %p295 = scmp.eq.s32.totalorder %s26, 1
    %p296 = por %p294, %p295
    %p297 = scmp.ne.s32.totalorder %s288, %s289
    %p298 = scmp.eq.s32.totalorder %s26, 0
    %p299 = por %p297, %p298
    %p300 = scmp.ne.s32.totalorder %s288, %s289
    %p301 = scmp.eq.s32.totalorder %s27, 1
    %p302 = por %p300, %p301
    %p304 = scmp.ne.s32.totalorder %s289, %s303
    %p305 = scmp.eq.s32.totalorder %s27, 0
    %p306 = por %p304, %p305
    %s308 = sadd.s32 %s307, 1
    %p311 = scmp.eq.s32.totalorder %s21, 1
    %p312 = scmp.ne.s32.totalorder %s307, %s309
    %p313 = scmp.eq.s32.totalorder %s21, 0
    %p314 = por %p312, %p313
    %p315 = scmp.ne.s32.totalorder %s307, %s309
    %p316 = scmp.eq.s32.totalorder %s26, 1
    %p317 = por %p315, %p316
    %p318 = scmp.ne.s32.totalorder %s309, %s310
    %p319 = scmp.eq.s32.totalorder %s26, 0
    %p320 = por %p318, %p319
    %p321 = scmp.ne.s32.totalorder %s309, %s310
    %p322 = scmp.eq.s32.totalorder %s27, 1
    %p323 = por %p321, %p322
    %p325 = scmp.ne.s32.totalorder %s310, %s324
    %p326 = scmp.eq.s32.totalorder %s27, 0
    %p327 = por %p325, %p326
    %s329 = sadd.s32 %s328, 1
    %p332 = scmp.eq.s32.totalorder %s21, 1
    %p333 = scmp.ne.s32.totalorder %s328, %s330
    %p334 = scmp.eq.s32.totalorder %s21, 0
    %p335 = por %p333, %p334
    %p336 = scmp.ne.s32.totalorder %s328, %s330
    %p337 = scmp.eq.s32.totalorder %s26, 1
    %p338 = por %p336, %p337
    %p339 = scmp.ne.s32.totalorder %s330, %s331
    %p340 = scmp.eq.s32.totalorder %s26, 0
    %p341 = por %p339, %p340
    %p342 = scmp.ne.s32.totalorder %s330, %s331
    %p343 = scmp.eq.s32.totalorder %s27, 1
    %p344 = por %p342, %p343
    %p346 = scmp.ne.s32.totalorder %s331, %s345
    %p347 = scmp.eq.s32.totalorder %s27, 0
    %p348 = por %p346, %p347
    %s349 = ssub.s32 %s21, %s28
    %p350 = scmp.eq.s32.totalorder %s349, 0
    %s352 = sadd.s32 %s351, 1
    %s353 = scalar_select %p350, %s351, %s352
    %p356 = pneg %p350
    %p357 = scmp.eq.s32.totalorder %s21, 1
    %p358 = por %p356, %p357
    %p359 = scmp.ne.s32.totalorder %s351, %s354
    %p360 = scmp.eq.s32.totalorder %s21, 0
    %p361 = por %p359, %p360
    %p362 = scmp.ne.s32.totalorder %s351, %s354
    %p363 = scmp.eq.s32.totalorder %s26, 1
    %p364 = por %p362, %p363
    %p365 = scmp.ne.s32.totalorder %s354, %s355
    %p366 = scmp.eq.s32.totalorder %s26, 0
    %p367 = por %p365, %p366
    %p368 = scmp.ne.s32.totalorder %s354, %s355
    %p369 = scmp.eq.s32.totalorder %s27, 1
    %p370 = por %p368, %p369
    %p372 = scmp.ne.s32.totalorder %s355, %s371
    %p373 = scmp.eq.s32.totalorder %s27, 0
    %p374 = por %p372, %p373
    %p375 = scmp.le.s32.totalorder 1, %s21
    %p376 = scmp.lt.s32.totalorder %s21, 3
    %p377 = pnand %p375, %p376
    %p378 = pneg %p377
    // Predicated region
    $region9: #{transformer_forward.2} parent=5 // pred_check
      _
    $region10: #{transformer_forward.2} parent=5 // pred_check_branch
      %380 = sbr.rel (%p377) target = $region12
    $region11: #{transformer_forward.2} parent=5 // pred_region
      %s381 = ssub.s32 %s21, 1
      // Predicated region
      $region13: #{transformer_forward.2} parent=11 // pred_check
        %p382 = pneg %p68
      $region14: #{transformer_forward.2} parent=11 // pred_check_branch
        %384 = sbr.rel (%p382) target = $region16
      $region15: #{transformer_forward.2} parent=11 // pred_region
        _
      $region16: #{transformer_forward.2} parent=11 // pred_fallthru
        _
      // Predicated region
      $region17: #{transformer_forward.2} parent=11 // pred_check
        %p385 = pneg %p89
      $region18: #{transformer_forward.2} parent=11 // pred_check_branch
        %387 = sbr.rel (%p385) target = $region20
      $region19: #{transformer_forward.2} parent=11 // pred_region
        _
      $region20: #{transformer_forward.2} parent=11 // pred_fallthru
        _
      // Predicated region
      $region21: #{transformer_forward.2} parent=11 // pred_check
        %p388 = pneg %p110
      $region22: #{transformer_forward.2} parent=11 // pred_check_branch
        %390 = sbr.rel (%p388) target = $region24
      $region23: #{transformer_forward.2} parent=11 // pred_region
        _
      $region24: #{transformer_forward.2} parent=11 // pred_fallthru
        _
      // Predicated region
      $region25: #{transformer_forward.2} parent=11 // pred_check
        %p391 = pneg %p131
      $region26: #{transformer_forward.2} parent=11 // pred_check_branch
        %393 = sbr.rel (%p391) target = $region28
      $region27: #{transformer_forward.2} parent=11 // pred_region
        _
      $region28: #{transformer_forward.2} parent=11 // pred_fallthru
        _
      // Predicated region
      $region29: #{transformer_forward.2} parent=11 // pred_check
        %p394 = pneg %p152
      $region30: #{transformer_forward.2} parent=11 // pred_check_branch
        %396 = sbr.rel (%p394) target = $region32
      $region31: #{transformer_forward.2} parent=11 // pred_region
        _
      $region32: #{transformer_forward.2} parent=11 // pred_fallthru
        _
      // Predicated region
      $region33: #{transformer_forward.2} parent=11 // pred_check
        %p397 = pneg %p173
      $region34: #{transformer_forward.2} parent=11 // pred_check_branch
        %399 = sbr.rel (%p397) target = $region36
      $region35: #{transformer_forward.2} parent=11 // pred_region
        _
      $region36: #{transformer_forward.2} parent=11 // pred_fallthru
        _
      // Predicated region
      $region37: #{transformer_forward.2} parent=11 // pred_check
        %p400 = pneg %p194
      $region38: #{transformer_forward.2} parent=11 // pred_check_branch
        %402 = sbr.rel (%p400) target = $region40
      $region39: #{transformer_forward.2} parent=11 // pred_region
        _
      $region40: #{transformer_forward.2} parent=11 // pred_fallthru
        _
      // Predicated region
      $region41: #{transformer_forward.2} parent=11 // pred_check
        %p403 = pneg %p215
      $region42: #{transformer_forward.2} parent=11 // pred_check_branch
        %405 = sbr.rel (%p403) target = $region44
      $region43: #{transformer_forward.2} parent=11 // pred_region
        _
      $region44: #{transformer_forward.2} parent=11 // pred_fallthru
        _
      // Predicated region
      $region45: #{transformer_forward.2} parent=11 // pred_check
        %p406 = pneg %p236
      $region46: #{transformer_forward.2} parent=11 // pred_check_branch
        %408 = sbr.rel (%p406) target = $region48
      $region47: #{transformer_forward.2} parent=11 // pred_region
        _
      $region48: #{transformer_forward.2} parent=11 // pred_fallthru
        _
      // Predicated region
      $region49: #{transformer_forward.2} parent=11 // pred_check
        %p409 = pneg %p257
      $region50: #{transformer_forward.2} parent=11 // pred_check_branch
        %411 = sbr.rel (%p409) target = $region52
      $region51: #{transformer_forward.2} parent=11 // pred_region
        _
      $region52: #{transformer_forward.2} parent=11 // pred_fallthru
        _
      // Predicated region
      $region53: #{transformer_forward.2} parent=11 // pred_check
        %p412 = pneg %p278
      $region54: #{transformer_forward.2} parent=11 // pred_check_branch
        %414 = sbr.rel (%p412) target = $region56
      $region55: #{transformer_forward.2} parent=11 // pred_region
        _
      $region56: #{transformer_forward.2} parent=11 // pred_fallthru
        _
      // Predicated region
      $region57: #{transformer_forward.2} parent=11 // pred_check
        %p415 = pneg %p299
      $region58: #{transformer_forward.2} parent=11 // pred_check_branch
        %417 = sbr.rel (%p415) target = $region60
      $region59: #{transformer_forward.2} parent=11 // pred_region
        _
      $region60: #{transformer_forward.2} parent=11 // pred_fallthru
        _
      // Predicated region
      $region61: #{transformer_forward.2} parent=11 // pred_check
        %p418 = pneg %p320
      $region62: #{transformer_forward.2} parent=11 // pred_check_branch
        %420 = sbr.rel (%p418) target = $region64
      $region63: #{transformer_forward.2} parent=11 // pred_region
        _
      $region64: #{transformer_forward.2} parent=11 // pred_fallthru
        _
      // Predicated region
      $region65: #{transformer_forward.2} parent=11 // pred_check
        %p421 = pneg %p341
      $region66: #{transformer_forward.2} parent=11 // pred_check_branch
        %423 = sbr.rel (%p421) target = $region68
      $region67: #{transformer_forward.2} parent=11 // pred_region
        _
      $region68: #{transformer_forward.2} parent=11 // pred_fallthru
        _
    $region12: #{transformer_forward.2} parent=5 // pred_fallthru
      _
    %p424 = scmp.lt.s32.totalorder %s21, 2
    // Predicated region
    $region69: #{transformer_forward.2} parent=5 // pred_check
      %p425 = pneg %p424
    $region70: #{transformer_forward.2} parent=5 // pred_check_branch
      %427 = sbr.rel (%p425) target = $region72
    $region71: #{transformer_forward.2} parent=5 // pred_region
      // Predicated region
      $region73: #{transformer_forward.2} parent=71 // pred_check
        %p428 = pneg %p41
      $region74: #{transformer_forward.2} parent=71 // pred_check_branch
        %430 = sbr.rel (%p428) target = $region76
      $region75: #{transformer_forward.2} parent=71 // pred_region
        %p431 = scmp.lt.s32.totalorder %s21, 1
        %s432 = scalar_select %p431, %s21, 1
        %s433 = smul.addr %s432, 8
        %s434 = scalar_lea.vmem %s0, %s433
      $region76: #{transformer_forward.2} parent=71 // pred_fallthru
        _
    $region72: #{transformer_forward.2} parent=5 // pred_fallthru
      _
    %p435 = scmp.le.s32.totalorder 1, %s21
    %p436 = scmp.lt.s32.totalorder %s21, 3
    %p437 = pnand %p435, %p436
    %p438 = pneg %p437
    // Predicated region
    $region77: #{transformer_forward.2} parent=5 // pred_check
      _
    $region78: #{transformer_forward.2} parent=5 // pred_check_branch
      %440 = sbr.rel (%p437) target = $region80
    $region79: #{transformer_forward.2} parent=5 // pred_region
      %s441 = ssub.s32 %s21, 1
      %p442 = scmp.lt.s32.totalorder %s26, 1
      %s443 = scalar_select %p442, %s26, 1
      %s444 = smul.addr %s443, 8
      %s445 = scalar_lea.vmem %s0, %s444
      %p446 = pneg %p47
      %p447 = pneg %p44
      %p448 = pneg %p68
      %p449 = pneg %p65
      %p450 = pneg %p89
      %p451 = pneg %p86
      %p452 = pneg %p110
      %p453 = pneg %p107
      %p454 = pneg %p131
      %p455 = pneg %p128
      %p456 = pneg %p152
      %p457 = pneg %p149
      %p458 = pneg %p173
      %p459 = pneg %p170
      %p460 = pneg %p194
      %p461 = pneg %p191
      %p462 = pneg %p215
      %p463 = pneg %p212
      %p464 = pneg %p236
      %p465 = pneg %p233
      %p466 = pneg %p257
      %p467 = pneg %p254
      %p468 = pneg %p278
      %p469 = pneg %p275
      %p470 = pneg %p299
      %p471 = pneg %p296
      %p472 = pneg %p320
      %p473 = pneg %p317
      %p474 = pneg %p341
      %p475 = pneg %p338
      %p476 = pneg %p367
      %p477 = pneg %p364
      %p478 = scmp.lt.s32.totalorder %s26, 1
      %s479 = scalar_select %p478, %s26, 1
      %s480 = smul.addr %s479, 8
      %s481 = scalar_lea.vmem %s15, %s480
      %p482 = scmp.lt.s32.totalorder %s26, 1
      %s483 = scalar_select %p482, %s26, 1
      %s484 = smul.addr %s483, 8
      %s485 = scalar_lea.vmem %s0, %s484
      %p486 = scmp.lt.s32.totalorder %s26, 1
      %s487 = scalar_select %p486, %s26, 1
      %s488 = smul.addr %s487, 8
      %s489 = scalar_lea.vmem %s15, %s488
      %v491 = vld [vmem:[%s485] sm:$0xff]
      %v492 = vld [vmem:[%s1] sm:$0xf]
      %v493 = vld [vmem:[%s1 + $0x4] sm:$0xf]
      %v494 = vld [vmem:[%s1 + $0x8] sm:$0xf]
      %v495 = vld [vmem:[%s1 + $0xc] sm:$0xf]
      %v496 = vld [vmem:[%s1 + $0x10] sm:$0xf]
      %v497 = vld [vmem:[%s1 + $0x14] sm:$0xf]
      %v498 = vld [vmem:[%s1 + $0x18] sm:$0xf]
      %v499 = vld [vmem:[%s1 + $0x1c] sm:$0xf]
      %v500 = vld [vmem:[%s1 + $0x20] sm:$0xf]
      %v501 = vld [vmem:[%s1 + $0x24] sm:$0xf]
      %v502 = vld [vmem:[%s1 + $0x28] sm:$0xf]
      %v503 = vld [vmem:[%s1 + $0x2c] sm:$0xf]
      %v504 = vld [vmem:[%s1 + $0x30] sm:$0xf]
      %v505 = vld [vmem:[%s1 + $0x34] sm:$0xf]
      %v506 = vld [vmem:[%s1 + $0x38] sm:$0xf]
      %v507 = vld [vmem:[%s1 + $0x3c] sm:$0xf]
      %v508 = vld [vmem:[%s1 + $0x40] sm:$0xf]
      %v509 = vld [vmem:[%s1 + $0x44] sm:$0xf]
      %v510 = vld [vmem:[%s1 + $0x48] sm:$0xf]
      %v511 = vld [vmem:[%s1 + $0x4c] sm:$0xf]
      %v512 = vld [vmem:[%s1 + $0x50] sm:$0xf]
      %v513 = vld [vmem:[%s1 + $0x54] sm:$0xf]
      %v514 = vld [vmem:[%s1 + $0x58] sm:$0xf]
      %v515 = vld [vmem:[%s1 + $0x5c] sm:$0xf]
      %v516 = vld [vmem:[%s1 + $0x60] sm:$0xf]
      %v517 = vld [vmem:[%s1 + $0x64] sm:$0xf]
      %v518 = vld [vmem:[%s1 + $0x68] sm:$0xf]
      %v519 = vld [vmem:[%s1 + $0x6c] sm:$0xf]
      %v520 = vld [vmem:[%s1 + $0x70] sm:$0xf]
      %v521 = vld [vmem:[%s1 + $0x74] sm:$0xf]
      %v522 = vld [vmem:[%s1 + $0x78] sm:$0xf]
      %v523 = vld [vmem:[%s1 + $0x7c] sm:$0xf]
      %v524 = vld [vmem:[%s1 + $0x80] sm:$0xf]
      %v525 = vld [vmem:[%s1 + $0x84] sm:$0xf]
      %v526 = vld [vmem:[%s1 + $0x88] sm:$0xf]
      %v527 = vld [vmem:[%s1 + $0x8c] sm:$0xf]
      %v528 = vld [vmem:[%s1 + $0x90] sm:$0xf]
      %v529 = vld [vmem:[%s1 + $0x94] sm:$0xf]
      %v530 = vld [vmem:[%s1 + $0x98] sm:$0xf]
      %v531 = vld [vmem:[%s1 + $0x9c] sm:$0xf]
      %v532 = vld [vmem:[%s1 + $0xa0] sm:$0xf]
      %v533 = vld [vmem:[%s1 + $0xa4] sm:$0xf]
      %v534 = vld [vmem:[%s1 + $0xa8] sm:$0xf]
      %v535 = vld [vmem:[%s1 + $0xac] sm:$0xf]
      %v536 = vld [vmem:[%s1 + $0xb0] sm:$0xf]
      %v537 = vld [vmem:[%s1 + $0xb4] sm:$0xf]
      %v538 = vld [vmem:[%s1 + $0xb8] sm:$0xf]
      %v539 = vld [vmem:[%s1 + $0xbc] sm:$0xf]
      %v540 = vld [vmem:[%s1 + $0xc0] sm:$0xf]
      %v541 = vld [vmem:[%s1 + $0xc4] sm:$0xf]
      %v542 = vld [vmem:[%s1 + $0xc8] sm:$0xf]
      %v543 = vld [vmem:[%s1 + $0xcc] sm:$0xf]
      %v544 = vld [vmem:[%s1 + $0xd0] sm:$0xf]
      %v545 = vld [vmem:[%s1 + $0xd4] sm:$0xf]
      %v546 = vld [vmem:[%s1 + $0xd8] sm:$0xf]
      %v547 = vld [vmem:[%s1 + $0xdc] sm:$0xf]
      %v548 = vld [vmem:[%s1 + $0xe0] sm:$0xf]
      %v549 = vld [vmem:[%s1 + $0xe4] sm:$0xf]
      %v550 = vld [vmem:[%s1 + $0xe8] sm:$0xf]
      %v551 = vld [vmem:[%s1 + $0xec] sm:$0xf]
      %v552 = vld [vmem:[%s1 + $0xf0] sm:$0xf]
      %v553 = vld [vmem:[%s1 + $0xf4] sm:$0xf]
      %v554 = vld [vmem:[%s1 + $0xf8] sm:$0xf]
      %v555 = vld [vmem:[%s1 + $0xfc] sm:$0xf]
      %v556 = vld [vmem:[%s1 + $0x100] sm:$0xf]
      %v557 = vld [vmem:[%s1 + $0x104] sm:$0xf]
      %v558 = vld [vmem:[%s1 + $0x108] sm:$0xf]
      %v559 = vld [vmem:[%s1 + $0x10c] sm:$0xf]
      %v560 = vld [vmem:[%s1 + $0x110] sm:$0xf]
      %v561 = vld [vmem:[%s1 + $0x114] sm:$0xf]
      %v562 = vld [vmem:[%s1 + $0x118] sm:$0xf]
      %v563 = vld [vmem:[%s1 + $0x11c] sm:$0xf]
      %v564 = vld [vmem:[%s1 + $0x120] sm:$0xf]
      %v565 = vld [vmem:[%s1 + $0x124] sm:$0xf]
      %v566 = vld [vmem:[%s1 + $0x128] sm:$0xf]
      %v567 = vld [vmem:[%s1 + $0x12c] sm:$0xf]
      %v568 = vld [vmem:[%s1 + $0x130] sm:$0xf]
      %v569 = vld [vmem:[%s1 + $0x134] sm:$0xf]
      %v570 = vld [vmem:[%s1 + $0x138] sm:$0xf]
      %v571 = vld [vmem:[%s1 + $0x13c] sm:$0xf]
      %v572 = vld [vmem:[%s1 + $0x140] sm:$0xf]
      %v573 = vld [vmem:[%s1 + $0x144] sm:$0xf]
      %v574 = vld [vmem:[%s1 + $0x148] sm:$0xf]
      %v575 = vld [vmem:[%s1 + $0x14c] sm:$0xf]
      %v576 = vld [vmem:[%s1 + $0x150] sm:$0xf]
      %v577 = vld [vmem:[%s1 + $0x154] sm:$0xf]
      %v578 = vld [vmem:[%s1 + $0x158] sm:$0xf]
      %v579 = vld [vmem:[%s1 + $0x15c] sm:$0xf]
      %v580 = vld [vmem:[%s1 + $0x160] sm:$0xf]
      %v581 = vld [vmem:[%s1 + $0x164] sm:$0xf]
      %v582 = vld [vmem:[%s1 + $0x168] sm:$0xf]
      %v583 = vld [vmem:[%s1 + $0x16c] sm:$0xf]
      %v584 = vld [vmem:[%s1 + $0x170] sm:$0xf]
      %v585 = vld [vmem:[%s1 + $0x174] sm:$0xf]
      %v586 = vld [vmem:[%s1 + $0x178] sm:$0xf]
      %v587 = vld [vmem:[%s1 + $0x17c] sm:$0xf]
      %v588 = vld [vmem:[%s1 + $0x180] sm:$0xf]
      %v589 = vld [vmem:[%s1 + $0x184] sm:$0xf]
      %v590 = vld [vmem:[%s1 + $0x188] sm:$0xf]
      %v591 = vld [vmem:[%s1 + $0x18c] sm:$0xf]
      %v592 = vld [vmem:[%s1 + $0x190] sm:$0xf]
      %v593 = vld [vmem:[%s1 + $0x194] sm:$0xf]
      %v594 = vld [vmem:[%s1 + $0x198] sm:$0xf]
      %v595 = vld [vmem:[%s1 + $0x19c] sm:$0xf]
      %v596 = vld [vmem:[%s1 + $0x1a0] sm:$0xf]
      %v597 = vld [vmem:[%s1 + $0x1a4] sm:$0xf]
      %v598 = vld [vmem:[%s1 + $0x1a8] sm:$0xf]
      %v599 = vld [vmem:[%s1 + $0x1ac] sm:$0xf]
      %v600 = vld [vmem:[%s1 + $0x1b0] sm:$0xf]
      %v601 = vld [vmem:[%s1 + $0x1b4] sm:$0xf]
      %v602 = vld [vmem:[%s1 + $0x1b8] sm:$0xf]
      %v603 = vld [vmem:[%s1 + $0x1bc] sm:$0xf]
      %v604 = vld [vmem:[%s1 + $0x1c0] sm:$0xf]
      %v605 = vld [vmem:[%s1 + $0x1c4] sm:$0xf]
      %v606 = vld [vmem:[%s1 + $0x1c8] sm:$0xf]
      %v607 = vld [vmem:[%s1 + $0x1cc] sm:$0xf]
      %v608 = vld [vmem:[%s1 + $0x1d0] sm:$0xf]
      %v609 = vld [vmem:[%s1 + $0x1d4] sm:$0xf]
      %v610 = vld [vmem:[%s1 + $0x1d8] sm:$0xf]
      %v611 = vld [vmem:[%s1 + $0x1dc] sm:$0xf]
      %v612 = vld [vmem:[%s1 + $0x1e0] sm:$0xf]
      %v613 = vld [vmem:[%s1 + $0x1e4] sm:$0xf]
      %v614 = vld [vmem:[%s1 + $0x1e8] sm:$0xf]
      %v615 = vld [vmem:[%s1 + $0x1ec] sm:$0xf]
      %v616 = vld [vmem:[%s1 + $0x1f0] sm:$0xf]
      %v617 = vld [vmem:[%s1 + $0x1f4] sm:$0xf]
      %v618 = vld [vmem:[%s1 + $0x1f8] sm:$0xf]
      %v619 = vld [vmem:[%s1 + $0x1fc] sm:$0xf]
      %v620 = vld [vmem:[%s1 + $0x200] sm:$0xf]
      %v621 = vld [vmem:[%s1 + $0x204] sm:$0xf]
      %v622 = vld [vmem:[%s1 + $0x208] sm:$0xf]
      %v623 = vld [vmem:[%s1 + $0x20c] sm:$0xf]
      %v624 = vld [vmem:[%s1 + $0x210] sm:$0xf]
      %v625 = vld [vmem:[%s1 + $0x214] sm:$0xf]
      %v626 = vld [vmem:[%s1 + $0x218] sm:$0xf]
      %v627 = vld [vmem:[%s1 + $0x21c] sm:$0xf]
      %v628 = vld [vmem:[%s1 + $0x220] sm:$0xf]
      %v629 = vld [vmem:[%s1 + $0x224] sm:$0xf]
      %v630 = vld [vmem:[%s1 + $0x228] sm:$0xf]
      %v631 = vld [vmem:[%s1 + $0x22c] sm:$0xf]
      %v632 = vld [vmem:[%s1 + $0x230] sm:$0xf]
      %v633 = vld [vmem:[%s1 + $0x234] sm:$0xf]
      %v634 = vld [vmem:[%s1 + $0x238] sm:$0xf]
      %v635 = vld [vmem:[%s1 + $0x23c] sm:$0xf]
      %v636 = vld [vmem:[%s1 + $0x240] sm:$0xf]
      %v637 = vld [vmem:[%s1 + $0x244] sm:$0xf]
      %v638 = vld [vmem:[%s1 + $0x248] sm:$0xf]
      %v639 = vld [vmem:[%s1 + $0x24c] sm:$0xf]
      %v640 = vld [vmem:[%s1 + $0x250] sm:$0xf]
      %v641 = vld [vmem:[%s1 + $0x254] sm:$0xf]
      %v642 = vld [vmem:[%s1 + $0x258] sm:$0xf]
      %v643 = vld [vmem:[%s1 + $0x25c] sm:$0xf]
      %v644 = vld [vmem:[%s1 + $0x260] sm:$0xf]
      %v645 = vld [vmem:[%s1 + $0x264] sm:$0xf]
      %v646 = vld [vmem:[%s1 + $0x268] sm:$0xf]
      %v647 = vld [vmem:[%s1 + $0x26c] sm:$0xf]
      %v648 = vld [vmem:[%s1 + $0x270] sm:$0xf]
      %v649 = vld [vmem:[%s1 + $0x274] sm:$0xf]
      %v650 = vld [vmem:[%s1 + $0x278] sm:$0xf]
      %v651 = vld [vmem:[%s1 + $0x27c] sm:$0xf]
      %v652 = vld [vmem:[%s1 + $0x280] sm:$0xf]
      %v653 = vld [vmem:[%s1 + $0x284] sm:$0xf]
      %v654 = vld [vmem:[%s1 + $0x288] sm:$0xf]
      %v655 = vld [vmem:[%s1 + $0x28c] sm:$0xf]
      %v656 = vld [vmem:[%s1 + $0x290] sm:$0xf]
      %v657 = vld [vmem:[%s1 + $0x294] sm:$0xf]
      %v658 = vld [vmem:[%s1 + $0x298] sm:$0xf]
      %v659 = vld [vmem:[%s1 + $0x29c] sm:$0xf]
      %v660 = vld [vmem:[%s1 + $0x2a0] sm:$0xf]
      %v661 = vld [vmem:[%s1 + $0x2a4] sm:$0xf]
      %v662 = vld [vmem:[%s1 + $0x2a8] sm:$0xf]
      %v663 = vld [vmem:[%s1 + $0x2ac] sm:$0xf]
      %v664 = vld [vmem:[%s1 + $0x2b0] sm:$0xf]
      %v665 = vld [vmem:[%s1 + $0x2b4] sm:$0xf]
      %v666 = vld [vmem:[%s1 + $0x2b8] sm:$0xf]
      %v667 = vld [vmem:[%s1 + $0x2bc] sm:$0xf]
      %v668 = vld [vmem:[%s1 + $0x2c0] sm:$0xf]
      %v669 = vld [vmem:[%s1 + $0x2c4] sm:$0xf]
      %v670 = vld [vmem:[%s1 + $0x2c8] sm:$0xf]
      %v671 = vld [vmem:[%s1 + $0x2cc] sm:$0xf]
      %v672 = vld [vmem:[%s1 + $0x2d0] sm:$0xf]
      %v673 = vld [vmem:[%s1 + $0x2d4] sm:$0xf]
      %v674 = vld [vmem:[%s1 + $0x2d8] sm:$0xf]
      %v675 = vld [vmem:[%s1 + $0x2dc] sm:$0xf]
      %v676 = vld [vmem:[%s1 + $0x2e0] sm:$0xf]
      %v677 = vld [vmem:[%s1 + $0x2e4] sm:$0xf]
      %v678 = vld [vmem:[%s1 + $0x2e8] sm:$0xf]
      %v679 = vld [vmem:[%s1 + $0x2ec] sm:$0xf]
      %v680 = vld [vmem:[%s1 + $0x2f0] sm:$0xf]
      %v681 = vld [vmem:[%s1 + $0x2f4] sm:$0xf]
      %v682 = vld [vmem:[%s1 + $0x2f8] sm:$0xf]
      %v683 = vld [vmem:[%s1 + $0x2fc] sm:$0xf]
      %v684 = vld [vmem:[%s2] sm:$0xf]
      %v685 = vld [vmem:[%s2 + $0x4] sm:$0xf]
      %v686 = vld [vmem:[%s2 + $0x8] sm:$0xf]
      %v687 = vld [vmem:[%s2 + $0xc] sm:$0xf]
      %v688 = vld [vmem:[%s2 + $0x10] sm:$0xf]
      %v689 = vld [vmem:[%s2 + $0x14] sm:$0xf]
      %v690 = vld [vmem:[%s2 + $0x18] sm:$0xf]
      %v691 = vld [vmem:[%s2 + $0x1c] sm:$0xf]
      %v692 = vld [vmem:[%s2 + $0x20] sm:$0xf]
      %v693 = vld [vmem:[%s2 + $0x24] sm:$0xf]
      %v694 = vld [vmem:[%s2 + $0x28] sm:$0xf]
      %v695 = vld [vmem:[%s2 + $0x2c] sm:$0xf]
      %v696 = vld [vmem:[%s2 + $0x30] sm:$0xf]
      %v697 = vld [vmem:[%s2 + $0x34] sm:$0xf]
      %v698 = vld [vmem:[%s2 + $0x38] sm:$0xf]
      %v699 = vld [vmem:[%s2 + $0x3c] sm:$0xf]
      %v700 = vpack.c.bf16 %v491, %v491
      %v717 = vunpack.c.l.b16 %v492
      %v718 = vunpack.c.l.b16 %v493
      %v719 = vunpack.c.l.b16 %v494
      %v720 = vunpack.c.l.b16 %v495
      %v721 = vunpack.c.l.b16 %v496
      %v722 = vunpack.c.l.b16 %v497
      %v723 = vunpack.c.l.b16 %v498
      %v724 = vunpack.c.l.b16 %v499
      %v725 = vunpack.c.l.b16 %v500
      %v726 = vunpack.c.l.b16 %v501
      %v727 = vunpack.c.l.b16 %v502
      %v728 = vunpack.c.l.b16 %v503
      %v729 = vunpack.c.l.b16 %v504
      %v730 = vunpack.c.l.b16 %v505
      %v731 = vunpack.c.l.b16 %v506
      %v732 = vunpack.c.l.b16 %v507
      %v733 = vpack.c.b16 %v718, %v717
      %v734 = vpack.c.b16 %v720, %v719
      %v735 = vpack.c.b16 %v722, %v721
      %v736 = vpack.c.b16 %v724, %v723
      %v737 = vpack.c.b16 %v726, %v725
      %v738 = vpack.c.b16 %v728, %v727
      %v739 = vpack.c.b16 %v730, %v729
      %v740 = vpack.c.b16 %v732, %v731
      %749 = vmatprep.subr.bf16.mxu0 0
      %750 = vmatpush1.bf16.msra.mxu0 %v733
      %751 = vmatprep.subr.bf16.mxu0 0
      %752 = vmatpush1.bf16.msra.mxu0 %v734
      %753 = vmatprep.subr.bf16.mxu0 0
      %754 = vmatpush1.bf16.msra.mxu0 %v735
      %755 = vmatprep.subr.bf16.mxu0 0
      %756 = vmatpush1.bf16.msra.mxu0 %v736
      %757 = vmatprep.subr.bf16.mxu0 0
      %758 = vmatpush1.bf16.msra.mxu0 %v737
      %759 = vmatprep.subr.bf16.mxu0 0
      %760 = vmatpush1.bf16.msra.mxu0 %v738
      %761 = vmatprep.subr.bf16.mxu0 0
      %762 = vmatpush1.bf16.msra.mxu0 %v739
      %763 = vmatprep.subr.bf16.mxu0 0
      %764 = vmatpush1.bf16.msra.mxu0 %v740
      %765 = vmatprep.subr.bf16.mxu0 0
      %766 = vmatpush1.bf16.msra.mxu0 0
      %767 = vmatprep.subr.bf16.mxu0 0
      %768 = vmatpush1.bf16.msra.mxu0 0
      %769 = vmatprep.subr.bf16.mxu0 0
      %770 = vmatpush1.bf16.msra.mxu0 0
      %771 = vmatprep.subr.bf16.mxu0 0
      %772 = vmatpush1.bf16.msra.mxu0 0
      %773 = vmatprep.subr.bf16.mxu0 0
      %774 = vmatpush1.bf16.msra.mxu0 0
      %775 = vmatprep.subr.bf16.mxu0 0
      %776 = vmatpush1.bf16.msra.mxu0 0
      %777 = vmatprep.subr.bf16.mxu0 0
      %778 = vmatpush1.bf16.msra.mxu0 0
      %779 = vmatprep.subr.bf16.mxu0 0
      %780 = vmatpush1.bf16.msra.mxu0 0
      %781 = vmatprep.mubr.bf16.mxu0 0
      %782 = vmatmul.mubr.bf16.gmra.mrb[0].mxu0 %v700
      %v783 = vpop.f32.mrb[0].mxu0
      %v784 = vadd.f32 0.0, %v783
      %v785 = vpop.f32.mrb[0].mxu0
      %v786 = vpop.f32.mrb[0].mxu0
      %v787 = vpop.f32.mrb[0].mxu0
      %788 = vdwg.mxu0
      %v805 = vunpack.c.l.b16 %v508
      %v806 = vunpack.c.l.b16 %v509
      %v807 = vunpack.c.l.b16 %v510
      %v808 = vunpack.c.l.b16 %v511
      %v809 = vunpack.c.l.b16 %v512
      %v810 = vunpack.c.l.b16 %v513
      %v811 = vunpack.c.l.b16 %v514
      %v812 = vunpack.c.l.b16 %v515
      %v813 = vunpack.c.l.b16 %v516
      %v814 = vunpack.c.l.b16 %v517
      %v815 = vunpack.c.l.b16 %v518
      %v816 = vunpack.c.l.b16 %v519
      %v817 = vunpack.c.l.b16 %v520
      %v818 = vunpack.c.l.b16 %v521
      %v819 = vunpack.c.l.b16 %v522
      %v820 = vunpack.c.l.b16 %v523
      %v821 = vpack.c.b16 %v806, %v805
      %v822 = vpack.c.b16 %v808, %v807
      %v823 = vpack.c.b16 %v810, %v809
      %v824 = vpack.c.b16 %v812, %v811
      %v825 = vpack.c.b16 %v814, %v813
      %v826 = vpack.c.b16 %v816, %v815
      %v827 = vpack.c.b16 %v818, %v817
      %v828 = vpack.c.b16 %v820, %v819
      %837 = vmatprep.subr.bf16.mxu0 0
      %838 = vmatpush1.bf16.msra.mxu0 %v821
      %839 = vmatprep.subr.bf16.mxu0 0
      %840 = vmatpush1.bf16.msra.mxu0 %v822
      %841 = vmatprep.subr.bf16.mxu0 0
      %842 = vmatpush1.bf16.msra.mxu0 %v823
      %843 = vmatprep.subr.bf16.mxu0 0
      %844 = vmatpush1.bf16.msra.mxu0 %v824
      %845 = vmatprep.subr.bf16.mxu0 0
      %846 = vmatpush1.bf16.msra.mxu0 %v825
      %847 = vmatprep.subr.bf16.mxu0 0
      %848 = vmatpush1.bf16.msra.mxu0 %v826
      %849 = vmatprep.subr.bf16.mxu0 0
      %850 = vmatpush1.bf16.msra.mxu0 %v827
      %851 = vmatprep.subr.bf16.mxu0 0
      %852 = vmatpush1.bf16.msra.mxu0 %v828
      %853 = vmatprep.subr.bf16.mxu0 0
      %854 = vmatpush1.bf16.msra.mxu0 0
      %855 = vmatprep.subr.bf16.mxu0 0
      %856 = vmatpush1.bf16.msra.mxu0 0
      %857 = vmatprep.subr.bf16.mxu0 0
      %858 = vmatpush1.bf16.msra.mxu0 0
      %859 = vmatprep.subr.bf16.mxu0 0
      %860 = vmatpush1.bf16.msra.mxu0 0
      %861 = vmatprep.subr.bf16.mxu0 0
      %862 = vmatpush1.bf16.msra.mxu0 0
      %863 = vmatprep.subr.bf16.mxu0 0
      %864 = vmatpush1.bf16.msra.mxu0 0
      %865 = vmatprep.subr.bf16.mxu0 0
      %866 = vmatpush1.bf16.msra.mxu0 0
      %867 = vmatprep.subr.bf16.mxu0 0
      %868 = vmatpush1.bf16.msra.mxu0 0
      %869 = vmatprep.mubr.bf16.mxu0 0
      %870 = vmatmul.mubr.bf16.gmra.mrb[0].mxu0 %v700
      %v871 = vpop.f32.mrb[0].mxu0
      %v872 = vadd.f32 0.0, %v871
      %v873 = vpop.f32.mrb[0].mxu0
      %v874 = vpop.f32.mrb[0].mxu0
      %v875 = vpop.f32.mrb[0].mxu0
      %876 = vdwg.mxu0
      %v893 = vunpack.c.l.b16 %v524
      %v894 = vunpack.c.l.b16 %v525
      %v895 = vunpack.c.l.b16 %v526
      %v896 = vunpack.c.l.b16 %v527
      %v897 = vunpack.c.l.b16 %v528
      %v898 = vunpack.c.l.b16 %v529
      %v899 = vunpack.c.l.b16 %v530
      %v900 = vunpack.c.l.b16 %v531
      %v901 = vunpack.c.l.b16 %v532
      %v902 = vunpack.c.l.b16 %v533
      %v903 = vunpack.c.l.b16 %v534
      %v904 = vunpack.c.l.b16 %v535
      %v905 = vunpack.c.l.b16 %v536
      %v906 = vunpack.c.l.b16 %v537
      %v907 = vunpack.c.l.b16 %v538
      %v908 = vunpack.c.l.b16 %v539
      %v909 = vpack.c.b16 %v894, %v893
      %v910 = vpack.c.b16 %v896, %v895
      %v911 = vpack.c.b16 %v898, %v897
      %v912 = vpack.c.b16 %v900, %v899
      %v913 = vpack.c.b16 %v902, %v901
      %v914 = vpack.c.b16 %v904, %v903
      %v915 = vpack.c.b16 %v906, %v905
      %v916 = vpack.c.b16 %v908, %v907
      %925 = vmatprep.subr.bf16.mxu0 0
      %926 = vmatpush1.bf16.msra.mxu0 %v909
      %927 = vmatprep.subr.bf16.mxu0 0
      %928 = vmatpush1.bf16.msra.mxu0 %v910
      %929 = vmatprep.subr.bf16.mxu0 0
      %930 = vmatpush1.bf16.msra.mxu0 %v911
      %931 = vmatprep.subr.bf16.mxu0 0
      %932 = vmatpush1.bf16.msra.mxu0 %v912
      %933 = vmatprep.subr.bf16.mxu0 0
      %934 = vmatpush1.bf16.msra.mxu0 %v913
      %935 = vmatprep.subr.bf16.mxu0 0
      %936 = vmatpush1.bf16.msra.mxu0 %v914
      %937 = vmatprep.subr.bf16.mxu0 0
      %938 = vmatpush1.bf16.msra.mxu0 %v915
      %939 = vmatprep.subr.bf16.mxu0 0
      %940 = vmatpush1.bf16.msra.mxu0 %v916
      %941 = vmatprep.subr.bf16.mxu0 0
      %942 = vmatpush1.bf16.msra.mxu0 0
      %943 = vmatprep.subr.bf16.mxu0 0
      %944 = vmatpush1.bf16.msra.mxu0 0
      %945 = vmatprep.subr.bf16.mxu0 0
      %946 = vmatpush1.bf16.msra.mxu0 0
      %947 = vmatprep.subr.bf16.mxu0 0
      %948 = vmatpush1.bf16.msra.mxu0 0
      %949 = vmatprep.subr.bf16.mxu0 0
      %950 = vmatpush1.bf16.msra.mxu0 0
      %951 = vmatprep.subr.bf16.mxu0 0
      %952 = vmatpush1.bf16.msra.mxu0 0
      %953 = vmatprep.subr.bf16.mxu0 0
      %954 = vmatpush1.bf16.msra.mxu0 0
      %955 = vmatprep.subr.bf16.mxu0 0
      %956 = vmatpush1.bf16.msra.mxu0 0
      %957 = vmatprep.mubr.bf16.mxu0 0
      %958 = vmatmul.mubr.bf16.gmra.mrb[0].mxu0 %v700
      %v959 = vpop.f32.mrb[0].mxu0
      %v960 = vadd.f32 0.0, %v959
      %v961 = vpop.f32.mrb[0].mxu0
      %v962 = vpop.f32.mrb[0].mxu0
      %v963 = vpop.f32.mrb[0].mxu0
      %964 = vdwg.mxu0
      %v981 = vunpack.c.l.b16 %v540
      %v982 = vunpack.c.l.b16 %v541
      %v983 = vunpack.c.l.b16 %v542
      %v984 = vunpack.c.l.b16 %v543
      %v985 = vunpack.c.l.b16 %v544
      %v986 = vunpack.c.l.b16 %v545
      %v987 = vunpack.c.l.b16 %v546
      %v988 = vunpack.c.l.b16 %v547
      %v989 = vunpack.c.l.b16 %v548
      %v990 = vunpack.c.l.b16 %v549
      %v991 = vunpack.c.l.b16 %v550
      %v992 = vunpack.c.l.b16 %v551
      %v993 = vunpack.c.l.b16 %v552
      %v994 = vunpack.c.l.b16 %v553
      %v995 = vunpack.c.l.b16 %v554
      %v996 = vunpack.c.l.b16 %v555
      %v997 = vpack.c.b16 %v982, %v981
      %v998 = vpack.c.b16 %v984, %v983
      %v999 = vpack.c.b16 %v986, %v985
      %v1000 = vpack.c.b16 %v988, %v987
      %v1001 = vpack.c.b16 %v990, %v989
      %v1002 = vpack.c.b16 %v992, %v991
      %v1003 = vpack.c.b16 %v994, %v993
      %v1004 = vpack.c.b16 %v996, %v995
      %1013 = vmatprep.subr.bf16.mxu0 0
      %1014 = vmatpush1.bf16.msra.mxu0 %v997
      %1015 = vmatprep.subr.bf16.mxu0 0
      %1016 = vmatpush1.bf16.msra.mxu0 %v998
      %1017 = vmatprep.subr.bf16.mxu0 0
      %1018 = vmatpush1.bf16.msra.mxu0 %v999
      %1019 = vmatprep.subr.bf16.mxu0 0
      %1020 = vmatpush1.bf16.msra.mxu0 %v1000
      %1021 = vmatprep.subr.bf16.mxu0 0
      %1022 = vmatpush1.bf16.msra.mxu0 %v1001
      %1023 = vmatprep.subr.bf16.mxu0 0
      %1024 = vmatpush1.bf16.msra.mxu0 %v1002
      %1025 = vmatprep.subr.bf16.mxu0 0
      %1026 = vmatpush1.bf16.msra.mxu0 %v1003
      %1027 = vmatprep.subr.bf16.mxu0 0
      %1028 = vmatpush1.bf16.msra.mxu0 %v1004
      %1029 = vmatprep.subr.bf16.mxu0 0
      %1030 = vmatpush1.bf16.msra.mxu0 0
      %1031 = vmatprep.subr.bf16.mxu0 0
      %1032 = vmatpush1.bf16.msra.mxu0 0
      %1033 = vmatprep.subr.bf16.mxu0 0
      %1034 = vmatpush1.bf16.msra.mxu0 0
      %1035 = vmatprep.subr.bf16.mxu0 0
      %1036 = vmatpush1.bf16.msra.mxu0 0
      %1037 = vmatprep.subr.bf16.mxu0 0
      %1038 = vmatpush1.bf16.msra.mxu0 0
      %1039 = vmatprep.subr.bf16.mxu0 0
      %1040 = vmatpush1.bf16.msra.mxu0 0
      %1041 = vmatprep.subr.bf16.mxu0 0
      %1042 = vmatpush1.bf16.msra.mxu0 0
      %1043 = vmatprep.subr.bf16.mxu0 0
      %1044 = vmatpush1.bf16.msra.mxu0 0
      %1045 = vmatprep.mubr.bf16.mxu0 0
      %1046 = vmatmul.mubr.bf16.gmra.mrb[0].mxu0 %v700
      %v1047 = vpop.f32.mrb[0].mxu0
      %v1048 = vadd.f32 0.0, %v1047
      %v1049 = vpop.f32.mrb[0].mxu0
      %v1050 = vpop.f32.mrb[0].mxu0
      %v1051 = vpop.f32.mrb[0].mxu0
      %1052 = vdwg.mxu0
      %v1069 = vunpack.c.l.b16 %v556
      %v1070 = vunpack.c.l.b16 %v557
      %v1071 = vunpack.c.l.b16 %v558
      %v1072 = vunpack.c.l.b16 %v559
      %v1073 = vunpack.c.l.b16 %v560
      %v1074 = vunpack.c.l.b16 %v561
      %v1075 = vunpack.c.l.b16 %v562
      %v1076 = vunpack.c.l.b16 %v563
      %v1077 = vunpack.c.l.b16 %v564
      %v1078 = vunpack.c.l.b16 %v565
      %v1079 = vunpack.c.l.b16 %v566
      %v1080 = vunpack.c.l.b16 %v567
      %v1081 = vunpack.c.l.b16 %v568
      %v1082 = vunpack.c.l.b16 %v569
      %v1083 = vunpack.c.l.b16 %v570
      %v1084 = vunpack.c.l.b16 %v571
      %v1085 = vpack.c.b16 %v1070, %v1069
      %v1086 = vpack.c.b16 %v1072, %v1071
      %v1087 = vpack.c.b16 %v1074, %v1073
      %v1088 = vpack.c.b16 %v1076, %v1075
      %v1089 = vpack.c.b16 %v1078, %v1077
      %v1090 = vpack.c.b16 %v1080, %v1079
      %v1091 = vpack.c.b16 %v1082, %v1081
      %v1092 = vpack.c.b16 %v1084, %v1083
      %1101 = vmatprep.subr.bf16.mxu0 0
      %1102 = vmatpush1.bf16.msra.mxu0 %v1085
      %1103 = vmatprep.subr.bf16.mxu0 0
      %1104 = vmatpush1.bf16.msra.mxu0 %v1086
      %1105 = vmatprep.subr.bf16.mxu0 0
      %1106 = vmatpush1.bf16.msra.mxu0 %v1087
      %1107 = vmatprep.subr.bf16.mxu0 0
      %1108 = vmatpush1.bf16.msra.mxu0 %v1088
      %1109 = vmatprep.subr.bf16.mxu0 0
      %1110 = vmatpush1.bf16.msra.mxu0 %v1089
      %1111 = vmatprep.subr.bf16.mxu0 0
      %1112 = vmatpush1.bf16.msra.mxu0 %v1090
      %1113 = vmatprep.subr.bf16.mxu0 0
      %1114 = vmatpush1.bf16.msra.mxu0 %v1091
      %1115 = vmatprep.subr.bf16.mxu0 0
      %1116 = vmatpush1.bf16.msra.mxu0 %v1092
      %1117 = vmatprep.subr.bf16.mxu0 0
      %1118 = vmatpush1.bf16.msra.mxu0 0
      %1119 = vmatprep.subr.bf16.mxu0 0
      %1120 = vmatpush1.bf16.msra.mxu0 0
      %1121 = vmatprep.subr.bf16.mxu0 0
      %1122 = vmatpush1.bf16.msra.mxu0 0
      %1123 = vmatprep.subr.bf16.mxu0 0
      %1124 = vmatpush1.bf16.msra.mxu0 0
      %1125 = vmatprep.subr.bf16.mxu0 0
      %1126 = vmatpush1.bf16.msra.mxu0 0
      %1127 = vmatprep.subr.bf16.mxu0 0
      %1128 = vmatpush1.bf16.msra.mxu0 0
      %1129 = vmatprep.subr.bf16.mxu0 0
      %1130 = vmatpush1.bf16.msra.mxu0 0
      %1131 = vmatprep.subr.bf16.mxu0 0
      %1132 = vmatpush1.bf16.msra.mxu0 0
      %1133 = vmatprep.mubr.bf16.mxu0 0
      %1134 = vmatmul.mubr.bf16.gmra.mrb[0].mxu0 %v700
      %v1135 = vpop.f32.mrb[0].mxu0
      %v1136 = vadd.f32 0.0, %v1135
      %v1137 = vpop.f32.mrb[0].mxu0
      %v1138 = vpop.f32.mrb[0].mxu0
      %v1139 = vpop.f32.mrb[0].mxu0
      %1140 = vdwg.mxu0
      %v1157 = vunpack.c.l.b16 %v572
      %v1158 = vunpack.c.l.b16 %v573
      %v1159 = vunpack.c.l.b16 %v574
      %v1160 = vunpack.c.l.b16 %v575
      %v1161 = vunpack.c.l.b16 %v576
      %v1162 = vunpack.c.l.b16 %v577
      %v1163 = vunpack.c.l.b16 %v578
      %v1164 = vunpack.c.l.b16 %v579
      %v1165 = vunpack.c.l.b16 %v580
      %v1166 = vunpack.c.l.b16 %v581
      %v1167 = vunpack.c.l.b16 %v582
      %v1168 = vunpack.c.l.b16 %v583
      %v1169 = vunpack.c.l.b16 %v584
      %v1170 = vunpack.c.l.b16 %v585
      %v1171 = vunpack.c.l.b16 %v586
      %v1172 = vunpack.c.l.b16 %v587
      %v1173 = vpack.c.b16 %v1158, %v1157
      %v1174 = vpack.c.b16 %v1160, %v1159
      %v1175 = vpack.c.b16 %v1162, %v1161
      %v1176 = vpack.c.b16 %v1164, %v1163
      %v1177 = vpack.c.b16 %v1166, %v1165
      %v1178 = vpack.c.b16 %v1168, %v1167
      %v1179 = vpack.c.b16 %v1170, %v1169
      %v1180 = vpack.c.b16 %v1172, %v1171
      %1189 = vmatprep.subr.bf16.mxu0 0
      %1190 = vmatpush1.bf16.msra.mxu0 %v1173
      %1191 = vmatprep.subr.bf16.mxu0 0
      %1192 = vmatpush1.bf16.msra.mxu0 %v1174
      %1193 = vmatprep.subr.bf16.mxu0 0
      %1194 = vmatpush1.bf16.msra.mxu0 %v1175
      %1195 = vmatprep.subr.bf16.mxu0 0
      %1196 = vmatpush1.bf16.msra.mxu0 %v1176
      %1197 = vmatprep.subr.bf16.mxu0 0
      %1198 = vmatpush1.bf16.msra.mxu0 %v1177
      %1199 = vmatprep.subr.bf16.mxu0 0
      %1200 = vmatpush1.bf16.msra.mxu0 %v1178
      %1201 = vmatprep.subr.bf16.mxu0 0
      %1202 = vmatpush1.bf16.msra.mxu0 %v1179
      %1203 = vmatprep.subr.bf16.mxu0 0
      %1204 = vmatpush1.bf16.msra.mxu0 %v1180
      %1205 = vmatprep.subr.bf16.mxu0 0
      %1206 = vmatpush1.bf16.msra.mxu0 0
      %1207 = vmatprep.subr.bf16.mxu0 0
      %1208 = vmatpush1.bf16.msra.mxu0 0
      %1209 = vmatprep.subr.bf16.mxu0 0
      %1210 = vmatpush1.bf16.msra.mxu0 0
      %1211 = vmatprep.subr.bf16.mxu0 0
      %1212 = vmatpush1.bf16.msra.mxu0 0
      %1213 = vmatprep.subr.bf16.mxu0 0
      %1214 = vmatpush1.bf16.msra.mxu0 0
      %1215 = vmatprep.subr.bf16.mxu0 0
      %1216 = vmatpush1.bf16.msra.mxu0 0
      %1217 = vmatprep.subr.bf16.mxu0 0
      %1218 = vmatpush1.bf16.msra.mxu0 0
      %1219 = vmatprep.subr.bf16.mxu0 0
      %1220 = vmatpush1.bf16.msra.mxu0 0
      %1221 = vmatprep.mubr.bf16.mxu0 0
      %1222 = vmatmul.mubr.bf16.gmra.mrb[0].mxu0 %v700
      %v1223 = vpop.f32.mrb[0].mxu0
      %v1224 = vadd.f32 0.0, %v1223
      %v1225 = vpop.f32.mrb[0].mxu0
      %v1226 = vpop.f32.mrb[0].mxu0
      %v1227 = vpop.f32.mrb[0].mxu0
      %1228 = vdwg.mxu0
      %v1245 = vunpack.c.l.b16 %v588
      %v1246 = vunpack.c.l.b16 %v589
      %v1247 = vunpack.c.l.b16 %v590
      %v1248 = vunpack.c.l.b16 %v591
      %v1249 = vunpack.c.l.b16 %v592
      %v1250 = vunpack.c.l.b16 %v593
      %v1251 = vunpack.c.l.b16 %v594
      %v1252 = vunpack.c.l.b16 %v595
      %v1253 = vunpack.c.l.b16 %v596
      %v1254 = vunpack.c.l.b16 %v597
      %v1255 = vunpack.c.l.b16 %v598
      %v1256 = vunpack.c.l.b16 %v599
      %v1257 = vunpack.c.l.b16 %v600
      %v1258 = vunpack.c.l.b16 %v601
      %v1259 = vunpack.c.l.b16 %v602
      %v1260 = vunpack.c.l.b16 %v603
      %v1261 = vpack.c.b16 %v1246, %v1245
      %v1262 = vpack.c.b16 %v1248, %v1247
      %v1263 = vpack.c.b16 %v1250, %v1249
      %v1264 = vpack.c.b16 %v1252, %v1251
      %v1265 = vpack.c.b16 %v1254, %v1253
      %v1266 = vpack.c.b16 %v1256, %v1255
      %v1267 = vpack.c.b16 %v1258, %v1257
      %v1268 = vpack.c.b16 %v1260, %v1259
      %1277 = vmatprep.subr.bf16.mxu0 0
      %1278 = vmatpush1.bf16.msra.mxu0 %v1261
      %1279 = vmatprep.subr.bf16.mxu0 0
      %1280 = vmatpush1.bf16.msra.mxu0 %v1262
      %1281 = vmatprep.subr.bf16.mxu0 0
      %1282 = vmatpush1.bf16.msra.mxu0 %v1263
      %1283 = vmatprep.subr.bf16.mxu0 0
      %1284 = vmatpush1.bf16.msra.mxu0 %v1264
      %1285 = vmatprep.subr.bf16.mxu0 0
      %1286 = vmatpush1.bf16.msra.mxu0 %v1265
      %1287 = vmatprep.subr.bf16.mxu0 0
      %1288 = vmatpush1.bf16.msra.mxu0 %v1266
      %1289 = vmatprep.subr.bf16.mxu0 0
      %1290 = vmatpush1.bf16.msra.mxu0 %v1267
      %1291 = vmatprep.subr.bf16.mxu0 0
      %1292 = vmatpush1.bf16.msra.mxu0 %v1268
      %1293 = vmatprep.subr.bf16.mxu0 0
      %1294 = vmatpush1.bf16.msra.mxu0 0
      %1295 = vmatprep.subr.bf16.mxu0 0
      %1296 = vmatpush1.bf16.msra.mxu0 0
      %1297 = vmatprep.subr.bf16.mxu0 0
      %1298 = vmatpush1.bf16.msra.mxu0 0
      %1299 = vmatprep.subr.bf16.mxu0 0
      %1300 = vmatpush1.bf16.msra.mxu0 0
      %1301 = vmatprep.subr.bf16.mxu0 0
      %1302 = vmatpush1.bf16.msra.mxu0 0
      %1303 = vmatprep.subr.bf16.mxu0 0
      %1304 = vmatpush1.bf16.msra.mxu0 0
      %1305 = vmatprep.subr.bf16.mxu0 0
      %1306 = vmatpush1.bf16.msra.mxu0 0
      %1307 = vmatprep.subr.bf16.mxu0 0
      %1308 = vmatpush1.bf16.msra.mxu0 0
      %1309 = vmatprep.mubr.bf16.mxu0 0
      %1310 = vmatmul.mubr.bf16.gmra.mrb[0].mxu0 %v700
      %v1311 = vpop.f32.mrb[0].mxu0
      %v1312 = vadd.f32 0.0, %v1311
      %v1313 = vpop.f32.mrb[0].mxu0
      %v1314 = vpop.f32.mrb[0].mxu0
      %v1315 = vpop.f32.mrb[0].mxu0
      %1316 = vdwg.mxu0
      %v1333 = vunpack.c.l.b16 %v604
      %v1334 = vunpack.c.l.b16 %v605
      %v1335 = vunpack.c.l.b16 %v606
      %v1336 = vunpack.c.l.b16 %v607
      %v1337 = vunpack.c.l.b16 %v608
      %v1338 = vunpack.c.l.b16 %v609
      %v1339 = vunpack.c.l.b16 %v610
      %v1340 = vunpack.c.l.b16 %v611
      %v1341 = vunpack.c.l.b16 %v612
      %v1342 = vunpack.c.l.b16 %v613
      %v1343 = vunpack.c.l.b16 %v614
      %v1344 = vunpack.c.l.b16 %v615
      %v1345 = vunpack.c.l.b16 %v616
      %v1346 = vunpack.c.l.b16 %v617
      %v1347 = vunpack.c.l.b16 %v618
      %v1348 = vunpack.c.l.b16 %v619
      %v1349 = vpack.c.b16 %v1334, %v1333
      %v1350 = vpack.c.b16 %v1336, %v1335
      %v1351 = vpack.c.b16 %v1338, %v1337
      %v1352 = vpack.c.b16 %v1340, %v1339
      %v1353 = vpack.c.b16 %v1342, %v1341
      %v1354 = vpack.c.b16 %v1344, %v1343
      %v1355 = vpack.c.b16 %v1346, %v1345
      %v1356 = vpack.c.b16 %v1348, %v1347
      %1365 = vmatprep.subr.bf16.mxu0 0
      %1366 = vmatpush1.bf16.msra.mxu0 %v1349
      %1367 = vmatprep.subr.bf16.mxu0 0
      %1368 = vmatpush1.bf16.msra.mxu0 %v1350
      %1369 = vmatprep.subr.bf16.mxu0 0
      %1370 = vmatpush1.bf16.msra.mxu0 %v1351
      %1371 = vmatprep.subr.bf16.mxu0 0
      %1372 = vmatpush1.bf16.msra.mxu0 %v1352
      %1373 = vmatprep.subr.bf16.mxu0 0
      %1374 = vmatpush1.bf16.msra.mxu0 %v1353
      %1375 = vmatprep.subr.bf16.mxu0 0
      %1376 = vmatpush1.bf16.msra.mxu0 %v1354
      %1377 = vmatprep.subr.bf16.mxu0 0
      %1378 = vmatpush1.bf16.msra.mxu0 %v1355
      %1379 = vmatprep.subr.bf16.mxu0 0
      %1380 = vmatpush1.bf16.msra.mxu0 %v1356
      %1381 = vmatprep.subr.bf16.mxu0 0
      %1382 = vmatpush1.bf16.msra.mxu0 0
      %1383 = vmatprep.subr.bf16.mxu0 0
      %1384 = vmatpush1.bf16.msra.mxu0 0
      %1385 = vmatprep.subr.bf16.mxu0 0
      %1386 = vmatpush1.bf16.msra.mxu0 0
      %1387 = vmatprep.subr.bf16.mxu0 0
      %1388 = vmatpush1.bf16.msra.mxu0 0
      %1389 = vmatprep.subr.bf16.mxu0 0
      %1390 = vmatpush1.bf16.msra.mxu0 0
      %1391 = vmatprep.subr.bf16.mxu0 0
      %1392 = vmatpush1.bf16.msra.mxu0 0
      %1393 = vmatprep.subr.bf16.mxu0 0
      %1394 = vmatpush1.bf16.msra.mxu0 0
      %1395 = vmatprep.subr.bf16.mxu0 0
      %1396 = vmatpush1.bf16.msra.mxu0 0
      %1397 = vmatprep.mubr.bf16.mxu0 0
      %1398 = vmatmul.mubr.bf16.gmra.mrb[0].mxu0 %v700
      %v1399 = vpop.f32.mrb[0].mxu0
      %v1400 = vadd.f32 0.0, %v1399
      %v1401 = vpop.f32.mrb[0].mxu0
      %v1402 = vpop.f32.mrb[0].mxu0
      %v1403 = vpop.f32.mrb[0].mxu0
      %1404 = vdwg.mxu0
      %v1421 = vunpack.c.l.b16 %v620
      %v1422 = vunpack.c.l.b16 %v621
      %v1423 = vunpack.c.l.b16 %v622
      %v1424 = vunpack.c.l.b16 %v623
      %v1425 = vunpack.c.l.b16 %v624
      %v1426 = vunpack.c.l.b16 %v625
      %v1427 = vunpack.c.l.b16 %v626
      %v1428 = vunpack.c.l.b16 %v627
      %v1429 = vunpack.c.l.b16 %v628
      %v1430 = vunpack.c.l.b16 %v629
      %v1431 = vunpack.c.l.b16 %v630
      %v1432 = vunpack.c.l.b16 %v631
      %v1433 = vunpack.c.l.b16 %v632
      %v1434 = vunpack.c.l.b16 %v633
      %v1435 = vunpack.c.l.b16 %v634
      %v1436 = vunpack.c.l.b16 %v635
      %v1437 = vpack.c.b16 %v1422, %v1421
      %v1438 = vpack.c.b16 %v1424, %v1423
      %v1439 = vpack.c.b16 %v1426, %v1425
      %v1440 = vpack.c.b16 %v1428, %v1427
      %v1441 = vpack.c.b16 %v1430, %v1429
      %v1442 = vpack.c.b16 %v1432, %v1431
      %v1443 = vpack.c.b16 %v1434, %v1433
      %v1444 = vpack.c.b16 %v1436, %v1435
      %1453 = vmatprep.subr.bf16.mxu0 0
      %1454 = vmatpush1.bf16.msra.mxu0 %v1437
      %1455 = vmatprep.subr.bf16.mxu0 0
      %1456 = vmatpush1.bf16.msra.mxu0 %v1438
      %1457 = vmatprep.subr.bf16.mxu0 0
      %1458 = vmatpush1.bf16.msra.mxu0 %v1439
      %1459 = vmatprep.subr.bf16.mxu0 0
      %1460 = vmatpush1.bf16.msra.mxu0 %v1440
      %1461 = vmatprep.subr.bf16.mxu0 0
      %1462 = vmatpush1.bf16.msra.mxu0 %v1441
      %1463 = vmatprep.subr.bf16.mxu0 0
      %1464 = vmatpush1.bf16.msra.mxu0 %v1442
      %1465 = vmatprep.subr.bf16.mxu0 0
      %1466 = vmatpush1.bf16.msra.mxu0 %v1443
      %1467 = vmatprep.subr.bf16.mxu0 0
      %1468 = vmatpush1.bf16.msra.mxu0 %v1444
      %1469 = vmatprep.subr.bf16.mxu0 0
      %1470 = vmatpush1.bf16.msra.mxu0 0
      %1471 = vmatprep.subr.bf16.mxu0 0
      %1472 = vmatpush1.bf16.msra.mxu0 0
      %1473 = vmatprep.subr.bf16.mxu0 0
      %1474 = vmatpush1.bf16.msra.mxu0 0
      %1475 = vmatprep.subr.bf16.mxu0 0
      %1476 = vmatpush1.bf16.msra.mxu0 0
      %1477 = vmatprep.subr.bf16.mxu0 0
      %1478 = vmatpush1.bf16.msra.mxu0 0
      %1479 = vmatprep.subr.bf16.mxu0 0
      %1480 = vmatpush1.bf16.msra.mxu0 0
      %1481 = vmatprep.subr.bf16.mxu0 0
      %1482 = vmatpush1.bf16.msra.mxu0 0
      %1483 = vmatprep.subr.bf16.mxu0 0
      %1484 = vmatpush1.bf16.msra.mxu0 0
      %1485 = vmatprep.mubr.bf16.mxu0 0
      %1486 = vmatmul.mubr.bf16.gmra.mrb[0].mxu0 %v700
      %v1487 = vpop.f32.mrb[0].mxu0
      %v1488 = vadd.f32 0.0, %v1487
      %v1489 = vpop.f32.mrb[0].mxu0
      %v1490 = vpop.f32.mrb[0].mxu0
      %v1491 = vpop.f32.mrb[0].mxu0
      %1492 = vdwg.mxu0
      %v1509 = vunpack.c.l.b16 %v636
      %v1510 = vunpack.c.l.b16 %v637
      %v1511 = vunpack.c.l.b16 %v638
      %v1512 = vunpack.c.l.b16 %v639
      %v1513 = vunpack.c.l.b16 %v640
      %v1514 = vunpack.c.l.b16 %v641
      %v1515 = vunpack.c.l.b16 %v642
      %v1516 = vunpack.c.l.b16 %v643
      %v1517 = vunpack.c.l.b16 %v644
      %v1518 = vunpack.c.l.b16 %v645
      %v1519 = vunpack.c.l.b16 %v646
      %v1520 = vunpack.c.l.b16 %v647
      %v1521 = vunpack.c.l.b16 %v648
      %v1522 = vunpack.c.l.b16 %v649
      %v1523 = vunpack.c.l.b16 %v650
      %v1524 = vunpack.c.l.b16 %v651
      %v1525 = vpack.c.b16 %v1510, %v1509
      %v1526 = vpack.c.b16 %v1512, %v1511
      %v1527 = vpack.c.b16 %v1514, %v1513
      %v1528 = vpack.c.b16 %v1516, %v1515
      %v1529 = vpack.c.b16 %v1518, %v1517
      %v1530 = vpack.c.b16 %v1520, %v1519
      %v1531 = vpack.c.b16 %v1522, %v1521
      %v1532 = vpack.c.b16 %v1524, %v1523
      %1541 = vmatprep.subr.bf16.mxu0 0
      %1542 = vmatpush1.bf16.msra.mxu0 %v1525
      %1543 = vmatprep.subr.bf16.mxu0 0
      %1544 = vmatpush1.bf16.msra.mxu0 %v1526
      %1545 = vmatprep.subr.bf16.mxu0 0
      %1546 = vmatpush1.bf16.msra.mxu0 %v1527
      %1547 = vmatprep.subr.bf16.mxu0 0
      %1548 = vmatpush1.bf16.msra.mxu0 %v1528
      %1549 = vmatprep.subr.bf16.mxu0 0
      %1550 = vmatpush1.bf16.msra.mxu0 %v1529
      %1551 = vmatprep.subr.bf16.mxu0 0
      %1552 = vmatpush1.bf16.msra.mxu0 %v1530
      %1553 = vmatprep.subr.bf16.mxu0 0
      %1554 = vmatpush1.bf16.msra.mxu0 %v1531
      %1555 = vmatprep.subr.bf16.mxu0 0
      %1556 = vmatpush1.bf16.msra.mxu0 %v1532
      %1557 = vmatprep.subr.bf16.mxu0 0
      %1558 = vmatpush1.bf16.msra.mxu0 0
      %1559 = vmatprep.subr.bf16.mxu0 0
      %1560 = vmatpush1.bf16.msra.mxu0 0
      %1561 = vmatprep.subr.bf16.mxu0 0
      %1562 = vmatpush1.bf16.msra.mxu0 0
      %1563 = vmatprep.subr.bf16.mxu0 0
      %1564 = vmatpush1.bf16.msra.mxu0 0
      %1565 = vmatprep.subr.bf16.mxu0 0
      %1566 = vmatpush1.bf16.msra.mxu0 0
      %1567 = vmatprep.subr.bf16.mxu0 0
      %1568 = vmatpush1.bf16.msra.mxu0 0
      %1569 = vmatprep.subr.bf16.mxu0 0
      %1570 = vmatpush1.bf16.msra.mxu0 0
      %1571 = vmatprep.subr.bf16.mxu0 0
      %1572 = vmatpush1.bf16.msra.mxu0 0
      %1573 = vmatprep.mubr.bf16.mxu0 0
      %1574 = vmatmul.mubr.bf16.gmra.mrb[0].mxu0 %v700
      %v1575 = vpop.f32.mrb[0].mxu0
      %v1576 = vadd.f32 0.0, %v1575
      %v1577 = vpop.f32.mrb[0].mxu0
      %v1578 = vpop.f32.mrb[0].mxu0
      %v1579 = vpop.f32.mrb[0].mxu0
      %1580 = vdwg.mxu0
      %v1597 = vunpack.c.l.b16 %v652
      %v1598 = vunpack.c.l.b16 %v653
      %v1599 = vunpack.c.l.b16 %v654
      %v1600 = vunpack.c.l.b16 %v655
      %v1601 = vunpack.c.l.b16 %v656
      %v1602 = vunpack.c.l.b16 %v657
      %v1603 = vunpack.c.l.b16 %v658
      %v1604 = vunpack.c.l.b16 %v659
      %v1605 = vunpack.c.l.b16 %v660
      %v1606 = vunpack.c.l.b16 %v661
      %v1607 = vunpack.c.l.b16 %v662
      %v1608 = vunpack.c.l.b16 %v663
      %v1609 = vunpack.c.l.b16 %v664
      %v1610 = vunpack.c.l.b16 %v665
      %v1611 = vunpack.c.l.b16 %v666
      %v1612 = vunpack.c.l.b16 %v667
      %v1613 = vpack.c.b16 %v1598, %v1597
      %v1614 = vpack.c.b16 %v1600, %v1599
      %v1615 = vpack.c.b16 %v1602, %v1601
      %v1616 = vpack.c.b16 %v1604, %v1603
      %v1617 = vpack.c.b16 %v1606, %v1605
      %v1618 = vpack.c.b16 %v1608, %v1607
      %v1619 = vpack.c.b16 %v1610, %v1609
      %v1620 = vpack.c.b16 %v1612, %v1611
      %1629 = vmatprep.subr.bf16.mxu0 0
      %1630 = vmatpush1.bf16.msra.mxu0 %v1613
      %1631 = vmatprep.subr.bf16.mxu0 0
      %1632 = vmatpush1.bf16.msra.mxu0 %v1614
      %1633 = vmatprep.subr.bf16.mxu0 0
      %1634 = vmatpush1.bf16.msra.mxu0 %v1615
      %1635 = vmatprep.subr.bf16.mxu0 0
      %1636 = vmatpush1.bf16.msra.mxu0 %v1616
      %1637 = vmatprep.subr.bf16.mxu0 0
      %1638 = vmatpush1.bf16.msra.mxu0 %v1617
      %1639 = vmatprep.subr.bf16.mxu0 0
      %1640 = vmatpush1.bf16.msra.mxu0 %v1618
      %1641 = vmatprep.subr.bf16.mxu0 0
      %1642 = vmatpush1.bf16.msra.mxu0 %v1619
      %1643 = vmatprep.subr.bf16.mxu0 0
      %1644 = vmatpush1.bf16.msra.mxu0 %v1620
      %1645 = vmatprep.subr.bf16.mxu0 0
      %1646 = vmatpush1.bf16.msra.mxu0 0
      %1647 = vmatprep.subr.bf16.mxu0 0
      %1648 = vmatpush1.bf16.msra.mxu0 0
      %1649 = vmatprep.subr.bf16.mxu0 0
      %1650 = vmatpush1.bf16.msra.mxu0 0
      %1651 = vmatprep.subr.bf16.mxu0 0
      %1652 = vmatpush1.bf16.msra.mxu0 0
      %1653 = vmatprep.subr.bf16.mxu0 0
      %1654 = vmatpush1.bf16.msra.mxu0 0
      %1655 = vmatprep.subr.bf16.mxu0 0
      %1656 = vmatpush1.bf16.msra.mxu0 0
      %1657 = vmatprep.subr.bf16.mxu0 0
      %1658 = vmatpush1.bf16.msra.mxu0 0
      %1659 = vmatprep.subr.bf16.mxu0 0
      %1660 = vmatpush1.bf16.msra.mxu0 0
      %1661 = vmatprep.mubr.bf16.mxu0 0
      %1662 = vmatmul.mubr.bf16.gmra.mrb[0].mxu0 %v700
      %v1663 = vpop.f32.mrb[0].mxu0
      %v1664 = vadd.f32 0.0, %v1663
      %v1665 = vpop.f32.mrb[0].mxu0
      %v1666 = vpop.f32.mrb[0].mxu0
      %v1667 = vpop.f32.mrb[0].mxu0
      %1668 = vdwg.mxu0
      %v1685 = vunpack.c.l.b16 %v668
      %v1686 = vunpack.c.l.b16 %v669
      %v1687 = vunpack.c.l.b16 %v670
      %v1688 = vunpack.c.l.b16 %v671
      %v1689 = vunpack.c.l.b16 %v672
      %v1690 = vunpack.c.l.b16 %v673
      %v1691 = vunpack.c.l.b16 %v674
      %v1692 = vunpack.c.l.b16 %v675
      %v1693 = vunpack.c.l.b16 %v676
      %v1694 = vunpack.c.l.b16 %v677
      %v1695 = vunpack.c.l.b16 %v678
      %v1696 = vunpack.c.l.b16 %v679
      %v1697 = vunpack.c.l.b16 %v680
      %v1698 = vunpack.c.l.b16 %v681
      %v1699 = vunpack.c.l.b16 %v682
      %v1700 = vunpack.c.l.b16 %v683
      %v1701 = vpack.c.b16 %v1686, %v1685
      %v1702 = vpack.c.b16 %v1688, %v1687
      %v1703 = vpack.c.b16 %v1690, %v1689
      %v1704 = vpack.c.b16 %v1692, %v1691
      %v1705 = vpack.c.b16 %v1694, %v1693
      %v1706 = vpack.c.b16 %v1696, %v1695
      %v1707 = vpack.c.b16 %v1698, %v1697
      %v1708 = vpack.c.b16 %v1700, %v1699
      %1717 = vmatprep.subr.bf16.mxu0 0
      %1718 = vmatpush1.bf16.msra.mxu0 %v1701
      %1719 = vmatprep.subr.bf16.mxu0 0
      %1720 = vmatpush1.bf16.msra.mxu0 %v1702
      %1721 = vmatprep.subr.bf16.mxu0 0
      %1722 = vmatpush1.bf16.msra.mxu0 %v1703
      %1723 = vmatprep.subr.bf16.mxu0 0
      %1724 = vmatpush1.bf16.msra.mxu0 %v1704
      %1725 = vmatprep.subr.bf16.mxu0 0
      %1726 = vmatpush1.bf16.msra.mxu0 %v1705
      %1727 = vmatprep.subr.bf16.mxu0 0
      %1728 = vmatpush1.bf16.msra.mxu0 %v1706
      %1729 = vmatprep.subr.bf16.mxu0 0
      %1730 = vmatpush1.bf16.msra.mxu0 %v1707
      %1731 = vmatprep.subr.bf16.mxu0 0
      %1732 = vmatpush1.bf16.msra.mxu0 %v1708
      %1733 = vmatprep.subr.bf16.mxu0 0
      %1734 = vmatpush1.bf16.msra.mxu0 0
      %1735 = vmatprep.subr.bf16.mxu0 0
      %1736 = vmatpush1.bf16.msra.mxu0 0
      %1737 = vmatprep.subr.bf16.mxu0 0
      %1738 = vmatpush1.bf16.msra.mxu0 0
      %1739 = vmatprep.subr.bf16.mxu0 0
      %1740 = vmatpush1.bf16.msra.mxu0 0
      %1741 = vmatprep.subr.bf16.mxu0 0
      %1742 = vmatpush1.bf16.msra.mxu0 0
      %1743 = vmatprep.subr.bf16.mxu0 0
      %1744 = vmatpush1.bf16.msra.mxu0 0
      %1745 = vmatprep.subr.bf16.mxu0 0
      %1746 = vmatpush1.bf16.msra.mxu0 0
      %1747 = vmatprep.subr.bf16.mxu0 0
      %1748 = vmatpush1.bf16.msra.mxu0 0
      %1749 = vmatprep.mubr.bf16.mxu0 0
      %1750 = vmatmul.mubr.bf16.gmra.mrb[0].mxu0 %v700
      %v1751 = vpop.f32.mrb[0].mxu0
      %v1752 = vadd.f32 0.0, %v1751
      %v1753 = vpop.f32.mrb[0].mxu0
      %v1754 = vpop.f32.mrb[0].mxu0
      %v1755 = vpop.f32.mrb[0].mxu0
      %1756 = vdwg.mxu0
      %v1757 = vpack.c.bf16 %v784, %v784
      %v1758 = vpack.c.bf16 %v872, %v872
      %v1759 = vpack.c.bf16 %v960, %v960
      %v1760 = vpack.c.bf16 %v1048, %v1048
      %v1761 = vpack.c.bf16 %v1136, %v1136
      %v1762 = vpack.c.bf16 %v1224, %v1224
      %v1763 = vpack.c.bf16 %v1312, %v1312
      %v1764 = vpack.c.bf16 %v1400, %v1400
      %vm1765 = vcmask 261120
      %v1767 = vsel %vm1765, %v1757, 0
      %v1770 = vsel %vm1765, %v1761, 0
      %1772 = vmatprep.subr.bf16.mxu0 0
      %1773 = vmatpush1.bf16.xpose.msra.mxu0 %v1770
      %1774 = vmatprep.subr.bf16.mxu0 0
      %1775 = vmatpush1.bf16.xpose.msra.mxu0 0
      %1776 = vmatprep.subr.bf16.mxu0 0
      %1777 = vmatpush1.bf16.xpose.msra.mxu0 0
      %1778 = vmatprep.subr.bf16.mxu0 0
      %1779 = vmatpush1.bf16.xpose.msra.mxu0 0
      %1780 = vmatprep.subr.bf16.mxu0 0
      %1781 = vmatpush1.bf16.xpose.msra.mxu0 0
      %1782 = vmatprep.subr.bf16.mxu0 0
      %1783 = vmatpush1.bf16.xpose.msra.mxu0 0
      %1784 = vmatprep.subr.bf16.mxu0 0
      %1785 = vmatpush1.bf16.xpose.msra.mxu0 0
      %1786 = vmatprep.subr.bf16.mxu0 0
      %1787 = vmatpush1.bf16.xpose.msra.mxu0 0
      %1788 = vmatprep.subr.bf16.mxu0 0
      %1789 = vmatpush1.bf16.xpose.msra.mxu0 0
      %1790 = vmatprep.subr.bf16.mxu0 0
      %1791 = vmatpush1.bf16.xpose.msra.mxu0 0
      %1792 = vmatprep.subr.bf16.mxu0 0
      %1793 = vmatpush1.bf16.xpose.msra.mxu0 0
      %1794 = vmatprep.subr.bf16.mxu0 0
      %1795 = vmatpush1.bf16.xpose.msra.mxu0 0
      %1796 = vmatprep.subr.bf16.mxu0 0
      %1797 = vmatpush1.bf16.xpose.msra.mxu0 0
      %1798 = vmatprep.subr.bf16.mxu0 0
      %1799 = vmatpush1.bf16.xpose.msra.mxu0 0
      %1800 = vmatprep.subr.bf16.mxu0 0
      %1801 = vmatpush1.bf16.xpose.msra.mxu0 0
      %1802 = vmatprep.subr.bf16.mxu0 0
      %1803 = vmatpush1.bf16.xpose.msra.mxu0 0
      %1804 = vmatprep.mubr.bf16.mxu0 0
      %1805 = vmatmul.mubr.bf16.gmra.mrb[0].mxu0 %v1767
      %v1806 = vpop.f32.mrb[0].mxu0
      %v1807 = vadd.f32 0.0, %v1806
      %v1808 = vpop.f32.mrb[0].mxu0
      %v1809 = vpop.f32.mrb[0].mxu0
      %v1810 = vpop.f32.mrb[0].mxu0
      %1811 = vdwg.mxu0
      %v1813 = vsel %vm1765, %v1758, 0
      %v1816 = vsel %vm1765, %v1762, 0
      %1818 = vmatprep.subr.bf16.mxu0 0
      %1819 = vmatpush1.bf16.xpose.msra.mxu0 %v1816
      %1820 = vmatprep.subr.bf16.mxu0 0
      %1821 = vmatpush1.bf16.xpose.msra.mxu0 0
      %1822 = vmatprep.subr.bf16.mxu0 0
      %1823 = vmatpush1.bf16.xpose.msra.mxu0 0
      %1824 = vmatprep.subr.bf16.mxu0 0
      %1825 = vmatpush1.bf16.xpose.msra.mxu0 0
      %1826 = vmatprep.subr.bf16.mxu0 0
      %1827 = vmatpush1.bf16.xpose.msra.mxu0 0
      %1828 = vmatprep.subr.bf16.mxu0 0
      %1829 = vmatpush1.bf16.xpose.msra.mxu0 0
      %1830 = vmatprep.subr.bf16.mxu0 0
      %1831 = vmatpush1.bf16.xpose.msra.mxu0 0
      %1832 = vmatprep.subr.bf16.mxu0 0
      %1833 = vmatpush1.bf16.xpose.msra.mxu0 0
      %1834 = vmatprep.subr.bf16.mxu0 0
      %1835 = vmatpush1.bf16.xpose.msra.mxu0 0
      %1836 = vmatprep.subr.bf16.mxu0 0
      %1837 = vmatpush1.bf16.xpose.msra.mxu0 0
      %1838 = vmatprep.subr.bf16.mxu0 0
      %1839 = vmatpush1.bf16.xpose.msra.mxu0 0
      %1840 = vmatprep.subr.bf16.mxu0 0
      %1841 = vmatpush1.bf16.xpose.msra.mxu0 0
      %1842 = vmatprep.subr.bf16.mxu0 0
      %1843 = vmatpush1.bf16.xpose.msra.mxu0 0
      %1844 = vmatprep.subr.bf16.mxu0 0
      %1845 = vmatpush1.bf16.xpose.msra.mxu0 0
      %1846 = vmatprep.subr.bf16.mxu0 0
      %1847 = vmatpush1.bf16.xpose.msra.mxu0 0
      %1848 = vmatprep.subr.bf16.mxu0 0
      %1849 = vmatpush1.bf16.xpose.msra.mxu0 0
      %1850 = vmatprep.mubr.bf16.mxu0 0
      %1851 = vmatmul.mubr.bf16.gmra.mrb[0].mxu0 %v1813
      %v1852 = vpop.f32.mrb[0].mxu0
      %v1853 = vadd.f32 0.0, %v1852
      %v1854 = vpop.f32.mrb[0].mxu0
      %v1855 = vpop.f32.mrb[0].mxu0
      %v1856 = vpop.f32.mrb[0].mxu0
      %1857 = vdwg.mxu0
      %v1859 = vsel %vm1765, %v1759, 0
      %v1862 = vsel %vm1765, %v1763, 0
      %1864 = vmatprep.subr.bf16.mxu0 0
      %1865 = vmatpush1.bf16.xpose.msra.mxu0 %v1862
      %1866 = vmatprep.subr.bf16.mxu0 0
      %1867 = vmatpush1.bf16.xpose.msra.mxu0 0
      %1868 = vmatprep.subr.bf16.mxu0 0
      %1869 = vmatpush1.bf16.xpose.msra.mxu0 0
      %1870 = vmatprep.subr.bf16.mxu0 0
      %1871 = vmatpush1.bf16.xpose.msra.mxu0 0
      %1872 = vmatprep.subr.bf16.mxu0 0
      %1873 = vmatpush1.bf16.xpose.msra.mxu0 0
      %1874 = vmatprep.subr.bf16.mxu0 0
      %1875 = vmatpush1.bf16.xpose.msra.mxu0 0
      %1876 = vmatprep.subr.bf16.mxu0 0
      %1877 = vmatpush1.bf16.xpose.msra.mxu0 0
      %1878 = vmatprep.subr.bf16.mxu0 0
      %1879 = vmatpush1.bf16.xpose.msra.mxu0 0
      %1880 = vmatprep.subr.bf16.mxu0 0
      %1881 = vmatpush1.bf16.xpose.msra.mxu0 0
      %1882 = vmatprep.subr.bf16.mxu0 0
      %1883 = vmatpush1.bf16.xpose.msra.mxu0 0
      %1884 = vmatprep.subr.bf16.mxu0 0
      %1885 = vmatpush1.bf16.xpose.msra.mxu0 0
      %1886 = vmatprep.subr.bf16.mxu0 0
      %1887 = vmatpush1.bf16.xpose.msra.mxu0 0
      %1888 = vmatprep.subr.bf16.mxu0 0
      %1889 = vmatpush1.bf16.xpose.msra.mxu0 0
      %1890 = vmatprep.subr.bf16.mxu0 0
      %1891 = vmatpush1.bf16.xpose.msra.mxu0 0
      %1892 = vmatprep.subr.bf16.mxu0 0
      %1893 = vmatpush1.bf16.xpose.msra.mxu0 0
      %1894 = vmatprep.subr.bf16.mxu0 0
      %1895 = vmatpush1.bf16.xpose.msra.mxu0 0
      %1896 = vmatprep.mubr.bf16.mxu0 0
      %1897 = vmatmul.mubr.bf16.gmra.mrb[0].mxu0 %v1859
      %v1898 = vpop.f32.mrb[0].mxu0
      %v1899 = vadd.f32 0.0, %v1898
      %v1900 = vpop.f32.mrb[0].mxu0
      %v1901 = vpop.f32.mrb[0].mxu0
      %v1902 = vpop.f32.mrb[0].mxu0
      %1903 = vdwg.mxu0
      %v1905 = vsel %vm1765, %v1760, 0
      %v1908 = vsel %vm1765, %v1764, 0
      %1910 = vmatprep.subr.bf16.mxu0 0
      %1911 = vmatpush1.bf16.xpose.msra.mxu0 %v1908
      %1912 = vmatprep.subr.bf16.mxu0 0
      %1913 = vmatpush1.bf16.xpose.msra.mxu0 0
      %1914 = vmatprep.subr.bf16.mxu0 0
      %1915 = vmatpush1.bf16.xpose.msra.mxu0 0
      %1916 = vmatprep.subr.bf16.mxu0 0
      %1917 = vmatpush1.bf16.xpose.msra.mxu0 0
      %1918 = vmatprep.subr.bf16.mxu0 0
      %1919 = vmatpush1.bf16.xpose.msra.mxu0 0
      %1920 = vmatprep.subr.bf16.mxu0 0
      %1921 = vmatpush1.bf16.xpose.msra.mxu0 0
      %1922 = vmatprep.subr.bf16.mxu0 0
      %1923 = vmatpush1.bf16.xpose.msra.mxu0 0
      %1924 = vmatprep.subr.bf16.mxu0 0
      %1925 = vmatpush1.bf16.xpose.msra.mxu0 0
      %1926 = vmatprep.subr.bf16.mxu0 0
      %1927 = vmatpush1.bf16.xpose.msra.mxu0 0
      %1928 = vmatprep.subr.bf16.mxu0 0
      %1929 = vmatpush1.bf16.xpose.msra.mxu0 0
      %1930 = vmatprep.subr.bf16.mxu0 0
      %1931 = vmatpush1.bf16.xpose.msra.mxu0 0
      %1932 = vmatprep.subr.bf16.mxu0 0
      %1933 = vmatpush1.bf16.xpose.msra.mxu0 0
      %1934 = vmatprep.subr.bf16.mxu0 0
      %1935 = vmatpush1.bf16.xpose.msra.mxu0 0
      %1936 = vmatprep.subr.bf16.mxu0 0
      %1937 = vmatpush1.bf16.xpose.msra.mxu0 0
      %1938 = vmatprep.subr.bf16.mxu0 0
      %1939 = vmatpush1.bf16.xpose.msra.mxu0 0
      %1940 = vmatprep.subr.bf16.mxu0 0
      %1941 = vmatpush1.bf16.xpose.msra.mxu0 0
      %1942 = vmatprep.mubr.bf16.mxu0 0
      %1943 = vmatmul.mubr.bf16.gmra.mrb[0].mxu0 %v1905
      %v1944 = vpop.f32.mrb[0].mxu0
      %v1945 = vadd.f32 0.0, %v1944
      %v1946 = vpop.f32.mrb[0].mxu0
      %v1947 = vpop.f32.mrb[0].mxu0
      %v1948 = vpop.f32.mrb[0].mxu0
      %1949 = vdwg.mxu0
      %v1950 = vlaneseq
      %v1951 = vshrl.u32 %v1950, 7
      %v1952 = vlaneseq
      %v1953 = vand.u32 %v1952, 127
      %vm1954 = vcmp.gt.s32.totalorder %v1953, %v1951
      %v1955 = vsel %vm1954, 1, 0
      %vm1956 = vcmp.eq.s32.totalorder %v1955, 1
      %v1957 = vsel %vm1956, -1e+30, %v1807
      %v1958 = vsel %vm1956, -1e+30, %v1853
      %v1959 = vsel %vm1956, -1e+30, %v1899
      %v1960 = vsel %vm1956, -1e+30, %v1945
      %vm1961 = vcmask 64512
      %v1962 = vsel %vm1961, %v1957, -inf
      %1963 = vmax.xlane.f32.xlu0 %v1962
      %v1964 = vpop.xlane.xlu0 %1963
      %v1965 = vsel %vm1961, %v1958, -inf
      %1966 = vmax.xlane.f32.xlu0 %v1965
      %v1967 = vpop.xlane.xlu0 %1966
      %v1968 = vsel %vm1961, %v1959, -inf
      %1969 = vmax.xlane.f32.xlu0 %v1968
      %v1970 = vpop.xlane.xlu0 %1969
      %v1971 = vsel %vm1961, %v1960, -inf
      %1972 = vmax.xlane.f32.xlu0 %v1971
      %v1973 = vpop.xlane.xlu0 %1972
      %v1974 = vsub.f32 %v1957, %v1964
      %v1975 = vsub.f32 %v1958, %v1967
      %v1976 = vsub.f32 %v1959, %v1970
      %v1977 = vsub.f32 %v1960, %v1973
      %v1978 = vmul.f32 %v1974, 1.442695
      %v1979 = vpow.pop %v1978
      %v1980 = vmul.f32 %v1975, 1.442695
      %v1981 = vpow.pop %v1980
      %v1982 = vmul.f32 %v1976, 1.442695
      %v1983 = vpow.pop %v1982
      %v1984 = vmul.f32 %v1977, 1.442695
      %v1985 = vpow.pop %v1984
      %v1986 = vsel %vm1961, %v1979, 0.0
      %1987 = vadd.xlane.f32.xlu0 %v1986
      %v1988 = vpop.xlane.xlu0 %1987
      %v1989 = vsel %vm1961, %v1981, 0.0
      %1990 = vadd.xlane.f32.xlu0 %v1989
      %v1991 = vpop.xlane.xlu0 %1990
      %v1992 = vsel %vm1961, %v1983, 0.0
      %1993 = vadd.xlane.f32.xlu0 %v1992
      %v1994 = vpop.xlane.xlu0 %1993
      %v1995 = vsel %vm1961, %v1985, 0.0
      %1996 = vadd.xlane.f32.xlu0 %v1995
      %v1997 = vpop.xlane.xlu0 %1996
      %v1998 = vrcp.pop %v1988
      %v1999 = vrcp.pop %v1991
      %v2000 = vrcp.pop %v1994
      %v2001 = vrcp.pop %v1997
      %v2002 = vmul.f32 %v1979, %v1998
      %v2003 = vmul.f32 %v1981, %v1999
      %v2004 = vmul.f32 %v1983, %v2000
      %v2005 = vmul.f32 %v1985, %v2001
      %v2006 = vpack.c.bf16 %v2002, %v2002
      %v2007 = vpack.c.bf16 %v2003, %v2003
      %v2008 = vpack.c.bf16 %v2004, %v2004
      %v2009 = vpack.c.bf16 %v2005, %v2005
      %v2010 = vpack.c.bf16 %v1488, %v1488
      %v2011 = vpack.c.bf16 %v1576, %v1576
      %v2012 = vpack.c.bf16 %v1664, %v1664
      %v2013 = vpack.c.bf16 %v1752, %v1752
      %v2015 = vsel %vm1961, %v2006, 0
      %vm2017 = vcmask 1043456
      %v2019 = vsel %vm2017, %v2010, 0
      %2021 = vmatprep.subr.bf16.mxu0 0
      %2022 = vmatpush1.bf16.msra.mxu0 %v2019
      %2023 = vmatprep.subr.bf16.mxu0 0
      %2024 = vmatpush1.bf16.msra.mxu0 0
      %2025 = vmatprep.subr.bf16.mxu0 0
      %2026 = vmatpush1.bf16.msra.mxu0 0
      %2027 = vmatprep.subr.bf16.mxu0 0
      %2028 = vmatpush1.bf16.msra.mxu0 0
      %2029 = vmatprep.subr.bf16.mxu0 0
      %2030 = vmatpush1.bf16.msra.mxu0 0
      %2031 = vmatprep.subr.bf16.mxu0 0
      %2032 = vmatpush1.bf16.msra.mxu0 0
      %2033 = vmatprep.subr.bf16.mxu0 0
      %2034 = vmatpush1.bf16.msra.mxu0 0
      %2035 = vmatprep.subr.bf16.mxu0 0
      %2036 = vmatpush1.bf16.msra.mxu0 0
      %2037 = vmatprep.subr.bf16.mxu0 0
      %2038 = vmatpush1.bf16.msra.mxu0 0
      %2039 = vmatprep.subr.bf16.mxu0 0
      %2040 = vmatpush1.bf16.msra.mxu0 0
      %2041 = vmatprep.subr.bf16.mxu0 0
      %2042 = vmatpush1.bf16.msra.mxu0 0
      %2043 = vmatprep.subr.bf16.mxu0 0
      %2044 = vmatpush1.bf16.msra.mxu0 0
      %2045 = vmatprep.subr.bf16.mxu0 0
      %2046 = vmatpush1.bf16.msra.mxu0 0
      %2047 = vmatprep.subr.bf16.mxu0 0
      %2048 = vmatpush1.bf16.msra.mxu0 0
      %2049 = vmatprep.subr.bf16.mxu0 0
      %2050 = vmatpush1.bf16.msra.mxu0 0
      %2051 = vmatprep.subr.bf16.mxu0 0
      %2052 = vmatpush1.bf16.msra.mxu0 0
      %2053 = vmatprep.mubr.bf16.mxu0 0
      %2054 = vmatmul.mubr.bf16.gmra.mrb[0].mxu0 %v2015
      %v2055 = vpop.f32.mrb[0].mxu0
      %v2056 = vadd.f32 0.0, %v2055
      %v2057 = vpop.f32.mrb[0].mxu0
      %v2058 = vpop.f32.mrb[0].mxu0
      %v2059 = vpop.f32.mrb[0].mxu0
      %2060 = vdwg.mxu0
      %v2062 = vsel %vm1961, %v2007, 0
      %v2065 = vsel %vm2017, %v2011, 0
      %2067 = vmatprep.subr.bf16.mxu0 0
      %2068 = vmatpush1.bf16.msra.mxu0 %v2065
      %2069 = vmatprep.subr.bf16.mxu0 0
      %2070 = vmatpush1.bf16.msra.mxu0 0
      %2071 = vmatprep.subr.bf16.mxu0 0
      %2072 = vmatpush1.bf16.msra.mxu0 0
      %2073 = vmatprep.subr.bf16.mxu0 0
      %2074 = vmatpush1.bf16.msra.mxu0 0
      %2075 = vmatprep.subr.bf16.mxu0 0
      %2076 = vmatpush1.bf16.msra.mxu0 0
      %2077 = vmatprep.subr.bf16.mxu0 0
      %2078 = vmatpush1.bf16.msra.mxu0 0
      %2079 = vmatprep.subr.bf16.mxu0 0
      %2080 = vmatpush1.bf16.msra.mxu0 0
      %2081 = vmatprep.subr.bf16.mxu0 0
      %2082 = vmatpush1.bf16.msra.mxu0 0
      %2083 = vmatprep.subr.bf16.mxu0 0
      %2084 = vmatpush1.bf16.msra.mxu0 0
      %2085 = vmatprep.subr.bf16.mxu0 0
      %2086 = vmatpush1.bf16.msra.mxu0 0
      %2087 = vmatprep.subr.bf16.mxu0 0
      %2088 = vmatpush1.bf16.msra.mxu0 0
      %2089 = vmatprep.subr.bf16.mxu0 0
      %2090 = vmatpush1.bf16.msra.mxu0 0
      %2091 = vmatprep.subr.bf16.mxu0 0
      %2092 = vmatpush1.bf16.msra.mxu0 0
      %2093 = vmatprep.subr.bf16.mxu0 0
      %2094 = vmatpush1.bf16.msra.mxu0 0
      %2095 = vmatprep.subr.bf16.mxu0 0
      %2096 = vmatpush1.bf16.msra.mxu0 0
      %2097 = vmatprep.subr.bf16.mxu0 0
      %2098 = vmatpush1.bf16.msra.mxu0 0
      %2099 = vmatprep.mubr.bf16.mxu0 0
      %2100 = vmatmul.mubr.bf16.gmra.mrb[0].mxu0 %v2062
      %v2101 = vpop.f32.mrb[0].mxu0
      %v2102 = vadd.f32 0.0, %v2101
      %v2103 = vpop.f32.mrb[0].mxu0
      %v2104 = vpop.f32.mrb[0].mxu0
      %v2105 = vpop.f32.mrb[0].mxu0
      %2106 = vdwg.mxu0
      %v2108 = vsel %vm1961, %v2008, 0
      %v2111 = vsel %vm2017, %v2012, 0
      %2113 = vmatprep.subr.bf16.mxu0 0
      %2114 = vmatpush1.bf16.msra.mxu0 %v2111
      %2115 = vmatprep.subr.bf16.mxu0 0
      %2116 = vmatpush1.bf16.msra.mxu0 0
      %2117 = vmatprep.subr.bf16.mxu0 0
      %2118 = vmatpush1.bf16.msra.mxu0 0
      %2119 = vmatprep.subr.bf16.mxu0 0
      %2120 = vmatpush1.bf16.msra.mxu0 0
      %2121 = vmatprep.subr.bf16.mxu0 0
      %2122 = vmatpush1.bf16.msra.mxu0 0
      %2123 = vmatprep.subr.bf16.mxu0 0
      %2124 = vmatpush1.bf16.msra.mxu0 0
      %2125 = vmatprep.subr.bf16.mxu0 0
      %2126 = vmatpush1.bf16.msra.mxu0 0
      %2127 = vmatprep.subr.bf16.mxu0 0
      %2128 = vmatpush1.bf16.msra.mxu0 0
      %2129 = vmatprep.subr.bf16.mxu0 0
      %2130 = vmatpush1.bf16.msra.mxu0 0
      %2131 = vmatprep.subr.bf16.mxu0 0
      %2132 = vmatpush1.bf16.msra.mxu0 0
      %2133 = vmatprep.subr.bf16.mxu0 0
      %2134 = vmatpush1.bf16.msra.mxu0 0
      %2135 = vmatprep.subr.bf16.mxu0 0
      %2136 = vmatpush1.bf16.msra.mxu0 0
      %2137 = vmatprep.subr.bf16.mxu0 0
      %2138 = vmatpush1.bf16.msra.mxu0 0
      %2139 = vmatprep.subr.bf16.mxu0 0
      %2140 = vmatpush1.bf16.msra.mxu0 0
      %2141 = vmatprep.subr.bf16.mxu0 0
      %2142 = vmatpush1.bf16.msra.mxu0 0
      %2143 = vmatprep.subr.bf16.mxu0 0
      %2144 = vmatpush1.bf16.msra.mxu0 0
      %2145 = vmatprep.mubr.bf16.mxu0 0
      %2146 = vmatmul.mubr.bf16.gmra.mrb[0].mxu0 %v2108
      %v2147 = vpop.f32.mrb[0].mxu0
      %v2148 = vadd.f32 0.0, %v2147
      %v2149 = vpop.f32.mrb[0].mxu0
      %v2150 = vpop.f32.mrb[0].mxu0
      %v2151 = vpop.f32.mrb[0].mxu0
      %2152 = vdwg.mxu0
      %v2154 = vsel %vm1961, %v2009, 0
      %v2157 = vsel %vm2017, %v2013, 0
      %2159 = vmatprep.subr.bf16.mxu0 0
      %2160 = vmatpush1.bf16.msra.mxu0 %v2157
      %2161 = vmatprep.subr.bf16.mxu0 0
      %2162 = vmatpush1.bf16.msra.mxu0 0
      %2163 = vmatprep.subr.bf16.mxu0 0
      %2164 = vmatpush1.bf16.msra.mxu0 0
      %2165 = vmatprep.subr.bf16.mxu0 0
      %2166 = vmatpush1.bf16.msra.mxu0 0
      %2167 = vmatprep.subr.bf16.mxu0 0
      %2168 = vmatpush1.bf16.msra.mxu0 0
      %2169 = vmatprep.subr.bf16.mxu0 0
      %2170 = vmatpush1.bf16.msra.mxu0 0
      %2171 = vmatprep.subr.bf16.mxu0 0
      %2172 = vmatpush1.bf16.msra.mxu0 0
      %2173 = vmatprep.subr.bf16.mxu0 0
      %2174 = vmatpush1.bf16.msra.mxu0 0
      %2175 = vmatprep.subr.bf16.mxu0 0
      %2176 = vmatpush1.bf16.msra.mxu0 0
      %2177 = vmatprep.subr.bf16.mxu0 0
      %2178 = vmatpush1.bf16.msra.mxu0 0
      %2179 = vmatprep.subr.bf16.mxu0 0
      %2180 = vmatpush1.bf16.msra.mxu0 0
      %2181 = vmatprep.subr.bf16.mxu0 0
      %2182 = vmatpush1.bf16.msra.mxu0 0
      %2183 = vmatprep.subr.bf16.mxu0 0
      %2184 = vmatpush1.bf16.msra.mxu0 0
      %2185 = vmatprep.subr.bf16.mxu0 0
      %2186 = vmatpush1.bf16.msra.mxu0 0
      %2187 = vmatprep.subr.bf16.mxu0 0
      %2188 = vmatpush1.bf16.msra.mxu0 0
      %2189 = vmatprep.subr.bf16.mxu0 0
      %2190 = vmatpush1.bf16.msra.mxu0 0
      %2191 = vmatprep.mubr.bf16.mxu0 0
      %2192 = vmatmul.mubr.bf16.gmra.mrb[0].mxu0 %v2154
      %v2193 = vpop.f32.mrb[0].mxu0
      %v2194 = vadd.f32 0.0, %v2193
      %v2195 = vpop.f32.mrb[0].mxu0
      %v2196 = vpop.f32.mrb[0].mxu0
      %v2197 = vpop.f32.mrb[0].mxu0
      %2198 = vdwg.mxu0
      %v2199 = vpack.c.bf16 %v2056, %v2056
      %v2200 = vpack.c.bf16 %v2102, %v2102
      %v2201 = vpack.c.bf16 %v2148, %v2148
      %v2202 = vpack.c.bf16 %v2194, %v2194
      %v2207 = vunpack.c.l.b16 %v684
      %v2208 = vunpack.c.l.b16 %v685
      %v2209 = vunpack.c.l.b16 %v686
      %v2210 = vunpack.c.l.b16 %v687
      %v2211 = vpack.c.b16 %v2208, %v2207
      %v2212 = vpack.c.b16 %v2210, %v2209
      %v2216 = vsel %vm1765, %v2199, 0
      %2218 = vmatprep.subr.bf16.mxu0 0
      %2219 = vmatpush1.bf16.msra.mxu0 %v2211
      %2220 = vmatprep.subr.bf16.mxu0 0
      %2221 = vmatpush1.bf16.msra.mxu0 %v2212
      %2222 = vmatprep.subr.bf16.mxu0 0
      %2223 = vmatpush1.bf16.msra.mxu0 0
      %2224 = vmatprep.subr.bf16.mxu0 0
      %2225 = vmatpush1.bf16.msra.mxu0 0
      %2226 = vmatprep.subr.bf16.mxu0 0
      %2227 = vmatpush1.bf16.msra.mxu0 0
      %2228 = vmatprep.subr.bf16.mxu0 0
      %2229 = vmatpush1.bf16.msra.mxu0 0
      %2230 = vmatprep.subr.bf16.mxu0 0
      %2231 = vmatpush1.bf16.msra.mxu0 0
      %2232 = vmatprep.subr.bf16.mxu0 0
      %2233 = vmatpush1.bf16.msra.mxu0 0
      %2234 = vmatprep.subr.bf16.mxu0 0
      %2235 = vmatpush1.bf16.msra.mxu0 0
      %2236 = vmatprep.subr.bf16.mxu0 0
      %2237 = vmatpush1.bf16.msra.mxu0 0
      %2238 = vmatprep.subr.bf16.mxu0 0
      %2239 = vmatpush1.bf16.msra.mxu0 0
      %2240 = vmatprep.subr.bf16.mxu0 0
      %2241 = vmatpush1.bf16.msra.mxu0 0
      %2242 = vmatprep.subr.bf16.mxu0 0
      %2243 = vmatpush1.bf16.msra.mxu0 0
      %2244 = vmatprep.subr.bf16.mxu0 0
      %2245 = vmatpush1.bf16.msra.mxu0 0
      %2246 = vmatprep.subr.bf16.mxu0 0
      %2247 = vmatpush1.bf16.msra.mxu0 0
      %2248 = vmatprep.subr.bf16.mxu0 0
      %2249 = vmatpush1.bf16.msra.mxu0 0
      %2250 = vmatprep.mubr.bf16.mxu0 0
      %2251 = vmatmul.mubr.bf16.gmra.mrb[0].mxu0 %v2216
      %v2252 = vpop.f32.mrb[0].mxu0
      %v2253 = vadd.f32 0.0, %v2252
      %v2254 = vpop.f32.mrb[0].mxu0
      %v2255 = vpop.f32.mrb[0].mxu0
      %v2256 = vpop.f32.mrb[0].mxu0
      %2257 = vdwg.mxu0
      %v2262 = vunpack.c.l.b16 %v688
      %v2263 = vunpack.c.l.b16 %v689
      %v2264 = vunpack.c.l.b16 %v690
      %v2265 = vunpack.c.l.b16 %v691
      %v2266 = vpack.c.b16 %v2263, %v2262
      %v2267 = vpack.c.b16 %v2265, %v2264
      %v2271 = vsel %vm1765, %v2200, 0
      %2273 = vmatprep.subr.bf16.mxu0 0
      %2274 = vmatpush1.bf16.msra.mxu0 %v2266
      %2275 = vmatprep.subr.bf16.mxu0 0
      %2276 = vmatpush1.bf16.msra.mxu0 %v2267
      %2277 = vmatprep.subr.bf16.mxu0 0
      %2278 = vmatpush1.bf16.msra.mxu0 0
      %2279 = vmatprep.subr.bf16.mxu0 0
      %2280 = vmatpush1.bf16.msra.mxu0 0
      %2281 = vmatprep.subr.bf16.mxu0 0
      %2282 = vmatpush1.bf16.msra.mxu0 0
      %2283 = vmatprep.subr.bf16.mxu0 0
      %2284 = vmatpush1.bf16.msra.mxu0 0
      %2285 = vmatprep.subr.bf16.mxu0 0
      %2286 = vmatpush1.bf16.msra.mxu0 0
      %2287 = vmatprep.subr.bf16.mxu0 0
      %2288 = vmatpush1.bf16.msra.mxu0 0
      %2289 = vmatprep.subr.bf16.mxu0 0
      %2290 = vmatpush1.bf16.msra.mxu0 0
      %2291 = vmatprep.subr.bf16.mxu0 0
      %2292 = vmatpush1.bf16.msra.mxu0 0
      %2293 = vmatprep.subr.bf16.mxu0 0
      %2294 = vmatpush1.bf16.msra.mxu0 0
      %2295 = vmatprep.subr.bf16.mxu0 0
      %2296 = vmatpush1.bf16.msra.mxu0 0
      %2297 = vmatprep.subr.bf16.mxu0 0
      %2298 = vmatpush1.bf16.msra.mxu0 0
      %2299 = vmatprep.subr.bf16.mxu0 0
      %2300 = vmatpush1.bf16.msra.mxu0 0
      %2301 = vmatprep.subr.bf16.mxu0 0
      %2302 = vmatpush1.bf16.msra.mxu0 0
      %2303 = vmatprep.subr.bf16.mxu0 0
      %2304 = vmatpush1.bf16.msra.mxu0 0
      %2305 = vmatprep.mubr.bf16.mxu0 0
      %2306 = vmatmul.mubr.bf16.gmra.mrb[0].mxu0 %v2271
      %v2307 = vpop.f32.mrb[0].mxu0
      %v2308 = vadd.f32 0.0, %v2307
      %v2309 = vpop.f32.mrb[0].mxu0
      %v2310 = vpop.f32.mrb[0].mxu0
      %v2311 = vpop.f32.mrb[0].mxu0
      %2312 = vdwg.mxu0
      %v2317 = vunpack.c.l.b16 %v692
      %v2318 = vunpack.c.l.b16 %v693
      %v2319 = vunpack.c.l.b16 %v694
      %v2320 = vunpack.c.l.b16 %v695
      %v2321 = vpack.c.b16 %v2318, %v2317
      %v2322 = vpack.c.b16 %v2320, %v2319
      %v2326 = vsel %vm1765, %v2201, 0
      %2328 = vmatprep.subr.bf16.mxu0 0
      %2329 = vmatpush1.bf16.msra.mxu0 %v2321
      %2330 = vmatprep.subr.bf16.mxu0 0
      %2331 = vmatpush1.bf16.msra.mxu0 %v2322
      %2332 = vmatprep.subr.bf16.mxu0 0
      %2333 = vmatpush1.bf16.msra.mxu0 0
      %2334 = vmatprep.subr.bf16.mxu0 0
      %2335 = vmatpush1.bf16.msra.mxu0 0
      %2336 = vmatprep.subr.bf16.mxu0 0
      %2337 = vmatpush1.bf16.msra.mxu0 0
      %2338 = vmatprep.subr.bf16.mxu0 0
      %2339 = vmatpush1.bf16.msra.mxu0 0
      %2340 = vmatprep.subr.bf16.mxu0 0
      %2341 = vmatpush1.bf16.msra.mxu0 0
      %2342 = vmatprep.subr.bf16.mxu0 0
      %2343 = vmatpush1.bf16.msra.mxu0 0
      %2344 = vmatprep.subr.bf16.mxu0 0
      %2345 = vmatpush1.bf16.msra.mxu0 0
      %2346 = vmatprep.subr.bf16.mxu0 0
      %2347 = vmatpush1.bf16.msra.mxu0 0
      %2348 = vmatprep.subr.bf16.mxu0 0
      %2349 = vmatpush1.bf16.msra.mxu0 0
      %2350 = vmatprep.subr.bf16.mxu0 0
      %2351 = vmatpush1.bf16.msra.mxu0 0
      %2352 = vmatprep.subr.bf16.mxu0 0
      %2353 = vmatpush1.bf16.msra.mxu0 0
      %2354 = vmatprep.subr.bf16.mxu0 0
      %2355 = vmatpush1.bf16.msra.mxu0 0
      %2356 = vmatprep.subr.bf16.mxu0 0
      %2357 = vmatpush1.bf16.msra.mxu0 0
      %2358 = vmatprep.subr.bf16.mxu0 0
      %2359 = vmatpush1.bf16.msra.mxu0 0
      %2360 = vmatprep.mubr.bf16.mxu0 0
      %2361 = vmatmul.mubr.bf16.gmra.mrb[0].mxu0 %v2326
      %v2362 = vpop.f32.mrb[0].mxu0
      %v2363 = vadd.f32 0.0, %v2362
      %v2364 = vpop.f32.mrb[0].mxu0
      %v2365 = vpop.f32.mrb[0].mxu0
      %v2366 = vpop.f32.mrb[0].mxu0
      %2367 = vdwg.mxu0
      %v2372 = vunpack.c.l.b16 %v696
      %v2373 = vunpack.c.l.b16 %v697
      %v2374 = vunpack.c.l.b16 %v698
      %v2375 = vunpack.c.l.b16 %v699
      %v2376 = vpack.c.b16 %v2373, %v2372
      %v2377 = vpack.c.b16 %v2375, %v2374
      %v2381 = vsel %vm1765, %v2202, 0
      %2383 = vmatprep.subr.bf16.mxu0 0
      %2384 = vmatpush1.bf16.msra.mxu0 %v2376
      %2385 = vmatprep.subr.bf16.mxu0 0
      %2386 = vmatpush1.bf16.msra.mxu0 %v2377
      %2387 = vmatprep.subr.bf16.mxu0 0
      %2388 = vmatpush1.bf16.msra.mxu0 0
      %2389 = vmatprep.subr.bf16.mxu0 0
      %2390 = vmatpush1.bf16.msra.mxu0 0
      %2391 = vmatprep.subr.bf16.mxu0 0
      %2392 = vmatpush1.bf16.msra.mxu0 0
      %2393 = vmatprep.subr.bf16.mxu0 0
      %2394 = vmatpush1.bf16.msra.mxu0 0
      %2395 = vmatprep.subr.bf16.mxu0 0
      %2396 = vmatpush1.bf16.msra.mxu0 0
      %2397 = vmatprep.subr.bf16.mxu0 0
      %2398 = vmatpush1.bf16.msra.mxu0 0
      %2399 = vmatprep.subr.bf16.mxu0 0
      %2400 = vmatpush1.bf16.msra.mxu0 0
      %2401 = vmatprep.subr.bf16.mxu0 0
      %2402 = vmatpush1.bf16.msra.mxu0 0
      %2403 = vmatprep.subr.bf16.mxu0 0
      %2404 = vmatpush1.bf16.msra.mxu0 0
      %2405 = vmatprep.subr.bf16.mxu0 0
      %2406 = vmatpush1.bf16.msra.mxu0 0
      %2407 = vmatprep.subr.bf16.mxu0 0
      %2408 = vmatpush1.bf16.msra.mxu0 0
      %2409 = vmatprep.subr.bf16.mxu0 0
      %2410 = vmatpush1.bf16.msra.mxu0 0
      %2411 = vmatprep.subr.bf16.mxu0 0
      %2412 = vmatpush1.bf16.msra.mxu0 0
      %2413 = vmatprep.subr.bf16.mxu0 0
      %2414 = vmatpush1.bf16.msra.mxu0 0
      %2415 = vmatprep.mubr.bf16.mxu0 0
      %2416 = vmatmul.mubr.bf16.gmra.mrb[0].mxu0 %v2381
      %v2417 = vpop.f32.mrb[0].mxu0
      %v2418 = vadd.f32 0.0, %v2417
      %v2419 = vpop.f32.mrb[0].mxu0
      %v2420 = vpop.f32.mrb[0].mxu0
      %v2421 = vpop.f32.mrb[0].mxu0
      %2422 = vdwg.mxu0
      %v2423 = vadd.f32 %v2253, %v2308
      %v2424 = vadd.f32 %v2423, %v2363
      %v2425 = vadd.f32 %v2424, %v2418
      %v2426 = vadd.f32 %v491, %v2425
      %v2427 = vld [vmem:[%s3] sm:$0x1]
      %v2428 = vld [vmem:[%s4] sm:$0x1]
      %2429 = vadd.xlane.f32.xlu0 %v2426
      %v2430 = vpop.xlane.xlu0 %2429
      %v2431 = vrcp.pop 128.0
      %v2432 = vmul.f32 %v2430, %v2431
      %v2433 = vsub.f32 %v2426, %v2432
      %v2434 = vmul.f32 %v2433, %v2433
      %2435 = vadd.xlane.f32.xlu0 %v2434
      %v2436 = vpop.xlane.xlu0 %2435
      %v2437 = vmul.f32 %v2436, %v2431
      %v2438 = vadd.f32 %v2437, 1e-05
      %v2439 = vrsqrt.pop %v2438
      %v2440 = vmul.f32 %v2433, %v2439
      %v2442 = vlaneseq
      %v2443 = vshrl.u32 %v2442, 7
      %v2444 = vsub.s32 0, %v2443
      %v2445 = vrot.slane %v2427, %v2444
      %v2447 = vmul.f32 %v2440, %v2445
      %v2449 = vlaneseq
      %v2450 = vshrl.u32 %v2449, 7
      %v2451 = vsub.s32 0, %v2450
      %v2452 = vrot.slane %v2428, %v2451
      %v2454 = vadd.f32 %v2447, %v2452
      %v2455 = vld [vmem:[%s5] sm:$0xf]
      %v2456 = vld [vmem:[%s5 + $0x4] sm:$0xf]
      %v2457 = vld [vmem:[%s5 + $0x8] sm:$0xf]
      %v2458 = vld [vmem:[%s5 + $0xc] sm:$0xf]
      %v2459 = vld [vmem:[%s5 + $0x10] sm:$0xf]
      %v2460 = vld [vmem:[%s5 + $0x14] sm:$0xf]
      %v2461 = vld [vmem:[%s5 + $0x18] sm:$0xf]
      %v2462 = vld [vmem:[%s5 + $0x1c] sm:$0xf]
      %v2463 = vld [vmem:[%s5 + $0x20] sm:$0xf]
      %v2464 = vld [vmem:[%s5 + $0x24] sm:$0xf]
      %v2465 = vld [vmem:[%s5 + $0x28] sm:$0xf]
      %v2466 = vld [vmem:[%s5 + $0x2c] sm:$0xf]
      %v2467 = vld [vmem:[%s5 + $0x30] sm:$0xf]
      %v2468 = vld [vmem:[%s5 + $0x34] sm:$0xf]
      %v2469 = vld [vmem:[%s5 + $0x38] sm:$0xf]
      %v2470 = vld [vmem:[%s5 + $0x3c] sm:$0xf]
      %v2471 = vld [vmem:[%s5 + $0x40] sm:$0xf]
      %v2472 = vld [vmem:[%s5 + $0x44] sm:$0xf]
      %v2473 = vld [vmem:[%s5 + $0x48] sm:$0xf]
      %v2474 = vld [vmem:[%s5 + $0x4c] sm:$0xf]
      %v2475 = vld [vmem:[%s5 + $0x50] sm:$0xf]
      %v2476 = vld [vmem:[%s5 + $0x54] sm:$0xf]
      %v2477 = vld [vmem:[%s5 + $0x58] sm:$0xf]
      %v2478 = vld [vmem:[%s5 + $0x5c] sm:$0xf]
      %v2479 = vld [vmem:[%s5 + $0x60] sm:$0xf]
      %v2480 = vld [vmem:[%s5 + $0x64] sm:$0xf]
      %v2481 = vld [vmem:[%s5 + $0x68] sm:$0xf]
      %v2482 = vld [vmem:[%s5 + $0x6c] sm:$0xf]
      %v2483 = vld [vmem:[%s5 + $0x70] sm:$0xf]
      %v2484 = vld [vmem:[%s5 + $0x74] sm:$0xf]
      %v2485 = vld [vmem:[%s5 + $0x78] sm:$0xf]
      %v2486 = vld [vmem:[%s5 + $0x7c] sm:$0xf]
      %v2487 = vld [vmem:[%s5 + $0x80] sm:$0xf]
      %v2488 = vld [vmem:[%s5 + $0x84] sm:$0xf]
      %v2489 = vld [vmem:[%s5 + $0x88] sm:$0xf]
      %v2490 = vld [vmem:[%s5 + $0x8c] sm:$0xf]
      %v2491 = vld [vmem:[%s5 + $0x90] sm:$0xf]
      %v2492 = vld [vmem:[%s5 + $0x94] sm:$0xf]
      %v2493 = vld [vmem:[%s5 + $0x98] sm:$0xf]
      %v2494 = vld [vmem:[%s5 + $0x9c] sm:$0xf]
      %v2495 = vld [vmem:[%s5 + $0xa0] sm:$0xf]
      %v2496 = vld [vmem:[%s5 + $0xa4] sm:$0xf]
      %v2497 = vld [vmem:[%s5 + $0xa8] sm:$0xf]
      %v2498 = vld [vmem:[%s5 + $0xac] sm:$0xf]
      %v2499 = vld [vmem:[%s5 + $0xb0] sm:$0xf]
      %v2500 = vld [vmem:[%s5 + $0xb4] sm:$0xf]
      %v2501 = vld [vmem:[%s5 + $0xb8] sm:$0xf]
      %v2502 = vld [vmem:[%s5 + $0xbc] sm:$0xf]
      %v2503 = vld [vmem:[%s5 + $0xc0] sm:$0xf]
      %v2504 = vld [vmem:[%s5 + $0xc4] sm:$0xf]
      %v2505 = vld [vmem:[%s5 + $0xc8] sm:$0xf]
      %v2506 = vld [vmem:[%s5 + $0xcc] sm:$0xf]
      %v2507 = vld [vmem:[%s5 + $0xd0] sm:$0xf]
      %v2508 = vld [vmem:[%s5 + $0xd4] sm:$0xf]
      %v2509 = vld [vmem:[%s5 + $0xd8] sm:$0xf]
      %v2510 = vld [vmem:[%s5 + $0xdc] sm:$0xf]
      %v2511 = vld [vmem:[%s5 + $0xe0] sm:$0xf]
      %v2512 = vld [vmem:[%s5 + $0xe4] sm:$0xf]
      %v2513 = vld [vmem:[%s5 + $0xe8] sm:$0xf]
      %v2514 = vld [vmem:[%s5 + $0xec] sm:$0xf]
      %v2515 = vld [vmem:[%s5 + $0xf0] sm:$0xf]
      %v2516 = vld [vmem:[%s5 + $0xf4] sm:$0xf]
      %v2517 = vld [vmem:[%s5 + $0xf8] sm:$0xf]
      %v2518 = vld [vmem:[%s5 + $0xfc] sm:$0xf]
      %v2519 = vld [vmem:[%s5 + $0x100] sm:$0xf]
      %v2520 = vld [vmem:[%s5 + $0x104] sm:$0xf]
      %v2521 = vld [vmem:[%s5 + $0x108] sm:$0xf]
      %v2522 = vld [vmem:[%s5 + $0x10c] sm:$0xf]
      %v2523 = vld [vmem:[%s5 + $0x110] sm:$0xf]
      %v2524 = vld [vmem:[%s5 + $0x114] sm:$0xf]
      %v2525 = vld [vmem:[%s5 + $0x118] sm:$0xf]
      %v2526 = vld [vmem:[%s5 + $0x11c] sm:$0xf]
      %v2527 = vld [vmem:[%s5 + $0x120] sm:$0xf]
      %v2528 = vld [vmem:[%s5 + $0x124] sm:$0xf]
      %v2529 = vld [vmem:[%s5 + $0x128] sm:$0xf]
      %v2530 = vld [vmem:[%s5 + $0x12c] sm:$0xf]
      %v2531 = vld [vmem:[%s5 + $0x130] sm:$0xf]
      %v2532 = vld [vmem:[%s5 + $0x134] sm:$0xf]
      %v2533 = vld [vmem:[%s5 + $0x138] sm:$0xf]
      %v2534 = vld [vmem:[%s5 + $0x13c] sm:$0xf]
      %v2535 = vld [vmem:[%s5 + $0x140] sm:$0xf]
      %v2536 = vld [vmem:[%s5 + $0x144] sm:$0xf]
      %v2537 = vld [vmem:[%s5 + $0x148] sm:$0xf]
      %v2538 = vld [vmem:[%s5 + $0x14c] sm:$0xf]
      %v2539 = vld [vmem:[%s5 + $0x150] sm:$0xf]
      %v2540 = vld [vmem:[%s5 + $0x154] sm:$0xf]
      %v2541 = vld [vmem:[%s5 + $0x158] sm:$0xf]
      %v2542 = vld [vmem:[%s5 + $0x15c] sm:$0xf]
      %v2543 = vld [vmem:[%s5 + $0x160] sm:$0xf]
      %v2544 = vld [vmem:[%s5 + $0x164] sm:$0xf]
      %v2545 = vld [vmem:[%s5 + $0x168] sm:$0xf]
      %v2546 = vld [vmem:[%s5 + $0x16c] sm:$0xf]
      %v2547 = vld [vmem:[%s5 + $0x170] sm:$0xf]
      %v2548 = vld [vmem:[%s5 + $0x174] sm:$0xf]
      %v2549 = vld [vmem:[%s5 + $0x178] sm:$0xf]
      %v2550 = vld [vmem:[%s5 + $0x17c] sm:$0xf]
      %v2551 = vld [vmem:[%s5 + $0x180] sm:$0xf]
      %v2552 = vld [vmem:[%s5 + $0x184] sm:$0xf]
      %v2553 = vld [vmem:[%s5 + $0x188] sm:$0xf]
      %v2554 = vld [vmem:[%s5 + $0x18c] sm:$0xf]
      %v2555 = vld [vmem:[%s5 + $0x190] sm:$0xf]
      %v2556 = vld [vmem:[%s5 + $0x194] sm:$0xf]
      %v2557 = vld [vmem:[%s5 + $0x198] sm:$0xf]
      %v2558 = vld [vmem:[%s5 + $0x19c] sm:$0xf]
      %v2559 = vld [vmem:[%s5 + $0x1a0] sm:$0xf]
      %v2560 = vld [vmem:[%s5 + $0x1a4] sm:$0xf]
      %v2561 = vld [vmem:[%s5 + $0x1a8] sm:$0xf]
      %v2562 = vld [vmem:[%s5 + $0x1ac] sm:$0xf]
      %v2563 = vld [vmem:[%s5 + $0x1b0] sm:$0xf]
      %v2564 = vld [vmem:[%s5 + $0x1b4] sm:$0xf]
      %v2565 = vld [vmem:[%s5 + $0x1b8] sm:$0xf]
      %v2566 = vld [vmem:[%s5 + $0x1bc] sm:$0xf]
      %v2567 = vld [vmem:[%s5 + $0x1c0] sm:$0xf]
      %v2568 = vld [vmem:[%s5 + $0x1c4] sm:$0xf]
      %v2569 = vld [vmem:[%s5 + $0x1c8] sm:$0xf]
      %v2570 = vld [vmem:[%s5 + $0x1cc] sm:$0xf]
      %v2571 = vld [vmem:[%s5 + $0x1d0] sm:$0xf]
      %v2572 = vld [vmem:[%s5 + $0x1d4] sm:$0xf]
      %v2573 = vld [vmem:[%s5 + $0x1d8] sm:$0xf]
      %v2574 = vld [vmem:[%s5 + $0x1dc] sm:$0xf]
      %v2575 = vld [vmem:[%s5 + $0x1e0] sm:$0xf]
      %v2576 = vld [vmem:[%s5 + $0x1e4] sm:$0xf]
      %v2577 = vld [vmem:[%s5 + $0x1e8] sm:$0xf]
      %v2578 = vld [vmem:[%s5 + $0x1ec] sm:$0xf]
      %v2579 = vld [vmem:[%s5 + $0x1f0] sm:$0xf]
      %v2580 = vld [vmem:[%s5 + $0x1f4] sm:$0xf]
      %v2581 = vld [vmem:[%s5 + $0x1f8] sm:$0xf]
      %v2582 = vld [vmem:[%s5 + $0x1fc] sm:$0xf]
      %v2583 = vld [vmem:[%s5 + $0x200] sm:$0xf]
      %v2584 = vld [vmem:[%s5 + $0x204] sm:$0xf]
      %v2585 = vld [vmem:[%s5 + $0x208] sm:$0xf]
      %v2586 = vld [vmem:[%s5 + $0x20c] sm:$0xf]
      %v2587 = vld [vmem:[%s5 + $0x210] sm:$0xf]
      %v2588 = vld [vmem:[%s5 + $0x214] sm:$0xf]
      %v2589 = vld [vmem:[%s5 + $0x218] sm:$0xf]
      %v2590 = vld [vmem:[%s5 + $0x21c] sm:$0xf]
      %v2591 = vld [vmem:[%s5 + $0x220] sm:$0xf]
      %v2592 = vld [vmem:[%s5 + $0x224] sm:$0xf]
      %v2593 = vld [vmem:[%s5 + $0x228] sm:$0xf]
      %v2594 = vld [vmem:[%s5 + $0x22c] sm:$0xf]
      %v2595 = vld [vmem:[%s5 + $0x230] sm:$0xf]
      %v2596 = vld [vmem:[%s5 + $0x234] sm:$0xf]
      %v2597 = vld [vmem:[%s5 + $0x238] sm:$0xf]
      %v2598 = vld [vmem:[%s5 + $0x23c] sm:$0xf]
      %v2599 = vld [vmem:[%s5 + $0x240] sm:$0xf]
      %v2600 = vld [vmem:[%s5 + $0x244] sm:$0xf]
      %v2601 = vld [vmem:[%s5 + $0x248] sm:$0xf]
      %v2602 = vld [vmem:[%s5 + $0x24c] sm:$0xf]
      %v2603 = vld [vmem:[%s5 + $0x250] sm:$0xf]
      %v2604 = vld [vmem:[%s5 + $0x254] sm:$0xf]
      %v2605 = vld [vmem:[%s5 + $0x258] sm:$0xf]
      %v2606 = vld [vmem:[%s5 + $0x25c] sm:$0xf]
      %v2607 = vld [vmem:[%s5 + $0x260] sm:$0xf]
      %v2608 = vld [vmem:[%s5 + $0x264] sm:$0xf]
      %v2609 = vld [vmem:[%s5 + $0x268] sm:$0xf]
      %v2610 = vld [vmem:[%s5 + $0x26c] sm:$0xf]
      %v2611 = vld [vmem:[%s5 + $0x270] sm:$0xf]
      %v2612 = vld [vmem:[%s5 + $0x274] sm:$0xf]
      %v2613 = vld [vmem:[%s5 + $0x278] sm:$0xf]
      %v2614 = vld [vmem:[%s5 + $0x27c] sm:$0xf]
      %v2615 = vld [vmem:[%s5 + $0x280] sm:$0xf]
      %v2616 = vld [vmem:[%s5 + $0x284] sm:$0xf]
      %v2617 = vld [vmem:[%s5 + $0x288] sm:$0xf]
      %v2618 = vld [vmem:[%s5 + $0x28c] sm:$0xf]
      %v2619 = vld [vmem:[%s5 + $0x290] sm:$0xf]
      %v2620 = vld [vmem:[%s5 + $0x294] sm:$0xf]
      %v2621 = vld [vmem:[%s5 + $0x298] sm:$0xf]
      %v2622 = vld [vmem:[%s5 + $0x29c] sm:$0xf]
      %v2623 = vld [vmem:[%s5 + $0x2a0] sm:$0xf]
      %v2624 = vld [vmem:[%s5 + $0x2a4] sm:$0xf]
      %v2625 = vld [vmem:[%s5 + $0x2a8] sm:$0xf]
      %v2626 = vld [vmem:[%s5 + $0x2ac] sm:$0xf]
      %v2627 = vld [vmem:[%s5 + $0x2b0] sm:$0xf]
      %v2628 = vld [vmem:[%s5 + $0x2b4] sm:$0xf]
      %v2629 = vld [vmem:[%s5 + $0x2b8] sm:$0xf]
      %v2630 = vld [vmem:[%s5 + $0x2bc] sm:$0xf]
      %v2631 = vld [vmem:[%s5 + $0x2c0] sm:$0xf]
      %v2632 = vld [vmem:[%s5 + $0x2c4] sm:$0xf]
      %v2633 = vld [vmem:[%s5 + $0x2c8] sm:$0xf]
      %v2634 = vld [vmem:[%s5 + $0x2cc] sm:$0xf]
      %v2635 = vld [vmem:[%s5 + $0x2d0] sm:$0xf]
      %v2636 = vld [vmem:[%s5 + $0x2d4] sm:$0xf]
      %v2637 = vld [vmem:[%s5 + $0x2d8] sm:$0xf]
      %v2638 = vld [vmem:[%s5 + $0x2dc] sm:$0xf]
      %v2639 = vld [vmem:[%s5 + $0x2e0] sm:$0xf]
      %v2640 = vld [vmem:[%s5 + $0x2e4] sm:$0xf]
      %v2641 = vld [vmem:[%s5 + $0x2e8] sm:$0xf]
      %v2642 = vld [vmem:[%s5 + $0x2ec] sm:$0xf]
      %v2643 = vld [vmem:[%s5 + $0x2f0] sm:$0xf]
      %v2644 = vld [vmem:[%s5 + $0x2f4] sm:$0xf]
      %v2645 = vld [vmem:[%s5 + $0x2f8] sm:$0xf]
      %v2646 = vld [vmem:[%s5 + $0x2fc] sm:$0xf]
      %v2647 = vld [vmem:[%s6] sm:$0xf]
      %v2648 = vld [vmem:[%s6 + $0x4] sm:$0xf]
      %v2649 = vld [vmem:[%s6 + $0x8] sm:$0xf]
      %v2650 = vld [vmem:[%s6 + $0xc] sm:$0xf]
      %v2651 = vld [vmem:[%s6 + $0x10] sm:$0xf]
      %v2652 = vld [vmem:[%s6 + $0x14] sm:$0xf]
      %v2653 = vld [vmem:[%s6 + $0x18] sm:$0xf]
      %v2654 = vld [vmem:[%s6 + $0x1c] sm:$0xf]
      %v2655 = vld [vmem:[%s6 + $0x20] sm:$0xf]
      %v2656 = vld [vmem:[%s6 + $0x24] sm:$0xf]
      %v2657 = vld [vmem:[%s6 + $0x28] sm:$0xf]
      %v2658 = vld [vmem:[%s6 + $0x2c] sm:$0xf]
      %v2659 = vld [vmem:[%s6 + $0x30] sm:$0xf]
      %v2660 = vld [vmem:[%s6 + $0x34] sm:$0xf]
      %v2661 = vld [vmem:[%s6 + $0x38] sm:$0xf]
      %v2662 = vld [vmem:[%s6 + $0x3c] sm:$0xf]
      %v2663 = vpack.c.bf16 %v2454, %v2454
      %v2680 = vunpack.c.l.b16 %v2455
      %v2681 = vunpack.c.l.b16 %v2456
      %v2682 = vunpack.c.l.b16 %v2457
      %v2683 = vunpack.c.l.b16 %v2458
      %v2684 = vunpack.c.l.b16 %v2459
      %v2685 = vunpack.c.l.b16 %v2460
      %v2686 = vunpack.c.l.b16 %v2461
      %v2687 = vunpack.c.l.b16 %v2462
      %v2688 = vunpack.c.l.b16 %v2463
      %v2689 = vunpack.c.l.b16 %v2464
      %v2690 = vunpack.c.l.b16 %v2465
      %v2691 = vunpack.c.l.b16 %v2466
      %v2692 = vunpack.c.l.b16 %v2467
      %v2693 = vunpack.c.l.b16 %v2468
      %v2694 = vunpack.c.l.b16 %v2469
      %v2695 = vunpack.c.l.b16 %v2470
      %v2696 = vpack.c.b16 %v2681, %v2680
      %v2697 = vpack.c.b16 %v2683, %v2682
      %v2698 = vpack.c.b16 %v2685, %v2684
      %v2699 = vpack.c.b16 %v2687, %v2686
      %v2700 = vpack.c.b16 %v2689, %v2688
      %v2701 = vpack.c.b16 %v2691, %v2690
      %v2702 = vpack.c.b16 %v2693, %v2692
      %v2703 = vpack.c.b16 %v2695, %v2694
      %2712 = vmatprep.subr.bf16.mxu0 0
      %2713 = vmatpush1.bf16.msra.mxu0 %v2696
      %2714 = vmatprep.subr.bf16.mxu0 0
      %2715 = vmatpush1.bf16.msra.mxu0 %v2697
      %2716 = vmatprep.subr.bf16.mxu0 0
      %2717 = vmatpush1.bf16.msra.mxu0 %v2698
      %2718 = vmatprep.subr.bf16.mxu0 0
      %2719 = vmatpush1.bf16.msra.mxu0 %v2699
      %2720 = vmatprep.subr.bf16.mxu0 0
      %2721 = vmatpush1.bf16.msra.mxu0 %v2700
      %2722 = vmatprep.subr.bf16.mxu0 0
      %2723 = vmatpush1.bf16.msra.mxu0 %v2701
      %2724 = vmatprep.subr.bf16.mxu0 0
      %2725 = vmatpush1.bf16.msra.mxu0 %v2702
      %2726 = vmatprep.subr.bf16.mxu0 0
      %2727 = vmatpush1.bf16.msra.mxu0 %v2703
      %2728 = vmatprep.subr.bf16.mxu0 0
      %2729 = vmatpush1.bf16.msra.mxu0 0
      %2730 = vmatprep.subr.bf16.mxu0 0
      %2731 = vmatpush1.bf16.msra.mxu0 0
      %2732 = vmatprep.subr.bf16.mxu0 0
      %2733 = vmatpush1.bf16.msra.mxu0 0
      %2734 = vmatprep.subr.bf16.mxu0 0
      %2735 = vmatpush1.bf16.msra.mxu0 0
      %2736 = vmatprep.subr.bf16.mxu0 0
      %2737 = vmatpush1.bf16.msra.mxu0 0
      %2738 = vmatprep.subr.bf16.mxu0 0
      %2739 = vmatpush1.bf16.msra.mxu0 0
      %2740 = vmatprep.subr.bf16.mxu0 0
      %2741 = vmatpush1.bf16.msra.mxu0 0
      %2742 = vmatprep.subr.bf16.mxu0 0
      %2743 = vmatpush1.bf16.msra.mxu0 0
      %2744 = vmatprep.mubr.bf16.mxu0 0
      %2745 = vmatmul.mubr.bf16.gmra.mrb[0].mxu0 %v2663
      %v2746 = vpop.f32.mrb[0].mxu0
      %v2747 = vadd.f32 0.0, %v2746
      %v2748 = vpop.f32.mrb[0].mxu0
      %v2749 = vpop.f32.mrb[0].mxu0
      %v2750 = vpop.f32.mrb[0].mxu0
      %2751 = vdwg.mxu0
      %v2768 = vunpack.c.l.b16 %v2471
      %v2769 = vunpack.c.l.b16 %v2472
      %v2770 = vunpack.c.l.b16 %v2473
      %v2771 = vunpack.c.l.b16 %v2474
      %v2772 = vunpack.c.l.b16 %v2475
      %v2773 = vunpack.c.l.b16 %v2476
      %v2774 = vunpack.c.l.b16 %v2477
      %v2775 = vunpack.c.l.b16 %v2478
      %v2776 = vunpack.c.l.b16 %v2479
      %v2777 = vunpack.c.l.b16 %v2480
      %v2778 = vunpack.c.l.b16 %v2481
      %v2779 = vunpack.c.l.b16 %v2482
      %v2780 = vunpack.c.l.b16 %v2483
      %v2781 = vunpack.c.l.b16 %v2484
      %v2782 = vunpack.c.l.b16 %v2485
      %v2783 = vunpack.c.l.b16 %v2486
      %v2784 = vpack.c.b16 %v2769, %v2768
      %v2785 = vpack.c.b16 %v2771, %v2770
      %v2786 = vpack.c.b16 %v2773, %v2772
      %v2787 = vpack.c.b16 %v2775, %v2774
      %v2788 = vpack.c.b16 %v2777, %v2776
      %v2789 = vpack.c.b16 %v2779, %v2778
      %v2790 = vpack.c.b16 %v2781, %v2780
      %v2791 = vpack.c.b16 %v2783, %v2782
      %2800 = vmatprep.subr.bf16.mxu0 0
      %2801 = vmatpush1.bf16.msra.mxu0 %v2784
      %2802 = vmatprep.subr.bf16.mxu0 0
      %2803 = vmatpush1.bf16.msra.mxu0 %v2785
      %2804 = vmatprep.subr.bf16.mxu0 0
      %2805 = vmatpush1.bf16.msra.mxu0 %v2786
      %2806 = vmatprep.subr.bf16.mxu0 0
      %2807 = vmatpush1.bf16.msra.mxu0 %v2787
      %2808 = vmatprep.subr.bf16.mxu0 0
      %2809 = vmatpush1.bf16.msra.mxu0 %v2788
      %2810 = vmatprep.subr.bf16.mxu0 0
      %2811 = vmatpush1.bf16.msra.mxu0 %v2789
      %2812 = vmatprep.subr.bf16.mxu0 0
      %2813 = vmatpush1.bf16.msra.mxu0 %v2790
      %2814 = vmatprep.subr.bf16.mxu0 0
      %2815 = vmatpush1.bf16.msra.mxu0 %v2791
      %2816 = vmatprep.subr.bf16.mxu0 0
      %2817 = vmatpush1.bf16.msra.mxu0 0
      %2818 = vmatprep.subr.bf16.mxu0 0
      %2819 = vmatpush1.bf16.msra.mxu0 0
      %2820 = vmatprep.subr.bf16.mxu0 0
      %2821 = vmatpush1.bf16.msra.mxu0 0
      %2822 = vmatprep.subr.bf16.mxu0 0
      %2823 = vmatpush1.bf16.msra.mxu0 0
      %2824 = vmatprep.subr.bf16.mxu0 0
      %2825 = vmatpush1.bf16.msra.mxu0 0
      %2826 = vmatprep.subr.bf16.mxu0 0
      %2827 = vmatpush1.bf16.msra.mxu0 0
      %2828 = vmatprep.subr.bf16.mxu0 0
      %2829 = vmatpush1.bf16.msra.mxu0 0
      %2830 = vmatprep.subr.bf16.mxu0 0
      %2831 = vmatpush1.bf16.msra.mxu0 0
      %2832 = vmatprep.mubr.bf16.mxu0 0
      %2833 = vmatmul.mubr.bf16.gmra.mrb[0].mxu0 %v2663
      %v2834 = vpop.f32.mrb[0].mxu0
      %v2835 = vadd.f32 0.0, %v2834
      %v2836 = vpop.f32.mrb[0].mxu0
      %v2837 = vpop.f32.mrb[0].mxu0
      %v2838 = vpop.f32.mrb[0].mxu0
      %2839 = vdwg.mxu0
      %v2856 = vunpack.c.l.b16 %v2487
      %v2857 = vunpack.c.l.b16 %v2488
      %v2858 = vunpack.c.l.b16 %v2489
      %v2859 = vunpack.c.l.b16 %v2490
      %v2860 = vunpack.c.l.b16 %v2491
      %v2861 = vunpack.c.l.b16 %v2492
      %v2862 = vunpack.c.l.b16 %v2493
      %v2863 = vunpack.c.l.b16 %v2494
      %v2864 = vunpack.c.l.b16 %v2495
      %v2865 = vunpack.c.l.b16 %v2496
      %v2866 = vunpack.c.l.b16 %v2497
      %v2867 = vunpack.c.l.b16 %v2498
      %v2868 = vunpack.c.l.b16 %v2499
      %v2869 = vunpack.c.l.b16 %v2500
      %v2870 = vunpack.c.l.b16 %v2501
      %v2871 = vunpack.c.l.b16 %v2502
      %v2872 = vpack.c.b16 %v2857, %v2856
      %v2873 = vpack.c.b16 %v2859, %v2858
      %v2874 = vpack.c.b16 %v2861, %v2860
      %v2875 = vpack.c.b16 %v2863, %v2862
      %v2876 = vpack.c.b16 %v2865, %v2864
      %v2877 = vpack.c.b16 %v2867, %v2866
      %v2878 = vpack.c.b16 %v2869, %v2868
      %v2879 = vpack.c.b16 %v2871, %v2870
      %2888 = vmatprep.subr.bf16.mxu0 0
      %2889 = vmatpush1.bf16.msra.mxu0 %v2872
      %2890 = vmatprep.subr.bf16.mxu0 0
      %2891 = vmatpush1.bf16.msra.mxu0 %v2873
      %2892 = vmatprep.subr.bf16.mxu0 0
      %2893 = vmatpush1.bf16.msra.mxu0 %v2874
      %2894 = vmatprep.subr.bf16.mxu0 0
      %2895 = vmatpush1.bf16.msra.mxu0 %v2875
      %2896 = vmatprep.subr.bf16.mxu0 0
      %2897 = vmatpush1.bf16.msra.mxu0 %v2876
      %2898 = vmatprep.subr.bf16.mxu0 0
      %2899 = vmatpush1.bf16.msra.mxu0 %v2877
      %2900 = vmatprep.subr.bf16.mxu0 0
      %2901 = vmatpush1.bf16.msra.mxu0 %v2878
      %2902 = vmatprep.subr.bf16.mxu0 0
      %2903 = vmatpush1.bf16.msra.mxu0 %v2879
      %2904 = vmatprep.subr.bf16.mxu0 0
      %2905 = vmatpush1.bf16.msra.mxu0 0
      %2906 = vmatprep.subr.bf16.mxu0 0
      %2907 = vmatpush1.bf16.msra.mxu0 0
      %2908 = vmatprep.subr.bf16.mxu0 0
      %2909 = vmatpush1.bf16.msra.mxu0 0
      %2910 = vmatprep.subr.bf16.mxu0 0
      %2911 = vmatpush1.bf16.msra.mxu0 0
      %2912 = vmatprep.subr.bf16.mxu0 0
      %2913 = vmatpush1.bf16.msra.mxu0 0
      %2914 = vmatprep.subr.bf16.mxu0 0
      %2915 = vmatpush1.bf16.msra.mxu0 0
      %2916 = vmatprep.subr.bf16.mxu0 0
      %2917 = vmatpush1.bf16.msra.mxu0 0
      %2918 = vmatprep.subr.bf16.mxu0 0
      %2919 = vmatpush1.bf16.msra.mxu0 0
      %2920 = vmatprep.mubr.bf16.mxu0 0
      %2921 = vmatmul.mubr.bf16.gmra.mrb[0].mxu0 %v2663
      %v2922 = vpop.f32.mrb[0].mxu0
      %v2923 = vadd.f32 0.0, %v2922
      %v2924 = vpop.f32.mrb[0].mxu0
      %v2925 = vpop.f32.mrb[0].mxu0
      %v2926 = vpop.f32.mrb[0].mxu0
      %2927 = vdwg.mxu0
      %v2944 = vunpack.c.l.b16 %v2503
      %v2945 = vunpack.c.l.b16 %v2504
      %v2946 = vunpack.c.l.b16 %v2505
      %v2947 = vunpack.c.l.b16 %v2506
      %v2948 = vunpack.c.l.b16 %v2507
      %v2949 = vunpack.c.l.b16 %v2508
      %v2950 = vunpack.c.l.b16 %v2509
      %v2951 = vunpack.c.l.b16 %v2510
      %v2952 = vunpack.c.l.b16 %v2511
      %v2953 = vunpack.c.l.b16 %v2512
      %v2954 = vunpack.c.l.b16 %v2513
      %v2955 = vunpack.c.l.b16 %v2514
      %v2956 = vunpack.c.l.b16 %v2515
      %v2957 = vunpack.c.l.b16 %v2516
      %v2958 = vunpack.c.l.b16 %v2517
      %v2959 = vunpack.c.l.b16 %v2518
      %v2960 = vpack.c.b16 %v2945, %v2944
      %v2961 = vpack.c.b16 %v2947, %v2946
      %v2962 = vpack.c.b16 %v2949, %v2948
      %v2963 = vpack.c.b16 %v2951, %v2950
      %v2964 = vpack.c.b16 %v2953, %v2952
      %v2965 = vpack.c.b16 %v2955, %v2954
      %v2966 = vpack.c.b16 %v2957, %v2956
      %v2967 = vpack.c.b16 %v2959, %v2958
      %2976 = vmatprep.subr.bf16.mxu0 0
      %2977 = vmatpush1.bf16.msra.mxu0 %v2960
      %2978 = vmatprep.subr.bf16.mxu0 0
      %2979 = vmatpush1.bf16.msra.mxu0 %v2961
      %2980 = vmatprep.subr.bf16.mxu0 0
      %2981 = vmatpush1.bf16.msra.mxu0 %v2962
      %2982 = vmatprep.subr.bf16.mxu0 0
      %2983 = vmatpush1.bf16.msra.mxu0 %v2963
      %2984 = vmatprep.subr.bf16.mxu0 0
      %2985 = vmatpush1.bf16.msra.mxu0 %v2964
      %2986 = vmatprep.subr.bf16.mxu0 0
      %2987 = vmatpush1.bf16.msra.mxu0 %v2965
      %2988 = vmatprep.subr.bf16.mxu0 0
      %2989 = vmatpush1.bf16.msra.mxu0 %v2966
      %2990 = vmatprep.subr.bf16.mxu0 0
      %2991 = vmatpush1.bf16.msra.mxu0 %v2967
      %2992 = vmatprep.subr.bf16.mxu0 0
      %2993 = vmatpush1.bf16.msra.mxu0 0
      %2994 = vmatprep.subr.bf16.mxu0 0
      %2995 = vmatpush1.bf16.msra.mxu0 0
      %2996 = vmatprep.subr.bf16.mxu0 0
      %2997 = vmatpush1.bf16.msra.mxu0 0
      %2998 = vmatprep.subr.bf16.mxu0 0
      %2999 = vmatpush1.bf16.msra.mxu0 0
      %3000 = vmatprep.subr.bf16.mxu0 0
      %3001 = vmatpush1.bf16.msra.mxu0 0
      %3002 = vmatprep.subr.bf16.mxu0 0
      %3003 = vmatpush1.bf16.msra.mxu0 0
      %3004 = vmatprep.subr.bf16.mxu0 0
      %3005 = vmatpush1.bf16.msra.mxu0 0
      %3006 = vmatprep.subr.bf16.mxu0 0
      %3007 = vmatpush1.bf16.msra.mxu0 0
      %3008 = vmatprep.mubr.bf16.mxu0 0
      %3009 = vmatmul.mubr.bf16.gmra.mrb[0].mxu0 %v2663
      %v3010 = vpop.f32.mrb[0].mxu0
      %v3011 = vadd.f32 0.0, %v3010
      %v3012 = vpop.f32.mrb[0].mxu0
      %v3013 = vpop.f32.mrb[0].mxu0
      %v3014 = vpop.f32.mrb[0].mxu0
      %3015 = vdwg.mxu0
      %v3032 = vunpack.c.l.b16 %v2519
      %v3033 = vunpack.c.l.b16 %v2520
      %v3034 = vunpack.c.l.b16 %v2521
      %v3035 = vunpack.c.l.b16 %v2522
      %v3036 = vunpack.c.l.b16 %v2523
      %v3037 = vunpack.c.l.b16 %v2524
      %v3038 = vunpack.c.l.b16 %v2525
      %v3039 = vunpack.c.l.b16 %v2526
      %v3040 = vunpack.c.l.b16 %v2527
      %v3041 = vunpack.c.l.b16 %v2528
      %v3042 = vunpack.c.l.b16 %v2529
      %v3043 = vunpack.c.l.b16 %v2530
      %v3044 = vunpack.c.l.b16 %v2531
      %v3045 = vunpack.c.l.b16 %v2532
      %v3046 = vunpack.c.l.b16 %v2533
      %v3047 = vunpack.c.l.b16 %v2534
      %v3048 = vpack.c.b16 %v3033, %v3032
      %v3049 = vpack.c.b16 %v3035, %v3034
      %v3050 = vpack.c.b16 %v3037, %v3036
      %v3051 = vpack.c.b16 %v3039, %v3038
      %v3052 = vpack.c.b16 %v3041, %v3040
      %v3053 = vpack.c.b16 %v3043, %v3042
      %v3054 = vpack.c.b16 %v3045, %v3044
      %v3055 = vpack.c.b16 %v3047, %v3046
      %3064 = vmatprep.subr.bf16.mxu0 0
      %3065 = vmatpush1.bf16.msra.mxu0 %v3048
      %3066 = vmatprep.subr.bf16.mxu0 0
      %3067 = vmatpush1.bf16.msra.mxu0 %v3049
      %3068 = vmatprep.subr.bf16.mxu0 0
      %3069 = vmatpush1.bf16.msra.mxu0 %v3050
      %3070 = vmatprep.subr.bf16.mxu0 0
      %3071 = vmatpush1.bf16.msra.mxu0 %v3051
      %3072 = vmatprep.subr.bf16.mxu0 0
      %3073 = vmatpush1.bf16.msra.mxu0 %v3052
      %3074 = vmatprep.subr.bf16.mxu0 0
      %3075 = vmatpush1.bf16.msra.mxu0 %v3053
      %3076 = vmatprep.subr.bf16.mxu0 0
      %3077 = vmatpush1.bf16.msra.mxu0 %v3054
      %3078 = vmatprep.subr.bf16.mxu0 0
      %3079 = vmatpush1.bf16.msra.mxu0 %v3055
      %3080 = vmatprep.subr.bf16.mxu0 0
      %3081 = vmatpush1.bf16.msra.mxu0 0
      %3082 = vmatprep.subr.bf16.mxu0 0
      %3083 = vmatpush1.bf16.msra.mxu0 0
      %3084 = vmatprep.subr.bf16.mxu0 0
      %3085 = vmatpush1.bf16.msra.mxu0 0
      %3086 = vmatprep.subr.bf16.mxu0 0
      %3087 = vmatpush1.bf16.msra.mxu0 0
      %3088 = vmatprep.subr.bf16.mxu0 0
      %3089 = vmatpush1.bf16.msra.mxu0 0
      %3090 = vmatprep.subr.bf16.mxu0 0
      %3091 = vmatpush1.bf16.msra.mxu0 0
      %3092 = vmatprep.subr.bf16.mxu0 0
      %3093 = vmatpush1.bf16.msra.mxu0 0
      %3094 = vmatprep.subr.bf16.mxu0 0
      %3095 = vmatpush1.bf16.msra.mxu0 0
      %3096 = vmatprep.mubr.bf16.mxu0 0
      %3097 = vmatmul.mubr.bf16.gmra.mrb[0].mxu0 %v700
      %v3098 = vpop.f32.mrb[0].mxu0
      %v3099 = vadd.f32 0.0, %v3098
      %v3100 = vpop.f32.mrb[0].mxu0
      %v3101 = vpop.f32.mrb[0].mxu0
      %v3102 = vpop.f32.mrb[0].mxu0
      %3103 = vdwg.mxu0
      %v3120 = vunpack.c.l.b16 %v2535
      %v3121 = vunpack.c.l.b16 %v2536
      %v3122 = vunpack.c.l.b16 %v2537
      %v3123 = vunpack.c.l.b16 %v2538
      %v3124 = vunpack.c.l.b16 %v2539
      %v3125 = vunpack.c.l.b16 %v2540
      %v3126 = vunpack.c.l.b16 %v2541
      %v3127 = vunpack.c.l.b16 %v2542
      %v3128 = vunpack.c.l.b16 %v2543
      %v3129 = vunpack.c.l.b16 %v2544
      %v3130 = vunpack.c.l.b16 %v2545
      %v3131 = vunpack.c.l.b16 %v2546
      %v3132 = vunpack.c.l.b16 %v2547
      %v3133 = vunpack.c.l.b16 %v2548
      %v3134 = vunpack.c.l.b16 %v2549
      %v3135 = vunpack.c.l.b16 %v2550
      %v3136 = vpack.c.b16 %v3121, %v3120
      %v3137 = vpack.c.b16 %v3123, %v3122
      %v3138 = vpack.c.b16 %v3125, %v3124
      %v3139 = vpack.c.b16 %v3127, %v3126
      %v3140 = vpack.c.b16 %v3129, %v3128
      %v3141 = vpack.c.b16 %v3131, %v3130
      %v3142 = vpack.c.b16 %v3133, %v3132
      %v3143 = vpack.c.b16 %v3135, %v3134
      %3152 = vmatprep.subr.bf16.mxu0 0
      %3153 = vmatpush1.bf16.msra.mxu0 %v3136
      %3154 = vmatprep.subr.bf16.mxu0 0
      %3155 = vmatpush1.bf16.msra.mxu0 %v3137
      %3156 = vmatprep.subr.bf16.mxu0 0
      %3157 = vmatpush1.bf16.msra.mxu0 %v3138
      %3158 = vmatprep.subr.bf16.mxu0 0
      %3159 = vmatpush1.bf16.msra.mxu0 %v3139
      %3160 = vmatprep.subr.bf16.mxu0 0
      %3161 = vmatpush1.bf16.msra.mxu0 %v3140
      %3162 = vmatprep.subr.bf16.mxu0 0
      %3163 = vmatpush1.bf16.msra.mxu0 %v3141
      %3164 = vmatprep.subr.bf16.mxu0 0
      %3165 = vmatpush1.bf16.msra.mxu0 %v3142
      %3166 = vmatprep.subr.bf16.mxu0 0
      %3167 = vmatpush1.bf16.msra.mxu0 %v3143
      %3168 = vmatprep.subr.bf16.mxu0 0
      %3169 = vmatpush1.bf16.msra.mxu0 0
      %3170 = vmatprep.subr.bf16.mxu0 0
      %3171 = vmatpush1.bf16.msra.mxu0 0
      %3172 = vmatprep.subr.bf16.mxu0 0
      %3173 = vmatpush1.bf16.msra.mxu0 0
      %3174 = vmatprep.subr.bf16.mxu0 0
      %3175 = vmatpush1.bf16.msra.mxu0 0
      %3176 = vmatprep.subr.bf16.mxu0 0
      %3177 = vmatpush1.bf16.msra.mxu0 0
      %3178 = vmatprep.subr.bf16.mxu0 0
      %3179 = vmatpush1.bf16.msra.mxu0 0
      %3180 = vmatprep.subr.bf16.mxu0 0
      %3181 = vmatpush1.bf16.msra.mxu0 0
      %3182 = vmatprep.subr.bf16.mxu0 0
      %3183 = vmatpush1.bf16.msra.mxu0 0
      %3184 = vmatprep.mubr.bf16.mxu0 0
      %3185 = vmatmul.mubr.bf16.gmra.mrb[0].mxu0 %v700
      %v3186 = vpop.f32.mrb[0].mxu0
      %v3187 = vadd.f32 0.0, %v3186
      %v3188 = vpop.f32.mrb[0].mxu0
      %v3189 = vpop.f32.mrb[0].mxu0
      %v3190 = vpop.f32.mrb[0].mxu0
      %3191 = vdwg.mxu0
      %v3208 = vunpack.c.l.b16 %v2551
      %v3209 = vunpack.c.l.b16 %v2552
      %v3210 = vunpack.c.l.b16 %v2553
      %v3211 = vunpack.c.l.b16 %v2554
      %v3212 = vunpack.c.l.b16 %v2555
      %v3213 = vunpack.c.l.b16 %v2556
      %v3214 = vunpack.c.l.b16 %v2557
      %v3215 = vunpack.c.l.b16 %v2558
      %v3216 = vunpack.c.l.b16 %v2559
      %v3217 = vunpack.c.l.b16 %v2560
      %v3218 = vunpack.c.l.b16 %v2561
      %v3219 = vunpack.c.l.b16 %v2562
      %v3220 = vunpack.c.l.b16 %v2563
      %v3221 = vunpack.c.l.b16 %v2564
      %v3222 = vunpack.c.l.b16 %v2565
      %v3223 = vunpack.c.l.b16 %v2566
      %v3224 = vpack.c.b16 %v3209, %v3208
      %v3225 = vpack.c.b16 %v3211, %v3210
      %v3226 = vpack.c.b16 %v3213, %v3212
      %v3227 = vpack.c.b16 %v3215, %v3214
      %v3228 = vpack.c.b16 %v3217, %v3216
      %v3229 = vpack.c.b16 %v3219, %v3218
      %v3230 = vpack.c.b16 %v3221, %v3220
      %v3231 = vpack.c.b16 %v3223, %v3222
      %3240 = vmatprep.subr.bf16.mxu0 0
      %3241 = vmatpush1.bf16.msra.mxu0 %v3224
      %3242 = vmatprep.subr.bf16.mxu0 0
      %3243 = vmatpush1.bf16.msra.mxu0 %v3225
      %3244 = vmatprep.subr.bf16.mxu0 0
      %3245 = vmatpush1.bf16.msra.mxu0 %v3226
      %3246 = vmatprep.subr.bf16.mxu0 0
      %3247 = vmatpush1.bf16.msra.mxu0 %v3227
      %3248 = vmatprep.subr.bf16.mxu0 0
      %3249 = vmatpush1.bf16.msra.mxu0 %v3228
      %3250 = vmatprep.subr.bf16.mxu0 0
      %3251 = vmatpush1.bf16.msra.mxu0 %v3229
      %3252 = vmatprep.subr.bf16.mxu0 0
      %3253 = vmatpush1.bf16.msra.mxu0 %v3230
      %3254 = vmatprep.subr.bf16.mxu0 0
      %3255 = vmatpush1.bf16.msra.mxu0 %v3231
      %3256 = vmatprep.subr.bf16.mxu0 0
      %3257 = vmatpush1.bf16.msra.mxu0 0
      %3258 = vmatprep.subr.bf16.mxu0 0
      %3259 = vmatpush1.bf16.msra.mxu0 0
      %3260 = vmatprep.subr.bf16.mxu0 0
      %3261 = vmatpush1.bf16.msra.mxu0 0
      %3262 = vmatprep.subr.bf16.mxu0 0
      %3263 = vmatpush1.bf16.msra.mxu0 0
      %3264 = vmatprep.subr.bf16.mxu0 0
      %3265 = vmatpush1.bf16.msra.mxu0 0
      %3266 = vmatprep.subr.bf16.mxu0 0
      %3267 = vmatpush1.bf16.msra.mxu0 0
      %3268 = vmatprep.subr.bf16.mxu0 0
      %3269 = vmatpush1.bf16.msra.mxu0 0
      %3270 = vmatprep.subr.bf16.mxu0 0
      %3271 = vmatpush1.bf16.msra.mxu0 0
      %3272 = vmatprep.mubr.bf16.mxu0 0
      %3273 = vmatmul.mubr.bf16.gmra.mrb[0].mxu0 %v700
      %v3274 = vpop.f32.mrb[0].mxu0
      %v3275 = vadd.f32 0.0, %v3274
      %v3276 = vpop.f32.mrb[0].mxu0
      %v3277 = vpop.f32.mrb[0].mxu0
      %v3278 = vpop.f32.mrb[0].mxu0
      %3279 = vdwg.mxu0
      %v3296 = vunpack.c.l.b16 %v2567
      %v3297 = vunpack.c.l.b16 %v2568
      %v3298 = vunpack.c.l.b16 %v2569
      %v3299 = vunpack.c.l.b16 %v2570
      %v3300 = vunpack.c.l.b16 %v2571
      %v3301 = vunpack.c.l.b16 %v2572
      %v3302 = vunpack.c.l.b16 %v2573
      %v3303 = vunpack.c.l.b16 %v2574
      %v3304 = vunpack.c.l.b16 %v2575
      %v3305 = vunpack.c.l.b16 %v2576
      %v3306 = vunpack.c.l.b16 %v2577
      %v3307 = vunpack.c.l.b16 %v2578
      %v3308 = vunpack.c.l.b16 %v2579
      %v3309 = vunpack.c.l.b16 %v2580
      %v3310 = vunpack.c.l.b16 %v2581
      %v3311 = vunpack.c.l.b16 %v2582
      %v3312 = vpack.c.b16 %v3297, %v3296
      %v3313 = vpack.c.b16 %v3299, %v3298
      %v3314 = vpack.c.b16 %v3301, %v3300
      %v3315 = vpack.c.b16 %v3303, %v3302
      %v3316 = vpack.c.b16 %v3305, %v3304
      %v3317 = vpack.c.b16 %v3307, %v3306
      %v3318 = vpack.c.b16 %v3309, %v3308
      %v3319 = vpack.c.b16 %v3311, %v3310
      %3328 = vmatprep.subr.bf16.mxu0 0
      %3329 = vmatpush1.bf16.msra.mxu0 %v3312
      %3330 = vmatprep.subr.bf16.mxu0 0
      %3331 = vmatpush1.bf16.msra.mxu0 %v3313
      %3332 = vmatprep.subr.bf16.mxu0 0
      %3333 = vmatpush1.bf16.msra.mxu0 %v3314
      %3334 = vmatprep.subr.bf16.mxu0 0
      %3335 = vmatpush1.bf16.msra.mxu0 %v3315
      %3336 = vmatprep.subr.bf16.mxu0 0
      %3337 = vmatpush1.bf16.msra.mxu0 %v3316
      %3338 = vmatprep.subr.bf16.mxu0 0
      %3339 = vmatpush1.bf16.msra.mxu0 %v3317
      %3340 = vmatprep.subr.bf16.mxu0 0
      %3341 = vmatpush1.bf16.msra.mxu0 %v3318
      %3342 = vmatprep.subr.bf16.mxu0 0
      %3343 = vmatpush1.bf16.msra.mxu0 %v3319
      %3344 = vmatprep.subr.bf16.mxu0 0
      %3345 = vmatpush1.bf16.msra.mxu0 0
      %3346 = vmatprep.subr.bf16.mxu0 0
      %3347 = vmatpush1.bf16.msra.mxu0 0
      %3348 = vmatprep.subr.bf16.mxu0 0
      %3349 = vmatpush1.bf16.msra.mxu0 0
      %3350 = vmatprep.subr.bf16.mxu0 0
      %3351 = vmatpush1.bf16.msra.mxu0 0
      %3352 = vmatprep.subr.bf16.mxu0 0
      %3353 = vmatpush1.bf16.msra.mxu0 0
      %3354 = vmatprep.subr.bf16.mxu0 0
      %3355 = vmatpush1.bf16.msra.mxu0 0
      %3356 = vmatprep.subr.bf16.mxu0 0
      %3357 = vmatpush1.bf16.msra.mxu0 0
      %3358 = vmatprep.subr.bf16.mxu0 0
      %3359 = vmatpush1.bf16.msra.mxu0 0
      %3360 = vmatprep.mubr.bf16.mxu0 0
      %3361 = vmatmul.mubr.bf16.gmra.mrb[0].mxu0 %v700
      %v3362 = vpop.f32.mrb[0].mxu0
      %v3363 = vadd.f32 0.0, %v3362
      %v3364 = vpop.f32.mrb[0].mxu0
      %v3365 = vpop.f32.mrb[0].mxu0
      %v3366 = vpop.f32.mrb[0].mxu0
      %3367 = vdwg.mxu0
      %v3384 = vunpack.c.l.b16 %v2583
      %v3385 = vunpack.c.l.b16 %v2584
      %v3386 = vunpack.c.l.b16 %v2585
      %v3387 = vunpack.c.l.b16 %v2586
      %v3388 = vunpack.c.l.b16 %v2587
      %v3389 = vunpack.c.l.b16 %v2588
      %v3390 = vunpack.c.l.b16 %v2589
      %v3391 = vunpack.c.l.b16 %v2590
      %v3392 = vunpack.c.l.b16 %v2591
      %v3393 = vunpack.c.l.b16 %v2592
      %v3394 = vunpack.c.l.b16 %v2593
      %v3395 = vunpack.c.l.b16 %v2594
      %v3396 = vunpack.c.l.b16 %v2595
      %v3397 = vunpack.c.l.b16 %v2596
      %v3398 = vunpack.c.l.b16 %v2597
      %v3399 = vunpack.c.l.b16 %v2598
      %v3400 = vpack.c.b16 %v3385, %v3384
      %v3401 = vpack.c.b16 %v3387, %v3386
      %v3402 = vpack.c.b16 %v3389, %v3388
      %v3403 = vpack.c.b16 %v3391, %v3390
      %v3404 = vpack.c.b16 %v3393, %v3392
      %v3405 = vpack.c.b16 %v3395, %v3394
      %v3406 = vpack.c.b16 %v3397, %v3396
      %v3407 = vpack.c.b16 %v3399, %v3398
      %3416 = vmatprep.subr.bf16.mxu0 0
      %3417 = vmatpush1.bf16.msra.mxu0 %v3400
      %3418 = vmatprep.subr.bf16.mxu0 0
      %3419 = vmatpush1.bf16.msra.mxu0 %v3401
      %3420 = vmatprep.subr.bf16.mxu0 0
      %3421 = vmatpush1.bf16.msra.mxu0 %v3402
      %3422 = vmatprep.subr.bf16.mxu0 0
      %3423 = vmatpush1.bf16.msra.mxu0 %v3403
      %3424 = vmatprep.subr.bf16.mxu0 0
      %3425 = vmatpush1.bf16.msra.mxu0 %v3404
      %3426 = vmatprep.subr.bf16.mxu0 0
      %3427 = vmatpush1.bf16.msra.mxu0 %v3405
      %3428 = vmatprep.subr.bf16.mxu0 0
      %3429 = vmatpush1.bf16.msra.mxu0 %v3406
      %3430 = vmatprep.subr.bf16.mxu0 0
      %3431 = vmatpush1.bf16.msra.mxu0 %v3407
      %3432 = vmatprep.subr.bf16.mxu0 0
      %3433 = vmatpush1.bf16.msra.mxu0 0
      %3434 = vmatprep.subr.bf16.mxu0 0
      %3435 = vmatpush1.bf16.msra.mxu0 0
      %3436 = vmatprep.subr.bf16.mxu0 0
      %3437 = vmatpush1.bf16.msra.mxu0 0
      %3438 = vmatprep.subr.bf16.mxu0 0
      %3439 = vmatpush1.bf16.msra.mxu0 0
      %3440 = vmatprep.subr.bf16.mxu0 0
      %3441 = vmatpush1.bf16.msra.mxu0 0
      %3442 = vmatprep.subr.bf16.mxu0 0
      %3443 = vmatpush1.bf16.msra.mxu0 0
      %3444 = vmatprep.subr.bf16.mxu0 0
      %3445 = vmatpush1.bf16.msra.mxu0 0
      %3446 = vmatprep.subr.bf16.mxu0 0
      %3447 = vmatpush1.bf16.msra.mxu0 0
      %3448 = vmatprep.mubr.bf16.mxu0 0
      %3449 = vmatmul.mubr.bf16.gmra.mrb[0].mxu0 %v700
      %v3450 = vpop.f32.mrb[0].mxu0
      %v3451 = vadd.f32 0.0, %v3450
      %v3452 = vpop.f32.mrb[0].mxu0
      %v3453 = vpop.f32.mrb[0].mxu0
      %v3454 = vpop.f32.mrb[0].mxu0
      %3455 = vdwg.mxu0
      %v3472 = vunpack.c.l.b16 %v2599
      %v3473 = vunpack.c.l.b16 %v2600
      %v3474 = vunpack.c.l.b16 %v2601
      %v3475 = vunpack.c.l.b16 %v2602
      %v3476 = vunpack.c.l.b16 %v2603
      %v3477 = vunpack.c.l.b16 %v2604
      %v3478 = vunpack.c.l.b16 %v2605
      %v3479 = vunpack.c.l.b16 %v2606
      %v3480 = vunpack.c.l.b16 %v2607
      %v3481 = vunpack.c.l.b16 %v2608
      %v3482 = vunpack.c.l.b16 %v2609
      %v3483 = vunpack.c.l.b16 %v2610
      %v3484 = vunpack.c.l.b16 %v2611
      %v3485 = vunpack.c.l.b16 %v2612
      %v3486 = vunpack.c.l.b16 %v2613
      %v3487 = vunpack.c.l.b16 %v2614
      %v3488 = vpack.c.b16 %v3473, %v3472
      %v3489 = vpack.c.b16 %v3475, %v3474
      %v3490 = vpack.c.b16 %v3477, %v3476
      %v3491 = vpack.c.b16 %v3479, %v3478
      %v3492 = vpack.c.b16 %v3481, %v3480
      %v3493 = vpack.c.b16 %v3483, %v3482
      %v3494 = vpack.c.b16 %v3485, %v3484
      %v3495 = vpack.c.b16 %v3487, %v3486
      %3504 = vmatprep.subr.bf16.mxu0 0
      %3505 = vmatpush1.bf16.msra.mxu0 %v3488
      %3506 = vmatprep.subr.bf16.mxu0 0
      %3507 = vmatpush1.bf16.msra.mxu0 %v3489
      %3508 = vmatprep.subr.bf16.mxu0 0
      %3509 = vmatpush1.bf16.msra.mxu0 %v3490
      %3510 = vmatprep.subr.bf16.mxu0 0
      %3511 = vmatpush1.bf16.msra.mxu0 %v3491
      %3512 = vmatprep.subr.bf16.mxu0 0
      %3513 = vmatpush1.bf16.msra.mxu0 %v3492
      %3514 = vmatprep.subr.bf16.mxu0 0
      %3515 = vmatpush1.bf16.msra.mxu0 %v3493
      %3516 = vmatprep.subr.bf16.mxu0 0
      %3517 = vmatpush1.bf16.msra.mxu0 %v3494
      %3518 = vmatprep.subr.bf16.mxu0 0
      %3519 = vmatpush1.bf16.msra.mxu0 %v3495
      %3520 = vmatprep.subr.bf16.mxu0 0
      %3521 = vmatpush1.bf16.msra.mxu0 0
      %3522 = vmatprep.subr.bf16.mxu0 0
      %3523 = vmatpush1.bf16.msra.mxu0 0
      %3524 = vmatprep.subr.bf16.mxu0 0
      %3525 = vmatpush1.bf16.msra.mxu0 0
      %3526 = vmatprep.subr.bf16.mxu0 0
      %3527 = vmatpush1.bf16.msra.mxu0 0
      %3528 = vmatprep.subr.bf16.mxu0 0
      %3529 = vmatpush1.bf16.msra.mxu0 0
      %3530 = vmatprep.subr.bf16.mxu0 0
      %3531 = vmatpush1.bf16.msra.mxu0 0
      %3532 = vmatprep.subr.bf16.mxu0 0
      %3533 = vmatpush1.bf16.msra.mxu0 0
      %3534 = vmatprep.subr.bf16.mxu0 0
      %3535 = vmatpush1.bf16.msra.mxu0 0
      %3536 = vmatprep.mubr.bf16.mxu0 0
      %3537 = vmatmul.mubr.bf16.gmra.mrb[0].mxu0 %v700
      %v3538 = vpop.f32.mrb[0].mxu0
      %v3539 = vadd.f32 0.0, %v3538
      %v3540 = vpop.f32.mrb[0].mxu0
      %v3541 = vpop.f32.mrb[0].mxu0
      %v3542 = vpop.f32.mrb[0].mxu0
      %3543 = vdwg.mxu0
      %v3560 = vunpack.c.l.b16 %v2615
      %v3561 = vunpack.c.l.b16 %v2616
      %v3562 = vunpack.c.l.b16 %v2617
      %v3563 = vunpack.c.l.b16 %v2618
      %v3564 = vunpack.c.l.b16 %v2619
      %v3565 = vunpack.c.l.b16 %v2620
      %v3566 = vunpack.c.l.b16 %v2621
      %v3567 = vunpack.c.l.b16 %v2622
      %v3568 = vunpack.c.l.b16 %v2623
      %v3569 = vunpack.c.l.b16 %v2624
      %v3570 = vunpack.c.l.b16 %v2625
      %v3571 = vunpack.c.l.b16 %v2626
      %v3572 = vunpack.c.l.b16 %v2627
      %v3573 = vunpack.c.l.b16 %v2628
      %v3574 = vunpack.c.l.b16 %v2629
      %v3575 = vunpack.c.l.b16 %v2630
      %v3576 = vpack.c.b16 %v3561, %v3560
      %v3577 = vpack.c.b16 %v3563, %v3562
      %v3578 = vpack.c.b16 %v3565, %v3564
      %v3579 = vpack.c.b16 %v3567, %v3566
      %v3580 = vpack.c.b16 %v3569, %v3568
      %v3581 = vpack.c.b16 %v3571, %v3570
      %v3582 = vpack.c.b16 %v3573, %v3572
      %v3583 = vpack.c.b16 %v3575, %v3574
      %3592 = vmatprep.subr.bf16.mxu0 0
      %3593 = vmatpush1.bf16.msra.mxu0 %v3576
      %3594 = vmatprep.subr.bf16.mxu0 0
      %3595 = vmatpush1.bf16.msra.mxu0 %v3577
      %3596 = vmatprep.subr.bf16.mxu0 0
      %3597 = vmatpush1.bf16.msra.mxu0 %v3578
      %3598 = vmatprep.subr.bf16.mxu0 0
      %3599 = vmatpush1.bf16.msra.mxu0 %v3579
      %3600 = vmatprep.subr.bf16.mxu0 0
      %3601 = vmatpush1.bf16.msra.mxu0 %v3580
      %3602 = vmatprep.subr.bf16.mxu0 0
      %3603 = vmatpush1.bf16.msra.mxu0 %v3581
      %3604 = vmatprep.subr.bf16.mxu0 0
      %3605 = vmatpush1.bf16.msra.mxu0 %v3582
      %3606 = vmatprep.subr.bf16.mxu0 0
      %3607 = vmatpush1.bf16.msra.mxu0 %v3583
      %3608 = vmatprep.subr.bf16.mxu0 0
      %3609 = vmatpush1.bf16.msra.mxu0 0
      %3610 = vmatprep.subr.bf16.mxu0 0
      %3611 = vmatpush1.bf16.msra.mxu0 0
      %3612 = vmatprep.subr.bf16.mxu0 0
      %3613 = vmatpush1.bf16.msra.mxu0 0
      %3614 = vmatprep.subr.bf16.mxu0 0
      %3615 = vmatpush1.bf16.msra.mxu0 0
      %3616 = vmatprep.subr.bf16.mxu0 0
      %3617 = vmatpush1.bf16.msra.mxu0 0
      %3618 = vmatprep.subr.bf16.mxu0 0
      %3619 = vmatpush1.bf16.msra.mxu0 0
      %3620 = vmatprep.subr.bf16.mxu0 0
      %3621 = vmatpush1.bf16.msra.mxu0 0
      %3622 = vmatprep.subr.bf16.mxu0 0
      %3623 = vmatpush1.bf16.msra.mxu0 0
      %3624 = vmatprep.mubr.bf16.mxu0 0
      %3625 = vmatmul.mubr.bf16.gmra.mrb[0].mxu0 %v700
      %v3626 = vpop.f32.mrb[0].mxu0
      %v3627 = vadd.f32 0.0, %v3626
      %v3628 = vpop.f32.mrb[0].mxu0
      %v3629 = vpop.f32.mrb[0].mxu0
      %v3630 = vpop.f32.mrb[0].mxu0
      %3631 = vdwg.mxu0
      %v3648 = vunpack.c.l.b16 %v2631
      %v3649 = vunpack.c.l.b16 %v2632
      %v3650 = vunpack.c.l.b16 %v2633
      %v3651 = vunpack.c.l.b16 %v2634
      %v3652 = vunpack.c.l.b16 %v2635
      %v3653 = vunpack.c.l.b16 %v2636
      %v3654 = vunpack.c.l.b16 %v2637
      %v3655 = vunpack.c.l.b16 %v2638
      %v3656 = vunpack.c.l.b16 %v2639
      %v3657 = vunpack.c.l.b16 %v2640
      %v3658 = vunpack.c.l.b16 %v2641
      %v3659 = vunpack.c.l.b16 %v2642
      %v3660 = vunpack.c.l.b16 %v2643
      %v3661 = vunpack.c.l.b16 %v2644
      %v3662 = vunpack.c.l.b16 %v2645
      %v3663 = vunpack.c.l.b16 %v2646
      %v3664 = vpack.c.b16 %v3649, %v3648
      %v3665 = vpack.c.b16 %v3651, %v3650
      %v3666 = vpack.c.b16 %v3653, %v3652
      %v3667 = vpack.c.b16 %v3655, %v3654
      %v3668 = vpack.c.b16 %v3657, %v3656
      %v3669 = vpack.c.b16 %v3659, %v3658
      %v3670 = vpack.c.b16 %v3661, %v3660
      %v3671 = vpack.c.b16 %v3663, %v3662
      %3680 = vmatprep.subr.bf16.mxu0 0
      %3681 = vmatpush1.bf16.msra.mxu0 %v3664
      %3682 = vmatprep.subr.bf16.mxu0 0
      %3683 = vmatpush1.bf16.msra.mxu0 %v3665
      %3684 = vmatprep.subr.bf16.mxu0 0
      %3685 = vmatpush1.bf16.msra.mxu0 %v3666
      %3686 = vmatprep.subr.bf16.mxu0 0
      %3687 = vmatpush1.bf16.msra.mxu0 %v3667
      %3688 = vmatprep.subr.bf16.mxu0 0
      %3689 = vmatpush1.bf16.msra.mxu0 %v3668
      %3690 = vmatprep.subr.bf16.mxu0 0
      %3691 = vmatpush1.bf16.msra.mxu0 %v3669
      %3692 = vmatprep.subr.bf16.mxu0 0
      %3693 = vmatpush1.bf16.msra.mxu0 %v3670
      %3694 = vmatprep.subr.bf16.mxu0 0
      %3695 = vmatpush1.bf16.msra.mxu0 %v3671
      %3696 = vmatprep.subr.bf16.mxu0 0
      %3697 = vmatpush1.bf16.msra.mxu0 0
      %3698 = vmatprep.subr.bf16.mxu0 0
      %3699 = vmatpush1.bf16.msra.mxu0 0
      %3700 = vmatprep.subr.bf16.mxu0 0
      %3701 = vmatpush1.bf16.msra.mxu0 0
      %3702 = vmatprep.subr.bf16.mxu0 0
      %3703 = vmatpush1.bf16.msra.mxu0 0
      %3704 = vmatprep.subr.bf16.mxu0 0
      %3705 = vmatpush1.bf16.msra.mxu0 0
      %3706 = vmatprep.subr.bf16.mxu0 0
      %3707 = vmatpush1.bf16.msra.mxu0 0
      %3708 = vmatprep.subr.bf16.mxu0 0
      %3709 = vmatpush1.bf16.msra.mxu0 0
      %3710 = vmatprep.subr.bf16.mxu0 0
      %3711 = vmatpush1.bf16.msra.mxu0 0
      %3712 = vmatprep.mubr.bf16.mxu0 0
      %3713 = vmatmul.mubr.bf16.gmra.mrb[0].mxu0 %v700
      %v3714 = vpop.f32.mrb[0].mxu0
      %v3715 = vadd.f32 0.0, %v3714
      %v3716 = vpop.f32.mrb[0].mxu0
      %v3717 = vpop.f32.mrb[0].mxu0
      %v3718 = vpop.f32.mrb[0].mxu0
      %3719 = vdwg.mxu0
      %v3720 = vpack.c.bf16 %v2747, %v2747
      %v3721 = vpack.c.bf16 %v2835, %v2835
      %v3722 = vpack.c.bf16 %v2923, %v2923
      %v3723 = vpack.c.bf16 %v3011, %v3011
      %v3724 = vpack.c.bf16 %v3099, %v3099
      %v3725 = vpack.c.bf16 %v3187, %v3187
      %v3726 = vpack.c.bf16 %v3275, %v3275
      %v3727 = vpack.c.bf16 %v3363, %v3363
      %v3729 = vsel %vm1765, %v3720, 0
      %v3732 = vsel %vm1765, %v3724, 0
      %3734 = vmatprep.subr.bf16.mxu0 0
      %3735 = vmatpush1.bf16.xpose.msra.mxu0 %v3732
      %3736 = vmatprep.subr.bf16.mxu0 0
      %3737 = vmatpush1.bf16.xpose.msra.mxu0 0
      %3738 = vmatprep.subr.bf16.mxu0 0
      %3739 = vmatpush1.bf16.xpose.msra.mxu0 0
      %3740 = vmatprep.subr.bf16.mxu0 0
      %3741 = vmatpush1.bf16.xpose.msra.mxu0 0
      %3742 = vmatprep.subr.bf16.mxu0 0
      %3743 = vmatpush1.bf16.xpose.msra.mxu0 0
      %3744 = vmatprep.subr.bf16.mxu0 0
      %3745 = vmatpush1.bf16.xpose.msra.mxu0 0
      %3746 = vmatprep.subr.bf16.mxu0 0
      %3747 = vmatpush1.bf16.xpose.msra.mxu0 0
      %3748 = vmatprep.subr.bf16.mxu0 0
      %3749 = vmatpush1.bf16.xpose.msra.mxu0 0
      %3750 = vmatprep.subr.bf16.mxu0 0
      %3751 = vmatpush1.bf16.xpose.msra.mxu0 0
      %3752 = vmatprep.subr.bf16.mxu0 0
      %3753 = vmatpush1.bf16.xpose.msra.mxu0 0
      %3754 = vmatprep.subr.bf16.mxu0 0
      %3755 = vmatpush1.bf16.xpose.msra.mxu0 0
      %3756 = vmatprep.subr.bf16.mxu0 0
      %3757 = vmatpush1.bf16.xpose.msra.mxu0 0
      %3758 = vmatprep.subr.bf16.mxu0 0
      %3759 = vmatpush1.bf16.xpose.msra.mxu0 0
      %3760 = vmatprep.subr.bf16.mxu0 0
      %3761 = vmatpush1.bf16.xpose.msra.mxu0 0
      %3762 = vmatprep.subr.bf16.mxu0 0
      %3763 = vmatpush1.bf16.xpose.msra.mxu0 0
      %3764 = vmatprep.subr.bf16.mxu0 0
      %3765 = vmatpush1.bf16.xpose.msra.mxu0 0
      %3766 = vmatprep.mubr.bf16.mxu0 0
      %3767 = vmatmul.mubr.bf16.gmra.mrb[0].mxu0 %v3729
      %v3768 = vpop.f32.mrb[0].mxu0
      %v3769 = vadd.f32 0.0, %v3768
      %v3770 = vpop.f32.mrb[0].mxu0
      %v3771 = vpop.f32.mrb[0].mxu0
      %v3772 = vpop.f32.mrb[0].mxu0
      %3773 = vdwg.mxu0
      %v3775 = vsel %vm1765, %v3721, 0
      %v3778 = vsel %vm1765, %v3725, 0
      %3780 = vmatprep.subr.bf16.mxu0 0
      %3781 = vmatpush1.bf16.xpose.msra.mxu0 %v3778
      %3782 = vmatprep.subr.bf16.mxu0 0
      %3783 = vmatpush1.bf16.xpose.msra.mxu0 0
      %3784 = vmatprep.subr.bf16.mxu0 0
      %3785 = vmatpush1.bf16.xpose.msra.mxu0 0
      %3786 = vmatprep.subr.bf16.mxu0 0
      %3787 = vmatpush1.bf16.xpose.msra.mxu0 0
      %3788 = vmatprep.subr.bf16.mxu0 0
      %3789 = vmatpush1.bf16.xpose.msra.mxu0 0
      %3790 = vmatprep.subr.bf16.mxu0 0
      %3791 = vmatpush1.bf16.xpose.msra.mxu0 0
      %3792 = vmatprep.subr.bf16.mxu0 0
      %3793 = vmatpush1.bf16.xpose.msra.mxu0 0
      %3794 = vmatprep.subr.bf16.mxu0 0
      %3795 = vmatpush1.bf16.xpose.msra.mxu0 0
      %3796 = vmatprep.subr.bf16.mxu0 0
      %3797 = vmatpush1.bf16.xpose.msra.mxu0 0
      %3798 = vmatprep.subr.bf16.mxu0 0
      %3799 = vmatpush1.bf16.xpose.msra.mxu0 0
      %3800 = vmatprep.subr.bf16.mxu0 0
      %3801 = vmatpush1.bf16.xpose.msra.mxu0 0
      %3802 = vmatprep.subr.bf16.mxu0 0
      %3803 = vmatpush1.bf16.xpose.msra.mxu0 0
      %3804 = vmatprep.subr.bf16.mxu0 0
      %3805 = vmatpush1.bf16.xpose.msra.mxu0 0
      %3806 = vmatprep.subr.bf16.mxu0 0
      %3807 = vmatpush1.bf16.xpose.msra.mxu0 0
      %3808 = vmatprep.subr.bf16.mxu0 0
      %3809 = vmatpush1.bf16.xpose.msra.mxu0 0
      %3810 = vmatprep.subr.bf16.mxu0 0
      %3811 = vmatpush1.bf16.xpose.msra.mxu0 0
      %3812 = vmatprep.mubr.bf16.mxu0 0
      %3813 = vmatmul.mubr.bf16.gmra.mrb[0].mxu0 %v3775
      %v3814 = vpop.f32.mrb[0].mxu0
      %v3815 = vadd.f32 0.0, %v3814
      %v3816 = vpop.f32.mrb[0].mxu0
      %v3817 = vpop.f32.mrb[0].mxu0
      %v3818 = vpop.f32.mrb[0].mxu0
      %3819 = vdwg.mxu0
      %v3821 = vsel %vm1765, %v3722, 0
      %v3824 = vsel %vm1765, %v3726, 0
      %3826 = vmatprep.subr.bf16.mxu0 0
      %3827 = vmatpush1.bf16.xpose.msra.mxu0 %v3824
      %3828 = vmatprep.subr.bf16.mxu0 0
      %3829 = vmatpush1.bf16.xpose.msra.mxu0 0
      %3830 = vmatprep.subr.bf16.mxu0 0
      %3831 = vmatpush1.bf16.xpose.msra.mxu0 0
      %3832 = vmatprep.subr.bf16.mxu0 0
      %3833 = vmatpush1.bf16.xpose.msra.mxu0 0
      %3834 = vmatprep.subr.bf16.mxu0 0
      %3835 = vmatpush1.bf16.xpose.msra.mxu0 0
      %3836 = vmatprep.subr.bf16.mxu0 0
      %3837 = vmatpush1.bf16.xpose.msra.mxu0 0
      %3838 = vmatprep.subr.bf16.mxu0 0
      %3839 = vmatpush1.bf16.xpose.msra.mxu0 0
      %3840 = vmatprep.subr.bf16.mxu0 0
      %3841 = vmatpush1.bf16.xpose.msra.mxu0 0
      %3842 = vmatprep.subr.bf16.mxu0 0
      %3843 = vmatpush1.bf16.xpose.msra.mxu0 0
      %3844 = vmatprep.subr.bf16.mxu0 0
      %3845 = vmatpush1.bf16.xpose.msra.mxu0 0
      %3846 = vmatprep.subr.bf16.mxu0 0
      %3847 = vmatpush1.bf16.xpose.msra.mxu0 0
      %3848 = vmatprep.subr.bf16.mxu0 0
      %3849 = vmatpush1.bf16.xpose.msra.mxu0 0
      %3850 = vmatprep.subr.bf16.mxu0 0
      %3851 = vmatpush1.bf16.xpose.msra.mxu0 0
      %3852 = vmatprep.subr.bf16.mxu0 0
      %3853 = vmatpush1.bf16.xpose.msra.mxu0 0
      %3854 = vmatprep.subr.bf16.mxu0 0
      %3855 = vmatpush1.bf16.xpose.msra.mxu0 0
      %3856 = vmatprep.subr.bf16.mxu0 0
      %3857 = vmatpush1.bf16.xpose.msra.mxu0 0
      %3858 = vmatprep.mubr.bf16.mxu0 0
      %3859 = vmatmul.mubr.bf16.gmra.mrb[0].mxu0 %v3821
      %v3860 = vpop.f32.mrb[0].mxu0
      %v3861 = vadd.f32 0.0, %v3860
      %v3862 = vpop.f32.mrb[0].mxu0
      %v3863 = vpop.f32.mrb[0].mxu0
      %v3864 = vpop.f32.mrb[0].mxu0
      %3865 = vdwg.mxu0
      %v3867 = vsel %vm1765, %v3723, 0
      %v3870 = vsel %vm1765, %v3727, 0
      %3872 = vmatprep.subr.bf16.mxu0 0
      %3873 = vmatpush1.bf16.xpose.msra.mxu0 %v3870
      %3874 = vmatprep.subr.bf16.mxu0 0
      %3875 = vmatpush1.bf16.xpose.msra.mxu0 0
      %3876 = vmatprep.subr.bf16.mxu0 0
      %3877 = vmatpush1.bf16.xpose.msra.mxu0 0
      %3878 = vmatprep.subr.bf16.mxu0 0
      %3879 = vmatpush1.bf16.xpose.msra.mxu0 0
      %3880 = vmatprep.subr.bf16.mxu0 0
      %3881 = vmatpush1.bf16.xpose.msra.mxu0 0
      %3882 = vmatprep.subr.bf16.mxu0 0
      %3883 = vmatpush1.bf16.xpose.msra.mxu0 0
      %3884 = vmatprep.subr.bf16.mxu0 0
      %3885 = vmatpush1.bf16.xpose.msra.mxu0 0
      %3886 = vmatprep.subr.bf16.mxu0 0
      %3887 = vmatpush1.bf16.xpose.msra.mxu0 0
      %3888 = vmatprep.subr.bf16.mxu0 0
      %3889 = vmatpush1.bf16.xpose.msra.mxu0 0
      %3890 = vmatprep.subr.bf16.mxu0 0
      %3891 = vmatpush1.bf16.xpose.msra.mxu0 0
      %3892 = vmatprep.subr.bf16.mxu0 0
      %3893 = vmatpush1.bf16.xpose.msra.mxu0 0
      %3894 = vmatprep.subr.bf16.mxu0 0
      %3895 = vmatpush1.bf16.xpose.msra.mxu0 0
      %3896 = vmatprep.subr.bf16.mxu0 0
      %3897 = vmatpush1.bf16.xpose.msra.mxu0 0
      %3898 = vmatprep.subr.bf16.mxu0 0
      %3899 = vmatpush1.bf16.xpose.msra.mxu0 0
      %3900 = vmatprep.subr.bf16.mxu0 0
      %3901 = vmatpush1.bf16.xpose.msra.mxu0 0
      %3902 = vmatprep.subr.bf16.mxu0 0
      %3903 = vmatpush1.bf16.xpose.msra.mxu0 0
      %3904 = vmatprep.mubr.bf16.mxu0 0
      %3905 = vmatmul.mubr.bf16.gmra.mrb[0].mxu0 %v3867
      %v3906 = vpop.f32.mrb[0].mxu0
      %v3907 = vadd.f32 0.0, %v3906
      %v3908 = vpop.f32.mrb[0].mxu0
      %v3909 = vpop.f32.mrb[0].mxu0
      %v3910 = vpop.f32.mrb[0].mxu0
      %3911 = vdwg.mxu0
      %v3912 = vsel %vm1961, %v3769, -inf
      %3913 = vmax.xlane.f32.xlu0 %v3912
      %v3914 = vpop.xlane.xlu0 %3913
      %v3915 = vsel %vm1961, %v3815, -inf
      %3916 = vmax.xlane.f32.xlu0 %v3915
      %v3917 = vpop.xlane.xlu0 %3916
      %v3918 = vsel %vm1961, %v3861, -inf
      %3919 = vmax.xlane.f32.xlu0 %v3918
      %v3920 = vpop.xlane.xlu0 %3919
      %v3921 = vsel %vm1961, %v3907, -inf
      %3922 = vmax.xlane.f32.xlu0 %v3921
      %v3923 = vpop.xlane.xlu0 %3922
      %v3924 = vsub.f32 %v3769, %v3914
      %v3925 = vsub.f32 %v3815, %v3917
      %v3926 = vsub.f32 %v3861, %v3920
      %v3927 = vsub.f32 %v3907, %v3923
      %v3928 = vmul.f32 %v3924, 1.442695
      %v3929 = vpow.pop %v3928
      %v3930 = vmul.f32 %v3925, 1.442695
      %v3931 = vpow.pop %v3930
      %v3932 = vmul.f32 %v3926, 1.442695
      %v3933 = vpow.pop %v3932
      %v3934 = vmul.f32 %v3927, 1.442695
      %v3935 = vpow.pop %v3934
      %v3936 = vsel %vm1961, %v3929, 0.0
      %3937 = vadd.xlane.f32.xlu0 %v3936
      %v3938 = vpop.xlane.xlu0 %3937
      %v3939 = vsel %vm1961, %v3931, 0.0
      %3940 = vadd.xlane.f32.xlu0 %v3939
      %v3941 = vpop.xlane.xlu0 %3940
      %v3942 = vsel %vm1961, %v3933, 0.0
      %3943 = vadd.xlane.f32.xlu0 %v3942
      %v3944 = vpop.xlane.xlu0 %3943
      %v3945 = vsel %vm1961, %v3935, 0.0
      %3946 = vadd.xlane.f32.xlu0 %v3945
      %v3947 = vpop.xlane.xlu0 %3946
      %v3948 = vrcp.pop %v3938
      %v3949 = vrcp.pop %v3941
      %v3950 = vrcp.pop %v3944
      %v3951 = vrcp.pop %v3947
      %v3952 = vmul.f32 %v3929, %v3948
      %v3953 = vmul.f32 %v3931, %v3949
      %v3954 = vmul.f32 %v3933, %v3950
      %v3955 = vmul.f32 %v3935, %v3951
      %v3956 = vpack.c.bf16 %v3952, %v3952
      %v3957 = vpack.c.bf16 %v3953, %v3953
      %v3958 = vpack.c.bf16 %v3954, %v3954
      %v3959 = vpack.c.bf16 %v3955, %v3955
      %v3960 = vpack.c.bf16 %v3451, %v3451
      %v3961 = vpack.c.bf16 %v3539, %v3539
      %v3962 = vpack.c.bf16 %v3627, %v3627
      %v3963 = vpack.c.bf16 %v3715, %v3715
      %v3965 = vsel %vm1961, %v3956, 0
      %v3968 = vsel %vm2017, %v3960, 0
      %3970 = vmatprep.subr.bf16.mxu0 0
      %3971 = vmatpush1.bf16.msra.mxu0 %v3968
      %3972 = vmatprep.subr.bf16.mxu0 0
      %3973 = vmatpush1.bf16.msra.mxu0 0
      %3974 = vmatprep.subr.bf16.mxu0 0
      %3975 = vmatpush1.bf16.msra.mxu0 0
      %3976 = vmatprep.subr.bf16.mxu0 0
      %3977 = vmatpush1.bf16.msra.mxu0 0
      %3978 = vmatprep.subr.bf16.mxu0 0
      %3979 = vmatpush1.bf16.msra.mxu0 0
      %3980 = vmatprep.subr.bf16.mxu0 0
      %3981 = vmatpush1.bf16.msra.mxu0 0
      %3982 = vmatprep.subr.bf16.mxu0 0
      %3983 = vmatpush1.bf16.msra.mxu0 0
      %3984 = vmatprep.subr.bf16.mxu0 0
      %3985 = vmatpush1.bf16.msra.mxu0 0
      %3986 = vmatprep.subr.bf16.mxu0 0
      %3987 = vmatpush1.bf16.msra.mxu0 0
      %3988 = vmatprep.subr.bf16.mxu0 0
      %3989 = vmatpush1.bf16.msra.mxu0 0
      %3990 = vmatprep.subr.bf16.mxu0 0
      %3991 = vmatpush1.bf16.msra.mxu0 0
      %3992 = vmatprep.subr.bf16.mxu0 0
      %3993 = vmatpush1.bf16.msra.mxu0 0
      %3994 = vmatprep.subr.bf16.mxu0 0
      %3995 = vmatpush1.bf16.msra.mxu0 0
      %3996 = vmatprep.subr.bf16.mxu0 0
      %3997 = vmatpush1.bf16.msra.mxu0 0
      %3998 = vmatprep.subr.bf16.mxu0 0
      %3999 = vmatpush1.bf16.msra.mxu0 0
      %4000 = vmatprep.subr.bf16.mxu0 0
      %4001 = vmatpush1.bf16.msra.mxu0 0
      %4002 = vmatprep.mubr.bf16.mxu0 0
      %4003 = vmatmul.mubr.bf16.gmra.mrb[0].mxu0 %v3965
      %v4004 = vpop.f32.mrb[0].mxu0
      %v4005 = vadd.f32 0.0, %v4004
      %v4006 = vpop.f32.mrb[0].mxu0
      %v4007 = vpop.f32.mrb[0].mxu0
      %v4008 = vpop.f32.mrb[0].mxu0
      %4009 = vdwg.mxu0
      %v4011 = vsel %vm1961, %v3957, 0
      %v4014 = vsel %vm2017, %v3961, 0
      %4016 = vmatprep.subr.bf16.mxu0 0
      %4017 = vmatpush1.bf16.msra.mxu0 %v4014
      %4018 = vmatprep.subr.bf16.mxu0 0
      %4019 = vmatpush1.bf16.msra.mxu0 0
      %4020 = vmatprep.subr.bf16.mxu0 0
      %4021 = vmatpush1.bf16.msra.mxu0 0
      %4022 = vmatprep.subr.bf16.mxu0 0
      %4023 = vmatpush1.bf16.msra.mxu0 0
      %4024 = vmatprep.subr.bf16.mxu0 0
      %4025 = vmatpush1.bf16.msra.mxu0 0
      %4026 = vmatprep.subr.bf16.mxu0 0
      %4027 = vmatpush1.bf16.msra.mxu0 0
      %4028 = vmatprep.subr.bf16.mxu0 0
      %4029 = vmatpush1.bf16.msra.mxu0 0
      %4030 = vmatprep.subr.bf16.mxu0 0
      %4031 = vmatpush1.bf16.msra.mxu0 0
      %4032 = vmatprep.subr.bf16.mxu0 0
      %4033 = vmatpush1.bf16.msra.mxu0 0
      %4034 = vmatprep.subr.bf16.mxu0 0
      %4035 = vmatpush1.bf16.msra.mxu0 0
      %4036 = vmatprep.subr.bf16.mxu0 0
      %4037 = vmatpush1.bf16.msra.mxu0 0
      %4038 = vmatprep.subr.bf16.mxu0 0
      %4039 = vmatpush1.bf16.msra.mxu0 0
      %4040 = vmatprep.subr.bf16.mxu0 0
      %4041 = vmatpush1.bf16.msra.mxu0 0
      %4042 = vmatprep.subr.bf16.mxu0 0
      %4043 = vmatpush1.bf16.msra.mxu0 0
      %4044 = vmatprep.subr.bf16.mxu0 0
      %4045 = vmatpush1.bf16.msra.mxu0 0
      %4046 = vmatprep.subr.bf16.mxu0 0
      %4047 = vmatpush1.bf16.msra.mxu0 0
      %4048 = vmatprep.mubr.bf16.mxu0 0
      %4049 = vmatmul.mubr.bf16.gmra.mrb[0].mxu0 %v4011
      %v4050 = vpop.f32.mrb[0].mxu0
      %v4051 = vadd.f32 0.0, %v4050
      %v4052 = vpop.f32.mrb[0].mxu0
      %v4053 = vpop.f32.mrb[0].mxu0
      %v4054 = vpop.f32.mrb[0].mxu0
      %4055 = vdwg.mxu0
      %v4057 = vsel %vm1961, %v3958, 0
      %v4060 = vsel %vm2017, %v3962, 0
      %4062 = vmatprep.subr.bf16.mxu0 0
      %4063 = vmatpush1.bf16.msra.mxu0 %v4060
      %4064 = vmatprep.subr.bf16.mxu0 0
      %4065 = vmatpush1.bf16.msra.mxu0 0
      %4066 = vmatprep.subr.bf16.mxu0 0
      %4067 = vmatpush1.bf16.msra.mxu0 0
      %4068 = vmatprep.subr.bf16.mxu0 0
      %4069 = vmatpush1.bf16.msra.mxu0 0
      %4070 = vmatprep.subr.bf16.mxu0 0
      %4071 = vmatpush1.bf16.msra.mxu0 0
      %4072 = vmatprep.subr.bf16.mxu0 0
      %4073 = vmatpush1.bf16.msra.mxu0 0
      %4074 = vmatprep.subr.bf16.mxu0 0
      %4075 = vmatpush1.bf16.msra.mxu0 0
      %4076 = vmatprep.subr.bf16.mxu0 0
      %4077 = vmatpush1.bf16.msra.mxu0 0
      %4078 = vmatprep.subr.bf16.mxu0 0
      %4079 = vmatpush1.bf16.msra.mxu0 0
      %4080 = vmatprep.subr.bf16.mxu0 0
      %4081 = vmatpush1.bf16.msra.mxu0 0
      %4082 = vmatprep.subr.bf16.mxu0 0
      %4083 = vmatpush1.bf16.msra.mxu0 0
      %4084 = vmatprep.subr.bf16.mxu0 0
      %4085 = vmatpush1.bf16.msra.mxu0 0
      %4086 = vmatprep.subr.bf16.mxu0 0
      %4087 = vmatpush1.bf16.msra.mxu0 0
      %4088 = vmatprep.subr.bf16.mxu0 0
      %4089 = vmatpush1.bf16.msra.mxu0 0
      %4090 = vmatprep.subr.bf16.mxu0 0
      %4091 = vmatpush1.bf16.msra.mxu0 0
      %4092 = vmatprep.subr.bf16.mxu0 0
      %4093 = vmatpush1.bf16.msra.mxu0 0
      %4094 = vmatprep.mubr.bf16.mxu0 0
      %4095 = vmatmul.mubr.bf16.gmra.mrb[0].mxu0 %v4057
      %v4096 = vpop.f32.mrb[0].mxu0
      %v4097 = vadd.f32 0.0, %v4096
      %v4098 = vpop.f32.mrb[0].mxu0
      %v4099 = vpop.f32.mrb[0].mxu0
      %v4100 = vpop.f32.mrb[0].mxu0
      %4101 = vdwg.mxu0
      %v4103 = vsel %vm1961, %v3959, 0
      %v4106 = vsel %vm2017, %v3963, 0
      %4108 = vmatprep.subr.bf16.mxu0 0
      %4109 = vmatpush1.bf16.msra.mxu0 %v4106
      %4110 = vmatprep.subr.bf16.mxu0 0
      %4111 = vmatpush1.bf16.msra.mxu0 0
      %4112 = vmatprep.subr.bf16.mxu0 0
      %4113 = vmatpush1.bf16.msra.mxu0 0
      %4114 = vmatprep.subr.bf16.mxu0 0
      %4115 = vmatpush1.bf16.msra.mxu0 0
      %4116 = vmatprep.subr.bf16.mxu0 0
      %4117 = vmatpush1.bf16.msra.mxu0 0
      %4118 = vmatprep.subr.bf16.mxu0 0
      %4119 = vmatpush1.bf16.msra.mxu0 0
      %4120 = vmatprep.subr.bf16.mxu0 0
      %4121 = vmatpush1.bf16.msra.mxu0 0
      %4122 = vmatprep.subr.bf16.mxu0 0
      %4123 = vmatpush1.bf16.msra.mxu0 0
      %4124 = vmatprep.subr.bf16.mxu0 0
      %4125 = vmatpush1.bf16.msra.mxu0 0
      %4126 = vmatprep.subr.bf16.mxu0 0
      %4127 = vmatpush1.bf16.msra.mxu0 0
      %4128 = vmatprep.subr.bf16.mxu0 0
      %4129 = vmatpush1.bf16.msra.mxu0 0
      %4130 = vmatprep.subr.bf16.mxu0 0
      %4131 = vmatpush1.bf16.msra.mxu0 0
      %4132 = vmatprep.subr.bf16.mxu0 0
      %4133 = vmatpush1.bf16.msra.mxu0 0
      %4134 = vmatprep.subr.bf16.mxu0 0
      %4135 = vmatpush1.bf16.msra.mxu0 0
      %4136 = vmatprep.subr.bf16.mxu0 0
      %4137 = vmatpush1.bf16.msra.mxu0 0
      %4138 = vmatprep.subr.bf16.mxu0 0
      %4139 = vmatpush1.bf16.msra.mxu0 0
      %4140 = vmatprep.mubr.bf16.mxu0 0
      %4141 = vmatmul.mubr.bf16.gmra.mrb[0].mxu0 %v4103
      %v4142 = vpop.f32.mrb[0].mxu0
      %v4143 = vadd.f32 0.0, %v4142
      %v4144 = vpop.f32.mrb[0].mxu0
      %v4145 = vpop.f32.mrb[0].mxu0
      %v4146 = vpop.f32.mrb[0].mxu0
      %4147 = vdwg.mxu0
      %v4148 = vpack.c.bf16 %v4005, %v4005
      %v4149 = vpack.c.bf16 %v4051, %v4051
      %v4150 = vpack.c.bf16 %v4097, %v4097
      %v4151 = vpack.c.bf16 %v4143, %v4143
      %v4156 = vunpack.c.l.b16 %v2647
      %v4157 = vunpack.c.l.b16 %v2648
      %v4158 = vunpack.c.l.b16 %v2649
      %v4159 = vunpack.c.l.b16 %v2650
      %v4160 = vpack.c.b16 %v4157, %v4156
      %v4161 = vpack.c.b16 %v4159, %v4158
      %v4165 = vsel %vm1765, %v4148, 0
      %4167 = vmatprep.subr.bf16.mxu0 0
      %4168 = vmatpush1.bf16.msra.mxu0 %v4160
      %4169 = vmatprep.subr.bf16.mxu0 0
      %4170 = vmatpush1.bf16.msra.mxu0 %v4161
      %4171 = vmatprep.subr.bf16.mxu0 0
      %4172 = vmatpush1.bf16.msra.mxu0 0
      %4173 = vmatprep.subr.bf16.mxu0 0
      %4174 = vmatpush1.bf16.msra.mxu0 0
      %4175 = vmatprep.subr.bf16.mxu0 0
      %4176 = vmatpush1.bf16.msra.mxu0 0
      %4177 = vmatprep.subr.bf16.mxu0 0
      %4178 = vmatpush1.bf16.msra.mxu0 0
      %4179 = vmatprep.subr.bf16.mxu0 0
      %4180 = vmatpush1.bf16.msra.mxu0 0
      %4181 = vmatprep.subr.bf16.mxu0 0
      %4182 = vmatpush1.bf16.msra.mxu0 0
      %4183 = vmatprep.subr.bf16.mxu0 0
      %4184 = vmatpush1.bf16.msra.mxu0 0
      %4185 = vmatprep.subr.bf16.mxu0 0
      %4186 = vmatpush1.bf16.msra.mxu0 0
      %4187 = vmatprep.subr.bf16.mxu0 0
      %4188 = vmatpush1.bf16.msra.mxu0 0
      %4189 = vmatprep.subr.bf16.mxu0 0
      %4190 = vmatpush1.bf16.msra.mxu0 0
      %4191 = vmatprep.subr.bf16.mxu0 0
      %4192 = vmatpush1.bf16.msra.mxu0 0
      %4193 = vmatprep.subr.bf16.mxu0 0
      %4194 = vmatpush1.bf16.msra.mxu0 0
      %4195 = vmatprep.subr.bf16.mxu0 0
      %4196 = vmatpush1.bf16.msra.mxu0 0
      %4197 = vmatprep.subr.bf16.mxu0 0
      %4198 = vmatpush1.bf16.msra.mxu0 0
      %4199 = vmatprep.mubr.bf16.mxu0 0
      %4200 = vmatmul.mubr.bf16.gmra.mrb[0].mxu0 %v4165
      %v4201 = vpop.f32.mrb[0].mxu0
      %v4202 = vadd.f32 0.0, %v4201
      %v4203 = vpop.f32.mrb[0].mxu0
      %v4204 = vpop.f32.mrb[0].mxu0
      %v4205 = vpop.f32.mrb[0].mxu0
      %4206 = vdwg.mxu0
      %v4211 = vunpack.c.l.b16 %v2651
      %v4212 = vunpack.c.l.b16 %v2652
      %v4213 = vunpack.c.l.b16 %v2653
      %v4214 = vunpack.c.l.b16 %v2654
      %v4215 = vpack.c.b16 %v4212, %v4211
      %v4216 = vpack.c.b16 %v4214, %v4213
      %v4220 = vsel %vm1765, %v4149, 0
      %4222 = vmatprep.subr.bf16.mxu0 0
      %4223 = vmatpush1.bf16.msra.mxu0 %v4215
      %4224 = vmatprep.subr.bf16.mxu0 0
      %4225 = vmatpush1.bf16.msra.mxu0 %v4216
      %4226 = vmatprep.subr.bf16.mxu0 0
      %4227 = vmatpush1.bf16.msra.mxu0 0
      %4228 = vmatprep.subr.bf16.mxu0 0
      %4229 = vmatpush1.bf16.msra.mxu0 0
      %4230 = vmatprep.subr.bf16.mxu0 0
      %4231 = vmatpush1.bf16.msra.mxu0 0
      %4232 = vmatprep.subr.bf16.mxu0 0
      %4233 = vmatpush1.bf16.msra.mxu0 0
      %4234 = vmatprep.subr.bf16.mxu0 0
      %4235 = vmatpush1.bf16.msra.mxu0 0
      %4236 = vmatprep.subr.bf16.mxu0 0
      %4237 = vmatpush1.bf16.msra.mxu0 0
      %4238 = vmatprep.subr.bf16.mxu0 0
      %4239 = vmatpush1.bf16.msra.mxu0 0
      %4240 = vmatprep.subr.bf16.mxu0 0
      %4241 = vmatpush1.bf16.msra.mxu0 0
      %4242 = vmatprep.subr.bf16.mxu0 0
      %4243 = vmatpush1.bf16.msra.mxu0 0
      %4244 = vmatprep.subr.bf16.mxu0 0
      %4245 = vmatpush1.bf16.msra.mxu0 0
      %4246 = vmatprep.subr.bf16.mxu0 0
      %4247 = vmatpush1.bf16.msra.mxu0 0
      %4248 = vmatprep.subr.bf16.mxu0 0
      %4249 = vmatpush1.bf16.msra.mxu0 0
      %4250 = vmatprep.subr.bf16.mxu0 0
      %4251 = vmatpush1.bf16.msra.mxu0 0
      %4252 = vmatprep.subr.bf16.mxu0 0
      %4253 = vmatpush1.bf16.msra.mxu0 0
      %4254 = vmatprep.mubr.bf16.mxu0 0
      %4255 = vmatmul.mubr.bf16.gmra.mrb[0].mxu0 %v4220
      %v4256 = vpop.f32.mrb[0].mxu0
      %v4257 = vadd.f32 0.0, %v4256
      %v4258 = vpop.f32.mrb[0].mxu0
      %v4259 = vpop.f32.mrb[0].mxu0
      %v4260 = vpop.f32.mrb[0].mxu0
      %4261 = vdwg.mxu0
      %v4266 = vunpack.c.l.b16 %v2655
      %v4267 = vunpack.c.l.b16 %v2656
      %v4268 = vunpack.c.l.b16 %v2657
      %v4269 = vunpack.c.l.b16 %v2658
      %v4270 = vpack.c.b16 %v4267, %v4266
      %v4271 = vpack.c.b16 %v4269, %v4268
      %v4275 = vsel %vm1765, %v4150, 0
      %4277 = vmatprep.subr.bf16.mxu0 0
      %4278 = vmatpush1.bf16.msra.mxu0 %v4270
      %4279 = vmatprep.subr.bf16.mxu0 0
      %4280 = vmatpush1.bf16.msra.mxu0 %v4271
      %4281 = vmatprep.subr.bf16.mxu0 0
      %4282 = vmatpush1.bf16.msra.mxu0 0
      %4283 = vmatprep.subr.bf16.mxu0 0
      %4284 = vmatpush1.bf16.msra.mxu0 0
      %4285 = vmatprep.subr.bf16.mxu0 0
      %4286 = vmatpush1.bf16.msra.mxu0 0
      %4287 = vmatprep.subr.bf16.mxu0 0
      %4288 = vmatpush1.bf16.msra.mxu0 0
      %4289 = vmatprep.subr.bf16.mxu0 0
      %4290 = vmatpush1.bf16.msra.mxu0 0
      %4291 = vmatprep.subr.bf16.mxu0 0
      %4292 = vmatpush1.bf16.msra.mxu0 0
      %4293 = vmatprep.subr.bf16.mxu0 0
      %4294 = vmatpush1.bf16.msra.mxu0 0
      %4295 = vmatprep.subr.bf16.mxu0 0
      %4296 = vmatpush1.bf16.msra.mxu0 0
      %4297 = vmatprep.subr.bf16.mxu0 0
      %4298 = vmatpush1.bf16.msra.mxu0 0
      %4299 = vmatprep.subr.bf16.mxu0 0
      %4300 = vmatpush1.bf16.msra.mxu0 0
      %4301 = vmatprep.subr.bf16.mxu0 0
      %4302 = vmatpush1.bf16.msra.mxu0 0
      %4303 = vmatprep.subr.bf16.mxu0 0
      %4304 = vmatpush1.bf16.msra.mxu0 0
      %4305 = vmatprep.subr.bf16.mxu0 0
      %4306 = vmatpush1.bf16.msra.mxu0 0
      %4307 = vmatprep.subr.bf16.mxu0 0
      %4308 = vmatpush1.bf16.msra.mxu0 0
      %4309 = vmatprep.mubr.bf16.mxu0 0
      %4310 = vmatmul.mubr.bf16.gmra.mrb[0].mxu0 %v4275
      %v4311 = vpop.f32.mrb[0].mxu0
      %v4312 = vadd.f32 0.0, %v4311
      %v4313 = vpop.f32.mrb[0].mxu0
      %v4314 = vpop.f32.mrb[0].mxu0
      %v4315 = vpop.f32.mrb[0].mxu0
      %4316 = vdwg.mxu0
      %v4321 = vunpack.c.l.b16 %v2659
      %v4322 = vunpack.c.l.b16 %v2660
      %v4323 = vunpack.c.l.b16 %v2661
      %v4324 = vunpack.c.l.b16 %v2662
      %v4325 = vpack.c.b16 %v4322, %v4321
      %v4326 = vpack.c.b16 %v4324, %v4323
      %v4330 = vsel %vm1765, %v4151, 0
      %4332 = vmatprep.subr.bf16.mxu0 0
      %4333 = vmatpush1.bf16.msra.mxu0 %v4325
      %4334 = vmatprep.subr.bf16.mxu0 0
      %4335 = vmatpush1.bf16.msra.mxu0 %v4326
      %4336 = vmatprep.subr.bf16.mxu0 0
      %4337 = vmatpush1.bf16.msra.mxu0 0
      %4338 = vmatprep.subr.bf16.mxu0 0
      %4339 = vmatpush1.bf16.msra.mxu0 0
      %4340 = vmatprep.subr.bf16.mxu0 0
      %4341 = vmatpush1.bf16.msra.mxu0 0
      %4342 = vmatprep.subr.bf16.mxu0 0
      %4343 = vmatpush1.bf16.msra.mxu0 0
      %4344 = vmatprep.subr.bf16.mxu0 0
      %4345 = vmatpush1.bf16.msra.mxu0 0
      %4346 = vmatprep.subr.bf16.mxu0 0
      %4347 = vmatpush1.bf16.msra.mxu0 0
      %4348 = vmatprep.subr.bf16.mxu0 0
      %4349 = vmatpush1.bf16.msra.mxu0 0
      %4350 = vmatprep.subr.bf16.mxu0 0
      %4351 = vmatpush1.bf16.msra.mxu0 0
      %4352 = vmatprep.subr.bf16.mxu0 0
      %4353 = vmatpush1.bf16.msra.mxu0 0
      %4354 = vmatprep.subr.bf16.mxu0 0
      %4355 = vmatpush1.bf16.msra.mxu0 0
      %4356 = vmatprep.subr.bf16.mxu0 0
      %4357 = vmatpush1.bf16.msra.mxu0 0
      %4358 = vmatprep.subr.bf16.mxu0 0
      %4359 = vmatpush1.bf16.msra.mxu0 0
      %4360 = vmatprep.subr.bf16.mxu0 0
      %4361 = vmatpush1.bf16.msra.mxu0 0
      %4362 = vmatprep.subr.bf16.mxu0 0
      %4363 = vmatpush1.bf16.msra.mxu0 0
      %4364 = vmatprep.mubr.bf16.mxu0 0
      %4365 = vmatmul.mubr.bf16.gmra.mrb[0].mxu0 %v4330
      %v4366 = vpop.f32.mrb[0].mxu0
      %v4367 = vadd.f32 0.0, %v4366
      %v4368 = vpop.f32.mrb[0].mxu0
      %v4369 = vpop.f32.mrb[0].mxu0
      %v4370 = vpop.f32.mrb[0].mxu0
      %4371 = vdwg.mxu0
      %v4372 = vadd.f32 %v4202, %v4257
      %v4373 = vadd.f32 %v4372, %v4312
      %v4374 = vadd.f32 %v4373, %v4367
      %v4375 = vadd.f32 %v2454, %v4374
      %v4376 = vld [vmem:[%s7] sm:$0x1]
      %v4377 = vld [vmem:[%s8] sm:$0x1]
      %4378 = vadd.xlane.f32.xlu0 %v4375
      %v4379 = vpop.xlane.xlu0 %4378
      %v4380 = vmul.f32 %v4379, %v2431
      %v4381 = vsub.f32 %v4375, %v4380
      %v4382 = vmul.f32 %v4381, %v4381
      %4383 = vadd.xlane.f32.xlu0 %v4382
      %v4384 = vpop.xlane.xlu0 %4383
      %v4385 = vmul.f32 %v4384, %v2431
      %v4386 = vadd.f32 %v4385, 1e-05
      %v4387 = vrsqrt.pop %v4386
      %v4388 = vmul.f32 %v4381, %v4387
      %v4390 = vlaneseq
      %v4391 = vshrl.u32 %v4390, 7
      %v4392 = vsub.s32 0, %v4391
      %v4393 = vrot.slane %v4376, %v4392
      %v4395 = vmul.f32 %v4388, %v4393
      %v4397 = vlaneseq
      %v4398 = vshrl.u32 %v4397, 7
      %v4399 = vsub.s32 0, %v4398
      %v4400 = vrot.slane %v4377, %v4399
      %v4402 = vadd.f32 %v4395, %v4400
      %v4403 = vld [vmem:[%s9] sm:$0xff]
      %v4404 = vld [vmem:[%s9 + $0x8] sm:$0xff]
      %v4405 = vld [vmem:[%s9 + $0x10] sm:$0xff]
      %v4406 = vld [vmem:[%s9 + $0x18] sm:$0xff]
      %v4407 = vld [vmem:[%s9 + $0x20] sm:$0xff]
      %v4408 = vld [vmem:[%s9 + $0x28] sm:$0xff]
      %v4409 = vld [vmem:[%s9 + $0x30] sm:$0xff]
      %v4410 = vld [vmem:[%s9 + $0x38] sm:$0xff]
      %v4411 = vld [vmem:[%s9 + $0x40] sm:$0xff]
      %v4412 = vld [vmem:[%s9 + $0x48] sm:$0xff]
      %v4413 = vld [vmem:[%s9 + $0x50] sm:$0xff]
      %v4414 = vld [vmem:[%s9 + $0x58] sm:$0xff]
      %v4415 = vld [vmem:[%s9 + $0x60] sm:$0xff]
      %v4416 = vld [vmem:[%s9 + $0x68] sm:$0xff]
      %v4417 = vld [vmem:[%s9 + $0x70] sm:$0xff]
      %v4418 = vld [vmem:[%s9 + $0x78] sm:$0xff]
      %v4419 = vld [vmem:[%s9 + $0x80] sm:$0xff]
      %v4420 = vld [vmem:[%s9 + $0x88] sm:$0xff]
      %v4421 = vld [vmem:[%s9 + $0x90] sm:$0xff]
      %v4422 = vld [vmem:[%s9 + $0x98] sm:$0xff]
      %v4423 = vld [vmem:[%s9 + $0xa0] sm:$0xff]
      %v4424 = vld [vmem:[%s9 + $0xa8] sm:$0xff]
      %v4425 = vld [vmem:[%s9 + $0xb0] sm:$0xff]
      %v4426 = vld [vmem:[%s9 + $0xb8] sm:$0xff]
      %v4427 = vld [vmem:[%s9 + $0xc0] sm:$0xff]
      %v4428 = vld [vmem:[%s9 + $0xc8] sm:$0xff]
      %v4429 = vld [vmem:[%s9 + $0xd0] sm:$0xff]
      %v4430 = vld [vmem:[%s9 + $0xd8] sm:$0xff]
      %v4431 = vld [vmem:[%s9 + $0xe0] sm:$0xff]
      %v4432 = vld [vmem:[%s9 + $0xe8] sm:$0xff]
      %v4433 = vld [vmem:[%s9 + $0xf0] sm:$0xff]
      %v4434 = vld [vmem:[%s9 + $0xf8] sm:$0xff]
      %v4435 = vld [vmem:[%s10] sm:$0xf]
      %v4436 = vld [vmem:[%s11] sm:$0xf]
      %v4437 = vld [vmem:[%s11 + $0x4] sm:$0xf]
      %v4438 = vld [vmem:[%s11 + $0x8] sm:$0xf]
      %v4439 = vld [vmem:[%s11 + $0xc] sm:$0xf]
      %v4440 = vld [vmem:[%s11 + $0x10] sm:$0xf]
      %v4441 = vld [vmem:[%s11 + $0x14] sm:$0xf]
      %v4442 = vld [vmem:[%s11 + $0x18] sm:$0xf]
      %v4443 = vld [vmem:[%s11 + $0x1c] sm:$0xf]
      %v4444 = vld [vmem:[%s11 + $0x20] sm:$0xf]
      %v4445 = vld [vmem:[%s11 + $0x24] sm:$0xf]
      %v4446 = vld [vmem:[%s11 + $0x28] sm:$0xf]
      %v4447 = vld [vmem:[%s11 + $0x2c] sm:$0xf]
      %v4448 = vld [vmem:[%s11 + $0x30] sm:$0xf]
      %v4449 = vld [vmem:[%s11 + $0x34] sm:$0xf]
      %v4450 = vld [vmem:[%s11 + $0x38] sm:$0xf]
      %v4451 = vld [vmem:[%s11 + $0x3c] sm:$0xf]
      %v4452 = vld [vmem:[%s11 + $0x40] sm:$0xf]
      %v4453 = vld [vmem:[%s11 + $0x44] sm:$0xf]
      %v4454 = vld [vmem:[%s11 + $0x48] sm:$0xf]
      %v4455 = vld [vmem:[%s11 + $0x4c] sm:$0xf]
      %v4456 = vld [vmem:[%s11 + $0x50] sm:$0xf]
      %v4457 = vld [vmem:[%s11 + $0x54] sm:$0xf]
      %v4458 = vld [vmem:[%s11 + $0x58] sm:$0xf]
      %v4459 = vld [vmem:[%s11 + $0x5c] sm:$0xf]
      %v4460 = vld [vmem:[%s11 + $0x60] sm:$0xf]
      %v4461 = vld [vmem:[%s11 + $0x64] sm:$0xf]
      %v4462 = vld [vmem:[%s11 + $0x68] sm:$0xf]
      %v4463 = vld [vmem:[%s11 + $0x6c] sm:$0xf]
      %v4464 = vld [vmem:[%s11 + $0x70] sm:$0xf]
      %v4465 = vld [vmem:[%s11 + $0x74] sm:$0xf]
      %v4466 = vld [vmem:[%s11 + $0x78] sm:$0xf]
      %v4467 = vld [vmem:[%s11 + $0x7c] sm:$0xf]
      %v4468 = vld [vmem:[%s11 + $0x80] sm:$0xf]
      %v4469 = vld [vmem:[%s11 + $0x84] sm:$0xf]
      %v4470 = vld [vmem:[%s11 + $0x88] sm:$0xf]
      %v4471 = vld [vmem:[%s11 + $0x8c] sm:$0xf]
      %v4472 = vld [vmem:[%s11 + $0x90] sm:$0xf]
      %v4473 = vld [vmem:[%s11 + $0x94] sm:$0xf]
      %v4474 = vld [vmem:[%s11 + $0x98] sm:$0xf]
      %v4475 = vld [vmem:[%s11 + $0x9c] sm:$0xf]
      %v4476 = vld [vmem:[%s11 + $0xa0] sm:$0xf]
      %v4477 = vld [vmem:[%s11 + $0xa4] sm:$0xf]
      %v4478 = vld [vmem:[%s11 + $0xa8] sm:$0xf]
      %v4479 = vld [vmem:[%s11 + $0xac] sm:$0xf]
      %v4480 = vld [vmem:[%s11 + $0xb0] sm:$0xf]
      %v4481 = vld [vmem:[%s11 + $0xb4] sm:$0xf]
      %v4482 = vld [vmem:[%s11 + $0xb8] sm:$0xf]
      %v4483 = vld [vmem:[%s11 + $0xbc] sm:$0xf]
      %v4484 = vld [vmem:[%s11 + $0xc0] sm:$0xf]
      %v4485 = vld [vmem:[%s11 + $0xc4] sm:$0xf]
      %v4486 = vld [vmem:[%s11 + $0xc8] sm:$0xf]
      %v4487 = vld [vmem:[%s11 + $0xcc] sm:$0xf]
      %v4488 = vld [vmem:[%s11 + $0xd0] sm:$0xf]
      %v4489 = vld [vmem:[%s11 + $0xd4] sm:$0xf]
      %v4490 = vld [vmem:[%s11 + $0xd8] sm:$0xf]
      %v4491 = vld [vmem:[%s11 + $0xdc] sm:$0xf]
      %v4492 = vld [vmem:[%s11 + $0xe0] sm:$0xf]
      %v4493 = vld [vmem:[%s11 + $0xe4] sm:$0xf]
      %v4494 = vld [vmem:[%s11 + $0xe8] sm:$0xf]
      %v4495 = vld [vmem:[%s11 + $0xec] sm:$0xf]
      %v4496 = vld [vmem:[%s11 + $0xf0] sm:$0xf]
      %v4497 = vld [vmem:[%s11 + $0xf4] sm:$0xf]
      %v4498 = vld [vmem:[%s11 + $0xf8] sm:$0xf]
      %v4499 = vld [vmem:[%s11 + $0xfc] sm:$0xf]
      %v4500 = vld [vmem:[%s12] sm:$0x1]
      %v4501 = vpack.c.bf16 %v4402, %v4402
      %v4503 = vlaneseq
      %v4504 = vshrl.u32 %v4503, 7
      %v4505 = vsub.s32 0, %v4504
      %v4506 = vrot.slane %v4435, %v4505
      %v4507 = vlaneseq
      %v4508 = vshrl.u32 %v4507, 7
      %v4509 = vsub.s32 1, %v4508
      %v4510 = vrot.slane %v4435, %v4509
      %v4511 = vlaneseq
      %v4512 = vshrl.u32 %v4511, 7
      %v4513 = vsub.s32 2, %v4512
      %v4514 = vrot.slane %v4435, %v4513
      %v4515 = vlaneseq
      %v4516 = vshrl.u32 %v4515, 7
      %v4517 = vsub.s32 3, %v4516
      %v4518 = vrot.slane %v4435, %v4517
      %v4555 = vunpack.c.l.b16 %v4403
      %v4556 = vunpack.c.h.b16 %v4403
      %v4557 = vunpack.c.l.b16 %v4404
      %v4558 = vunpack.c.h.b16 %v4404
      %v4559 = vunpack.c.l.b16 %v4405
      %v4560 = vunpack.c.h.b16 %v4405
      %v4561 = vunpack.c.l.b16 %v4406
      %v4562 = vunpack.c.h.b16 %v4406
      %v4563 = vunpack.c.l.b16 %v4407
      %v4564 = vunpack.c.h.b16 %v4407
      %v4565 = vunpack.c.l.b16 %v4408
      %v4566 = vunpack.c.h.b16 %v4408
      %v4567 = vunpack.c.l.b16 %v4409
      %v4568 = vunpack.c.h.b16 %v4409
      %v4569 = vunpack.c.l.b16 %v4410
      %v4570 = vunpack.c.h.b16 %v4410
      %v4571 = vunpack.c.l.b16 %v4411
      %v4572 = vunpack.c.h.b16 %v4411
      %v4573 = vunpack.c.l.b16 %v4412
      %v4574 = vunpack.c.h.b16 %v4412
      %v4575 = vunpack.c.l.b16 %v4413
      %v4576 = vunpack.c.h.b16 %v4413
      %v4577 = vunpack.c.l.b16 %v4414
      %v4578 = vunpack.c.h.b16 %v4414
      %v4579 = vunpack.c.l.b16 %v4415
      %v4580 = vunpack.c.h.b16 %v4415
      %v4581 = vunpack.c.l.b16 %v4416
      %v4582 = vunpack.c.h.b16 %v4416
      %v4583 = vunpack.c.l.b16 %v4417
      %v4584 = vunpack.c.h.b16 %v4417
      %v4585 = vunpack.c.l.b16 %v4418
      %v4586 = vunpack.c.h.b16 %v4418
      %v4587 = vunpack.c.l.b16 %v4419
      %v4588 = vunpack.c.h.b16 %v4419
      %v4589 = vunpack.c.l.b16 %v4420
      %v4590 = vunpack.c.h.b16 %v4420
      %v4591 = vunpack.c.l.b16 %v4421
      %v4592 = vunpack.c.h.b16 %v4421
      %v4593 = vunpack.c.l.b16 %v4422
      %v4594 = vunpack.c.h.b16 %v4422
      %v4595 = vunpack.c.l.b16 %v4423
      %v4596 = vunpack.c.h.b16 %v4423
      %v4597 = vunpack.c.l.b16 %v4424
      %v4598 = vunpack.c.h.b16 %v4424
      %v4599 = vunpack.c.l.b16 %v4425
      %v4600 = vunpack.c.h.b16 %v4425
      %v4601 = vunpack.c.l.b16 %v4426
      %v4602 = vunpack.c.h.b16 %v4426
      %v4603 = vunpack.c.l.b16 %v4427
      %v4604 = vunpack.c.h.b16 %v4427
      %v4605 = vunpack.c.l.b16 %v4428
      %v4606 = vunpack.c.h.b16 %v4428
      %v4607 = vunpack.c.l.b16 %v4429
      %v4608 = vunpack.c.h.b16 %v4429
      %v4609 = vunpack.c.l.b16 %v4430
      %v4610 = vunpack.c.h.b16 %v4430
      %v4611 = vunpack.c.l.b16 %v4431
      %v4612 = vunpack.c.h.b16 %v4431
      %v4613 = vunpack.c.l.b16 %v4432
      %v4614 = vunpack.c.h.b16 %v4432
      %v4615 = vunpack.c.l.b16 %v4433
      %v4616 = vunpack.c.h.b16 %v4433
      %v4617 = vunpack.c.l.b16 %v4434
      %v4618 = vunpack.c.h.b16 %v4434
      %v4619 = vpack.c.b16 %v4559, %v4555
      %v4620 = vpack.c.b16 %v4560, %v4556
      %v4621 = vpack.c.b16 %v4561, %v4557
      %v4622 = vpack.c.b16 %v4562, %v4558
      %v4623 = vpack.c.b16 %v4567, %v4563
      %v4624 = vpack.c.b16 %v4568, %v4564
      %v4625 = vpack.c.b16 %v4569, %v4565
      %v4626 = vpack.c.b16 %v4570, %v4566
      %v4627 = vpack.c.b16 %v4575, %v4571
      %v4628 = vpack.c.b16 %v4576, %v4572
      %v4629 = vpack.c.b16 %v4577, %v4573
      %v4630 = vpack.c.b16 %v4578, %v4574
      %v4631 = vpack.c.b16 %v4583, %v4579
      %v4632 = vpack.c.b16 %v4584, %v4580
      %v4633 = vpack.c.b16 %v4585, %v4581
      %v4634 = vpack.c.b16 %v4586, %v4582
      %v4635 = vpack.c.b16 %v4591, %v4587
      %v4636 = vpack.c.b16 %v4592, %v4588
      %v4637 = vpack.c.b16 %v4593, %v4589
      %v4638 = vpack.c.b16 %v4594, %v4590
      %v4639 = vpack.c.b16 %v4599, %v4595
      %v4640 = vpack.c.b16 %v4600, %v4596
      %v4641 = vpack.c.b16 %v4601, %v4597
      %v4642 = vpack.c.b16 %v4602, %v4598
      %v4643 = vpack.c.b16 %v4607, %v4603
      %v4644 = vpack.c.b16 %v4608, %v4604
      %v4645 = vpack.c.b16 %v4609, %v4605
      %v4646 = vpack.c.b16 %v4610, %v4606
      %v4647 = vpack.c.b16 %v4615, %v4611
      %v4648 = vpack.c.b16 %v4616, %v4612
      %v4649 = vpack.c.b16 %v4617, %v4613
      %v4650 = vpack.c.b16 %v4618, %v4614
      %4683 = vmatprep.subr.bf16.mxu0 %v4620
      %4684 = vmatpush1.bf16.msra.mxu0 %v4619
      %4685 = vmatprep.subr.bf16.mxu0 %v4624
      %4686 = vmatpush1.bf16.msra.mxu0 %v4623
      %4687 = vmatprep.subr.bf16.mxu0 %v4628
      %4688 = vmatpush1.bf16.msra.mxu0 %v4627
      %4689 = vmatprep.subr.bf16.mxu0 %v4632
      %4690 = vmatpush1.bf16.msra.mxu0 %v4631
      %4691 = vmatprep.subr.bf16.mxu0 %v4636
      %4692 = vmatpush1.bf16.msra.mxu0 %v4635
      %4693 = vmatprep.subr.bf16.mxu0 %v4640
      %4694 = vmatpush1.bf16.msra.mxu0 %v4639
      %4695 = vmatprep.subr.bf16.mxu0 %v4644
      %4696 = vmatpush1.bf16.msra.mxu0 %v4643
      %4697 = vmatprep.subr.bf16.mxu0 %v4648
      %4698 = vmatpush1.bf16.msra.mxu0 %v4647
      %4699 = vmatprep.subr.bf16.mxu0 0
      %4700 = vmatpush1.bf16.msra.mxu0 0
      %4701 = vmatprep.subr.bf16.mxu0 0
      %4702 = vmatpush1.bf16.msra.mxu0 0
      %4703 = vmatprep.subr.bf16.mxu0 0
      %4704 = vmatpush1.bf16.msra.mxu0 0
      %4705 = vmatprep.subr.bf16.mxu0 0
      %4706 = vmatpush1.bf16.msra.mxu0 0
      %4707 = vmatprep.subr.bf16.mxu0 0
      %4708 = vmatpush1.bf16.msra.mxu0 0
      %4709 = vmatprep.subr.bf16.mxu0 0
      %4710 = vmatpush1.bf16.msra.mxu0 0
      %4711 = vmatprep.subr.bf16.mxu0 0
      %4712 = vmatpush1.bf16.msra.mxu0 0
      %4713 = vmatprep.subr.bf16.mxu0 0
      %4714 = vmatpush1.bf16.msra.mxu0 0
      %4715 = vmatprep.mubr.bf16.mxu0 0
      %4716 = vmatmul.mubr.bf16.gmra.mrb[0].mxu0 %v4501
      %v4717 = vpop.f32.mrb[0].mxu0
      %v4718 = vadd.f32 %v4506, %v4717
      %v4719 = vpop.f32.mrb[0].mxu0
      %v4720 = vadd.f32 %v4510, %v4719
      %v4721 = vpop.f32.mrb[0].mxu0
      %v4722 = vpop.f32.mrb[0].mxu0
      %4723 = vdwg.mxu0
      %4724 = vmatprep.subr.bf16.mxu0 %v4622
      %4725 = vmatpush1.bf16.msra.mxu0 %v4621
      %4726 = vmatprep.subr.bf16.mxu0 %v4626
      %4727 = vmatpush1.bf16.msra.mxu0 %v4625
      %4728 = vmatprep.subr.bf16.mxu0 %v4630
      %4729 = vmatpush1.bf16.msra.mxu0 %v4629
      %4730 = vmatprep.subr.bf16.mxu0 %v4634
      %4731 = vmatpush1.bf16.msra.mxu0 %v4633
      %4732 = vmatprep.subr.bf16.mxu0 %v4638
      %4733 = vmatpush1.bf16.msra.mxu0 %v4637
      %4734 = vmatprep.subr.bf16.mxu0 %v4642
      %4735 = vmatpush1.bf16.msra.mxu0 %v4641
      %4736 = vmatprep.subr.bf16.mxu0 %v4646
      %4737 = vmatpush1.bf16.msra.mxu0 %v4645
      %4738 = vmatprep.subr.bf16.mxu0 %v4650
      %4739 = vmatpush1.bf16.msra.mxu0 %v4649
      %4740 = vmatprep.subr.bf16.mxu0 0
      %4741 = vmatpush1.bf16.msra.mxu0 0
      %4742 = vmatprep.subr.bf16.mxu0 0
      %4743 = vmatpush1.bf16.msra.mxu0 0
      %4744 = vmatprep.subr.bf16.mxu0 0
      %4745 = vmatpush1.bf16.msra.mxu0 0
      %4746 = vmatprep.subr.bf16.mxu0 0
      %4747 = vmatpush1.bf16.msra.mxu0 0
      %4748 = vmatprep.subr.bf16.mxu0 0
      %4749 = vmatpush1.bf16.msra.mxu0 0
      %4750 = vmatprep.subr.bf16.mxu0 0
      %4751 = vmatpush1.bf16.msra.mxu0 0
      %4752 = vmatprep.subr.bf16.mxu0 0
      %4753 = vmatpush1.bf16.msra.mxu0 0
      %4754 = vmatprep.subr.bf16.mxu0 0
      %4755 = vmatpush1.bf16.msra.mxu0 0
      %4756 = vmatprep.mubr.bf16.mxu0 0
      %4757 = vmatmul.mubr.bf16.gmra.mrb[0].mxu0 %v4501
      %v4758 = vpop.f32.mrb[0].mxu0
      %v4759 = vadd.f32 %v4514, %v4758
      %v4760 = vpop.f32.mrb[0].mxu0
      %v4761 = vadd.f32 %v4518, %v4760
      %v4762 = vpop.f32.mrb[0].mxu0
      %v4763 = vpop.f32.mrb[0].mxu0
      %4764 = vdwg.mxu0
      %v4765 = vmax.f32 %v4718, 0.0
      %v4766 = vmax.f32 %v4720, 0.0
      %v4767 = vmax.f32 %v4759, 0.0
      %v4768 = vmax.f32 %v4761, 0.0
      %v4769 = vpack.c.bf16 %v4765, %v4765
      %v4770 = vpack.c.bf16 %v4766, %v4766
      %v4771 = vpack.c.bf16 %v4767, %v4767
      %v4772 = vpack.c.bf16 %v4768, %v4768
      %v4774 = vlaneseq
      %v4775 = vshrl.u32 %v4774, 7
      %v4776 = vsub.s32 0, %v4775
      %v4777 = vrot.slane %v4500, %v4776
      %v4843 = vunpack.c.l.b16 %v4436
      %v4844 = vunpack.c.l.b16 %v4437
      %v4845 = vunpack.c.l.b16 %v4438
      %v4846 = vunpack.c.l.b16 %v4439
      %v4847 = vunpack.c.l.b16 %v4440
      %v4848 = vunpack.c.l.b16 %v4441
      %v4849 = vunpack.c.l.b16 %v4442
      %v4850 = vunpack.c.l.b16 %v4443
      %v4851 = vunpack.c.l.b16 %v4444
      %v4852 = vunpack.c.l.b16 %v4445
      %v4853 = vunpack.c.l.b16 %v4446
      %v4854 = vunpack.c.l.b16 %v4447
      %v4855 = vunpack.c.l.b16 %v4448
      %v4856 = vunpack.c.l.b16 %v4449
      %v4857 = vunpack.c.l.b16 %v4450
      %v4858 = vunpack.c.l.b16 %v4451
      %v4859 = vunpack.c.l.b16 %v4452
      %v4860 = vunpack.c.l.b16 %v4453
      %v4861 = vunpack.c.l.b16 %v4454
      %v4862 = vunpack.c.l.b16 %v4455
      %v4863 = vunpack.c.l.b16 %v4456
      %v4864 = vunpack.c.l.b16 %v4457
      %v4865 = vunpack.c.l.b16 %v4458
      %v4866 = vunpack.c.l.b16 %v4459
      %v4867 = vunpack.c.l.b16 %v4460
      %v4868 = vunpack.c.l.b16 %v4461
      %v4869 = vunpack.c.l.b16 %v4462
      %v4870 = vunpack.c.l.b16 %v4463
      %v4871 = vunpack.c.l.b16 %v4464
      %v4872 = vunpack.c.l.b16 %v4465
      %v4873 = vunpack.c.l.b16 %v4466
      %v4874 = vunpack.c.l.b16 %v4467
      %v4875 = vunpack.c.l.b16 %v4468
      %v4876 = vunpack.c.l.b16 %v4469
      %v4877 = vunpack.c.l.b16 %v4470
      %v4878 = vunpack.c.l.b16 %v4471
      %v4879 = vunpack.c.l.b16 %v4472
      %v4880 = vunpack.c.l.b16 %v4473
      %v4881 = vunpack.c.l.b16 %v4474
      %v4882 = vunpack.c.l.b16 %v4475
      %v4883 = vunpack.c.l.b16 %v4476
      %v4884 = vunpack.c.l.b16 %v4477
      %v4885 = vunpack.c.l.b16 %v4478
      %v4886 = vunpack.c.l.b16 %v4479
      %v4887 = vunpack.c.l.b16 %v4480
      %v4888 = vunpack.c.l.b16 %v4481
      %v4889 = vunpack.c.l.b16 %v4482
      %v4890 = vunpack.c.l.b16 %v4483
      %v4891 = vunpack.c.l.b16 %v4484
      %v4892 = vunpack.c.l.b16 %v4485
      %v4893 = vunpack.c.l.b16 %v4486
      %v4894 = vunpack.c.l.b16 %v4487
      %v4895 = vunpack.c.l.b16 %v4488
      %v4896 = vunpack.c.l.b16 %v4489
      %v4897 = vunpack.c.l.b16 %v4490
      %v4898 = vunpack.c.l.b16 %v4491
      %v4899 = vunpack.c.l.b16 %v4492
      %v4900 = vunpack.c.l.b16 %v4493
      %v4901 = vunpack.c.l.b16 %v4494
      %v4902 = vunpack.c.l.b16 %v4495
      %v4903 = vunpack.c.l.b16 %v4496
      %v4904 = vunpack.c.l.b16 %v4497
      %v4905 = vunpack.c.l.b16 %v4498
      %v4906 = vunpack.c.l.b16 %v4499
      %v4907 = vpack.c.b16 %v4844, %v4843
      %v4908 = vpack.c.b16 %v4846, %v4845
      %v4909 = vpack.c.b16 %v4848, %v4847
      %v4910 = vpack.c.b16 %v4850, %v4849
      %v4911 = vpack.c.b16 %v4852, %v4851
      %v4912 = vpack.c.b16 %v4854, %v4853
      %v4913 = vpack.c.b16 %v4856, %v4855
      %v4914 = vpack.c.b16 %v4858, %v4857
      %v4915 = vpack.c.b16 %v4860, %v4859
      %v4916 = vpack.c.b16 %v4862, %v4861
      %v4917 = vpack.c.b16 %v4864, %v4863
      %v4918 = vpack.c.b16 %v4866, %v4865
      %v4919 = vpack.c.b16 %v4868, %v4867
      %v4920 = vpack.c.b16 %v4870, %v4869
      %v4921 = vpack.c.b16 %v4872, %v4871
      %v4922 = vpack.c.b16 %v4874, %v4873
      %v4923 = vpack.c.b16 %v4876, %v4875
      %v4924 = vpack.c.b16 %v4878, %v4877
      %v4925 = vpack.c.b16 %v4880, %v4879
      %v4926 = vpack.c.b16 %v4882, %v4881
      %v4927 = vpack.c.b16 %v4884, %v4883
      %v4928 = vpack.c.b16 %v4886, %v4885
      %v4929 = vpack.c.b16 %v4888, %v4887
      %v4930 = vpack.c.b16 %v4890, %v4889
      %v4931 = vpack.c.b16 %v4892, %v4891
      %v4932 = vpack.c.b16 %v4894, %v4893
      %v4933 = vpack.c.b16 %v4896, %v4895
      %v4934 = vpack.c.b16 %v4898, %v4897
      %v4935 = vpack.c.b16 %v4900, %v4899
      %v4936 = vpack.c.b16 %v4902, %v4901
      %v4937 = vpack.c.b16 %v4904, %v4903
      %v4938 = vpack.c.b16 %v4906, %v4905
      %4971 = vmatprep.subr.bf16.mxu0 0
      %4972 = vmatpush1.bf16.msra.mxu0 %v4907
      %4973 = vmatprep.subr.bf16.mxu0 0
      %4974 = vmatpush1.bf16.msra.mxu0 %v4908
      %4975 = vmatprep.subr.bf16.mxu0 0
      %4976 = vmatpush1.bf16.msra.mxu0 %v4909
      %4977 = vmatprep.subr.bf16.mxu0 0
      %4978 = vmatpush1.bf16.msra.mxu0 %v4910
      %4979 = vmatprep.subr.bf16.mxu0 0
      %4980 = vmatpush1.bf16.msra.mxu0 %v4911
      %4981 = vmatprep.subr.bf16.mxu0 0
      %4982 = vmatpush1.bf16.msra.mxu0 %v4912
      %4983 = vmatprep.subr.bf16.mxu0 0
      %4984 = vmatpush1.bf16.msra.mxu0 %v4913
      %4985 = vmatprep.subr.bf16.mxu0 0
      %4986 = vmatpush1.bf16.msra.mxu0 %v4914
      %4987 = vmatprep.subr.bf16.mxu0 0
      %4988 = vmatpush1.bf16.msra.mxu0 %v4915
      %4989 = vmatprep.subr.bf16.mxu0 0
      %4990 = vmatpush1.bf16.msra.mxu0 %v4916
      %4991 = vmatprep.subr.bf16.mxu0 0
      %4992 = vmatpush1.bf16.msra.mxu0 %v4917
      %4993 = vmatprep.subr.bf16.mxu0 0
      %4994 = vmatpush1.bf16.msra.mxu0 %v4918
      %4995 = vmatprep.subr.bf16.mxu0 0
      %4996 = vmatpush1.bf16.msra.mxu0 %v4919
      %4997 = vmatprep.subr.bf16.mxu0 0
      %4998 = vmatpush1.bf16.msra.mxu0 %v4920
      %4999 = vmatprep.subr.bf16.mxu0 0
      %5000 = vmatpush1.bf16.msra.mxu0 %v4921
      %5001 = vmatprep.subr.bf16.mxu0 0
      %5002 = vmatpush1.bf16.msra.mxu0 %v4922
      %5003 = vmatprep.mubr.bf16.mxu0 %v4770
      %5004 = vmatmul.mubr.bf16.gmra.mrb[0].mxu0 %v4769
      %v5005 = vpop.f32.mrb[0].mxu0
      %v5006 = vadd.f32 %v4777, %v5005
      %v5007 = vpop.f32.mrb[0].mxu0
      %v5008 = vpop.f32.mrb[0].mxu0
      %v5009 = vpop.f32.mrb[0].mxu0
      %5010 = vdwg.mxu0
      %5011 = vmatprep.subr.bf16.mxu0 0
      %5012 = vmatpush1.bf16.msra.mxu0 %v4923
      %5013 = vmatprep.subr.bf16.mxu0 0
      %5014 = vmatpush1.bf16.msra.mxu0 %v4924
      %5015 = vmatprep.subr.bf16.mxu0 0
      %5016 = vmatpush1.bf16.msra.mxu0 %v4925
      %5017 = vmatprep.subr.bf16.mxu0 0
      %5018 = vmatpush1.bf16.msra.mxu0 %v4926
      %5019 = vmatprep.subr.bf16.mxu0 0
      %5020 = vmatpush1.bf16.msra.mxu0 %v4927
      %5021 = vmatprep.subr.bf16.mxu0 0
      %5022 = vmatpush1.bf16.msra.mxu0 %v4928
      %5023 = vmatprep.subr.bf16.mxu0 0
      %5024 = vmatpush1.bf16.msra.mxu0 %v4929
      %5025 = vmatprep.subr.bf16.mxu0 0
      %5026 = vmatpush1.bf16.msra.mxu0 %v4930
      %5027 = vmatprep.subr.bf16.mxu0 0
      %5028 = vmatpush1.bf16.msra.mxu0 %v4931
      %5029 = vmatprep.subr.bf16.mxu0 0
      %5030 = vmatpush1.bf16.msra.mxu0 %v4932
      %5031 = vmatprep.subr.bf16.mxu0 0
      %5032 = vmatpush1.bf16.msra.mxu0 %v4933
      %5033 = vmatprep.subr.bf16.mxu0 0
      %5034 = vmatpush1.bf16.msra.mxu0 %v4934
      %5035 = vmatprep.subr.bf16.mxu0 0
      %5036 = vmatpush1.bf16.msra.mxu0 %v4935
      %5037 = vmatprep.subr.bf16.mxu0 0
      %5038 = vmatpush1.bf16.msra.mxu0 %v4936
      %5039 = vmatprep.subr.bf16.mxu0 0
      %5040 = vmatpush1.bf16.msra.mxu0 %v4937
      %5041 = vmatprep.subr.bf16.mxu0 0
      %5042 = vmatpush1.bf16.msra.mxu0 %v4938
      %5043 = vmatprep.mubr.bf16.mxu0 %v4772
      %5044 = vmatmul.mubr.bf16.gmra.mrb[0].mxu0 %v4771
      %v5045 = vpop.f32.mrb[0].mxu0
      %v5046 = vadd.f32 %v5006, %v5045
      %v5047 = vpop.f32.mrb[0].mxu0
      %v5048 = vpop.f32.mrb[0].mxu0
      %v5049 = vpop.f32.mrb[0].mxu0
      %5050 = vdwg.mxu0
      %v5051 = vadd.f32 %v4402, %v5046
      %v5052 = vld [vmem:[%s13] sm:$0x1]
      %v5053 = vld [vmem:[%s14] sm:$0x1]
      %5054 = vadd.xlane.f32.xlu0 %v5051
      %v5055 = vpop.xlane.xlu0 %5054
      %v5056 = vmul.f32 %v5055, %v2431
      %v5057 = vsub.f32 %v5051, %v5056
      %v5058 = vmul.f32 %v5057, %v5057
      %5059 = vadd.xlane.f32.xlu0 %v5058
      %v5060 = vpop.xlane.xlu0 %5059
      %v5061 = vmul.f32 %v5060, %v2431
      %v5062 = vadd.f32 %v5061, 1e-05
      %v5063 = vrsqrt.pop %v5062
      %v5064 = vmul.f32 %v5057, %v5063
      %v5066 = vlaneseq
      %v5067 = vshrl.u32 %v5066, 7
      %v5068 = vsub.s32 0, %v5067
      %v5069 = vrot.slane %v5052, %v5068
      %v5071 = vmul.f32 %v5064, %v5069
      %v5073 = vlaneseq
      %v5074 = vshrl.u32 %v5073, 7
      %v5075 = vsub.s32 0, %v5074
      %v5076 = vrot.slane %v5053, %v5075
      %v5078 = vadd.f32 %v5071, %v5076
      %5079 = vst [vmem:[%s489] sm:$0xff] %v5078
      %p5080 = scmp.lt.s32.totalorder %s26, 1
      %s5081 = scalar_select %p5080, %s26, 1
      %s5082 = smul.addr %s5081, 8
      %s5083 = scalar_lea.vmem %s15, %s5082
      // Predicated region
      $region81: #{transformer_forward.2} parent=79 // pred_check
        %p5084 = pneg %p364
      $region82: #{transformer_forward.2} parent=79 // pred_check_branch
        %5086 = sbr.rel (%p5084) target = $region84
      $region83: #{transformer_forward.2} parent=79 // pred_region
        _
      $region84: #{transformer_forward.2} parent=79 // pred_fallthru
        _
    $region80: #{transformer_forward.2} parent=5 // pred_fallthru
      _
    %p5087 = scmp.le.s32.totalorder 2, %s21
    // Predicated region
    $region85: #{transformer_forward.2} parent=5 // pred_check
      %p5088 = pneg %p5087
    $region86: #{transformer_forward.2} parent=5 // pred_check_branch
      %5090 = sbr.rel (%p5088) target = $region88
    $region87: #{transformer_forward.2} parent=5 // pred_region
      %s5091 = ssub.s32 %s21, 2
      // Predicated region
      $region89: #{transformer_forward.2} parent=87 // pred_check
        %p5092 = pneg %p370
      $region90: #{transformer_forward.2} parent=87 // pred_check_branch
        %5094 = sbr.rel (%p5092) target = $region92
      $region91: #{transformer_forward.2} parent=87 // pred_region
        %p5095 = scmp.lt.s32.totalorder %s27, 1
        %s5096 = scalar_select %p5095, %s27, 1
        %s5097 = smul.addr %s5096, 8
        %s5098 = scalar_lea.vmem %s15, %s5097
      $region92: #{transformer_forward.2} parent=87 // pred_fallthru
        _
    $region88: #{transformer_forward.2} parent=5 // pred_fallthru
      _
  $region6: #{transformer_forward.2} parent=0 // loop_footer
    %s25 = sadd.s32 1, %s21
  $region7: #{transformer_forward.2} parent=0 // loop_footer_branch
    %20 = sbr.rel target = $region3
  $region8: #{transformer_forward.2} parent=0 // loop_exit
    _

</llo_original>
